<compile_context>
chip_gen: v6e
topology: v6e:2x2x1
jax: 0.10.0
libtpu: 0.0.40
codegen_flags: <defaults>
</compile_context>

<pallas_src>
import functools

import jax
import jax.numpy as jnp
from jax.experimental import pallas as pl
from jax.experimental.pallas import tpu as pltpu


# ------------------------------ Pallas kernels --------------------------------

def _subconv_kernel(x_ref, m_ref, e_ref, w_ref, *rest, k, p, res_mode):
    """Fused submanifold conv in the lane-packed W*C layout.

    x_ref : (1, D, H, W*Cin)       f32  un-padded packed input
    m_ref : (1, D, H, W)           f32  per-site active mask (not broadcast over C)
    e_ref : (W, W*Cout)            bf16 0/1 lane-expansion matrix for the mask
    w_ref : (k, k, W*Cin, W*Cout)  bf16 banded weights (kw tap + W boundary folded)
    rest  : res_mode 0 -> (o_ref, shift_ref)
            res_mode 1 -> (r_ref, o_ref, shift_ref)           identity shortcut
            res_mode 2 -> (r_ref, rw_ref, o_ref, shift_ref)   NIN shortcut
    out   = mask * (conv_k(relu(x)) [+ shortcut])
    """
    if res_mode == 0:
        o_ref, shift_ref = rest
        r_ref = rw_ref = None
    elif res_mode == 1:
        r_ref, o_ref, shift_ref = rest
        rw_ref = None
    else:
        r_ref, rw_ref, o_ref, shift_ref = rest

    _, D, H, Lin = x_ref.shape
    W, Lout = e_ref.shape

    # LeakyReLU(0) once; cast to bf16 for the MXU (accumulation stays f32).
    xr = jnp.maximum(x_ref[0], 0.0).astype(jnp.bfloat16)         # (D, H, Lin)

    # Build k depth-padded, height-shifted bf16 copies so every (kd, kh) tap
    # below is a contiguous leading-dim slice (no per-tap relayout copy).
    shift_ref[...] = jnp.zeros(shift_ref.shape, shift_ref.dtype)
    for kh in range(k):
        lo = max(0, p - kh)
        hi = min(H, H + p - kh)
        src = lo + kh - p
        shift_ref[kh, p:p + D, lo:hi, :] = xr[:, src:src + (hi - lo), :]

    acc = None                                                    # (D*H, Lout) f32
    for kd in range(k):
        for kh in range(k):
            lhs = shift_ref[kh, kd:kd + D, :, :].reshape(D * H, Lin)
            y = jnp.dot(lhs, w_ref[kd, kh], preferred_element_type=jnp.float32)
            acc = y if acc is None else acc + y

    if res_mode == 1:                                             # identity shortcut
        acc = acc + r_ref[0].reshape(D * H, Lout)
    elif res_mode == 2:                                           # 1x1x1 NIN shortcut
        rr = r_ref[0].astype(jnp.bfloat16).reshape(D * H, r_ref.shape[3])
        acc = acc + jnp.dot(rr, rw_ref[...], preferred_element_type=jnp.float32)

    # Expand the per-site mask over Cout lanes with a tiny 0/1 matmul (exact),
    # instead of DMAing a pre-broadcast (W*Cout)-wide mask from HBM.
    m2 = m_ref[0].astype(jnp.bfloat16).reshape(D * H, W)
    mexp = jnp.dot(m2, e_ref[...], preferred_element_type=jnp.float32)
    o_ref[0] = (acc * mexp).reshape(D, H, Lout)


def _relu_maxpool_kernel(x_ref, o_ref, *, W, C):
    # x_ref: (1, 2, Hh, 2, W*C)  ->  o_ref: (1, Hh, (W//2)*C)   (packed layout)
    v = x_ref[0]                                   # (2, Hh, 2, W*C)
    v = jnp.maximum(v[0], v[1])                    # depth pair   -> (Hh, 2, W*C)
    v = jnp.maximum(v[:, 0, :], v[:, 1, :])        # height pair  -> (Hh, W*C)
    Hh = v.shape[0]
    v = jnp.max(v.reshape(Hh, W // 2, 2, C), axis=2)              # width pair
    o_ref[0] = jnp.maximum(v.reshape(Hh, (W // 2) * C), 0.0)      # LeakyReLU(0)


def _zcombiner_kernel(x_ref, w_ref, b_ref, o_ref):
    # x_ref: (1, Dz, th, L); w_ref: (Dz, 1, L); b_ref: (1, 1, L)   (L = W*C packed)
    x = x_ref[0]                                   # (Dz, th, L)
    acc = x[0] * w_ref[0]
    for dd in range(1, x.shape[0]):
        acc = acc + x[dd] * w_ref[dd]
    o_ref[0] = jnp.maximum(acc + b_ref[0], 0.0)    # + bias, LeakyReLU(0)


# ----------------------------- kernel wrappers --------------------------------

def subconv(x_pack, mask, e_mat, w_banded, *, k, res_mode, residual=None,
            res_w=None):
    N, D, H, Lin = x_pack.shape
    W, Lout = e_mat.shape
    p = (k - 1) // 2
    kern = functools.partial(_subconv_kernel, k=k, p=p, res_mode=res_mode)
    in_specs = [
        pl.BlockSpec((1, D, H, Lin), lambda n: (n, 0, 0, 0)),
        pl.BlockSpec((1, D, H, W), lambda n: (n, 0, 0, 0)),
        pl.BlockSpec((W, Lout), lambda n: (0, 0)),
        pl.BlockSpec((k, k, Lin, Lout), lambda n: (0, 0, 0, 0)),
    ]
    args = [x_pack, mask, e_mat, w_banded]
    if res_mode >= 1:
        in_specs.append(pl.BlockSpec((1, D, H, residual.shape[3]),
                                     lambda n: (n, 0, 0, 0)))
        args.append(residual)
    if res_mode == 2:
        in_specs.append(pl.BlockSpec(res_w.shape, lambda n: (0, 0)))
        args.append(res_w)
    # TODO(synk): add a D-halo grid axis (manual async copies) for large D /
    # v7x so the pipeline has more than N steps and both TensorCores get work.
    return pl.pallas_call(
        kern,
        out_shape=jax.ShapeDtypeStruct((N, D, H, Lout), jnp.float32),
        grid=(N,),
        in_specs=in_specs,
        out_specs=pl.BlockSpec((1, D, H, Lout), lambda n: (n, 0, 0, 0)),
        scratch_shapes=[pltpu.VMEM((k, D + 2 * p, H, Lin), jnp.bfloat16)],
        compiler_params=pltpu.CompilerParams(dimension_semantics=("parallel",)),
    )(*args)


def relu_maxpool2(x_pack, *, W, C):
    """scn.LeakyReLU(0) + scn.MaxPooling(2,2,2), fused, packed W*C layout."""
    N, D, H, L = x_pack.shape
    assert L == W * C and D % 2 == 0 and H % 2 == 0 and W % 2 == 0
    x5 = x_pack.reshape(N * (D // 2), 2, H // 2, 2, L)   # free metadata reshape
    kern = functools.partial(_relu_maxpool_kernel, W=W, C=C)
    out = pl.pallas_call(
        kern,
        out_shape=jax.ShapeDtypeStruct((N * (D // 2), H // 2, (W // 2) * C),
                                       jnp.float32),
        grid=(N * (D // 2),),
        in_specs=[pl.BlockSpec((1, 2, H // 2, 2, L), lambda i: (i, 0, 0, 0, 0))],
        out_specs=pl.BlockSpec((1, H // 2, (W // 2) * C), lambda i: (i, 0, 0)),
        compiler_params=pltpu.CompilerParams(dimension_semantics=("parallel",)),
    )(x5)
    return out.reshape(N, D // 2, H // 2, (W // 2) * C)


def z_combiner(x_pack, w_exp, b_exp):
    """nn.Conv3d(C, C, (8,1,1), groups=C) + bias + LeakyReLU(0), packed layout."""
    N, Dz, Hf, L = x_pack.shape
    assert Dz == w_exp.shape[0], "z_combiner consumes exactly the Conv3d depth"
    th = Hf
    # largest H tile that keeps the input block under ~8 MiB (memory-bound op)
    while th % 2 == 0 and Dz * th * L * 4 > (8 << 20):
        th //= 2
    return pl.pallas_call(
        _zcombiner_kernel,
        out_shape=jax.ShapeDtypeStruct((N, Hf, L), jnp.float32),
        grid=(N, Hf // th),
        in_specs=[
            pl.BlockSpec((1, Dz, th, L), lambda n, hb: (n, 0, hb, 0)),
            pl.BlockSpec((Dz, 1, L), lambda n, hb: (0, 0, 0)),
            pl.BlockSpec((1, 1, L), lambda n, hb: (0, 0, 0)),
        ],
        out_specs=pl.BlockSpec((1, th, L), lambda n, hb: (n, hb, 0)),
        compiler_params=pltpu.CompilerParams(
            dimension_semantics=("parallel", "parallel")),
    )(x_pack, w_exp, b_exp)


# ------------------------------- JAX glue -------------------------------------

def banded_conv_weight(w_k3, k, W):
    """Fold the kw tap, channel contraction and the W 'same' boundary into
    (k, k, W*Cin, W*Cout) banded bf16 matrices (one per (kd, kh) tap)."""
    cin, cout = w_k3.shape[1], w_k3.shape[2]
    p = (k - 1) // 2
    w = w_k3.reshape(k, k, k, cin, cout)
    rows = []
    for kd in range(k):
        cols = []
        for kh in range(k):
            acc = jnp.zeros((W * cin, W * cout), jnp.float32)
            for kw in range(k):
                shift = jnp.eye(W, W, k=p - kw, dtype=jnp.float32)
                acc = acc + jnp.kron(shift, w[kd, kh, kw])
            cols.append(acc)
        rows.append(jnp.stack(cols))
    return jnp.stack(rows).astype(jnp.bfloat16)


def precompute(params, spatial_shape):
    """Hoist all per-parameter-set constants (banded conv weights, NIN bands,
    mask-expansion matrices, W-tiled z-combiner weights) out of the forward."""
    _, _, W = spatial_shape
    pre = {"blocks": []}
    Wb = W
    for bi, layers in enumerate(params["blocks"]):
        if bi > 0:
            Wb //= 2
        cout = layers[0]["conv1"].shape[-1]
        e_mat = jnp.kron(jnp.eye(Wb, dtype=jnp.float32),
                         jnp.ones((1, cout), jnp.float32)).astype(jnp.bfloat16)
        lpre = []
        for layer in layers:
            k = layer["kernel_size"]
            nin_b = None
            if layer["nin"] is not None:
                nin_b = jnp.kron(jnp.eye(Wb, dtype=jnp.float32),
                                 layer["nin"]).astype(jnp.bfloat16)
            lpre.append({
                "k": k,
                "w1b": banded_conv_weight(layer["conv1"], k, Wb),
                "w2b": banded_conv_weight(layer["conv2"], k, Wb),
                "nin_b": nin_b,
            })
        pre["blocks"].append({"e": e_mat, "layers": lpre, "cout": cout})
    # depthwise z-combiner weights, tiled over the final W (lane-dense packed)
    Wf = Wb // 2
    Dz, C = params["z_w"].shape
    pre["z_w"] = jnp.broadcast_to(params["z_w"][:, None, :],
                                  (Dz, Wf, C)).reshape(Dz, 1, Wf * C)
    pre["z_b"] = jnp.broadcast_to(params["z_b"][None, :],
                                  (Wf, C)).reshape(1, 1, Wf * C)
    return pre


def residual_layer(x_pack, mask, e_mat, lp):
    """scn ConcatTable(Identity|NIN, ReLU->SubConv->ReLU->SubConv) + AddTable."""
    k = lp["k"]
    t1 = subconv(x_pack, mask, e_mat, lp["w1b"], k=k, res_mode=0)
    if lp["nin_b"] is None:
        return subconv(t1, mask, e_mat, lp["w2b"], k=k, res_mode=1,
                       residual=x_pack)
    return subconv(t1, mask, e_mat, lp["w2b"], k=k, res_mode=2,
                   residual=x_pack, res_w=lp["nin_b"])


def init_params(key, blocks, layers_per_block, in_channels=1):
    keys = iter(jax.random.split(key, 1024))

    def conv_w(k3, cin, cout):
        std = 1.0 / jnp.sqrt(float(k3 * cin))
        return jax.random.normal(next(keys), (k3, cin, cout), jnp.float32) * std

    params = {"blocks": []}
    prev = in_channels
    for cout, ksize in blocks:
        a = prev
        layers = []
        for _ in range(layers_per_block):
            layers.append({
                "kernel_size": ksize,
                "nin": None if a == cout else conv_w(1, a, cout).reshape(a, cout),
                "conv1": conv_w(ksize ** 3, a, cout),
                "conv2": conv_w(ksize ** 3, cout, cout),
            })
            a = cout
        params["blocks"].append(layers)
        prev = cout
    # z_combiner: depthwise Conv3d(prev, prev, (8,1,1), groups=prev) with bias
    params["z_w"] = jax.random.normal(next(keys), (8, prev), jnp.float32) / jnp.sqrt(8.0)
    params["z_b"] = jax.random.normal(next(keys), (prev,), jnp.float32) * 0.05
    return params


def pyramid_forward(params, pre, voxel_features, coors, batch_size, spatial_shape):
    """coors: (n_vox, 4) int32 with columns (batch, d, h, w) — matches the torch
    module, which permutes [:, [1,2,3,0]] before scn.InputLayer."""
    del params  # all per-parameter constants are in `pre`
    N = batch_size
    D, H, W = spatial_shape
    Cin = voxel_features.shape[1]
    cb, cd, ch, cw = coors[:, 0], coors[:, 1], coors[:, 2], coors[:, 3]

    x = jnp.zeros((N, D, H, W, Cin), jnp.float32).at[cb, cd, ch, cw, :].set(
        voxel_features)
    x = x.reshape(N, D, H, W * Cin)                      # lane-packed layout
    C = Cin

    for bi, blk in enumerate(pre["blocks"]):
        if bi > 0:
            # block_models[1:-1] prefix: scn.LeakyReLU(0) + MaxPooling(2,2,2)
            x = relu_maxpool2(x, W=W, C=C)
            D, H, W = D // 2, H // 2, W // 2
        # active-site mask at this scale, straight from the voxel coordinates
        mask = jnp.zeros((N, D, H, W), jnp.float32).at[
            cb, cd >> bi, ch >> bi, cw >> bi].set(1.0)
        for lp in blk["layers"]:
            x = residual_layer(x, mask, blk["e"], lp)
        C = blk["cout"]

    x = relu_maxpool2(x, W=W, C=C)                       # block_models[-1]
    D, H, W = D // 2, H // 2, W // 2

    # sparse_to_dense is implicit (zeros at inactive sites); depthwise combiner
    out = z_combiner(x, pre["z_w"], pre["z_b"])          # (N, H, W*C)
    # torch: (N, C, 1, H, W).view(N, C, H, W)  ->  NCHW
    return out.reshape(N, H, W, C).transpose(0, 3, 1, 2)


# --------------------- pure-JAX reference (dense equivalent) ------------------

def _ref_subconv(x, w_k3, k):
    cin, cout = w_k3.shape[1], w_k3.shape[2]
    w = w_k3.reshape(k, k, k, cin, cout)
    return jax.lax.conv_general_dilated(
        x, w, window_strides=(1, 1, 1), padding="SAME",
        dimension_numbers=("NDHWC", "DHWIO", "NDHWC"))


def _ref_pool(x):
    n, dd, hh, ww, cc = x.shape
    x = jnp.maximum(x, 0.0)
    return x.reshape(n, dd // 2, 2, hh // 2, 2, ww // 2, 2, cc).max(axis=(2, 4, 6))


def ref_forward(params, voxel_features, coors, batch_size, spatial_shape):
    N = batch_size
    D, H, W = spatial_shape
    Cin = voxel_features.shape[1]
    cb, cd, ch, cw = coors[:, 0], coors[:, 1], coors[:, 2], coors[:, 3]
    x = jnp.zeros((N, D, H, W, Cin), jnp.float32).at[cb, cd, ch, cw, :].set(
        voxel_features)
    for bi, layers in enumerate(params["blocks"]):
        if bi > 0:
            x = _ref_pool(x)
        n, dd, hh, ww, _ = x.shape
        mask = jnp.zeros((n, dd, hh, ww, 1), jnp.float32).at[
            cb, cd >> bi, ch >> bi, cw >> bi, :].set(1.0)
        for layer in layers:
            k = layer["kernel_size"]
            t1 = mask * _ref_subconv(jnp.maximum(x, 0.0), layer["conv1"], k)
            t2 = _ref_subconv(jnp.maximum(t1, 0.0), layer["conv2"], k)
            short = x if layer["nin"] is None else jnp.einsum(
                "ndhwc,cf->ndhwf", x, layer["nin"])
            x = mask * (t2 + short)
    x = _ref_pool(x)
    y = jnp.einsum("ndhwc,dc->nhwc", x, params["z_w"]) + params["z_b"]
    return jnp.maximum(y, 0.0).transpose(0, 3, 1, 2)


if __name__ == "__main__":
    key = jax.random.PRNGKey(0)

    # Small configuration consistent with the module's constructor signature.
    blocks = [(8, 3), (16, 3)]          # (num_filters, kernel_size)
    layers_per_block = 2
    batch_size = 2
    D, H, W = 32, 16, 16                # two /2 downsamples -> final depth = 8

    k_params, k_feat, k_coor = jax.random.split(key, 3)
    params = init_params(k_params, blocks, layers_per_block, in_channels=1)
    pre = precompute(params, (D, H, W))   # hoisted: built once per parameter set

    # deterministic, unique active voxel coordinates per batch element
    n_per_batch = 40
    coors_list = []
    for bidx in range(batch_size):
        kb = jax.random.fold_in(k_coor, bidx)
        flat = jax.random.permutation(kb, D * H * W)[:n_per_batch]
        dd = (flat // (H * W)).astype(jnp.int32)
        hh = ((flat // W) % H).astype(jnp.int32)
        ww = (flat % W).astype(jnp.int32)
        bb = jnp.full((n_per_batch,), bidx, jnp.int32)
        coors_list.append(jnp.stack([bb, dd, hh, ww], axis=1))
    coors = jnp.concatenate(coors_list, axis=0)
    voxel_features = jax.random.normal(k_feat, (coors.shape[0], 1), jnp.float32)

    out = pyramid_forward(params, pre, voxel_features, coors, batch_size, (D, H, W))
    out = jax.block_until_ready(out)

    assert out.shape == (batch_size, blocks[-1][0], H // 4, W // 4), out.shape
    assert bool(jnp.all(jnp.isfinite(out)))

    # tolerance check against the pure-JAX dense-equivalent reference
    # (loose because MXU inputs are bf16 with f32 accumulation)
    ref = ref_forward(params, voxel_features, coors, batch_size, (D, H, W))
    err = float(jnp.max(jnp.abs(out - ref)))
    scale = float(jnp.max(jnp.abs(ref)))
    assert err <= 5e-2 * max(1.0, scale), (err, scale)

    print("KERNEL_OK")
</pallas_src>

<mosaic_0001>
module attributes {stable_mosaic.version = 11 : i64} {
  func.func @_subconv_kernel(%arg0: i32, %arg1: memref<1x32x16x16xf32, #tpu.memory_space<vmem>>, %arg2: memref<1x32x16x16xf32, #tpu.memory_space<vmem>>, %arg3: memref<16x128xbf16, #tpu.memory_space<vmem>>, %arg4: memref<3x3x16x128xbf16, #tpu.memory_space<vmem>>, %arg5: memref<1x32x16x128xf32, #tpu.memory_space<vmem>>, %arg6: memref<3x34x16x16xbf16, #tpu.memory_space<vmem>>) attributes {dimension_semantics = [#tpu.dimension_semantics<parallel>], iteration_bounds = array<i64: 2>, scalar_prefetch = 0 : i64, scratch_operands = 1 : i64, tpu.core_type = #tpu.core_type<tc>, window_params = [{transform_indices = @transform_0, window_bounds = array<i64: 1, 32, 16, 16>}, {transform_indices = @transform_1, window_bounds = array<i64: 1, 32, 16, 16>}, {pipeline_mode = #tpu.pipeline_mode<synchronous>, transform_indices = @transform_2, window_bounds = array<i64: 16, 128>}, {pipeline_mode = #tpu.pipeline_mode<synchronous>, transform_indices = @transform_3, window_bounds = array<i64: 3, 3, 16, 128>}, {transform_indices = @transform_4, window_bounds = array<i64: 1, 32, 16, 128>}]} {
    %c0 = arith.constant 0 : index
    %c0_0 = arith.constant 0 : index
    %c0_1 = arith.constant 0 : index
    %c0_2 = arith.constant 0 : index
    %0 = vector.load %arg1[%c0, %c0_0, %c0_1, %c0_2] : memref<1x32x16x16xf32, #tpu.memory_space<vmem>>, vector<1x32x16x16xf32>
    %1 = vector.shape_cast %0 : vector<1x32x16x16xf32> to vector<32x16x16xf32>
    %cst = arith.constant 0.000000e+00 : f32
    %2 = vector.broadcast %cst : f32 to vector<32x16x16xf32>
    %3 = arith.maximumf %1, %2 : vector<32x16x16xf32>
    %4 = arith.truncf %3 : vector<32x16x16xf32> to vector<32x16x16xbf16>
    %cst_3 = arith.constant 0.000000e+00 : bf16
    %5 = vector.broadcast %cst_3 : bf16 to vector<3x34x16x16xbf16>
    %c0_4 = arith.constant 0 : index
    %c0_5 = arith.constant 0 : index
    %c0_6 = arith.constant 0 : index
    %c0_7 = arith.constant 0 : index
    %6 = vector.load %arg6[%c0_4, %c0_5, %c0_6, %c0_7] : memref<3x34x16x16xbf16, #tpu.memory_space<vmem>>, vector<3x34x16x16xbf16>
    tpu.vector_store %arg6[%c0_4, %c0_5, %c0_6, %c0_7], %5 {strides = array<i32>} : memref<3x34x16x16xbf16, #tpu.memory_space<vmem>>, vector<3x34x16x16xbf16>,
    %7 = vector.extract_strided_slice %4 {offsets = [0, 0, 0], sizes = [32, 15, 16], strides = [1, 1, 1]} : vector<32x16x16xbf16> to vector<32x15x16xbf16>
    %c0_8 = arith.constant 0 : index
    %c1 = arith.constant 1 : index
    %c1_9 = arith.constant 1 : index
    %c0_10 = arith.constant 0 : index
    %8 = vector.load %arg6[%c0_8, %c1, %c1_9, %c0_10] : memref<3x34x16x16xbf16, #tpu.memory_space<vmem>>, vector<1x32x15x16xbf16>
    %9 = vector.shape_cast %8 : vector<1x32x15x16xbf16> to vector<32x15x16xbf16>
    %10 = vector.shape_cast %7 : vector<32x15x16xbf16> to vector<1x32x15x16xbf16>
    tpu.vector_store %arg6[%c0_8, %c1, %c1_9, %c0_10], %10 {strides = array<i32>} : memref<3x34x16x16xbf16, #tpu.memory_space<vmem>>, vector<1x32x15x16xbf16>,
    %c1_11 = arith.constant 1 : index
    %c1_12 = arith.constant 1 : index
    %c0_13 = arith.constant 0 : index
    %c0_14 = arith.constant 0 : index
    %11 = vector.load %arg6[%c1_11, %c1_12, %c0_13, %c0_14] : memref<3x34x16x16xbf16, #tpu.memory_space<vmem>>, vector<1x32x16x16xbf16>
    %12 = vector.shape_cast %11 : vector<1x32x16x16xbf16> to vector<32x16x16xbf16>
    %13 = vector.shape_cast %4 : vector<32x16x16xbf16> to vector<1x32x16x16xbf16>
    tpu.vector_store %arg6[%c1_11, %c1_12, %c0_13, %c0_14], %13 {strides = array<i32>} : memref<3x34x16x16xbf16, #tpu.memory_space<vmem>>, vector<1x32x16x16xbf16>,
    %14 = vector.extract_strided_slice %4 {offsets = [0, 1, 0], sizes = [32, 15, 16], strides = [1, 1, 1]} : vector<32x16x16xbf16> to vector<32x15x16xbf16>
    %c2 = arith.constant 2 : index
    %c1_15 = arith.constant 1 : index
    %c0_16 = arith.constant 0 : index
    %c0_17 = arith.constant 0 : index
    %15 = vector.load %arg6[%c2, %c1_15, %c0_16, %c0_17] : memref<3x34x16x16xbf16, #tpu.memory_space<vmem>>, vector<1x32x15x16xbf16>
    %16 = vector.shape_cast %15 : vector<1x32x15x16xbf16> to vector<32x15x16xbf16>
    %17 = vector.shape_cast %14 : vector<32x15x16xbf16> to vector<1x32x15x16xbf16>
    tpu.vector_store %arg6[%c2, %c1_15, %c0_16, %c0_17], %17 {strides = array<i32>} : memref<3x34x16x16xbf16, #tpu.memory_space<vmem>>, vector<1x32x15x16xbf16>,
    %c0_18 = arith.constant 0 : index
    %c0_19 = arith.constant 0 : index
    %c0_20 = arith.constant 0 : index
    %c0_21 = arith.constant 0 : index
    %18 = vector.load %arg6[%c0_18, %c0_19, %c0_20, %c0_21] : memref<3x34x16x16xbf16, #tpu.memory_space<vmem>>, vector<1x32x16x16xbf16>
    %19 = vector.shape_cast %18 : vector<1x32x16x16xbf16> to vector<32x16x16xbf16>
    %20 = vector.shape_cast %19 : vector<32x16x16xbf16> to vector<512x16xbf16>
    %c0_22 = arith.constant 0 : index
    %c0_23 = arith.constant 0 : index
    %c0_24 = arith.constant 0 : index
    %c0_25 = arith.constant 0 : index
    %21 = vector.load %arg4[%c0_22, %c0_23, %c0_24, %c0_25] : memref<3x3x16x128xbf16, #tpu.memory_space<vmem>>, vector<1x1x16x128xbf16>
    %22 = vector.shape_cast %21 : vector<1x1x16x128xbf16> to vector<16x128xbf16>
    %cst_26 = arith.constant dense<0.000000e+00> : vector<512x128xf32>
    %23 = tpu.matmul %20, %22, %cst_26 {dimension_numbers = #tpu.dot_dimension_numbers<[1], [0], [0], [1], [0, 0, 1, 1], [], []>} : vector<512x16xbf16>, vector<16x128xbf16>, vector<512x128xf32> -> vector<512x128xf32>
    %c1_27 = arith.constant 1 : index
    %c0_28 = arith.constant 0 : index
    %c0_29 = arith.constant 0 : index
    %c0_30 = arith.constant 0 : index
    %24 = vector.load %arg6[%c1_27, %c0_28, %c0_29, %c0_30] : memref<3x34x16x16xbf16, #tpu.memory_space<vmem>>, vector<1x32x16x16xbf16>
    %25 = vector.shape_cast %24 : vector<1x32x16x16xbf16> to vector<32x16x16xbf16>
    %26 = vector.shape_cast %25 : vector<32x16x16xbf16> to vector<512x16xbf16>
    %c0_31 = arith.constant 0 : index
    %c1_32 = arith.constant 1 : index
    %c0_33 = arith.constant 0 : index
    %c0_34 = arith.constant 0 : index
    %27 = vector.load %arg4[%c0_31, %c1_32, %c0_33, %c0_34] : memref<3x3x16x128xbf16, #tpu.memory_space<vmem>>, vector<1x1x16x128xbf16>
    %28 = vector.shape_cast %27 : vector<1x1x16x128xbf16> to vector<16x128xbf16>
    %cst_35 = arith.constant dense<0.000000e+00> : vector<512x128xf32>
    %29 = tpu.matmul %26, %28, %cst_35 {dimension_numbers = #tpu.dot_dimension_numbers<[1], [0], [0], [1], [0, 0, 1, 1], [], []>} : vector<512x16xbf16>, vector<16x128xbf16>, vector<512x128xf32> -> vector<512x128xf32>
    %30 = arith.addf %23, %29 : vector<512x128xf32>
    %c2_36 = arith.constant 2 : index
    %c0_37 = arith.constant 0 : index
    %c0_38 = arith.constant 0 : index
    %c0_39 = arith.constant 0 : index
    %31 = vector.load %arg6[%c2_36, %c0_37, %c0_38, %c0_39] : memref<3x34x16x16xbf16, #tpu.memory_space<vmem>>, vector<1x32x16x16xbf16>
    %32 = vector.shape_cast %31 : vector<1x32x16x16xbf16> to vector<32x16x16xbf16>
    %33 = vector.shape_cast %32 : vector<32x16x16xbf16> to vector<512x16xbf16>
    %c0_40 = arith.constant 0 : index
    %c2_41 = arith.constant 2 : index
    %c0_42 = arith.constant 0 : index
    %c0_43 = arith.constant 0 : index
    %34 = vector.load %arg4[%c0_40, %c2_41, %c0_42, %c0_43] : memref<3x3x16x128xbf16, #tpu.memory_space<vmem>>, vector<1x1x16x128xbf16>
    %35 = vector.shape_cast %34 : vector<1x1x16x128xbf16> to vector<16x128xbf16>
    %cst_44 = arith.constant dense<0.000000e+00> : vector<512x128xf32>
    %36 = tpu.matmul %33, %35, %cst_44 {dimension_numbers = #tpu.dot_dimension_numbers<[1], [0], [0], [1], [0, 0, 1, 1], [], []>} : vector<512x16xbf16>, vector<16x128xbf16>, vector<512x128xf32> -> vector<512x128xf32>
    %37 = arith.addf %30, %36 : vector<512x128xf32>
    %c0_45 = arith.constant 0 : index
    %c1_46 = arith.constant 1 : index
    %c0_47 = arith.constant 0 : index
    %c0_48 = arith.constant 0 : index
    %38 = vector.load %arg6[%c0_45, %c1_46, %c0_47, %c0_48] : memref<3x34x16x16xbf16, #tpu.memory_space<vmem>>, vector<1x32x16x16xbf16>
    %39 = vector.shape_cast %38 : vector<1x32x16x16xbf16> to vector<32x16x16xbf16>
    %40 = vector.shape_cast %39 : vector<32x16x16xbf16> to vector<512x16xbf16>
    %c1_49 = arith.constant 1 : index
    %c0_50 = arith.constant 0 : index
    %c0_51 = arith.constant 0 : index
    %c0_52 = arith.constant 0 : index
    %41 = vector.load %arg4[%c1_49, %c0_50, %c0_51, %c0_52] : memref<3x3x16x128xbf16, #tpu.memory_space<vmem>>, vector<1x1x16x128xbf16>
    %42 = vector.shape_cast %41 : vector<1x1x16x128xbf16> to vector<16x128xbf16>
    %cst_53 = arith.constant dense<0.000000e+00> : vector<512x128xf32>
    %43 = tpu.matmul %40, %42, %cst_53 {dimension_numbers = #tpu.dot_dimension_numbers<[1], [0], [0], [1], [0, 0, 1, 1], [], []>} : vector<512x16xbf16>, vector<16x128xbf16>, vector<512x128xf32> -> vector<512x128xf32>
    %44 = arith.addf %37, %43 : vector<512x128xf32>
    %c1_54 = arith.constant 1 : index
    %c1_55 = arith.constant 1 : index
    %c0_56 = arith.constant 0 : index
    %c0_57 = arith.constant 0 : index
    %45 = vector.load %arg6[%c1_54, %c1_55, %c0_56, %c0_57] : memref<3x34x16x16xbf16, #tpu.memory_space<vmem>>, vector<1x32x16x16xbf16>
    %46 = vector.shape_cast %45 : vector<1x32x16x16xbf16> to vector<32x16x16xbf16>
    %47 = vector.shape_cast %46 : vector<32x16x16xbf16> to vector<512x16xbf16>
    %c1_58 = arith.constant 1 : index
    %c1_59 = arith.constant 1 : index
    %c0_60 = arith.constant 0 : index
    %c0_61 = arith.constant 0 : index
    %48 = vector.load %arg4[%c1_58, %c1_59, %c0_60, %c0_61] : memref<3x3x16x128xbf16, #tpu.memory_space<vmem>>, vector<1x1x16x128xbf16>
    %49 = vector.shape_cast %48 : vector<1x1x16x128xbf16> to vector<16x128xbf16>
    %cst_62 = arith.constant dense<0.000000e+00> : vector<512x128xf32>
    %50 = tpu.matmul %47, %49, %cst_62 {dimension_numbers = #tpu.dot_dimension_numbers<[1], [0], [0], [1], [0, 0, 1, 1], [], []>} : vector<512x16xbf16>, vector<16x128xbf16>, vector<512x128xf32> -> vector<512x128xf32>
    %51 = arith.addf %44, %50 : vector<512x128xf32>
    %c2_63 = arith.constant 2 : index
    %c1_64 = arith.constant 1 : index
    %c0_65 = arith.constant 0 : index
    %c0_66 = arith.constant 0 : index
    %52 = vector.load %arg6[%c2_63, %c1_64, %c0_65, %c0_66] : memref<3x34x16x16xbf16, #tpu.memory_space<vmem>>, vector<1x32x16x16xbf16>
    %53 = vector.shape_cast %52 : vector<1x32x16x16xbf16> to vector<32x16x16xbf16>
    %54 = vector.shape_cast %53 : vector<32x16x16xbf16> to vector<512x16xbf16>
    %c1_67 = arith.constant 1 : index
    %c2_68 = arith.constant 2 : index
    %c0_69 = arith.constant 0 : index
    %c0_70 = arith.constant 0 : index
    %55 = vector.load %arg4[%c1_67, %c2_68, %c0_69, %c0_70] : memref<3x3x16x128xbf16, #tpu.memory_space<vmem>>, vector<1x1x16x128xbf16>
    %56 = vector.shape_cast %55 : vector<1x1x16x128xbf16> to vector<16x128xbf16>
    %cst_71 = arith.constant dense<0.000000e+00> : vector<512x128xf32>
    %57 = tpu.matmul %54, %56, %cst_71 {dimension_numbers = #tpu.dot_dimension_numbers<[1], [0], [0], [1], [0, 0, 1, 1], [], []>} : vector<512x16xbf16>, vector<16x128xbf16>, vector<512x128xf32> -> vector<512x128xf32>
    %58 = arith.addf %51, %57 : vector<512x128xf32>
    %c0_72 = arith.constant 0 : index
    %c2_73 = arith.constant 2 : index
    %c0_74 = arith.constant 0 : index
    %c0_75 = arith.constant 0 : index
    %59 = vector.load %arg6[%c0_72, %c2_73, %c0_74, %c0_75] : memref<3x34x16x16xbf16, #tpu.memory_space<vmem>>, vector<1x32x16x16xbf16>
    %60 = vector.shape_cast %59 : vector<1x32x16x16xbf16> to vector<32x16x16xbf16>
    %61 = vector.shape_cast %60 : vector<32x16x16xbf16> to vector<512x16xbf16>
    %c2_76 = arith.constant 2 : index
    %c0_77 = arith.constant 0 : index
    %c0_78 = arith.constant 0 : index
    %c0_79 = arith.constant 0 : index
    %62 = vector.load %arg4[%c2_76, %c0_77, %c0_78, %c0_79] : memref<3x3x16x128xbf16, #tpu.memory_space<vmem>>, vector<1x1x16x128xbf16>
    %63 = vector.shape_cast %62 : vector<1x1x16x128xbf16> to vector<16x128xbf16>
    %cst_80 = arith.constant dense<0.000000e+00> : vector<512x128xf32>
    %64 = tpu.matmul %61, %63, %cst_80 {dimension_numbers = #tpu.dot_dimension_numbers<[1], [0], [0], [1], [0, 0, 1, 1], [], []>} : vector<512x16xbf16>, vector<16x128xbf16>, vector<512x128xf32> -> vector<512x128xf32>
    %65 = arith.addf %58, %64 : vector<512x128xf32>
    %c1_81 = arith.constant 1 : index
    %c2_82 = arith.constant 2 : index
    %c0_83 = arith.constant 0 : index
    %c0_84 = arith.constant 0 : index
    %66 = vector.load %arg6[%c1_81, %c2_82, %c0_83, %c0_84] : memref<3x34x16x16xbf16, #tpu.memory_space<vmem>>, vector<1x32x16x16xbf16>
    %67 = vector.shape_cast %66 : vector<1x32x16x16xbf16> to vector<32x16x16xbf16>
    %68 = vector.shape_cast %67 : vector<32x16x16xbf16> to vector<512x16xbf16>
    %c2_85 = arith.constant 2 : index
    %c1_86 = arith.constant 1 : index
    %c0_87 = arith.constant 0 : index
    %c0_88 = arith.constant 0 : index
    %69 = vector.load %arg4[%c2_85, %c1_86, %c0_87, %c0_88] : memref<3x3x16x128xbf16, #tpu.memory_space<vmem>>, vector<1x1x16x128xbf16>
    %70 = vector.shape_cast %69 : vector<1x1x16x128xbf16> to vector<16x128xbf16>
    %cst_89 = arith.constant dense<0.000000e+00> : vector<512x128xf32>
    %71 = tpu.matmul %68, %70, %cst_89 {dimension_numbers = #tpu.dot_dimension_numbers<[1], [0], [0], [1], [0, 0, 1, 1], [], []>} : vector<512x16xbf16>, vector<16x128xbf16>, vector<512x128xf32> -> vector<512x128xf32>
    %72 = arith.addf %65, %71 : vector<512x128xf32>
    %c2_90 = arith.constant 2 : index
    %c2_91 = arith.constant 2 : index
    %c0_92 = arith.constant 0 : index
    %c0_93 = arith.constant 0 : index
    %73 = vector.load %arg6[%c2_90, %c2_91, %c0_92, %c0_93] : memref<3x34x16x16xbf16, #tpu.memory_space<vmem>>, vector<1x32x16x16xbf16>
    %74 = vector.shape_cast %73 : vector<1x32x16x16xbf16> to vector<32x16x16xbf16>
    %75 = vector.shape_cast %74 : vector<32x16x16xbf16> to vector<512x16xbf16>
    %c2_94 = arith.constant 2 : index
    %c2_95 = arith.constant 2 : index
    %c0_96 = arith.constant 0 : index
    %c0_97 = arith.constant 0 : index
    %76 = vector.load %arg4[%c2_94, %c2_95, %c0_96, %c0_97] : memref<3x3x16x128xbf16, #tpu.memory_space<vmem>>, vector<1x1x16x128xbf16>
    %77 = vector.shape_cast %76 : vector<1x1x16x128xbf16> to vector<16x128xbf16>
    %cst_98 = arith.constant dense<0.000000e+00> : vector<512x128xf32>
    %78 = tpu.matmul %75, %77, %cst_98 {dimension_numbers = #tpu.dot_dimension_numbers<[1], [0], [0], [1], [0, 0, 1, 1], [], []>} : vector<512x16xbf16>, vector<16x128xbf16>, vector<512x128xf32> -> vector<512x128xf32>
    %79 = arith.addf %72, %78 : vector<512x128xf32>
    %c0_99 = arith.constant 0 : index
    %c0_100 = arith.constant 0 : index
    %c0_101 = arith.constant 0 : index
    %c0_102 = arith.constant 0 : index
    %80 = vector.load %arg2[%c0_99, %c0_100, %c0_101, %c0_102] : memref<1x32x16x16xf32, #tpu.memory_space<vmem>>, vector<1x32x16x16xf32>
    %81 = vector.shape_cast %80 : vector<1x32x16x16xf32> to vector<32x16x16xf32>
    %82 = arith.truncf %81 : vector<32x16x16xf32> to vector<32x16x16xbf16>
    %83 = vector.shape_cast %82 : vector<32x16x16xbf16> to vector<512x16xbf16>
    %c0_103 = arith.constant 0 : index
    %c0_104 = arith.constant 0 : index
    %84 = vector.load %arg3[%c0_103, %c0_104] : memref<16x128xbf16, #tpu.memory_space<vmem>>, vector<16x128xbf16>
    %cst_105 = arith.constant dense<0.000000e+00> : vector<512x128xf32>
    %85 = tpu.matmul %83, %84, %cst_105 {dimension_numbers = #tpu.dot_dimension_numbers<[1], [0], [0], [1], [0, 0, 1, 1], [], []>} : vector<512x16xbf16>, vector<16x128xbf16>, vector<512x128xf32> -> vector<512x128xf32>
    %86 = arith.mulf %79, %85 : vector<512x128xf32>
    %87 = vector.shape_cast %86 : vector<512x128xf32> to vector<32x16x128xf32>
    %c0_106 = arith.constant 0 : index
    %c0_107 = arith.constant 0 : index
    %c0_108 = arith.constant 0 : index
    %c0_109 = arith.constant 0 : index
    %88 = vector.load %arg5[%c0_106, %c0_107, %c0_108, %c0_109] : memref<1x32x16x128xf32, #tpu.memory_space<vmem>>, vector<1x32x16x128xf32>
    %89 = vector.shape_cast %88 : vector<1x32x16x128xf32> to vector<32x16x128xf32>
    %90 = vector.shape_cast %87 : vector<32x16x128xf32> to vector<1x32x16x128xf32>
    tpu.vector_store %arg5[%c0_106, %c0_107, %c0_108, %c0_109], %90 {strides = array<i32>} : memref<1x32x16x128xf32, #tpu.memory_space<vmem>>, vector<1x32x16x128xf32>,
    return
  }
  func.func @transform_0(%arg0: i32) -> (i32, i32, i32, i32) {
    %c0_i32 = arith.constant 0 : i32
    %c0_i32_0 = arith.constant 0 : i32
    %c0_i32_1 = arith.constant 0 : i32
    %c0_i32_2 = arith.constant 0 : i32
    return %arg0, %c0_i32, %c0_i32_0, %c0_i32_1 : i32, i32, i32, i32
  }
  func.func @transform_1(%arg0: i32) -> (i32, i32, i32, i32) {
    %c0_i32 = arith.constant 0 : i32
    %c0_i32_0 = arith.constant 0 : i32
    %c0_i32_1 = arith.constant 0 : i32
    %c0_i32_2 = arith.constant 0 : i32
    return %arg0, %c0_i32, %c0_i32_0, %c0_i32_1 : i32, i32, i32, i32
  }
  func.func @transform_2(%arg0: i32) -> (i32, i32) {
    %c0_i32 = arith.constant 0 : i32
    %c0_i32_0 = arith.constant 0 : i32
    %c0_i32_1 = arith.constant 0 : i32
    return %c0_i32, %c0_i32_0 : i32, i32
  }
  func.func @transform_3(%arg0: i32) -> (i32, i32, i32, i32) {
    %c0_i32 = arith.constant 0 : i32
    %c0_i32_0 = arith.constant 0 : i32
    %c0_i32_1 = arith.constant 0 : i32
    %c0_i32_2 = arith.constant 0 : i32
    %c0_i32_3 = arith.constant 0 : i32
    return %c0_i32, %c0_i32_0, %c0_i32_1, %c0_i32_2 : i32, i32, i32, i32
  }
  func.func @transform_4(%arg0: i32) -> (i32, i32, i32, i32) {
    %c0_i32 = arith.constant 0 : i32
    %c0_i32_0 = arith.constant 0 : i32
    %c0_i32_1 = arith.constant 0 : i32
    %c0_i32_2 = arith.constant 0 : i32
    return %arg0, %c0_i32, %c0_i32_0, %c0_i32_1 : i32, i32, i32, i32
  }
}

</mosaic_0001>

<llo_original>
// kernel: tpu_custom_call.1
$region0: #{tpu_custom_call.1}
  #allocation0 [shape = 'u32[]', space=smem, size = 0x4, offset = 0x4, fixed_abs, tag = 'smem constant byte address 0x4 - core index']
  #allocation1 [shape = 'u32[144,128]{1,0:T(1,128)}', space=vmem, size = 0x12000, scoped, tag = 'internal scratch']
  #allocation2 [shape = 'bf16[3,34,16,16]{3,2,1,0:T(8,128)(2,1)}', space=vmem, size = 0x66000, scoped, tag = 'scratch operand']
  %s0 = inlined_call_operand.vmem [shape: f32[2,32,16,16], index: 0, kind: input, shape index: {}]
  %s1 = inlined_call_operand.vmem [shape: f32[2,32,16,16], index: 1, kind: input, shape index: {}]
  %s2 = inlined_call_operand.vmem [shape: bf16[16,128], index: 2, kind: input, shape index: {}]
  %s3 = inlined_call_operand.vmem [shape: bf16[3,3,16,128], index: 3, kind: input, shape index: {}]
  %s4 = inlined_call_operand.hbm [shape: f32[2,32,16,128], index: 4, kind: output, shape index: {}]
  %s5 = sld [smem:[#allocation0]]
  $region49: #{tpu_custom_call.1} parent=0
    _
  %s7 = ssub.s32 1, %s5
  %s8 = scalar_select 0, %s7, %s5
  $region1: #{tpu_custom_call.1} parent=0
    #allocation3 [shape = 'u8[524288]{0}', space=vmem, size = 0x80000, scoped, tag = 'output window, operand 0']
    #allocation4 [shape = 's32[2]{0}', space=sflag, size = 0x8, scoped, tag = 'scoped memory for tpu_custom_call.1']
    %9 = vsyncpa [#allocation4], 0
    %s10 = scalar_lea.sflag [#allocation4], 1
    %11 = vsyncpa %s10, 0
    loop: start=0, step=1, limit=4
    $region2: #{tpu_custom_call.1} parent=1 // loop_pre_header
      _
    $region3: #{tpu_custom_call.1} parent=1 // loop_header
      %s13 = sphi 0, %s17
      %p14 = scmp.ge.s32.totalorder %s13, 4
      %s23 = sphi 0, %s25
      %s26 = sphi 0, %s23
      %s27 = sphi 0, %s26
      %s43 = sphi 0, %s27
      %s49 = sphi 0, %s51
      %s52 = sphi 0, %s49
      %s53 = sphi 0, %s52
      %s69 = sphi 0, %s53
      %s73 = sphi 0, %s73
      %s75 = sphi 0, %s73
      %s76 = sphi 0, %s75
      %s90 = sphi 0, %s76
      %s94 = sphi 0, %s94
      %s96 = sphi 0, %s94
      %s97 = sphi 0, %s96
      %s111 = sphi 0, %s97
      %s117 = sphi 0, %s119
      %s120 = sphi 0, %s117
      %s121 = sphi 0, %s120
      %s137 = sphi 0, %s121
    $region4: #{tpu_custom_call.1} parent=1 // loop_header_branch
      %16 = sbr.rel (%p14) target = $region8
    $region5: #{tpu_custom_call.1} parent=1 // loop_body
      %s18 = ssub.s32 %s13, 1
      %s19 = ssub.s32 %s13, 2
      %s20 = sadd.s32 %s13, 1
      %s21 = ssub.s32 %s13, %s20
      %p22 = scmp.eq.s32.totalorder %s21, 0
      %s24 = sadd.s32 %s23, 1
      %s25 = scalar_select %p22, %s23, %s24
      %p28 = pneg %p22
      %p29 = scmp.eq.s32.totalorder %s13, 1
      %p30 = por %p28, %p29
      %p31 = scmp.ne.s32.totalorder %s23, %s26
      %p32 = scmp.eq.s32.totalorder %s13, 0
      %p33 = por %p31, %p32
      %p34 = scmp.ne.s32.totalorder %s23, %s26
      %p35 = scmp.eq.s32.totalorder %s18, 1
      %p36 = por %p34, %p35
      %p37 = scmp.ne.s32.totalorder %s26, %s27
      %p38 = scmp.eq.s32.totalorder %s18, 0
      %p39 = por %p37, %p38
      %p40 = scmp.ne.s32.totalorder %s26, %s27
      %p41 = scmp.eq.s32.totalorder %s19, 1
      %p42 = por %p40, %p41
      %p44 = scmp.ne.s32.totalorder %s27, %s43
      %p45 = scmp.eq.s32.totalorder %s19, 0
      %p46 = por %p44, %p45
      %s47 = ssub.s32 %s13, %s20
      %p48 = scmp.eq.s32.totalorder %s47, 0
      %s50 = sadd.s32 %s49, 1
      %s51 = scalar_select %p48, %s49, %s50
      %p54 = pneg %p48
      %p55 = scmp.eq.s32.totalorder %s13, 1
      %p56 = por %p54, %p55
      %p57 = scmp.ne.s32.totalorder %s49, %s52
      %p58 = scmp.eq.s32.totalorder %s13, 0
      %p59 = por %p57, %p58
      %p60 = scmp.ne.s32.totalorder %s49, %s52
      %p61 = scmp.eq.s32.totalorder %s18, 1
      %p62 = por %p60, %p61
      %p63 = scmp.ne.s32.totalorder %s52, %s53
      %p64 = scmp.eq.s32.totalorder %s18, 0
      %p65 = por %p63, %p64
      %p66 = scmp.ne.s32.totalorder %s52, %s53
      %p67 = scmp.eq.s32.totalorder %s19, 1
      %p68 = por %p66, %p67
      %p70 = scmp.ne.s32.totalorder %s53, %s69
      %p71 = scmp.eq.s32.totalorder %s19, 0
      %p72 = por %p70, %p71
      %s74 = sadd.s32 %s73, 1
      %p77 = scmp.eq.s32.totalorder %s13, 1
      %p78 = scmp.ne.s32.totalorder %s73, %s75
      %p79 = scmp.eq.s32.totalorder %s13, 0
      %p80 = por %p78, %p79
      %p81 = scmp.ne.s32.totalorder %s73, %s75
      %p82 = scmp.eq.s32.totalorder %s18, 1
      %p83 = por %p81, %p82
      %p84 = scmp.ne.s32.totalorder %s75, %s76
      %p85 = scmp.eq.s32.totalorder %s18, 0
      %p86 = por %p84, %p85
      %p87 = scmp.ne.s32.totalorder %s75, %s76
      %p88 = scmp.eq.s32.totalorder %s19, 1
      %p89 = por %p87, %p88
      %p91 = scmp.ne.s32.totalorder %s76, %s90
      %p92 = scmp.eq.s32.totalorder %s19, 0
      %p93 = por %p91, %p92
      %s95 = sadd.s32 %s94, 1
      %p98 = scmp.eq.s32.totalorder %s13, 1
      %p99 = scmp.ne.s32.totalorder %s94, %s96
      %p100 = scmp.eq.s32.totalorder %s13, 0
      %p101 = por %p99, %p100
      %p102 = scmp.ne.s32.totalorder %s94, %s96
      %p103 = scmp.eq.s32.totalorder %s18, 1
      %p104 = por %p102, %p103
      %p105 = scmp.ne.s32.totalorder %s96, %s97
      %p106 = scmp.eq.s32.totalorder %s18, 0
      %p107 = por %p105, %p106
      %p108 = scmp.ne.s32.totalorder %s96, %s97
      %p109 = scmp.eq.s32.totalorder %s19, 1
      %p110 = por %p108, %p109
      %p112 = scmp.ne.s32.totalorder %s97, %s111
      %p113 = scmp.eq.s32.totalorder %s19, 0
      %p114 = por %p112, %p113
      %s115 = ssub.s32 %s13, %s20
      %p116 = scmp.eq.s32.totalorder %s115, 0
      %s118 = sadd.s32 %s117, 1
      %s119 = scalar_select %p116, %s117, %s118
      %p122 = pneg %p116
      %p123 = scmp.eq.s32.totalorder %s13, 1
      %p124 = por %p122, %p123
      %p125 = scmp.ne.s32.totalorder %s117, %s120
      %p126 = scmp.eq.s32.totalorder %s13, 0
      %p127 = por %p125, %p126
      %p128 = scmp.ne.s32.totalorder %s117, %s120
      %p129 = scmp.eq.s32.totalorder %s18, 1
      %p130 = por %p128, %p129
      %p131 = scmp.ne.s32.totalorder %s120, %s121
      %p132 = scmp.eq.s32.totalorder %s18, 0
      %p133 = por %p131, %p132
      %p134 = scmp.ne.s32.totalorder %s120, %s121
      %p135 = scmp.eq.s32.totalorder %s19, 1
      %p136 = por %p134, %p135
      %p138 = scmp.ne.s32.totalorder %s121, %s137
      %p139 = scmp.eq.s32.totalorder %s19, 0
      %p140 = por %p138, %p139
      %p141 = scmp.le.s32.totalorder 1, %s13
      %p142 = scmp.lt.s32.totalorder %s13, 3
      %p143 = pnand %p141, %p142
      %p144 = pneg %p143
      // Predicated region
      $region9: #{tpu_custom_call.1} parent=5 // pred_check
        _
      $region10: #{tpu_custom_call.1} parent=5 // pred_check_branch
        %146 = sbr.rel (%p143) target = $region12
      $region11: #{tpu_custom_call.1} parent=5 // pred_region
        %s147 = ssub.s32 %s13, 1
        // Predicated region
        $region13: #{tpu_custom_call.1} parent=11 // pred_check
          %p148 = pneg %p86
        $region14: #{tpu_custom_call.1} parent=11 // pred_check_branch
          %150 = sbr.rel (%p148) target = $region16
        $region15: #{tpu_custom_call.1} parent=11 // pred_region
          _
        $region16: #{tpu_custom_call.1} parent=11 // pred_fallthru
          _
        // Predicated region
        $region17: #{tpu_custom_call.1} parent=11 // pred_check
          %p151 = pneg %p107
        $region18: #{tpu_custom_call.1} parent=11 // pred_check_branch
          %153 = sbr.rel (%p151) target = $region20
        $region19: #{tpu_custom_call.1} parent=11 // pred_region
          _
        $region20: #{tpu_custom_call.1} parent=11 // pred_fallthru
          _
      $region12: #{tpu_custom_call.1} parent=5 // pred_fallthru
        _
      %p154 = scmp.lt.s32.totalorder %s13, 2
      // Predicated region
      $region21: #{tpu_custom_call.1} parent=5 // pred_check
        %p155 = pneg %p154
      $region22: #{tpu_custom_call.1} parent=5 // pred_check_branch
        %157 = sbr.rel (%p155) target = $region24
      $region23: #{tpu_custom_call.1} parent=5 // pred_region
        // Predicated region
        $region25: #{tpu_custom_call.1} parent=23 // pred_check
          %p158 = pneg %p33
        $region26: #{tpu_custom_call.1} parent=23 // pred_check_branch
          %160 = sbr.rel (%p158) target = $region28
        $region27: #{tpu_custom_call.1} parent=23 // pred_region
          %p161 = scmp.lt.s32.totalorder %s13, 1
          %s162 = scalar_select %p161, %s13, 1
          %s163 = smul.addr %s162, 64
          %s164 = smul.addr %s163, 8
          %s165 = scalar_lea.vmem %s0, %s164
        $region28: #{tpu_custom_call.1} parent=23 // pred_fallthru
          _
        // Predicated region
        $region29: #{tpu_custom_call.1} parent=23 // pred_check
          %p166 = pneg %p59
        $region30: #{tpu_custom_call.1} parent=23 // pred_check_branch
          %168 = sbr.rel (%p166) target = $region32
        $region31: #{tpu_custom_call.1} parent=23 // pred_region
          %p169 = scmp.lt.s32.totalorder %s13, 1
          %s170 = scalar_select %p169, %s13, 1
          %s171 = smul.addr %s170, 64
          %s172 = smul.addr %s171, 8
          %s173 = scalar_lea.vmem %s1, %s172
        $region32: #{tpu_custom_call.1} parent=23 // pred_fallthru
          _
      $region24: #{tpu_custom_call.1} parent=5 // pred_fallthru
        _
      %p174 = scmp.le.s32.totalorder 1, %s13
      %p175 = scmp.lt.s32.totalorder %s13, 3
      %p176 = pnand %p174, %p175
      %p177 = pneg %p176
      // Predicated region
      $region33: #{tpu_custom_call.1} parent=5 // pred_check
        _
      $region34: #{tpu_custom_call.1} parent=5 // pred_check_branch
        %179 = sbr.rel (%p176) target = $region36
      $region35: #{tpu_custom_call.1} parent=5 // pred_region
        %s180 = ssub.s32 %s13, 1
        %p181 = scmp.lt.s32.totalorder %s18, 1
        %s182 = scalar_select %p181, %s18, 1
        %s183 = smul.addr %s182, 64
        %s184 = smul.addr %s183, 8
        %s185 = scalar_lea.vmem %s0, %s184
        %p186 = pneg %p39
        %p187 = pneg %p36
        %p188 = scmp.lt.s32.totalorder %s18, 1
        %s189 = scalar_select %p188, %s18, 1
        %s190 = smul.addr %s189, 64
        %s191 = smul.addr %s190, 8
        %s192 = scalar_lea.vmem %s1, %s191
        %p193 = pneg %p65
        %p194 = pneg %p62
        %p195 = pneg %p86
        %p196 = pneg %p83
        %p197 = pneg %p107
        %p198 = pneg %p104
        %p199 = pneg %p133
        %p200 = pneg %p130
        %s201 = sand.u32 %s120, 1
        %s202 = scalar_lea.sflag [#allocation4], %s201
        %s203 = sand.u32 %s120, 1
        %s204 = smul.addr %s203, 512
        %s205 = scalar_lea.vmem [#allocation3], %s204
        %p206 = scmp.lt.s32.totalorder %s18, 1
        %s207 = scalar_select %p206, %s18, 1
        %s208 = smul.addr %s207, 64
        %s209 = smul.addr %s208, 8
        %s210 = scalar_lea.vmem %s0, %s209
        %p211 = scmp.lt.s32.totalorder %s18, 1
        %s212 = scalar_select %p211, %s18, 1
        %s213 = smul.addr %s212, 64
        %s214 = smul.addr %s213, 8
        %s215 = scalar_lea.vmem %s1, %s214
        %v217 = vld [vmem:[%s210] sm:$0xff]
        %v218 = vld [vmem:[%s210 + $0x8] sm:$0xff]
        %v219 = vld [vmem:[%s210 + $0x10] sm:$0xff]
        %v220 = vld [vmem:[%s210 + $0x18] sm:$0xff]
        %v221 = vld [vmem:[%s210 + $0x20] sm:$0xff]
        %v222 = vld [vmem:[%s210 + $0x28] sm:$0xff]
        %v223 = vld [vmem:[%s210 + $0x30] sm:$0xff]
        %v224 = vld [vmem:[%s210 + $0x38] sm:$0xff]
        %v225 = vld [vmem:[%s210 + $0x40] sm:$0xff]
        %v226 = vld [vmem:[%s210 + $0x48] sm:$0xff]
        %v227 = vld [vmem:[%s210 + $0x50] sm:$0xff]
        %v228 = vld [vmem:[%s210 + $0x58] sm:$0xff]
        %v229 = vld [vmem:[%s210 + $0x60] sm:$0xff]
        %v230 = vld [vmem:[%s210 + $0x68] sm:$0xff]
        %v231 = vld [vmem:[%s210 + $0x70] sm:$0xff]
        %v232 = vld [vmem:[%s210 + $0x78] sm:$0xff]
        %v233 = vld [vmem:[%s210 + $0x80] sm:$0xff]
        %v234 = vld [vmem:[%s210 + $0x88] sm:$0xff]
        %v235 = vld [vmem:[%s210 + $0x90] sm:$0xff]
        %v236 = vld [vmem:[%s210 + $0x98] sm:$0xff]
        %v237 = vld [vmem:[%s210 + $0xa0] sm:$0xff]
        %v238 = vld [vmem:[%s210 + $0xa8] sm:$0xff]
        %v239 = vld [vmem:[%s210 + $0xb0] sm:$0xff]
        %v240 = vld [vmem:[%s210 + $0xb8] sm:$0xff]
        %v241 = vld [vmem:[%s210 + $0xc0] sm:$0xff]
        %v242 = vld [vmem:[%s210 + $0xc8] sm:$0xff]
        %v243 = vld [vmem:[%s210 + $0xd0] sm:$0xff]
        %v244 = vld [vmem:[%s210 + $0xd8] sm:$0xff]
        %v245 = vld [vmem:[%s210 + $0xe0] sm:$0xff]
        %v246 = vld [vmem:[%s210 + $0xe8] sm:$0xff]
        %v247 = vld [vmem:[%s210 + $0xf0] sm:$0xff]
        %v248 = vld [vmem:[%s210 + $0xf8] sm:$0xff]
        %v249 = vld [vmem:[%s210 + $0x100] sm:$0xff]
        %v250 = vld [vmem:[%s210 + $0x108] sm:$0xff]
        %v251 = vld [vmem:[%s210 + $0x110] sm:$0xff]
        %v252 = vld [vmem:[%s210 + $0x118] sm:$0xff]
        %v253 = vld [vmem:[%s210 + $0x120] sm:$0xff]
        %v254 = vld [vmem:[%s210 + $0x128] sm:$0xff]
        %v255 = vld [vmem:[%s210 + $0x130] sm:$0xff]
        %v256 = vld [vmem:[%s210 + $0x138] sm:$0xff]
        %v257 = vld [vmem:[%s210 + $0x140] sm:$0xff]
        %v258 = vld [vmem:[%s210 + $0x148] sm:$0xff]
        %v259 = vld [vmem:[%s210 + $0x150] sm:$0xff]
        %v260 = vld [vmem:[%s210 + $0x158] sm:$0xff]
        %v261 = vld [vmem:[%s210 + $0x160] sm:$0xff]
        %v262 = vld [vmem:[%s210 + $0x168] sm:$0xff]
        %v263 = vld [vmem:[%s210 + $0x170] sm:$0xff]
        %v264 = vld [vmem:[%s210 + $0x178] sm:$0xff]
        %v265 = vld [vmem:[%s210 + $0x180] sm:$0xff]
        %v266 = vld [vmem:[%s210 + $0x188] sm:$0xff]
        %v267 = vld [vmem:[%s210 + $0x190] sm:$0xff]
        %v268 = vld [vmem:[%s210 + $0x198] sm:$0xff]
        %v269 = vld [vmem:[%s210 + $0x1a0] sm:$0xff]
        %v270 = vld [vmem:[%s210 + $0x1a8] sm:$0xff]
        %v271 = vld [vmem:[%s210 + $0x1b0] sm:$0xff]
        %v272 = vld [vmem:[%s210 + $0x1b8] sm:$0xff]
        %v273 = vld [vmem:[%s210 + $0x1c0] sm:$0xff]
        %v274 = vld [vmem:[%s210 + $0x1c8] sm:$0xff]
        %v275 = vld [vmem:[%s210 + $0x1d0] sm:$0xff]
        %v276 = vld [vmem:[%s210 + $0x1d8] sm:$0xff]
        %v277 = vld [vmem:[%s210 + $0x1e0] sm:$0xff]
        %v278 = vld [vmem:[%s210 + $0x1e8] sm:$0xff]
        %v279 = vld [vmem:[%s210 + $0x1f0] sm:$0xff]
        %v280 = vld [vmem:[%s210 + $0x1f8] sm:$0xff]
        %v281 = vmax.f32 %v217, 0.0
        %v282 = vmax.f32 %v218, 0.0
        %v283 = vmax.f32 %v219, 0.0
        %v284 = vmax.f32 %v220, 0.0
        %v285 = vmax.f32 %v221, 0.0
        %v286 = vmax.f32 %v222, 0.0
        %v287 = vmax.f32 %v223, 0.0
        %v288 = vmax.f32 %v224, 0.0
        %v289 = vmax.f32 %v225, 0.0
        %v290 = vmax.f32 %v226, 0.0
        %v291 = vmax.f32 %v227, 0.0
        %v292 = vmax.f32 %v228, 0.0
        %v293 = vmax.f32 %v229, 0.0
        %v294 = vmax.f32 %v230, 0.0
        %v295 = vmax.f32 %v231, 0.0
        %v296 = vmax.f32 %v232, 0.0
        %v297 = vmax.f32 %v233, 0.0
        %v298 = vmax.f32 %v234, 0.0
        %v299 = vmax.f32 %v235, 0.0
        %v300 = vmax.f32 %v236, 0.0
        %v301 = vmax.f32 %v237, 0.0
        %v302 = vmax.f32 %v238, 0.0
        %v303 = vmax.f32 %v239, 0.0
        %v304 = vmax.f32 %v240, 0.0
        %v305 = vmax.f32 %v241, 0.0
        %v306 = vmax.f32 %v242, 0.0
        %v307 = vmax.f32 %v243, 0.0
        %v308 = vmax.f32 %v244, 0.0
        %v309 = vmax.f32 %v245, 0.0
        %v310 = vmax.f32 %v246, 0.0
        %v311 = vmax.f32 %v247, 0.0
        %v312 = vmax.f32 %v248, 0.0
        %v313 = vmax.f32 %v249, 0.0
        %v314 = vmax.f32 %v250, 0.0
        %v315 = vmax.f32 %v251, 0.0
        %v316 = vmax.f32 %v252, 0.0
        %v317 = vmax.f32 %v253, 0.0
        %v318 = vmax.f32 %v254, 0.0
        %v319 = vmax.f32 %v255, 0.0
        %v320 = vmax.f32 %v256, 0.0
        %v321 = vmax.f32 %v257, 0.0
        %v322 = vmax.f32 %v258, 0.0
        %v323 = vmax.f32 %v259, 0.0
        %v324 = vmax.f32 %v260, 0.0
        %v325 = vmax.f32 %v261, 0.0
        %v326 = vmax.f32 %v262, 0.0
        %v327 = vmax.f32 %v263, 0.0
        %v328 = vmax.f32 %v264, 0.0
        %v329 = vmax.f32 %v265, 0.0
        %v330 = vmax.f32 %v266, 0.0
        %v331 = vmax.f32 %v267, 0.0
        %v332 = vmax.f32 %v268, 0.0
        %v333 = vmax.f32 %v269, 0.0
        %v334 = vmax.f32 %v270, 0.0
        %v335 = vmax.f32 %v271, 0.0
        %v336 = vmax.f32 %v272, 0.0
        %v337 = vmax.f32 %v273, 0.0
        %v338 = vmax.f32 %v274, 0.0
        %v339 = vmax.f32 %v275, 0.0
        %v340 = vmax.f32 %v276, 0.0
        %v341 = vmax.f32 %v277, 0.0
        %v342 = vmax.f32 %v278, 0.0
        %v343 = vmax.f32 %v279, 0.0
        %v344 = vmax.f32 %v280, 0.0
        %v345 = vpack.c.bf16 %v282, %v281
        %v346 = vpack.c.bf16 %v284, %v283
        %v347 = vpack.c.bf16 %v286, %v285
        %v348 = vpack.c.bf16 %v288, %v287
        %v349 = vpack.c.bf16 %v290, %v289
        %v350 = vpack.c.bf16 %v292, %v291
        %v351 = vpack.c.bf16 %v294, %v293
        %v352 = vpack.c.bf16 %v296, %v295
        %v353 = vpack.c.bf16 %v298, %v297
        %v354 = vpack.c.bf16 %v300, %v299
        %v355 = vpack.c.bf16 %v302, %v301
        %v356 = vpack.c.bf16 %v304, %v303
        %v357 = vpack.c.bf16 %v306, %v305
        %v358 = vpack.c.bf16 %v308, %v307
        %v359 = vpack.c.bf16 %v310, %v309
        %v360 = vpack.c.bf16 %v312, %v311
        %v361 = vpack.c.bf16 %v314, %v313
        %v362 = vpack.c.bf16 %v316, %v315
        %v363 = vpack.c.bf16 %v318, %v317
        %v364 = vpack.c.bf16 %v320, %v319
        %v365 = vpack.c.bf16 %v322, %v321
        %v366 = vpack.c.bf16 %v324, %v323
        %v367 = vpack.c.bf16 %v326, %v325
        %v368 = vpack.c.bf16 %v328, %v327
        %v369 = vpack.c.bf16 %v330, %v329
        %v370 = vpack.c.bf16 %v332, %v331
        %v371 = vpack.c.bf16 %v334, %v333
        %v372 = vpack.c.bf16 %v336, %v335
        %v373 = vpack.c.bf16 %v338, %v337
        %v374 = vpack.c.bf16 %v340, %v339
        %v375 = vpack.c.bf16 %v342, %v341
        %v376 = vpack.c.bf16 %v344, %v343
        %vm377 = vcmask 125952
        %378 = vst.msk [vmem:[#allocation2] sm:$0xf] %vm377, 0
        %379 = vst.msk [vmem:[#allocation2 + $0x4] sm:$0xf] %vm377, 0
        %380 = vst.msk [vmem:[#allocation2 + $0x8] sm:$0xf] %vm377, 0
        %381 = vst.msk [vmem:[#allocation2 + $0xc] sm:$0xf] %vm377, 0
        %382 = vst.msk [vmem:[#allocation2 + $0x10] sm:$0xf] %vm377, 0
        %383 = vst.msk [vmem:[#allocation2 + $0x14] sm:$0xf] %vm377, 0
        %384 = vst.msk [vmem:[#allocation2 + $0x18] sm:$0xf] %vm377, 0
        %385 = vst.msk [vmem:[#allocation2 + $0x1c] sm:$0xf] %vm377, 0
        %386 = vst.msk [vmem:[#allocation2 + $0x20] sm:$0xf] %vm377, 0
        %387 = vst.msk [vmem:[#allocation2 + $0x24] sm:$0xf] %vm377, 0
        %388 = vst.msk [vmem:[#allocation2 + $0x28] sm:$0xf] %vm377, 0
        %389 = vst.msk [vmem:[#allocation2 + $0x2c] sm:$0xf] %vm377, 0
        %390 = vst.msk [vmem:[#allocation2 + $0x30] sm:$0xf] %vm377, 0
        %391 = vst.msk [vmem:[#allocation2 + $0x34] sm:$0xf] %vm377, 0
        %392 = vst.msk [vmem:[#allocation2 + $0x38] sm:$0xf] %vm377, 0
        %393 = vst.msk [vmem:[#allocation2 + $0x3c] sm:$0xf] %vm377, 0
        %394 = vst.msk [vmem:[#allocation2 + $0x40] sm:$0xf] %vm377, 0
        %395 = vst.msk [vmem:[#allocation2 + $0x44] sm:$0xf] %vm377, 0
        %396 = vst.msk [vmem:[#allocation2 + $0x48] sm:$0xf] %vm377, 0
        %397 = vst.msk [vmem:[#allocation2 + $0x4c] sm:$0xf] %vm377, 0
        %398 = vst.msk [vmem:[#allocation2 + $0x50] sm:$0xf] %vm377, 0
        %399 = vst.msk [vmem:[#allocation2 + $0x54] sm:$0xf] %vm377, 0
        %400 = vst.msk [vmem:[#allocation2 + $0x58] sm:$0xf] %vm377, 0
        %401 = vst.msk [vmem:[#allocation2 + $0x5c] sm:$0xf] %vm377, 0
        %402 = vst.msk [vmem:[#allocation2 + $0x60] sm:$0xf] %vm377, 0
        %403 = vst.msk [vmem:[#allocation2 + $0x64] sm:$0xf] %vm377, 0
        %404 = vst.msk [vmem:[#allocation2 + $0x68] sm:$0xf] %vm377, 0
        %405 = vst.msk [vmem:[#allocation2 + $0x6c] sm:$0xf] %vm377, 0
        %406 = vst.msk [vmem:[#allocation2 + $0x70] sm:$0xf] %vm377, 0
        %407 = vst.msk [vmem:[#allocation2 + $0x74] sm:$0xf] %vm377, 0
        %408 = vst.msk [vmem:[#allocation2 + $0x78] sm:$0xf] %vm377, 0
        %409 = vst.msk [vmem:[#allocation2 + $0x7c] sm:$0xf] %vm377, 0
        %410 = vst.msk [vmem:[#allocation2 + $0x80] sm:$0xf] %vm377, 0
        %411 = vst.msk [vmem:[#allocation2 + $0x84] sm:$0xf] %vm377, 0
        %412 = vst.msk [vmem:[#allocation2 + $0x88] sm:$0xf] %vm377, 0
        %413 = vst.msk [vmem:[#allocation2 + $0x8c] sm:$0xf] %vm377, 0
        %414 = vst.msk [vmem:[#allocation2 + $0x90] sm:$0xf] %vm377, 0
        %415 = vst.msk [vmem:[#allocation2 + $0x94] sm:$0xf] %vm377, 0
        %416 = vst.msk [vmem:[#allocation2 + $0x98] sm:$0xf] %vm377, 0
        %417 = vst.msk [vmem:[#allocation2 + $0x9c] sm:$0xf] %vm377, 0
        %418 = vst.msk [vmem:[#allocation2 + $0xa0] sm:$0xf] %vm377, 0
        %419 = vst.msk [vmem:[#allocation2 + $0xa4] sm:$0xf] %vm377, 0
        %420 = vst.msk [vmem:[#allocation2 + $0xa8] sm:$0xf] %vm377, 0
        %421 = vst.msk [vmem:[#allocation2 + $0xac] sm:$0xf] %vm377, 0
        %422 = vst.msk [vmem:[#allocation2 + $0xb0] sm:$0xf] %vm377, 0
        %423 = vst.msk [vmem:[#allocation2 + $0xb4] sm:$0xf] %vm377, 0
        %424 = vst.msk [vmem:[#allocation2 + $0xb8] sm:$0xf] %vm377, 0
        %425 = vst.msk [vmem:[#allocation2 + $0xbc] sm:$0xf] %vm377, 0
        %426 = vst.msk [vmem:[#allocation2 + $0xc0] sm:$0xf] %vm377, 0
        %427 = vst.msk [vmem:[#allocation2 + $0xc4] sm:$0xf] %vm377, 0
        %428 = vst.msk [vmem:[#allocation2 + $0xc8] sm:$0xf] %vm377, 0
        %429 = vst.msk [vmem:[#allocation2 + $0xcc] sm:$0xf] %vm377, 0
        %430 = vst.msk [vmem:[#allocation2 + $0xd0] sm:$0xf] %vm377, 0
        %431 = vst.msk [vmem:[#allocation2 + $0xd4] sm:$0xf] %vm377, 0
        %432 = vst.msk [vmem:[#allocation2 + $0xd8] sm:$0xf] %vm377, 0
        %433 = vst.msk [vmem:[#allocation2 + $0xdc] sm:$0xf] %vm377, 0
        %434 = vst.msk [vmem:[#allocation2 + $0xe0] sm:$0xf] %vm377, 0
        %435 = vst.msk [vmem:[#allocation2 + $0xe4] sm:$0xf] %vm377, 0
        %436 = vst.msk [vmem:[#allocation2 + $0xe8] sm:$0xf] %vm377, 0
        %437 = vst.msk [vmem:[#allocation2 + $0xec] sm:$0xf] %vm377, 0
        %438 = vst.msk [vmem:[#allocation2 + $0xf0] sm:$0xf] %vm377, 0
        %439 = vst.msk [vmem:[#allocation2 + $0xf4] sm:$0xf] %vm377, 0
        %440 = vst.msk [vmem:[#allocation2 + $0xf8] sm:$0xf] %vm377, 0
        %441 = vst.msk [vmem:[#allocation2 + $0xfc] sm:$0xf] %vm377, 0
        %442 = vst.msk [vmem:[#allocation2 + $0x100] sm:$0xf] %vm377, 0
        %443 = vst.msk [vmem:[#allocation2 + $0x104] sm:$0xf] %vm377, 0
        %444 = vst.msk [vmem:[#allocation2 + $0x108] sm:$0xf] %vm377, 0
        %445 = vst.msk [vmem:[#allocation2 + $0x10c] sm:$0xf] %vm377, 0
        %446 = vst.msk [vmem:[#allocation2 + $0x110] sm:$0xf] %vm377, 0
        %447 = vst.msk [vmem:[#allocation2 + $0x114] sm:$0xf] %vm377, 0
        %448 = vst.msk [vmem:[#allocation2 + $0x118] sm:$0xf] %vm377, 0
        %449 = vst.msk [vmem:[#allocation2 + $0x11c] sm:$0xf] %vm377, 0
        %450 = vst.msk [vmem:[#allocation2 + $0x120] sm:$0xf] %vm377, 0
        %451 = vst.msk [vmem:[#allocation2 + $0x124] sm:$0xf] %vm377, 0
        %452 = vst.msk [vmem:[#allocation2 + $0x128] sm:$0xf] %vm377, 0
        %453 = vst.msk [vmem:[#allocation2 + $0x12c] sm:$0xf] %vm377, 0
        %454 = vst.msk [vmem:[#allocation2 + $0x130] sm:$0xf] %vm377, 0
        %455 = vst.msk [vmem:[#allocation2 + $0x134] sm:$0xf] %vm377, 0
        %456 = vst.msk [vmem:[#allocation2 + $0x138] sm:$0xf] %vm377, 0
        %457 = vst.msk [vmem:[#allocation2 + $0x13c] sm:$0xf] %vm377, 0
        %458 = vst.msk [vmem:[#allocation2 + $0x140] sm:$0xf] %vm377, 0
        %459 = vst.msk [vmem:[#allocation2 + $0x144] sm:$0xf] %vm377, 0
        %460 = vst.msk [vmem:[#allocation2 + $0x148] sm:$0xf] %vm377, 0
        %461 = vst.msk [vmem:[#allocation2 + $0x14c] sm:$0xf] %vm377, 0
        %462 = vst.msk [vmem:[#allocation2 + $0x150] sm:$0xf] %vm377, 0
        %463 = vst.msk [vmem:[#allocation2 + $0x154] sm:$0xf] %vm377, 0
        %464 = vst.msk [vmem:[#allocation2 + $0x158] sm:$0xf] %vm377, 0
        %465 = vst.msk [vmem:[#allocation2 + $0x15c] sm:$0xf] %vm377, 0
        %466 = vst.msk [vmem:[#allocation2 + $0x160] sm:$0xf] %vm377, 0
        %467 = vst.msk [vmem:[#allocation2 + $0x164] sm:$0xf] %vm377, 0
        %468 = vst.msk [vmem:[#allocation2 + $0x168] sm:$0xf] %vm377, 0
        %469 = vst.msk [vmem:[#allocation2 + $0x16c] sm:$0xf] %vm377, 0
        %470 = vst.msk [vmem:[#allocation2 + $0x170] sm:$0xf] %vm377, 0
        %471 = vst.msk [vmem:[#allocation2 + $0x174] sm:$0xf] %vm377, 0
        %472 = vst.msk [vmem:[#allocation2 + $0x178] sm:$0xf] %vm377, 0
        %473 = vst.msk [vmem:[#allocation2 + $0x17c] sm:$0xf] %vm377, 0
        %474 = vst.msk [vmem:[#allocation2 + $0x180] sm:$0xf] %vm377, 0
        %475 = vst.msk [vmem:[#allocation2 + $0x184] sm:$0xf] %vm377, 0
        %476 = vst.msk [vmem:[#allocation2 + $0x188] sm:$0xf] %vm377, 0
        %477 = vst.msk [vmem:[#allocation2 + $0x18c] sm:$0xf] %vm377, 0
        %478 = vst.msk [vmem:[#allocation2 + $0x190] sm:$0xf] %vm377, 0
        %479 = vst.msk [vmem:[#allocation2 + $0x194] sm:$0xf] %vm377, 0
        %480 = vst.msk [vmem:[#allocation2 + $0x198] sm:$0xf] %vm377, 0
        %481 = vst.msk [vmem:[#allocation2 + $0x19c] sm:$0xf] %vm377, 0
        %482 = vst.msk [vmem:[#allocation2 + $0x1a0] sm:$0xf] %vm377, 0
        %483 = vst.msk [vmem:[#allocation2 + $0x1a4] sm:$0xf] %vm377, 0
        %484 = vst.msk [vmem:[#allocation2 + $0x1a8] sm:$0xf] %vm377, 0
        %485 = vst.msk [vmem:[#allocation2 + $0x1ac] sm:$0xf] %vm377, 0
        %486 = vst.msk [vmem:[#allocation2 + $0x1b0] sm:$0xf] %vm377, 0
        %487 = vst.msk [vmem:[#allocation2 + $0x1b4] sm:$0xf] %vm377, 0
        %488 = vst.msk [vmem:[#allocation2 + $0x1b8] sm:$0xf] %vm377, 0
        %489 = vst.msk [vmem:[#allocation2 + $0x1bc] sm:$0xf] %vm377, 0
        %490 = vst.msk [vmem:[#allocation2 + $0x1c0] sm:$0xf] %vm377, 0
        %491 = vst.msk [vmem:[#allocation2 + $0x1c4] sm:$0xf] %vm377, 0
        %492 = vst.msk [vmem:[#allocation2 + $0x1c8] sm:$0xf] %vm377, 0
        %493 = vst.msk [vmem:[#allocation2 + $0x1cc] sm:$0xf] %vm377, 0
        %494 = vst.msk [vmem:[#allocation2 + $0x1d0] sm:$0xf] %vm377, 0
        %495 = vst.msk [vmem:[#allocation2 + $0x1d4] sm:$0xf] %vm377, 0
        %496 = vst.msk [vmem:[#allocation2 + $0x1d8] sm:$0xf] %vm377, 0
        %497 = vst.msk [vmem:[#allocation2 + $0x1dc] sm:$0xf] %vm377, 0
        %498 = vst.msk [vmem:[#allocation2 + $0x1e0] sm:$0xf] %vm377, 0
        %499 = vst.msk [vmem:[#allocation2 + $0x1e4] sm:$0xf] %vm377, 0
        %500 = vst.msk [vmem:[#allocation2 + $0x1e8] sm:$0xf] %vm377, 0
        %501 = vst.msk [vmem:[#allocation2 + $0x1ec] sm:$0xf] %vm377, 0
        %502 = vst.msk [vmem:[#allocation2 + $0x1f0] sm:$0xf] %vm377, 0
        %503 = vst.msk [vmem:[#allocation2 + $0x1f4] sm:$0xf] %vm377, 0
        %504 = vst.msk [vmem:[#allocation2 + $0x1f8] sm:$0xf] %vm377, 0
        %505 = vst.msk [vmem:[#allocation2 + $0x1fc] sm:$0xf] %vm377, 0
        %506 = vst.msk [vmem:[#allocation2 + $0x200] sm:$0xf] %vm377, 0
        %507 = vst.msk [vmem:[#allocation2 + $0x204] sm:$0xf] %vm377, 0
        %508 = vst.msk [vmem:[#allocation2 + $0x208] sm:$0xf] %vm377, 0
        %509 = vst.msk [vmem:[#allocation2 + $0x20c] sm:$0xf] %vm377, 0
        %510 = vst.msk [vmem:[#allocation2 + $0x210] sm:$0xf] %vm377, 0
        %511 = vst.msk [vmem:[#allocation2 + $0x214] sm:$0xf] %vm377, 0
        %512 = vst.msk [vmem:[#allocation2 + $0x218] sm:$0xf] %vm377, 0
        %513 = vst.msk [vmem:[#allocation2 + $0x21c] sm:$0xf] %vm377, 0
        %514 = vst.msk [vmem:[#allocation2 + $0x220] sm:$0xf] %vm377, 0
        %515 = vst.msk [vmem:[#allocation2 + $0x224] sm:$0xf] %vm377, 0
        %516 = vst.msk [vmem:[#allocation2 + $0x228] sm:$0xf] %vm377, 0
        %517 = vst.msk [vmem:[#allocation2 + $0x22c] sm:$0xf] %vm377, 0
        %518 = vst.msk [vmem:[#allocation2 + $0x230] sm:$0xf] %vm377, 0
        %519 = vst.msk [vmem:[#allocation2 + $0x234] sm:$0xf] %vm377, 0
        %520 = vst.msk [vmem:[#allocation2 + $0x238] sm:$0xf] %vm377, 0
        %521 = vst.msk [vmem:[#allocation2 + $0x23c] sm:$0xf] %vm377, 0
        %522 = vst.msk [vmem:[#allocation2 + $0x240] sm:$0xf] %vm377, 0
        %523 = vst.msk [vmem:[#allocation2 + $0x244] sm:$0xf] %vm377, 0
        %524 = vst.msk [vmem:[#allocation2 + $0x248] sm:$0xf] %vm377, 0
        %525 = vst.msk [vmem:[#allocation2 + $0x24c] sm:$0xf] %vm377, 0
        %526 = vst.msk [vmem:[#allocation2 + $0x250] sm:$0xf] %vm377, 0
        %527 = vst.msk [vmem:[#allocation2 + $0x254] sm:$0xf] %vm377, 0
        %528 = vst.msk [vmem:[#allocation2 + $0x258] sm:$0xf] %vm377, 0
        %529 = vst.msk [vmem:[#allocation2 + $0x25c] sm:$0xf] %vm377, 0
        %530 = vst.msk [vmem:[#allocation2 + $0x260] sm:$0xf] %vm377, 0
        %531 = vst.msk [vmem:[#allocation2 + $0x264] sm:$0xf] %vm377, 0
        %532 = vst.msk [vmem:[#allocation2 + $0x268] sm:$0xf] %vm377, 0
        %533 = vst.msk [vmem:[#allocation2 + $0x26c] sm:$0xf] %vm377, 0
        %534 = vst.msk [vmem:[#allocation2 + $0x270] sm:$0xf] %vm377, 0
        %535 = vst.msk [vmem:[#allocation2 + $0x274] sm:$0xf] %vm377, 0
        %536 = vst.msk [vmem:[#allocation2 + $0x278] sm:$0xf] %vm377, 0
        %537 = vst.msk [vmem:[#allocation2 + $0x27c] sm:$0xf] %vm377, 0
        %538 = vst.msk [vmem:[#allocation2 + $0x280] sm:$0xf] %vm377, 0
        %539 = vst.msk [vmem:[#allocation2 + $0x284] sm:$0xf] %vm377, 0
        %540 = vst.msk [vmem:[#allocation2 + $0x288] sm:$0xf] %vm377, 0
        %541 = vst.msk [vmem:[#allocation2 + $0x28c] sm:$0xf] %vm377, 0
        %542 = vst.msk [vmem:[#allocation2 + $0x290] sm:$0xf] %vm377, 0
        %543 = vst.msk [vmem:[#allocation2 + $0x294] sm:$0xf] %vm377, 0
        %544 = vst.msk [vmem:[#allocation2 + $0x298] sm:$0xf] %vm377, 0
        %545 = vst.msk [vmem:[#allocation2 + $0x29c] sm:$0xf] %vm377, 0
        %546 = vst.msk [vmem:[#allocation2 + $0x2a0] sm:$0xf] %vm377, 0
        %547 = vst.msk [vmem:[#allocation2 + $0x2a4] sm:$0xf] %vm377, 0
        %548 = vst.msk [vmem:[#allocation2 + $0x2a8] sm:$0xf] %vm377, 0
        %549 = vst.msk [vmem:[#allocation2 + $0x2ac] sm:$0xf] %vm377, 0
        %550 = vst.msk [vmem:[#allocation2 + $0x2b0] sm:$0xf] %vm377, 0
        %551 = vst.msk [vmem:[#allocation2 + $0x2b4] sm:$0xf] %vm377, 0
        %552 = vst.msk [vmem:[#allocation2 + $0x2b8] sm:$0xf] %vm377, 0
        %553 = vst.msk [vmem:[#allocation2 + $0x2bc] sm:$0xf] %vm377, 0
        %554 = vst.msk [vmem:[#allocation2 + $0x2c0] sm:$0xf] %vm377, 0
        %555 = vst.msk [vmem:[#allocation2 + $0x2c4] sm:$0xf] %vm377, 0
        %556 = vst.msk [vmem:[#allocation2 + $0x2c8] sm:$0xf] %vm377, 0
        %557 = vst.msk [vmem:[#allocation2 + $0x2cc] sm:$0xf] %vm377, 0
        %558 = vst.msk [vmem:[#allocation2 + $0x2d0] sm:$0xf] %vm377, 0
        %559 = vst.msk [vmem:[#allocation2 + $0x2d4] sm:$0xf] %vm377, 0
        %560 = vst.msk [vmem:[#allocation2 + $0x2d8] sm:$0xf] %vm377, 0
        %561 = vst.msk [vmem:[#allocation2 + $0x2dc] sm:$0xf] %vm377, 0
        %562 = vst.msk [vmem:[#allocation2 + $0x2e0] sm:$0xf] %vm377, 0
        %563 = vst.msk [vmem:[#allocation2 + $0x2e4] sm:$0xf] %vm377, 0
        %564 = vst.msk [vmem:[#allocation2 + $0x2e8] sm:$0xf] %vm377, 0
        %565 = vst.msk [vmem:[#allocation2 + $0x2ec] sm:$0xf] %vm377, 0
        %566 = vst.msk [vmem:[#allocation2 + $0x2f0] sm:$0xf] %vm377, 0
        %567 = vst.msk [vmem:[#allocation2 + $0x2f4] sm:$0xf] %vm377, 0
        %568 = vst.msk [vmem:[#allocation2 + $0x2f8] sm:$0xf] %vm377, 0
        %569 = vst.msk [vmem:[#allocation2 + $0x2fc] sm:$0xf] %vm377, 0
        %570 = vst.msk [vmem:[#allocation2 + $0x300] sm:$0xf] %vm377, 0
        %571 = vst.msk [vmem:[#allocation2 + $0x304] sm:$0xf] %vm377, 0
        %572 = vst.msk [vmem:[#allocation2 + $0x308] sm:$0xf] %vm377, 0
        %573 = vst.msk [vmem:[#allocation2 + $0x30c] sm:$0xf] %vm377, 0
        %574 = vst.msk [vmem:[#allocation2 + $0x310] sm:$0xf] %vm377, 0
        %575 = vst.msk [vmem:[#allocation2 + $0x314] sm:$0xf] %vm377, 0
        %576 = vst.msk [vmem:[#allocation2 + $0x318] sm:$0xf] %vm377, 0
        %577 = vst.msk [vmem:[#allocation2 + $0x31c] sm:$0xf] %vm377, 0
        %578 = vst.msk [vmem:[#allocation2 + $0x320] sm:$0xf] %vm377, 0
        %579 = vst.msk [vmem:[#allocation2 + $0x324] sm:$0xf] %vm377, 0
        %580 = vst.msk [vmem:[#allocation2 + $0x328] sm:$0xf] %vm377, 0
        %581 = vst.msk [vmem:[#allocation2 + $0x32c] sm:$0xf] %vm377, 0
        %v614 = vunpack.c.l.b16 %v345
        %v615 = vunpack.c.h.b16 %v345
        %v616 = vunpack.c.l.b16 %v346
        %v617 = vunpack.c.h.b16 %v346
        %v618 = vunpack.c.l.b16 %v347
        %v619 = vunpack.c.h.b16 %v347
        %v620 = vunpack.c.l.b16 %v348
        %v621 = vunpack.c.h.b16 %v348
        %v622 = vunpack.c.l.b16 %v349
        %v623 = vunpack.c.h.b16 %v349
        %v624 = vunpack.c.l.b16 %v350
        %v625 = vunpack.c.h.b16 %v350
        %v626 = vunpack.c.l.b16 %v351
        %v627 = vunpack.c.h.b16 %v351
        %v628 = vunpack.c.l.b16 %v352
        %v629 = vunpack.c.h.b16 %v352
        %v630 = vunpack.c.l.b16 %v353
        %v631 = vunpack.c.h.b16 %v353
        %v632 = vunpack.c.l.b16 %v354
        %v633 = vunpack.c.h.b16 %v354
        %v634 = vunpack.c.l.b16 %v355
        %v635 = vunpack.c.h.b16 %v355
        %v636 = vunpack.c.l.b16 %v356
        %v637 = vunpack.c.h.b16 %v356
        %v638 = vunpack.c.l.b16 %v357
        %v639 = vunpack.c.h.b16 %v357
        %v640 = vunpack.c.l.b16 %v358
        %v641 = vunpack.c.h.b16 %v358
        %v642 = vunpack.c.l.b16 %v359
        %v643 = vunpack.c.h.b16 %v359
        %v644 = vunpack.c.l.b16 %v360
        %v645 = vunpack.c.h.b16 %v360
        %v646 = vunpack.c.l.b16 %v361
        %v647 = vunpack.c.h.b16 %v361
        %v648 = vunpack.c.l.b16 %v362
        %v649 = vunpack.c.h.b16 %v362
        %v650 = vunpack.c.l.b16 %v363
        %v651 = vunpack.c.h.b16 %v363
        %v652 = vunpack.c.l.b16 %v364
        %v653 = vunpack.c.h.b16 %v364
        %v654 = vunpack.c.l.b16 %v365
        %v655 = vunpack.c.h.b16 %v365
        %v656 = vunpack.c.l.b16 %v366
        %v657 = vunpack.c.h.b16 %v366
        %v658 = vunpack.c.l.b16 %v367
        %v659 = vunpack.c.h.b16 %v367
        %v660 = vunpack.c.l.b16 %v368
        %v661 = vunpack.c.h.b16 %v368
        %v662 = vunpack.c.l.b16 %v369
        %v663 = vunpack.c.h.b16 %v369
        %v664 = vunpack.c.l.b16 %v370
        %v665 = vunpack.c.h.b16 %v370
        %v666 = vunpack.c.l.b16 %v371
        %v667 = vunpack.c.h.b16 %v371
        %v668 = vunpack.c.l.b16 %v372
        %v669 = vunpack.c.h.b16 %v372
        %v670 = vunpack.c.l.b16 %v373
        %v671 = vunpack.c.h.b16 %v373
        %v672 = vunpack.c.l.b16 %v374
        %v673 = vunpack.c.h.b16 %v374
        %v674 = vunpack.c.l.b16 %v375
        %v675 = vunpack.c.h.b16 %v375
        %v676 = vunpack.c.l.b16 %v376
        %v677 = vunpack.c.h.b16 %v376
        %v678 = vpack.c.b16 %v614, %v614
        %v679 = vpack.c.b16 %v615, %v615
        %v680 = vpack.c.b16 %v616, %v616
        %v681 = vpack.c.b16 %v617, %v617
        %v682 = vpack.c.b16 %v618, %v618
        %v683 = vpack.c.b16 %v619, %v619
        %v684 = vpack.c.b16 %v620, %v620
        %v685 = vpack.c.b16 %v621, %v621
        %v686 = vpack.c.b16 %v622, %v622
        %v687 = vpack.c.b16 %v623, %v623
        %v688 = vpack.c.b16 %v624, %v624
        %v689 = vpack.c.b16 %v625, %v625
        %v690 = vpack.c.b16 %v626, %v626
        %v691 = vpack.c.b16 %v627, %v627
        %v692 = vpack.c.b16 %v628, %v628
        %v693 = vpack.c.b16 %v629, %v629
        %v694 = vpack.c.b16 %v630, %v630
        %v695 = vpack.c.b16 %v631, %v631
        %v696 = vpack.c.b16 %v632, %v632
        %v697 = vpack.c.b16 %v633, %v633
        %v698 = vpack.c.b16 %v634, %v634
        %v699 = vpack.c.b16 %v635, %v635
        %v700 = vpack.c.b16 %v636, %v636
        %v701 = vpack.c.b16 %v637, %v637
        %v702 = vpack.c.b16 %v638, %v638
        %v703 = vpack.c.b16 %v639, %v639
        %v704 = vpack.c.b16 %v640, %v640
        %v705 = vpack.c.b16 %v641, %v641
        %v706 = vpack.c.b16 %v642, %v642
        %v707 = vpack.c.b16 %v643, %v643
        %v708 = vpack.c.b16 %v644, %v644
        %v709 = vpack.c.b16 %v645, %v645
        %v710 = vpack.c.b16 %v646, %v646
        %v711 = vpack.c.b16 %v647, %v647
        %v712 = vpack.c.b16 %v648, %v648
        %v713 = vpack.c.b16 %v649, %v649
        %v714 = vpack.c.b16 %v650, %v650
        %v715 = vpack.c.b16 %v651, %v651
        %v716 = vpack.c.b16 %v652, %v652
        %v717 = vpack.c.b16 %v653, %v653
        %v718 = vpack.c.b16 %v654, %v654
        %v719 = vpack.c.b16 %v655, %v655
        %v720 = vpack.c.b16 %v656, %v656
        %v721 = vpack.c.b16 %v657, %v657
        %v722 = vpack.c.b16 %v658, %v658
        %v723 = vpack.c.b16 %v659, %v659
        %v724 = vpack.c.b16 %v660, %v660
        %v725 = vpack.c.b16 %v661, %v661
        %v726 = vpack.c.b16 %v662, %v662
        %v727 = vpack.c.b16 %v663, %v663
        %v728 = vpack.c.b16 %v664, %v664
        %v729 = vpack.c.b16 %v665, %v665
        %v730 = vpack.c.b16 %v666, %v666
        %v731 = vpack.c.b16 %v667, %v667
        %v732 = vpack.c.b16 %v668, %v668
        %v733 = vpack.c.b16 %v669, %v669
        %v734 = vpack.c.b16 %v670, %v670
        %v735 = vpack.c.b16 %v671, %v671
        %v736 = vpack.c.b16 %v672, %v672
        %v737 = vpack.c.b16 %v673, %v673
        %v738 = vpack.c.b16 %v674, %v674
        %v739 = vpack.c.b16 %v675, %v675
        %v740 = vpack.c.b16 %v676, %v676
        %v741 = vpack.c.b16 %v677, %v677
        %vm742 = vsmask.f32 256
        %vm743 = vsmask.f32 4368
        %vm744 = vmor %vm742, %vm743
        %v746 = vshrl.u32 %v678, 16
        %v748 = vrot.slane %v746, 7
        %v749 = vshll.u32 %v678, 16
        %v751 = vor.u32 %v748, %v749
        %v752 = vrot.slane %v748, 4
        %v754 = vshrl.u32 %v679, 16
        %v756 = vrot.slane %v754, 7
        %v757 = vshll.u32 %v679, 16
        %v759 = vor.u32 %v756, %v757
        %v760 = vsel %vm744, %v752, %v759
        %v762 = vshrl.u32 %v680, 16
        %v764 = vrot.slane %v762, 7
        %v765 = vshll.u32 %v680, 16
        %v767 = vor.u32 %v764, %v765
        %v768 = vrot.slane %v764, 4
        %v770 = vshrl.u32 %v681, 16
        %v772 = vrot.slane %v770, 7
        %v773 = vshll.u32 %v681, 16
        %v775 = vor.u32 %v772, %v773
        %v776 = vsel %vm744, %v768, %v775
        %v778 = vshrl.u32 %v682, 16
        %v780 = vrot.slane %v778, 7
        %v781 = vshll.u32 %v682, 16
        %v783 = vor.u32 %v780, %v781
        %v784 = vrot.slane %v780, 4
        %v786 = vshrl.u32 %v683, 16
        %v788 = vrot.slane %v786, 7
        %v789 = vshll.u32 %v683, 16
        %v791 = vor.u32 %v788, %v789
        %v792 = vsel %vm744, %v784, %v791
        %v794 = vshrl.u32 %v684, 16
        %v796 = vrot.slane %v794, 7
        %v797 = vshll.u32 %v684, 16
        %v799 = vor.u32 %v796, %v797
        %v800 = vrot.slane %v796, 4
        %v802 = vshrl.u32 %v685, 16
        %v804 = vrot.slane %v802, 7
        %v805 = vshll.u32 %v685, 16
        %v807 = vor.u32 %v804, %v805
        %v808 = vsel %vm744, %v800, %v807
        %v810 = vshrl.u32 %v686, 16
        %v812 = vrot.slane %v810, 7
        %v813 = vshll.u32 %v686, 16
        %v815 = vor.u32 %v812, %v813
        %v816 = vrot.slane %v812, 4
        %v818 = vshrl.u32 %v687, 16
        %v820 = vrot.slane %v818, 7
        %v821 = vshll.u32 %v687, 16
        %v823 = vor.u32 %v820, %v821
        %v824 = vsel %vm744, %v816, %v823
        %v826 = vshrl.u32 %v688, 16
        %v828 = vrot.slane %v826, 7
        %v829 = vshll.u32 %v688, 16
        %v831 = vor.u32 %v828, %v829
        %v832 = vrot.slane %v828, 4
        %v834 = vshrl.u32 %v689, 16
        %v836 = vrot.slane %v834, 7
        %v837 = vshll.u32 %v689, 16
        %v839 = vor.u32 %v836, %v837
        %v840 = vsel %vm744, %v832, %v839
        %v842 = vshrl.u32 %v690, 16
        %v844 = vrot.slane %v842, 7
        %v845 = vshll.u32 %v690, 16
        %v847 = vor.u32 %v844, %v845
        %v848 = vrot.slane %v844, 4
        %v850 = vshrl.u32 %v691, 16
        %v852 = vrot.slane %v850, 7
        %v853 = vshll.u32 %v691, 16
        %v855 = vor.u32 %v852, %v853
        %v856 = vsel %vm744, %v848, %v855
        %v858 = vshrl.u32 %v692, 16
        %v860 = vrot.slane %v858, 7
        %v861 = vshll.u32 %v692, 16
        %v863 = vor.u32 %v860, %v861
        %v864 = vrot.slane %v860, 4
        %v866 = vshrl.u32 %v693, 16
        %v868 = vrot.slane %v866, 7
        %v869 = vshll.u32 %v693, 16
        %v871 = vor.u32 %v868, %v869
        %v872 = vsel %vm744, %v864, %v871
        %v874 = vshrl.u32 %v694, 16
        %v876 = vrot.slane %v874, 7
        %v877 = vshll.u32 %v694, 16
        %v879 = vor.u32 %v876, %v877
        %v880 = vrot.slane %v876, 4
        %v882 = vshrl.u32 %v695, 16
        %v884 = vrot.slane %v882, 7
        %v885 = vshll.u32 %v695, 16
        %v887 = vor.u32 %v884, %v885
        %v888 = vsel %vm744, %v880, %v887
        %v890 = vshrl.u32 %v696, 16
        %v892 = vrot.slane %v890, 7
        %v893 = vshll.u32 %v696, 16
        %v895 = vor.u32 %v892, %v893
        %v896 = vrot.slane %v892, 4
        %v898 = vshrl.u32 %v697, 16
        %v900 = vrot.slane %v898, 7
        %v901 = vshll.u32 %v697, 16
        %v903 = vor.u32 %v900, %v901
        %v904 = vsel %vm744, %v896, %v903
        %v906 = vshrl.u32 %v698, 16
        %v908 = vrot.slane %v906, 7
        %v909 = vshll.u32 %v698, 16
        %v911 = vor.u32 %v908, %v909
        %v912 = vrot.slane %v908, 4
        %v914 = vshrl.u32 %v699, 16
        %v916 = vrot.slane %v914, 7
        %v917 = vshll.u32 %v699, 16
        %v919 = vor.u32 %v916, %v917
        %v920 = vsel %vm744, %v912, %v919
        %v922 = vshrl.u32 %v700, 16
        %v924 = vrot.slane %v922, 7
        %v925 = vshll.u32 %v700, 16
        %v927 = vor.u32 %v924, %v925
        %v928 = vrot.slane %v924, 4
        %v930 = vshrl.u32 %v701, 16
        %v932 = vrot.slane %v930, 7
        %v933 = vshll.u32 %v701, 16
        %v935 = vor.u32 %v932, %v933
        %v936 = vsel %vm744, %v928, %v935
        %v938 = vshrl.u32 %v702, 16
        %v940 = vrot.slane %v938, 7
        %v941 = vshll.u32 %v702, 16
        %v943 = vor.u32 %v940, %v941
        %v944 = vrot.slane %v940, 4
        %v946 = vshrl.u32 %v703, 16
        %v948 = vrot.slane %v946, 7
        %v949 = vshll.u32 %v703, 16
        %v951 = vor.u32 %v948, %v949
        %v952 = vsel %vm744, %v944, %v951
        %v954 = vshrl.u32 %v704, 16
        %v956 = vrot.slane %v954, 7
        %v957 = vshll.u32 %v704, 16
        %v959 = vor.u32 %v956, %v957
        %v960 = vrot.slane %v956, 4
        %v962 = vshrl.u32 %v705, 16
        %v964 = vrot.slane %v962, 7
        %v965 = vshll.u32 %v705, 16
        %v967 = vor.u32 %v964, %v965
        %v968 = vsel %vm744, %v960, %v967
        %v970 = vshrl.u32 %v706, 16
        %v972 = vrot.slane %v970, 7
        %v973 = vshll.u32 %v706, 16
        %v975 = vor.u32 %v972, %v973
        %v976 = vrot.slane %v972, 4
        %v978 = vshrl.u32 %v707, 16
        %v980 = vrot.slane %v978, 7
        %v981 = vshll.u32 %v707, 16
        %v983 = vor.u32 %v980, %v981
        %v984 = vsel %vm744, %v976, %v983
        %v986 = vshrl.u32 %v708, 16
        %v988 = vrot.slane %v986, 7
        %v989 = vshll.u32 %v708, 16
        %v991 = vor.u32 %v988, %v989
        %v992 = vrot.slane %v988, 4
        %v994 = vshrl.u32 %v709, 16
        %v996 = vrot.slane %v994, 7
        %v997 = vshll.u32 %v709, 16
        %v999 = vor.u32 %v996, %v997
        %v1000 = vsel %vm744, %v992, %v999
        %v1002 = vshrl.u32 %v710, 16
        %v1004 = vrot.slane %v1002, 7
        %v1005 = vshll.u32 %v710, 16
        %v1007 = vor.u32 %v1004, %v1005
        %v1008 = vrot.slane %v1004, 4
        %v1010 = vshrl.u32 %v711, 16
        %v1012 = vrot.slane %v1010, 7
        %v1013 = vshll.u32 %v711, 16
        %v1015 = vor.u32 %v1012, %v1013
        %v1016 = vsel %vm744, %v1008, %v1015
        %v1018 = vshrl.u32 %v712, 16
        %v1020 = vrot.slane %v1018, 7
        %v1021 = vshll.u32 %v712, 16
        %v1023 = vor.u32 %v1020, %v1021
        %v1024 = vrot.slane %v1020, 4
        %v1026 = vshrl.u32 %v713, 16
        %v1028 = vrot.slane %v1026, 7
        %v1029 = vshll.u32 %v713, 16
        %v1031 = vor.u32 %v1028, %v1029
        %v1032 = vsel %vm744, %v1024, %v1031
        %v1034 = vshrl.u32 %v714, 16
        %v1036 = vrot.slane %v1034, 7
        %v1037 = vshll.u32 %v714, 16
        %v1039 = vor.u32 %v1036, %v1037
        %v1040 = vrot.slane %v1036, 4
        %v1042 = vshrl.u32 %v715, 16
        %v1044 = vrot.slane %v1042, 7
        %v1045 = vshll.u32 %v715, 16
        %v1047 = vor.u32 %v1044, %v1045
        %v1048 = vsel %vm744, %v1040, %v1047
        %v1050 = vshrl.u32 %v716, 16
        %v1052 = vrot.slane %v1050, 7
        %v1053 = vshll.u32 %v716, 16
        %v1055 = vor.u32 %v1052, %v1053
        %v1056 = vrot.slane %v1052, 4
        %v1058 = vshrl.u32 %v717, 16
        %v1060 = vrot.slane %v1058, 7
        %v1061 = vshll.u32 %v717, 16
        %v1063 = vor.u32 %v1060, %v1061
        %v1064 = vsel %vm744, %v1056, %v1063
        %v1066 = vshrl.u32 %v718, 16
        %v1068 = vrot.slane %v1066, 7
        %v1069 = vshll.u32 %v718, 16
        %v1071 = vor.u32 %v1068, %v1069
        %v1072 = vrot.slane %v1068, 4
        %v1074 = vshrl.u32 %v719, 16
        %v1076 = vrot.slane %v1074, 7
        %v1077 = vshll.u32 %v719, 16
        %v1079 = vor.u32 %v1076, %v1077
        %v1080 = vsel %vm744, %v1072, %v1079
        %v1082 = vshrl.u32 %v720, 16
        %v1084 = vrot.slane %v1082, 7
        %v1085 = vshll.u32 %v720, 16
        %v1087 = vor.u32 %v1084, %v1085
        %v1088 = vrot.slane %v1084, 4
        %v1090 = vshrl.u32 %v721, 16
        %v1092 = vrot.slane %v1090, 7
        %v1093 = vshll.u32 %v721, 16
        %v1095 = vor.u32 %v1092, %v1093
        %v1096 = vsel %vm744, %v1088, %v1095
        %v1098 = vshrl.u32 %v722, 16
        %v1100 = vrot.slane %v1098, 7
        %v1101 = vshll.u32 %v722, 16
        %v1103 = vor.u32 %v1100, %v1101
        %v1104 = vrot.slane %v1100, 4
        %v1106 = vshrl.u32 %v723, 16
        %v1108 = vrot.slane %v1106, 7
        %v1109 = vshll.u32 %v723, 16
        %v1111 = vor.u32 %v1108, %v1109
        %v1112 = vsel %vm744, %v1104, %v1111
        %v1114 = vshrl.u32 %v724, 16
        %v1116 = vrot.slane %v1114, 7
        %v1117 = vshll.u32 %v724, 16
        %v1119 = vor.u32 %v1116, %v1117
        %v1120 = vrot.slane %v1116, 4
        %v1122 = vshrl.u32 %v725, 16
        %v1124 = vrot.slane %v1122, 7
        %v1125 = vshll.u32 %v725, 16
        %v1127 = vor.u32 %v1124, %v1125
        %v1128 = vsel %vm744, %v1120, %v1127
        %v1130 = vshrl.u32 %v726, 16
        %v1132 = vrot.slane %v1130, 7
        %v1133 = vshll.u32 %v726, 16
        %v1135 = vor.u32 %v1132, %v1133
        %v1136 = vrot.slane %v1132, 4
        %v1138 = vshrl.u32 %v727, 16
        %v1140 = vrot.slane %v1138, 7
        %v1141 = vshll.u32 %v727, 16
        %v1143 = vor.u32 %v1140, %v1141
        %v1144 = vsel %vm744, %v1136, %v1143
        %v1146 = vshrl.u32 %v728, 16
        %v1148 = vrot.slane %v1146, 7
        %v1149 = vshll.u32 %v728, 16
        %v1151 = vor.u32 %v1148, %v1149
        %v1152 = vrot.slane %v1148, 4
        %v1154 = vshrl.u32 %v729, 16
        %v1156 = vrot.slane %v1154, 7
        %v1157 = vshll.u32 %v729, 16
        %v1159 = vor.u32 %v1156, %v1157
        %v1160 = vsel %vm744, %v1152, %v1159
        %v1162 = vshrl.u32 %v730, 16
        %v1164 = vrot.slane %v1162, 7
        %v1165 = vshll.u32 %v730, 16
        %v1167 = vor.u32 %v1164, %v1165
        %v1168 = vrot.slane %v1164, 4
        %v1170 = vshrl.u32 %v731, 16
        %v1172 = vrot.slane %v1170, 7
        %v1173 = vshll.u32 %v731, 16
        %v1175 = vor.u32 %v1172, %v1173
        %v1176 = vsel %vm744, %v1168, %v1175
        %v1178 = vshrl.u32 %v732, 16
        %v1180 = vrot.slane %v1178, 7
        %v1181 = vshll.u32 %v732, 16
        %v1183 = vor.u32 %v1180, %v1181
        %v1184 = vrot.slane %v1180, 4
        %v1186 = vshrl.u32 %v733, 16
        %v1188 = vrot.slane %v1186, 7
        %v1189 = vshll.u32 %v733, 16
        %v1191 = vor.u32 %v1188, %v1189
        %v1192 = vsel %vm744, %v1184, %v1191
        %v1194 = vshrl.u32 %v734, 16
        %v1196 = vrot.slane %v1194, 7
        %v1197 = vshll.u32 %v734, 16
        %v1199 = vor.u32 %v1196, %v1197
        %v1200 = vrot.slane %v1196, 4
        %v1202 = vshrl.u32 %v735, 16
        %v1204 = vrot.slane %v1202, 7
        %v1205 = vshll.u32 %v735, 16
        %v1207 = vor.u32 %v1204, %v1205
        %v1208 = vsel %vm744, %v1200, %v1207
        %v1210 = vshrl.u32 %v736, 16
        %v1212 = vrot.slane %v1210, 7
        %v1213 = vshll.u32 %v736, 16
        %v1215 = vor.u32 %v1212, %v1213
        %v1216 = vrot.slane %v1212, 4
        %v1218 = vshrl.u32 %v737, 16
        %v1220 = vrot.slane %v1218, 7
        %v1221 = vshll.u32 %v737, 16
        %v1223 = vor.u32 %v1220, %v1221
        %v1224 = vsel %vm744, %v1216, %v1223
        %v1226 = vshrl.u32 %v738, 16
        %v1228 = vrot.slane %v1226, 7
        %v1229 = vshll.u32 %v738, 16
        %v1231 = vor.u32 %v1228, %v1229
        %v1232 = vrot.slane %v1228, 4
        %v1234 = vshrl.u32 %v739, 16
        %v1236 = vrot.slane %v1234, 7
        %v1237 = vshll.u32 %v739, 16
        %v1239 = vor.u32 %v1236, %v1237
        %v1240 = vsel %vm744, %v1232, %v1239
        %v1242 = vshrl.u32 %v740, 16
        %v1244 = vrot.slane %v1242, 7
        %v1245 = vshll.u32 %v740, 16
        %v1247 = vor.u32 %v1244, %v1245
        %v1248 = vrot.slane %v1244, 4
        %v1250 = vshrl.u32 %v741, 16
        %v1252 = vrot.slane %v1250, 7
        %v1253 = vshll.u32 %v741, 16
        %v1255 = vor.u32 %v1252, %v1253
        %v1256 = vsel %vm744, %v1248, %v1255
        %s1321 = scalar_lea.vmem [#allocation2], 8
        %vm1322 = vcmask 125952
        %vm1323 = vsmask.f32 7938
        %vm1324 = vmand %vm1322, %vm1323
        %v1325 = vld [vmem:[%s1321] sm:$0xf]
        %v1326 = vsel %vm1324, %v751, %v1325
        %1327 = vst [vmem:[%s1321] sm:$0xf] %v1326
        %1328 = vst.msk [vmem:[%s1321 + $0x4] sm:$0xf] %vm377, %v760
        %v1329 = vld [vmem:[%s1321 + $0x8] sm:$0xf]
        %v1330 = vsel %vm1324, %v767, %v1329
        %1331 = vst [vmem:[%s1321 + $0x8] sm:$0xf] %v1330
        %1332 = vst.msk [vmem:[%s1321 + $0xc] sm:$0xf] %vm377, %v776
        %v1333 = vld [vmem:[%s1321 + $0x10] sm:$0xf]
        %v1334 = vsel %vm1324, %v783, %v1333
        %1335 = vst [vmem:[%s1321 + $0x10] sm:$0xf] %v1334
        %1336 = vst.msk [vmem:[%s1321 + $0x14] sm:$0xf] %vm377, %v792
        %v1337 = vld [vmem:[%s1321 + $0x18] sm:$0xf]
        %v1338 = vsel %vm1324, %v799, %v1337
        %1339 = vst [vmem:[%s1321 + $0x18] sm:$0xf] %v1338
        %1340 = vst.msk [vmem:[%s1321 + $0x1c] sm:$0xf] %vm377, %v808
        %v1341 = vld [vmem:[%s1321 + $0x20] sm:$0xf]
        %v1342 = vsel %vm1324, %v815, %v1341
        %1343 = vst [vmem:[%s1321 + $0x20] sm:$0xf] %v1342
        %1344 = vst.msk [vmem:[%s1321 + $0x24] sm:$0xf] %vm377, %v824
        %v1345 = vld [vmem:[%s1321 + $0x28] sm:$0xf]
        %v1346 = vsel %vm1324, %v831, %v1345
        %1347 = vst [vmem:[%s1321 + $0x28] sm:$0xf] %v1346
        %1348 = vst.msk [vmem:[%s1321 + $0x2c] sm:$0xf] %vm377, %v840
        %v1349 = vld [vmem:[%s1321 + $0x30] sm:$0xf]
        %v1350 = vsel %vm1324, %v847, %v1349
        %1351 = vst [vmem:[%s1321 + $0x30] sm:$0xf] %v1350
        %1352 = vst.msk [vmem:[%s1321 + $0x34] sm:$0xf] %vm377, %v856
        %v1353 = vld [vmem:[%s1321 + $0x38] sm:$0xf]
        %v1354 = vsel %vm1324, %v863, %v1353
        %1355 = vst [vmem:[%s1321 + $0x38] sm:$0xf] %v1354
        %1356 = vst.msk [vmem:[%s1321 + $0x3c] sm:$0xf] %vm377, %v872
        %v1357 = vld [vmem:[%s1321 + $0x40] sm:$0xf]
        %v1358 = vsel %vm1324, %v879, %v1357
        %1359 = vst [vmem:[%s1321 + $0x40] sm:$0xf] %v1358
        %1360 = vst.msk [vmem:[%s1321 + $0x44] sm:$0xf] %vm377, %v888
        %v1361 = vld [vmem:[%s1321 + $0x48] sm:$0xf]
        %v1362 = vsel %vm1324, %v895, %v1361
        %1363 = vst [vmem:[%s1321 + $0x48] sm:$0xf] %v1362
        %1364 = vst.msk [vmem:[%s1321 + $0x4c] sm:$0xf] %vm377, %v904
        %v1365 = vld [vmem:[%s1321 + $0x50] sm:$0xf]
        %v1366 = vsel %vm1324, %v911, %v1365
        %1367 = vst [vmem:[%s1321 + $0x50] sm:$0xf] %v1366
        %1368 = vst.msk [vmem:[%s1321 + $0x54] sm:$0xf] %vm377, %v920
        %v1369 = vld [vmem:[%s1321 + $0x58] sm:$0xf]
        %v1370 = vsel %vm1324, %v927, %v1369
        %1371 = vst [vmem:[%s1321 + $0x58] sm:$0xf] %v1370
        %1372 = vst.msk [vmem:[%s1321 + $0x5c] sm:$0xf] %vm377, %v936
        %v1373 = vld [vmem:[%s1321 + $0x60] sm:$0xf]
        %v1374 = vsel %vm1324, %v943, %v1373
        %1375 = vst [vmem:[%s1321 + $0x60] sm:$0xf] %v1374
        %1376 = vst.msk [vmem:[%s1321 + $0x64] sm:$0xf] %vm377, %v952
        %v1377 = vld [vmem:[%s1321 + $0x68] sm:$0xf]
        %v1378 = vsel %vm1324, %v959, %v1377
        %1379 = vst [vmem:[%s1321 + $0x68] sm:$0xf] %v1378
        %1380 = vst.msk [vmem:[%s1321 + $0x6c] sm:$0xf] %vm377, %v968
        %v1381 = vld [vmem:[%s1321 + $0x70] sm:$0xf]
        %v1382 = vsel %vm1324, %v975, %v1381
        %1383 = vst [vmem:[%s1321 + $0x70] sm:$0xf] %v1382
        %1384 = vst.msk [vmem:[%s1321 + $0x74] sm:$0xf] %vm377, %v984
        %v1385 = vld [vmem:[%s1321 + $0x78] sm:$0xf]
        %v1386 = vsel %vm1324, %v991, %v1385
        %1387 = vst [vmem:[%s1321 + $0x78] sm:$0xf] %v1386
        %1388 = vst.msk [vmem:[%s1321 + $0x7c] sm:$0xf] %vm377, %v1000
        %v1389 = vld [vmem:[%s1321 + $0x80] sm:$0xf]
        %v1390 = vsel %vm1324, %v1007, %v1389
        %1391 = vst [vmem:[%s1321 + $0x80] sm:$0xf] %v1390
        %1392 = vst.msk [vmem:[%s1321 + $0x84] sm:$0xf] %vm377, %v1016
        %v1393 = vld [vmem:[%s1321 + $0x88] sm:$0xf]
        %v1394 = vsel %vm1324, %v1023, %v1393
        %1395 = vst [vmem:[%s1321 + $0x88] sm:$0xf] %v1394
        %1396 = vst.msk [vmem:[%s1321 + $0x8c] sm:$0xf] %vm377, %v1032
        %v1397 = vld [vmem:[%s1321 + $0x90] sm:$0xf]
        %v1398 = vsel %vm1324, %v1039, %v1397
        %1399 = vst [vmem:[%s1321 + $0x90] sm:$0xf] %v1398
        %1400 = vst.msk [vmem:[%s1321 + $0x94] sm:$0xf] %vm377, %v1048
        %v1401 = vld [vmem:[%s1321 + $0x98] sm:$0xf]
        %v1402 = vsel %vm1324, %v1055, %v1401
        %1403 = vst [vmem:[%s1321 + $0x98] sm:$0xf] %v1402
        %1404 = vst.msk [vmem:[%s1321 + $0x9c] sm:$0xf] %vm377, %v1064
        %v1405 = vld [vmem:[%s1321 + $0xa0] sm:$0xf]
        %v1406 = vsel %vm1324, %v1071, %v1405
        %1407 = vst [vmem:[%s1321 + $0xa0] sm:$0xf] %v1406
        %1408 = vst.msk [vmem:[%s1321 + $0xa4] sm:$0xf] %vm377, %v1080
        %v1409 = vld [vmem:[%s1321 + $0xa8] sm:$0xf]
        %v1410 = vsel %vm1324, %v1087, %v1409
        %1411 = vst [vmem:[%s1321 + $0xa8] sm:$0xf] %v1410
        %1412 = vst.msk [vmem:[%s1321 + $0xac] sm:$0xf] %vm377, %v1096
        %v1413 = vld [vmem:[%s1321 + $0xb0] sm:$0xf]
        %v1414 = vsel %vm1324, %v1103, %v1413
        %1415 = vst [vmem:[%s1321 + $0xb0] sm:$0xf] %v1414
        %1416 = vst.msk [vmem:[%s1321 + $0xb4] sm:$0xf] %vm377, %v1112
        %v1417 = vld [vmem:[%s1321 + $0xb8] sm:$0xf]
        %v1418 = vsel %vm1324, %v1119, %v1417
        %1419 = vst [vmem:[%s1321 + $0xb8] sm:$0xf] %v1418
        %1420 = vst.msk [vmem:[%s1321 + $0xbc] sm:$0xf] %vm377, %v1128
        %v1421 = vld [vmem:[%s1321 + $0xc0] sm:$0xf]
        %v1422 = vsel %vm1324, %v1135, %v1421
        %1423 = vst [vmem:[%s1321 + $0xc0] sm:$0xf] %v1422
        %1424 = vst.msk [vmem:[%s1321 + $0xc4] sm:$0xf] %vm377, %v1144
        %v1425 = vld [vmem:[%s1321 + $0xc8] sm:$0xf]
        %v1426 = vsel %vm1324, %v1151, %v1425
        %1427 = vst [vmem:[%s1321 + $0xc8] sm:$0xf] %v1426
        %1428 = vst.msk [vmem:[%s1321 + $0xcc] sm:$0xf] %vm377, %v1160
        %v1429 = vld [vmem:[%s1321 + $0xd0] sm:$0xf]
        %v1430 = vsel %vm1324, %v1167, %v1429
        %1431 = vst [vmem:[%s1321 + $0xd0] sm:$0xf] %v1430
        %1432 = vst.msk [vmem:[%s1321 + $0xd4] sm:$0xf] %vm377, %v1176
        %v1433 = vld [vmem:[%s1321 + $0xd8] sm:$0xf]
        %v1434 = vsel %vm1324, %v1183, %v1433
        %1435 = vst [vmem:[%s1321 + $0xd8] sm:$0xf] %v1434
        %1436 = vst.msk [vmem:[%s1321 + $0xdc] sm:$0xf] %vm377, %v1192
        %v1437 = vld [vmem:[%s1321 + $0xe0] sm:$0xf]
        %v1438 = vsel %vm1324, %v1199, %v1437
        %1439 = vst [vmem:[%s1321 + $0xe0] sm:$0xf] %v1438
        %1440 = vst.msk [vmem:[%s1321 + $0xe4] sm:$0xf] %vm377, %v1208
        %v1441 = vld [vmem:[%s1321 + $0xe8] sm:$0xf]
        %v1442 = vsel %vm1324, %v1215, %v1441
        %1443 = vst [vmem:[%s1321 + $0xe8] sm:$0xf] %v1442
        %1444 = vst.msk [vmem:[%s1321 + $0xec] sm:$0xf] %vm377, %v1224
        %v1445 = vld [vmem:[%s1321 + $0xf0] sm:$0xf]
        %v1446 = vsel %vm1324, %v1231, %v1445
        %1447 = vst [vmem:[%s1321 + $0xf0] sm:$0xf] %v1446
        %1448 = vst.msk [vmem:[%s1321 + $0xf4] sm:$0xf] %vm377, %v1240
        %v1449 = vld [vmem:[%s1321 + $0xf8] sm:$0xf]
        %v1450 = vsel %vm1324, %v1247, %v1449
        %1451 = vst [vmem:[%s1321 + $0xf8] sm:$0xf] %v1450
        %1452 = vst.msk [vmem:[%s1321 + $0xfc] sm:$0xf] %vm377, %v1256
        %s1517 = scalar_lea.vmem [#allocation2], 280
        %1518 = vst.msk [vmem:[%s1517] sm:$0xf] %vm377, %v678
        %1519 = vst.msk [vmem:[%s1517 + $0x4] sm:$0xf] %vm377, %v679
        %1520 = vst.msk [vmem:[%s1517 + $0x8] sm:$0xf] %vm377, %v680
        %1521 = vst.msk [vmem:[%s1517 + $0xc] sm:$0xf] %vm377, %v681
        %1522 = vst.msk [vmem:[%s1517 + $0x10] sm:$0xf] %vm377, %v682
        %1523 = vst.msk [vmem:[%s1517 + $0x14] sm:$0xf] %vm377, %v683
        %1524 = vst.msk [vmem:[%s1517 + $0x18] sm:$0xf] %vm377, %v684
        %1525 = vst.msk [vmem:[%s1517 + $0x1c] sm:$0xf] %vm377, %v685
        %1526 = vst.msk [vmem:[%s1517 + $0x20] sm:$0xf] %vm377, %v686
        %1527 = vst.msk [vmem:[%s1517 + $0x24] sm:$0xf] %vm377, %v687
        %1528 = vst.msk [vmem:[%s1517 + $0x28] sm:$0xf] %vm377, %v688
        %1529 = vst.msk [vmem:[%s1517 + $0x2c] sm:$0xf] %vm377, %v689
        %1530 = vst.msk [vmem:[%s1517 + $0x30] sm:$0xf] %vm377, %v690
        %1531 = vst.msk [vmem:[%s1517 + $0x34] sm:$0xf] %vm377, %v691
        %1532 = vst.msk [vmem:[%s1517 + $0x38] sm:$0xf] %vm377, %v692
        %1533 = vst.msk [vmem:[%s1517 + $0x3c] sm:$0xf] %vm377, %v693
        %1534 = vst.msk [vmem:[%s1517 + $0x40] sm:$0xf] %vm377, %v694
        %1535 = vst.msk [vmem:[%s1517 + $0x44] sm:$0xf] %vm377, %v695
        %1536 = vst.msk [vmem:[%s1517 + $0x48] sm:$0xf] %vm377, %v696
        %1537 = vst.msk [vmem:[%s1517 + $0x4c] sm:$0xf] %vm377, %v697
        %1538 = vst.msk [vmem:[%s1517 + $0x50] sm:$0xf] %vm377, %v698
        %1539 = vst.msk [vmem:[%s1517 + $0x54] sm:$0xf] %vm377, %v699
        %1540 = vst.msk [vmem:[%s1517 + $0x58] sm:$0xf] %vm377, %v700
        %1541 = vst.msk [vmem:[%s1517 + $0x5c] sm:$0xf] %vm377, %v701
        %1542 = vst.msk [vmem:[%s1517 + $0x60] sm:$0xf] %vm377, %v702
        %1543 = vst.msk [vmem:[%s1517 + $0x64] sm:$0xf] %vm377, %v703
        %1544 = vst.msk [vmem:[%s1517 + $0x68] sm:$0xf] %vm377, %v704
        %1545 = vst.msk [vmem:[%s1517 + $0x6c] sm:$0xf] %vm377, %v705
        %1546 = vst.msk [vmem:[%s1517 + $0x70] sm:$0xf] %vm377, %v706
        %1547 = vst.msk [vmem:[%s1517 + $0x74] sm:$0xf] %vm377, %v707
        %1548 = vst.msk [vmem:[%s1517 + $0x78] sm:$0xf] %vm377, %v708
        %1549 = vst.msk [vmem:[%s1517 + $0x7c] sm:$0xf] %vm377, %v709
        %1550 = vst.msk [vmem:[%s1517 + $0x80] sm:$0xf] %vm377, %v710
        %1551 = vst.msk [vmem:[%s1517 + $0x84] sm:$0xf] %vm377, %v711
        %1552 = vst.msk [vmem:[%s1517 + $0x88] sm:$0xf] %vm377, %v712
        %1553 = vst.msk [vmem:[%s1517 + $0x8c] sm:$0xf] %vm377, %v713
        %1554 = vst.msk [vmem:[%s1517 + $0x90] sm:$0xf] %vm377, %v714
        %1555 = vst.msk [vmem:[%s1517 + $0x94] sm:$0xf] %vm377, %v715
        %1556 = vst.msk [vmem:[%s1517 + $0x98] sm:$0xf] %vm377, %v716
        %1557 = vst.msk [vmem:[%s1517 + $0x9c] sm:$0xf] %vm377, %v717
        %1558 = vst.msk [vmem:[%s1517 + $0xa0] sm:$0xf] %vm377, %v718
        %1559 = vst.msk [vmem:[%s1517 + $0xa4] sm:$0xf] %vm377, %v719
        %1560 = vst.msk [vmem:[%s1517 + $0xa8] sm:$0xf] %vm377, %v720
        %1561 = vst.msk [vmem:[%s1517 + $0xac] sm:$0xf] %vm377, %v721
        %1562 = vst.msk [vmem:[%s1517 + $0xb0] sm:$0xf] %vm377, %v722
        %1563 = vst.msk [vmem:[%s1517 + $0xb4] sm:$0xf] %vm377, %v723
        %1564 = vst.msk [vmem:[%s1517 + $0xb8] sm:$0xf] %vm377, %v724
        %1565 = vst.msk [vmem:[%s1517 + $0xbc] sm:$0xf] %vm377, %v725
        %1566 = vst.msk [vmem:[%s1517 + $0xc0] sm:$0xf] %vm377, %v726
        %1567 = vst.msk [vmem:[%s1517 + $0xc4] sm:$0xf] %vm377, %v727
        %1568 = vst.msk [vmem:[%s1517 + $0xc8] sm:$0xf] %vm377, %v728
        %1569 = vst.msk [vmem:[%s1517 + $0xcc] sm:$0xf] %vm377, %v729
        %1570 = vst.msk [vmem:[%s1517 + $0xd0] sm:$0xf] %vm377, %v730
        %1571 = vst.msk [vmem:[%s1517 + $0xd4] sm:$0xf] %vm377, %v731
        %1572 = vst.msk [vmem:[%s1517 + $0xd8] sm:$0xf] %vm377, %v732
        %1573 = vst.msk [vmem:[%s1517 + $0xdc] sm:$0xf] %vm377, %v733
        %1574 = vst.msk [vmem:[%s1517 + $0xe0] sm:$0xf] %vm377, %v734
        %1575 = vst.msk [vmem:[%s1517 + $0xe4] sm:$0xf] %vm377, %v735
        %1576 = vst.msk [vmem:[%s1517 + $0xe8] sm:$0xf] %vm377, %v736
        %1577 = vst.msk [vmem:[%s1517 + $0xec] sm:$0xf] %vm377, %v737
        %1578 = vst.msk [vmem:[%s1517 + $0xf0] sm:$0xf] %vm377, %v738
        %1579 = vst.msk [vmem:[%s1517 + $0xf4] sm:$0xf] %vm377, %v739
        %1580 = vst.msk [vmem:[%s1517 + $0xf8] sm:$0xf] %vm377, %v740
        %1581 = vst.msk [vmem:[%s1517 + $0xfc] sm:$0xf] %vm377, %v741
        %vm1582 = vsmask.f32 3328
        %vm1583 = vsmask.f32 7440
        %vm1584 = vmor %vm1582, %vm1583
        %v1585 = vrot.slane %v746, 4
        %v1586 = vrot.slane %v749, 5
        %v1587 = vor.u32 %v1585, %v1586
        %v1588 = vrot.slane %v1587, 4
        %v1589 = vrot.slane %v757, 5
        %v1590 = vsel %vm1584, %v1588, %v1589
        %v1591 = vrot.slane %v754, 4
        %v1592 = vor.u32 %v1591, %v1589
        %v1593 = vrot.slane %v1592, 4
        %v1594 = vrot.slane %v762, 4
        %v1595 = vrot.slane %v765, 5
        %v1596 = vor.u32 %v1594, %v1595
        %v1597 = vrot.slane %v1596, 4
        %v1598 = vrot.slane %v773, 5
        %v1599 = vsel %vm1584, %v1597, %v1598
        %v1600 = vrot.slane %v770, 4
        %v1601 = vor.u32 %v1600, %v1598
        %v1602 = vrot.slane %v1601, 4
        %v1603 = vrot.slane %v778, 4
        %v1604 = vrot.slane %v781, 5
        %v1605 = vor.u32 %v1603, %v1604
        %v1606 = vrot.slane %v1605, 4
        %v1607 = vrot.slane %v789, 5
        %v1608 = vsel %vm1584, %v1606, %v1607
        %v1609 = vrot.slane %v786, 4
        %v1610 = vor.u32 %v1609, %v1607
        %v1611 = vrot.slane %v1610, 4
        %v1612 = vrot.slane %v794, 4
        %v1613 = vrot.slane %v797, 5
        %v1614 = vor.u32 %v1612, %v1613
        %v1615 = vrot.slane %v1614, 4
        %v1616 = vrot.slane %v805, 5
        %v1617 = vsel %vm1584, %v1615, %v1616
        %v1618 = vrot.slane %v802, 4
        %v1619 = vor.u32 %v1618, %v1616
        %v1620 = vrot.slane %v1619, 4
        %v1621 = vrot.slane %v810, 4
        %v1622 = vrot.slane %v813, 5
        %v1623 = vor.u32 %v1621, %v1622
        %v1624 = vrot.slane %v1623, 4
        %v1625 = vrot.slane %v821, 5
        %v1626 = vsel %vm1584, %v1624, %v1625
        %v1627 = vrot.slane %v818, 4
        %v1628 = vor.u32 %v1627, %v1625
        %v1629 = vrot.slane %v1628, 4
        %v1630 = vrot.slane %v826, 4
        %v1631 = vrot.slane %v829, 5
        %v1632 = vor.u32 %v1630, %v1631
        %v1633 = vrot.slane %v1632, 4
        %v1634 = vrot.slane %v837, 5
        %v1635 = vsel %vm1584, %v1633, %v1634
        %v1636 = vrot.slane %v834, 4
        %v1637 = vor.u32 %v1636, %v1634
        %v1638 = vrot.slane %v1637, 4
        %v1639 = vrot.slane %v842, 4
        %v1640 = vrot.slane %v845, 5
        %v1641 = vor.u32 %v1639, %v1640
        %v1642 = vrot.slane %v1641, 4
        %v1643 = vrot.slane %v853, 5
        %v1644 = vsel %vm1584, %v1642, %v1643
        %v1645 = vrot.slane %v850, 4
        %v1646 = vor.u32 %v1645, %v1643
        %v1647 = vrot.slane %v1646, 4
        %v1648 = vrot.slane %v858, 4
        %v1649 = vrot.slane %v861, 5
        %v1650 = vor.u32 %v1648, %v1649
        %v1651 = vrot.slane %v1650, 4
        %v1652 = vrot.slane %v869, 5
        %v1653 = vsel %vm1584, %v1651, %v1652
        %v1654 = vrot.slane %v866, 4
        %v1655 = vor.u32 %v1654, %v1652
        %v1656 = vrot.slane %v1655, 4
        %v1657 = vrot.slane %v874, 4
        %v1658 = vrot.slane %v877, 5
        %v1659 = vor.u32 %v1657, %v1658
        %v1660 = vrot.slane %v1659, 4
        %v1661 = vrot.slane %v885, 5
        %v1662 = vsel %vm1584, %v1660, %v1661
        %v1663 = vrot.slane %v882, 4
        %v1664 = vor.u32 %v1663, %v1661
        %v1665 = vrot.slane %v1664, 4
        %v1666 = vrot.slane %v890, 4
        %v1667 = vrot.slane %v893, 5
        %v1668 = vor.u32 %v1666, %v1667
        %v1669 = vrot.slane %v1668, 4
        %v1670 = vrot.slane %v901, 5
        %v1671 = vsel %vm1584, %v1669, %v1670
        %v1672 = vrot.slane %v898, 4
        %v1673 = vor.u32 %v1672, %v1670
        %v1674 = vrot.slane %v1673, 4
        %v1675 = vrot.slane %v906, 4
        %v1676 = vrot.slane %v909, 5
        %v1677 = vor.u32 %v1675, %v1676
        %v1678 = vrot.slane %v1677, 4
        %v1679 = vrot.slane %v917, 5
        %v1680 = vsel %vm1584, %v1678, %v1679
        %v1681 = vrot.slane %v914, 4
        %v1682 = vor.u32 %v1681, %v1679
        %v1683 = vrot.slane %v1682, 4
        %v1684 = vrot.slane %v922, 4
        %v1685 = vrot.slane %v925, 5
        %v1686 = vor.u32 %v1684, %v1685
        %v1687 = vrot.slane %v1686, 4
        %v1688 = vrot.slane %v933, 5
        %v1689 = vsel %vm1584, %v1687, %v1688
        %v1690 = vrot.slane %v930, 4
        %v1691 = vor.u32 %v1690, %v1688
        %v1692 = vrot.slane %v1691, 4
        %v1693 = vrot.slane %v938, 4
        %v1694 = vrot.slane %v941, 5
        %v1695 = vor.u32 %v1693, %v1694
        %v1696 = vrot.slane %v1695, 4
        %v1697 = vrot.slane %v949, 5
        %v1698 = vsel %vm1584, %v1696, %v1697
        %v1699 = vrot.slane %v946, 4
        %v1700 = vor.u32 %v1699, %v1697
        %v1701 = vrot.slane %v1700, 4
        %v1702 = vrot.slane %v954, 4
        %v1703 = vrot.slane %v957, 5
        %v1704 = vor.u32 %v1702, %v1703
        %v1705 = vrot.slane %v1704, 4
        %v1706 = vrot.slane %v965, 5
        %v1707 = vsel %vm1584, %v1705, %v1706
        %v1708 = vrot.slane %v962, 4
        %v1709 = vor.u32 %v1708, %v1706
        %v1710 = vrot.slane %v1709, 4
        %v1711 = vrot.slane %v970, 4
        %v1712 = vrot.slane %v973, 5
        %v1713 = vor.u32 %v1711, %v1712
        %v1714 = vrot.slane %v1713, 4
        %v1715 = vrot.slane %v981, 5
        %v1716 = vsel %vm1584, %v1714, %v1715
        %v1717 = vrot.slane %v978, 4
        %v1718 = vor.u32 %v1717, %v1715
        %v1719 = vrot.slane %v1718, 4
        %v1720 = vrot.slane %v986, 4
        %v1721 = vrot.slane %v989, 5
        %v1722 = vor.u32 %v1720, %v1721
        %v1723 = vrot.slane %v1722, 4
        %v1724 = vrot.slane %v997, 5
        %v1725 = vsel %vm1584, %v1723, %v1724
        %v1726 = vrot.slane %v994, 4
        %v1727 = vor.u32 %v1726, %v1724
        %v1728 = vrot.slane %v1727, 4
        %v1729 = vrot.slane %v1002, 4
        %v1730 = vrot.slane %v1005, 5
        %v1731 = vor.u32 %v1729, %v1730
        %v1732 = vrot.slane %v1731, 4
        %v1733 = vrot.slane %v1013, 5
        %v1734 = vsel %vm1584, %v1732, %v1733
        %v1735 = vrot.slane %v1010, 4
        %v1736 = vor.u32 %v1735, %v1733
        %v1737 = vrot.slane %v1736, 4
        %v1738 = vrot.slane %v1018, 4
        %v1739 = vrot.slane %v1021, 5
        %v1740 = vor.u32 %v1738, %v1739
        %v1741 = vrot.slane %v1740, 4
        %v1742 = vrot.slane %v1029, 5
        %v1743 = vsel %vm1584, %v1741, %v1742
        %v1744 = vrot.slane %v1026, 4
        %v1745 = vor.u32 %v1744, %v1742
        %v1746 = vrot.slane %v1745, 4
        %v1747 = vrot.slane %v1034, 4
        %v1748 = vrot.slane %v1037, 5
        %v1749 = vor.u32 %v1747, %v1748
        %v1750 = vrot.slane %v1749, 4
        %v1751 = vrot.slane %v1045, 5
        %v1752 = vsel %vm1584, %v1750, %v1751
        %v1753 = vrot.slane %v1042, 4
        %v1754 = vor.u32 %v1753, %v1751
        %v1755 = vrot.slane %v1754, 4
        %v1756 = vrot.slane %v1050, 4
        %v1757 = vrot.slane %v1053, 5
        %v1758 = vor.u32 %v1756, %v1757
        %v1759 = vrot.slane %v1758, 4
        %v1760 = vrot.slane %v1061, 5
        %v1761 = vsel %vm1584, %v1759, %v1760
        %v1762 = vrot.slane %v1058, 4
        %v1763 = vor.u32 %v1762, %v1760
        %v1764 = vrot.slane %v1763, 4
        %v1765 = vrot.slane %v1066, 4
        %v1766 = vrot.slane %v1069, 5
        %v1767 = vor.u32 %v1765, %v1766
        %v1768 = vrot.slane %v1767, 4
        %v1769 = vrot.slane %v1077, 5
        %v1770 = vsel %vm1584, %v1768, %v1769
        %v1771 = vrot.slane %v1074, 4
        %v1772 = vor.u32 %v1771, %v1769
        %v1773 = vrot.slane %v1772, 4
        %v1774 = vrot.slane %v1082, 4
        %v1775 = vrot.slane %v1085, 5
        %v1776 = vor.u32 %v1774, %v1775
        %v1777 = vrot.slane %v1776, 4
        %v1778 = vrot.slane %v1093, 5
        %v1779 = vsel %vm1584, %v1777, %v1778
        %v1780 = vrot.slane %v1090, 4
        %v1781 = vor.u32 %v1780, %v1778
        %v1782 = vrot.slane %v1781, 4
        %v1783 = vrot.slane %v1098, 4
        %v1784 = vrot.slane %v1101, 5
        %v1785 = vor.u32 %v1783, %v1784
        %v1786 = vrot.slane %v1785, 4
        %v1787 = vrot.slane %v1109, 5
        %v1788 = vsel %vm1584, %v1786, %v1787
        %v1789 = vrot.slane %v1106, 4
        %v1790 = vor.u32 %v1789, %v1787
        %v1791 = vrot.slane %v1790, 4
        %v1792 = vrot.slane %v1114, 4
        %v1793 = vrot.slane %v1117, 5
        %v1794 = vor.u32 %v1792, %v1793
        %v1795 = vrot.slane %v1794, 4
        %v1796 = vrot.slane %v1125, 5
        %v1797 = vsel %vm1584, %v1795, %v1796
        %v1798 = vrot.slane %v1122, 4
        %v1799 = vor.u32 %v1798, %v1796
        %v1800 = vrot.slane %v1799, 4
        %v1801 = vrot.slane %v1130, 4
        %v1802 = vrot.slane %v1133, 5
        %v1803 = vor.u32 %v1801, %v1802
        %v1804 = vrot.slane %v1803, 4
        %v1805 = vrot.slane %v1141, 5
        %v1806 = vsel %vm1584, %v1804, %v1805
        %v1807 = vrot.slane %v1138, 4
        %v1808 = vor.u32 %v1807, %v1805
        %v1809 = vrot.slane %v1808, 4
        %v1810 = vrot.slane %v1146, 4
        %v1811 = vrot.slane %v1149, 5
        %v1812 = vor.u32 %v1810, %v1811
        %v1813 = vrot.slane %v1812, 4
        %v1814 = vrot.slane %v1157, 5
        %v1815 = vsel %vm1584, %v1813, %v1814
        %v1816 = vrot.slane %v1154, 4
        %v1817 = vor.u32 %v1816, %v1814
        %v1818 = vrot.slane %v1817, 4
        %v1819 = vrot.slane %v1162, 4
        %v1820 = vrot.slane %v1165, 5
        %v1821 = vor.u32 %v1819, %v1820
        %v1822 = vrot.slane %v1821, 4
        %v1823 = vrot.slane %v1173, 5
        %v1824 = vsel %vm1584, %v1822, %v1823
        %v1825 = vrot.slane %v1170, 4
        %v1826 = vor.u32 %v1825, %v1823
        %v1827 = vrot.slane %v1826, 4
        %v1828 = vrot.slane %v1178, 4
        %v1829 = vrot.slane %v1181, 5
        %v1830 = vor.u32 %v1828, %v1829
        %v1831 = vrot.slane %v1830, 4
        %v1832 = vrot.slane %v1189, 5
        %v1833 = vsel %vm1584, %v1831, %v1832
        %v1834 = vrot.slane %v1186, 4
        %v1835 = vor.u32 %v1834, %v1832
        %v1836 = vrot.slane %v1835, 4
        %v1837 = vrot.slane %v1194, 4
        %v1838 = vrot.slane %v1197, 5
        %v1839 = vor.u32 %v1837, %v1838
        %v1840 = vrot.slane %v1839, 4
        %v1841 = vrot.slane %v1205, 5
        %v1842 = vsel %vm1584, %v1840, %v1841
        %v1843 = vrot.slane %v1202, 4
        %v1844 = vor.u32 %v1843, %v1841
        %v1845 = vrot.slane %v1844, 4
        %v1846 = vrot.slane %v1210, 4
        %v1847 = vrot.slane %v1213, 5
        %v1848 = vor.u32 %v1846, %v1847
        %v1849 = vrot.slane %v1848, 4
        %v1850 = vrot.slane %v1221, 5
        %v1851 = vsel %vm1584, %v1849, %v1850
        %v1852 = vrot.slane %v1218, 4
        %v1853 = vor.u32 %v1852, %v1850
        %v1854 = vrot.slane %v1853, 4
        %v1855 = vrot.slane %v1226, 4
        %v1856 = vrot.slane %v1229, 5
        %v1857 = vor.u32 %v1855, %v1856
        %v1858 = vrot.slane %v1857, 4
        %v1859 = vrot.slane %v1237, 5
        %v1860 = vsel %vm1584, %v1858, %v1859
        %v1861 = vrot.slane %v1234, 4
        %v1862 = vor.u32 %v1861, %v1859
        %v1863 = vrot.slane %v1862, 4
        %v1864 = vrot.slane %v1242, 4
        %v1865 = vrot.slane %v1245, 5
        %v1866 = vor.u32 %v1864, %v1865
        %v1867 = vrot.slane %v1866, 4
        %v1868 = vrot.slane %v1253, 5
        %v1869 = vsel %vm1584, %v1867, %v1868
        %v1870 = vrot.slane %v1250, 4
        %v1871 = vor.u32 %v1870, %v1868
        %v1872 = vrot.slane %v1871, 4
        %s1937 = scalar_lea.vmem [#allocation2], 552
        %1938 = vst.msk [vmem:[%s1937] sm:$0xf] %vm377, %v1590
        %vm1939 = vmand %vm1322, %vm1582
        %v1940 = vld [vmem:[%s1937 + $0x4] sm:$0xf]
        %v1941 = vsel %vm1939, %v1593, %v1940
        %1942 = vst [vmem:[%s1937 + $0x4] sm:$0xf] %v1941
        %1943 = vst.msk [vmem:[%s1937 + $0x8] sm:$0xf] %vm377, %v1599
        %v1944 = vld [vmem:[%s1937 + $0xc] sm:$0xf]
        %v1945 = vsel %vm1939, %v1602, %v1944
        %1946 = vst [vmem:[%s1937 + $0xc] sm:$0xf] %v1945
        %1947 = vst.msk [vmem:[%s1937 + $0x10] sm:$0xf] %vm377, %v1608
        %v1948 = vld [vmem:[%s1937 + $0x14] sm:$0xf]
        %v1949 = vsel %vm1939, %v1611, %v1948
        %1950 = vst [vmem:[%s1937 + $0x14] sm:$0xf] %v1949
        %1951 = vst.msk [vmem:[%s1937 + $0x18] sm:$0xf] %vm377, %v1617
        %v1952 = vld [vmem:[%s1937 + $0x1c] sm:$0xf]
        %v1953 = vsel %vm1939, %v1620, %v1952
        %1954 = vst [vmem:[%s1937 + $0x1c] sm:$0xf] %v1953
        %1955 = vst.msk [vmem:[%s1937 + $0x20] sm:$0xf] %vm377, %v1626
        %v1956 = vld [vmem:[%s1937 + $0x24] sm:$0xf]
        %v1957 = vsel %vm1939, %v1629, %v1956
        %1958 = vst [vmem:[%s1937 + $0x24] sm:$0xf] %v1957
        %1959 = vst.msk [vmem:[%s1937 + $0x28] sm:$0xf] %vm377, %v1635
        %v1960 = vld [vmem:[%s1937 + $0x2c] sm:$0xf]
        %v1961 = vsel %vm1939, %v1638, %v1960
        %1962 = vst [vmem:[%s1937 + $0x2c] sm:$0xf] %v1961
        %1963 = vst.msk [vmem:[%s1937 + $0x30] sm:$0xf] %vm377, %v1644
        %v1964 = vld [vmem:[%s1937 + $0x34] sm:$0xf]
        %v1965 = vsel %vm1939, %v1647, %v1964
        %1966 = vst [vmem:[%s1937 + $0x34] sm:$0xf] %v1965
        %1967 = vst.msk [vmem:[%s1937 + $0x38] sm:$0xf] %vm377, %v1653
        %v1968 = vld [vmem:[%s1937 + $0x3c] sm:$0xf]
        %v1969 = vsel %vm1939, %v1656, %v1968
        %1970 = vst [vmem:[%s1937 + $0x3c] sm:$0xf] %v1969
        %1971 = vst.msk [vmem:[%s1937 + $0x40] sm:$0xf] %vm377, %v1662
        %v1972 = vld [vmem:[%s1937 + $0x44] sm:$0xf]
        %v1973 = vsel %vm1939, %v1665, %v1972
        %1974 = vst [vmem:[%s1937 + $0x44] sm:$0xf] %v1973
        %1975 = vst.msk [vmem:[%s1937 + $0x48] sm:$0xf] %vm377, %v1671
        %v1976 = vld [vmem:[%s1937 + $0x4c] sm:$0xf]
        %v1977 = vsel %vm1939, %v1674, %v1976
        %1978 = vst [vmem:[%s1937 + $0x4c] sm:$0xf] %v1977
        %1979 = vst.msk [vmem:[%s1937 + $0x50] sm:$0xf] %vm377, %v1680
        %v1980 = vld [vmem:[%s1937 + $0x54] sm:$0xf]
        %v1981 = vsel %vm1939, %v1683, %v1980
        %1982 = vst [vmem:[%s1937 + $0x54] sm:$0xf] %v1981
        %1983 = vst.msk [vmem:[%s1937 + $0x58] sm:$0xf] %vm377, %v1689
        %v1984 = vld [vmem:[%s1937 + $0x5c] sm:$0xf]
        %v1985 = vsel %vm1939, %v1692, %v1984
        %1986 = vst [vmem:[%s1937 + $0x5c] sm:$0xf] %v1985
        %1987 = vst.msk [vmem:[%s1937 + $0x60] sm:$0xf] %vm377, %v1698
        %v1988 = vld [vmem:[%s1937 + $0x64] sm:$0xf]
        %v1989 = vsel %vm1939, %v1701, %v1988
        %1990 = vst [vmem:[%s1937 + $0x64] sm:$0xf] %v1989
        %1991 = vst.msk [vmem:[%s1937 + $0x68] sm:$0xf] %vm377, %v1707
        %v1992 = vld [vmem:[%s1937 + $0x6c] sm:$0xf]
        %v1993 = vsel %vm1939, %v1710, %v1992
        %1994 = vst [vmem:[%s1937 + $0x6c] sm:$0xf] %v1993
        %1995 = vst.msk [vmem:[%s1937 + $0x70] sm:$0xf] %vm377, %v1716
        %v1996 = vld [vmem:[%s1937 + $0x74] sm:$0xf]
        %v1997 = vsel %vm1939, %v1719, %v1996
        %1998 = vst [vmem:[%s1937 + $0x74] sm:$0xf] %v1997
        %1999 = vst.msk [vmem:[%s1937 + $0x78] sm:$0xf] %vm377, %v1725
        %v2000 = vld [vmem:[%s1937 + $0x7c] sm:$0xf]
        %v2001 = vsel %vm1939, %v1728, %v2000
        %2002 = vst [vmem:[%s1937 + $0x7c] sm:$0xf] %v2001
        %2003 = vst.msk [vmem:[%s1937 + $0x80] sm:$0xf] %vm377, %v1734
        %v2004 = vld [vmem:[%s1937 + $0x84] sm:$0xf]
        %v2005 = vsel %vm1939, %v1737, %v2004
        %2006 = vst [vmem:[%s1937 + $0x84] sm:$0xf] %v2005
        %2007 = vst.msk [vmem:[%s1937 + $0x88] sm:$0xf] %vm377, %v1743
        %v2008 = vld [vmem:[%s1937 + $0x8c] sm:$0xf]
        %v2009 = vsel %vm1939, %v1746, %v2008
        %2010 = vst [vmem:[%s1937 + $0x8c] sm:$0xf] %v2009
        %2011 = vst.msk [vmem:[%s1937 + $0x90] sm:$0xf] %vm377, %v1752
        %v2012 = vld [vmem:[%s1937 + $0x94] sm:$0xf]
        %v2013 = vsel %vm1939, %v1755, %v2012
        %2014 = vst [vmem:[%s1937 + $0x94] sm:$0xf] %v2013
        %2015 = vst.msk [vmem:[%s1937 + $0x98] sm:$0xf] %vm377, %v1761
        %v2016 = vld [vmem:[%s1937 + $0x9c] sm:$0xf]
        %v2017 = vsel %vm1939, %v1764, %v2016
        %2018 = vst [vmem:[%s1937 + $0x9c] sm:$0xf] %v2017
        %2019 = vst.msk [vmem:[%s1937 + $0xa0] sm:$0xf] %vm377, %v1770
        %v2020 = vld [vmem:[%s1937 + $0xa4] sm:$0xf]
        %v2021 = vsel %vm1939, %v1773, %v2020
        %2022 = vst [vmem:[%s1937 + $0xa4] sm:$0xf] %v2021
        %2023 = vst.msk [vmem:[%s1937 + $0xa8] sm:$0xf] %vm377, %v1779
        %v2024 = vld [vmem:[%s1937 + $0xac] sm:$0xf]
        %v2025 = vsel %vm1939, %v1782, %v2024
        %2026 = vst [vmem:[%s1937 + $0xac] sm:$0xf] %v2025
        %2027 = vst.msk [vmem:[%s1937 + $0xb0] sm:$0xf] %vm377, %v1788
        %v2028 = vld [vmem:[%s1937 + $0xb4] sm:$0xf]
        %v2029 = vsel %vm1939, %v1791, %v2028
        %2030 = vst [vmem:[%s1937 + $0xb4] sm:$0xf] %v2029
        %2031 = vst.msk [vmem:[%s1937 + $0xb8] sm:$0xf] %vm377, %v1797
        %v2032 = vld [vmem:[%s1937 + $0xbc] sm:$0xf]
        %v2033 = vsel %vm1939, %v1800, %v2032
        %2034 = vst [vmem:[%s1937 + $0xbc] sm:$0xf] %v2033
        %2035 = vst.msk [vmem:[%s1937 + $0xc0] sm:$0xf] %vm377, %v1806
        %v2036 = vld [vmem:[%s1937 + $0xc4] sm:$0xf]
        %v2037 = vsel %vm1939, %v1809, %v2036
        %2038 = vst [vmem:[%s1937 + $0xc4] sm:$0xf] %v2037
        %2039 = vst.msk [vmem:[%s1937 + $0xc8] sm:$0xf] %vm377, %v1815
        %v2040 = vld [vmem:[%s1937 + $0xcc] sm:$0xf]
        %v2041 = vsel %vm1939, %v1818, %v2040
        %2042 = vst [vmem:[%s1937 + $0xcc] sm:$0xf] %v2041
        %2043 = vst.msk [vmem:[%s1937 + $0xd0] sm:$0xf] %vm377, %v1824
        %v2044 = vld [vmem:[%s1937 + $0xd4] sm:$0xf]
        %v2045 = vsel %vm1939, %v1827, %v2044
        %2046 = vst [vmem:[%s1937 + $0xd4] sm:$0xf] %v2045
        %2047 = vst.msk [vmem:[%s1937 + $0xd8] sm:$0xf] %vm377, %v1833
        %v2048 = vld [vmem:[%s1937 + $0xdc] sm:$0xf]
        %v2049 = vsel %vm1939, %v1836, %v2048
        %2050 = vst [vmem:[%s1937 + $0xdc] sm:$0xf] %v2049
        %2051 = vst.msk [vmem:[%s1937 + $0xe0] sm:$0xf] %vm377, %v1842
        %v2052 = vld [vmem:[%s1937 + $0xe4] sm:$0xf]
        %v2053 = vsel %vm1939, %v1845, %v2052
        %2054 = vst [vmem:[%s1937 + $0xe4] sm:$0xf] %v2053
        %2055 = vst.msk [vmem:[%s1937 + $0xe8] sm:$0xf] %vm377, %v1851
        %v2056 = vld [vmem:[%s1937 + $0xec] sm:$0xf]
        %v2057 = vsel %vm1939, %v1854, %v2056
        %2058 = vst [vmem:[%s1937 + $0xec] sm:$0xf] %v2057
        %2059 = vst.msk [vmem:[%s1937 + $0xf0] sm:$0xf] %vm377, %v1860
        %v2060 = vld [vmem:[%s1937 + $0xf4] sm:$0xf]
        %v2061 = vsel %vm1939, %v1863, %v2060
        %2062 = vst [vmem:[%s1937 + $0xf4] sm:$0xf] %v2061
        %2063 = vst.msk [vmem:[%s1937 + $0xf8] sm:$0xf] %vm377, %v1869
        %v2064 = vld [vmem:[%s1937 + $0xfc] sm:$0xf]
        %v2065 = vsel %vm1939, %v1872, %v2064
        %2066 = vst [vmem:[%s1937 + $0xfc] sm:$0xf] %v2065
        %v2067 = vld [vmem:[#allocation2] sm:$0xf]
        %v2068 = vld [vmem:[#allocation2 + $0x4] sm:$0xf]
        %v2069 = vld [vmem:[#allocation2 + $0x8] sm:$0xf]
        %v2070 = vld [vmem:[#allocation2 + $0xc] sm:$0xf]
        %v2071 = vld [vmem:[#allocation2 + $0x10] sm:$0xf]
        %v2072 = vld [vmem:[#allocation2 + $0x14] sm:$0xf]
        %v2073 = vld [vmem:[#allocation2 + $0x18] sm:$0xf]
        %v2074 = vld [vmem:[#allocation2 + $0x1c] sm:$0xf]
        %v2075 = vld [vmem:[#allocation2 + $0x20] sm:$0xf]
        %v2076 = vld [vmem:[#allocation2 + $0x24] sm:$0xf]
        %v2077 = vld [vmem:[#allocation2 + $0x28] sm:$0xf]
        %v2078 = vld [vmem:[#allocation2 + $0x2c] sm:$0xf]
        %v2079 = vld [vmem:[#allocation2 + $0x30] sm:$0xf]
        %v2080 = vld [vmem:[#allocation2 + $0x34] sm:$0xf]
        %v2081 = vld [vmem:[#allocation2 + $0x38] sm:$0xf]
        %v2082 = vld [vmem:[#allocation2 + $0x3c] sm:$0xf]
        %v2083 = vld [vmem:[#allocation2 + $0x40] sm:$0xf]
        %v2084 = vld [vmem:[#allocation2 + $0x44] sm:$0xf]
        %v2085 = vld [vmem:[#allocation2 + $0x48] sm:$0xf]
        %v2086 = vld [vmem:[#allocation2 + $0x4c] sm:$0xf]
        %v2087 = vld [vmem:[#allocation2 + $0x50] sm:$0xf]
        %v2088 = vld [vmem:[#allocation2 + $0x54] sm:$0xf]
        %v2089 = vld [vmem:[#allocation2 + $0x58] sm:$0xf]
        %v2090 = vld [vmem:[#allocation2 + $0x5c] sm:$0xf]
        %v2091 = vld [vmem:[#allocation2 + $0x60] sm:$0xf]
        %v2092 = vld [vmem:[#allocation2 + $0x64] sm:$0xf]
        %v2093 = vld [vmem:[#allocation2 + $0x68] sm:$0xf]
        %v2094 = vld [vmem:[#allocation2 + $0x6c] sm:$0xf]
        %v2095 = vld [vmem:[#allocation2 + $0x70] sm:$0xf]
        %v2096 = vld [vmem:[#allocation2 + $0x74] sm:$0xf]
        %v2097 = vld [vmem:[#allocation2 + $0x78] sm:$0xf]
        %v2098 = vld [vmem:[#allocation2 + $0x7c] sm:$0xf]
        %v2099 = vld [vmem:[#allocation2 + $0x80] sm:$0xf]
        %v2100 = vld [vmem:[#allocation2 + $0x84] sm:$0xf]
        %v2101 = vld [vmem:[#allocation2 + $0x88] sm:$0xf]
        %v2102 = vld [vmem:[#allocation2 + $0x8c] sm:$0xf]
        %v2103 = vld [vmem:[#allocation2 + $0x90] sm:$0xf]
        %v2104 = vld [vmem:[#allocation2 + $0x94] sm:$0xf]
        %v2105 = vld [vmem:[#allocation2 + $0x98] sm:$0xf]
        %v2106 = vld [vmem:[#allocation2 + $0x9c] sm:$0xf]
        %v2107 = vld [vmem:[#allocation2 + $0xa0] sm:$0xf]
        %v2108 = vld [vmem:[#allocation2 + $0xa4] sm:$0xf]
        %v2109 = vld [vmem:[#allocation2 + $0xa8] sm:$0xf]
        %v2110 = vld [vmem:[#allocation2 + $0xac] sm:$0xf]
        %v2111 = vld [vmem:[#allocation2 + $0xb0] sm:$0xf]
        %v2112 = vld [vmem:[#allocation2 + $0xb4] sm:$0xf]
        %v2113 = vld [vmem:[#allocation2 + $0xb8] sm:$0xf]
        %v2114 = vld [vmem:[#allocation2 + $0xbc] sm:$0xf]
        %v2115 = vld [vmem:[#allocation2 + $0xc0] sm:$0xf]
        %v2116 = vld [vmem:[#allocation2 + $0xc4] sm:$0xf]
        %v2117 = vld [vmem:[#allocation2 + $0xc8] sm:$0xf]
        %v2118 = vld [vmem:[#allocation2 + $0xcc] sm:$0xf]
        %v2119 = vld [vmem:[#allocation2 + $0xd0] sm:$0xf]
        %v2120 = vld [vmem:[#allocation2 + $0xd4] sm:$0xf]
        %v2121 = vld [vmem:[#allocation2 + $0xd8] sm:$0xf]
        %v2122 = vld [vmem:[#allocation2 + $0xdc] sm:$0xf]
        %v2123 = vld [vmem:[#allocation2 + $0xe0] sm:$0xf]
        %v2124 = vld [vmem:[#allocation2 + $0xe4] sm:$0xf]
        %v2125 = vld [vmem:[#allocation2 + $0xe8] sm:$0xf]
        %v2126 = vld [vmem:[#allocation2 + $0xec] sm:$0xf]
        %v2127 = vld [vmem:[#allocation2 + $0xf0] sm:$0xf]
        %v2128 = vld [vmem:[#allocation2 + $0xf4] sm:$0xf]
        %v2129 = vld [vmem:[#allocation2 + $0xf8] sm:$0xf]
        %v2130 = vld [vmem:[#allocation2 + $0xfc] sm:$0xf]
        %v2131 = vld [vmem:[%s3] sm:$0xf]
        %v2132 = vld [vmem:[%s3 + $0x4] sm:$0xf]
        %s2133 = scalar_lea.vmem [#allocation2], 272
        %v2134 = vld [vmem:[%s2133] sm:$0xf]
        %v2135 = vld [vmem:[%s2133 + $0x4] sm:$0xf]
        %v2136 = vld [vmem:[%s2133 + $0x8] sm:$0xf]
        %v2137 = vld [vmem:[%s2133 + $0xc] sm:$0xf]
        %v2138 = vld [vmem:[%s2133 + $0x10] sm:$0xf]
        %v2139 = vld [vmem:[%s2133 + $0x14] sm:$0xf]
        %v2140 = vld [vmem:[%s2133 + $0x18] sm:$0xf]
        %v2141 = vld [vmem:[%s2133 + $0x1c] sm:$0xf]
        %v2142 = vld [vmem:[%s2133 + $0x20] sm:$0xf]
        %v2143 = vld [vmem:[%s2133 + $0x24] sm:$0xf]
        %v2144 = vld [vmem:[%s2133 + $0x28] sm:$0xf]
        %v2145 = vld [vmem:[%s2133 + $0x2c] sm:$0xf]
        %v2146 = vld [vmem:[%s2133 + $0x30] sm:$0xf]
        %v2147 = vld [vmem:[%s2133 + $0x34] sm:$0xf]
        %v2148 = vld [vmem:[%s2133 + $0x38] sm:$0xf]
        %v2149 = vld [vmem:[%s2133 + $0x3c] sm:$0xf]
        %v2150 = vld [vmem:[%s2133 + $0x40] sm:$0xf]
        %v2151 = vld [vmem:[%s2133 + $0x44] sm:$0xf]
        %v2152 = vld [vmem:[%s2133 + $0x48] sm:$0xf]
        %v2153 = vld [vmem:[%s2133 + $0x4c] sm:$0xf]
        %v2154 = vld [vmem:[%s2133 + $0x50] sm:$0xf]
        %v2155 = vld [vmem:[%s2133 + $0x54] sm:$0xf]
        %v2156 = vld [vmem:[%s2133 + $0x58] sm:$0xf]
        %v2157 = vld [vmem:[%s2133 + $0x5c] sm:$0xf]
        %v2158 = vld [vmem:[%s2133 + $0x60] sm:$0xf]
        %v2159 = vld [vmem:[%s2133 + $0x64] sm:$0xf]
        %v2160 = vld [vmem:[%s2133 + $0x68] sm:$0xf]
        %v2161 = vld [vmem:[%s2133 + $0x6c] sm:$0xf]
        %v2162 = vld [vmem:[%s2133 + $0x70] sm:$0xf]
        %v2163 = vld [vmem:[%s2133 + $0x74] sm:$0xf]
        %v2164 = vld [vmem:[%s2133 + $0x78] sm:$0xf]
        %v2165 = vld [vmem:[%s2133 + $0x7c] sm:$0xf]
        %v2166 = vld [vmem:[%s2133 + $0x80] sm:$0xf]
        %v2167 = vld [vmem:[%s2133 + $0x84] sm:$0xf]
        %v2168 = vld [vmem:[%s2133 + $0x88] sm:$0xf]
        %v2169 = vld [vmem:[%s2133 + $0x8c] sm:$0xf]
        %v2170 = vld [vmem:[%s2133 + $0x90] sm:$0xf]
        %v2171 = vld [vmem:[%s2133 + $0x94] sm:$0xf]
        %v2172 = vld [vmem:[%s2133 + $0x98] sm:$0xf]
        %v2173 = vld [vmem:[%s2133 + $0x9c] sm:$0xf]
        %v2174 = vld [vmem:[%s2133 + $0xa0] sm:$0xf]
        %v2175 = vld [vmem:[%s2133 + $0xa4] sm:$0xf]
        %v2176 = vld [vmem:[%s2133 + $0xa8] sm:$0xf]
        %v2177 = vld [vmem:[%s2133 + $0xac] sm:$0xf]
        %v2178 = vld [vmem:[%s2133 + $0xb0] sm:$0xf]
        %v2179 = vld [vmem:[%s2133 + $0xb4] sm:$0xf]
        %v2180 = vld [vmem:[%s2133 + $0xb8] sm:$0xf]
        %v2181 = vld [vmem:[%s2133 + $0xbc] sm:$0xf]
        %v2182 = vld [vmem:[%s2133 + $0xc0] sm:$0xf]
        %v2183 = vld [vmem:[%s2133 + $0xc4] sm:$0xf]
        %v2184 = vld [vmem:[%s2133 + $0xc8] sm:$0xf]
        %v2185 = vld [vmem:[%s2133 + $0xcc] sm:$0xf]
        %v2186 = vld [vmem:[%s2133 + $0xd0] sm:$0xf]
        %v2187 = vld [vmem:[%s2133 + $0xd4] sm:$0xf]
        %v2188 = vld [vmem:[%s2133 + $0xd8] sm:$0xf]
        %v2189 = vld [vmem:[%s2133 + $0xdc] sm:$0xf]
        %v2190 = vld [vmem:[%s2133 + $0xe0] sm:$0xf]
        %v2191 = vld [vmem:[%s2133 + $0xe4] sm:$0xf]
        %v2192 = vld [vmem:[%s2133 + $0xe8] sm:$0xf]
        %v2193 = vld [vmem:[%s2133 + $0xec] sm:$0xf]
        %v2194 = vld [vmem:[%s2133 + $0xf0] sm:$0xf]
        %v2195 = vld [vmem:[%s2133 + $0xf4] sm:$0xf]
        %v2196 = vld [vmem:[%s2133 + $0xf8] sm:$0xf]
        %v2197 = vld [vmem:[%s2133 + $0xfc] sm:$0xf]
        %s2198 = scalar_lea.vmem %s3, 8
        %v2199 = vld [vmem:[%s2198] sm:$0xf]
        %v2200 = vld [vmem:[%s2198 + $0x4] sm:$0xf]
        %v2265 = vunpack.c.l.b16 %v2134
        %v2266 = vunpack.c.l.b16 %v2135
        %v2267 = vunpack.c.l.b16 %v2136
        %v2268 = vunpack.c.l.b16 %v2137
        %v2269 = vunpack.c.l.b16 %v2138
        %v2270 = vunpack.c.l.b16 %v2139
        %v2271 = vunpack.c.l.b16 %v2140
        %v2272 = vunpack.c.l.b16 %v2141
        %v2273 = vunpack.c.l.b16 %v2142
        %v2274 = vunpack.c.l.b16 %v2143
        %v2275 = vunpack.c.l.b16 %v2144
        %v2276 = vunpack.c.l.b16 %v2145
        %v2277 = vunpack.c.l.b16 %v2146
        %v2278 = vunpack.c.l.b16 %v2147
        %v2279 = vunpack.c.l.b16 %v2148
        %v2280 = vunpack.c.l.b16 %v2149
        %v2281 = vunpack.c.l.b16 %v2150
        %v2282 = vunpack.c.l.b16 %v2151
        %v2283 = vunpack.c.l.b16 %v2152
        %v2284 = vunpack.c.l.b16 %v2153
        %v2285 = vunpack.c.l.b16 %v2154
        %v2286 = vunpack.c.l.b16 %v2155
        %v2287 = vunpack.c.l.b16 %v2156
        %v2288 = vunpack.c.l.b16 %v2157
        %v2289 = vunpack.c.l.b16 %v2158
        %v2290 = vunpack.c.l.b16 %v2159
        %v2291 = vunpack.c.l.b16 %v2160
        %v2292 = vunpack.c.l.b16 %v2161
        %v2293 = vunpack.c.l.b16 %v2162
        %v2294 = vunpack.c.l.b16 %v2163
        %v2295 = vunpack.c.l.b16 %v2164
        %v2296 = vunpack.c.l.b16 %v2165
        %v2297 = vunpack.c.l.b16 %v2166
        %v2298 = vunpack.c.l.b16 %v2167
        %v2299 = vunpack.c.l.b16 %v2168
        %v2300 = vunpack.c.l.b16 %v2169
        %v2301 = vunpack.c.l.b16 %v2170
        %v2302 = vunpack.c.l.b16 %v2171
        %v2303 = vunpack.c.l.b16 %v2172
        %v2304 = vunpack.c.l.b16 %v2173
        %v2305 = vunpack.c.l.b16 %v2174
        %v2306 = vunpack.c.l.b16 %v2175
        %v2307 = vunpack.c.l.b16 %v2176
        %v2308 = vunpack.c.l.b16 %v2177
        %v2309 = vunpack.c.l.b16 %v2178
        %v2310 = vunpack.c.l.b16 %v2179
        %v2311 = vunpack.c.l.b16 %v2180
        %v2312 = vunpack.c.l.b16 %v2181
        %v2313 = vunpack.c.l.b16 %v2182
        %v2314 = vunpack.c.l.b16 %v2183
        %v2315 = vunpack.c.l.b16 %v2184
        %v2316 = vunpack.c.l.b16 %v2185
        %v2317 = vunpack.c.l.b16 %v2186
        %v2318 = vunpack.c.l.b16 %v2187
        %v2319 = vunpack.c.l.b16 %v2188
        %v2320 = vunpack.c.l.b16 %v2189
        %v2321 = vunpack.c.l.b16 %v2190
        %v2322 = vunpack.c.l.b16 %v2191
        %v2323 = vunpack.c.l.b16 %v2192
        %v2324 = vunpack.c.l.b16 %v2193
        %v2325 = vunpack.c.l.b16 %v2194
        %v2326 = vunpack.c.l.b16 %v2195
        %v2327 = vunpack.c.l.b16 %v2196
        %v2328 = vunpack.c.l.b16 %v2197
        %v2329 = vpack.c.b16 %v2266, %v2265
        %v2330 = vpack.c.b16 %v2268, %v2267
        %v2331 = vpack.c.b16 %v2270, %v2269
        %v2332 = vpack.c.b16 %v2272, %v2271
        %v2333 = vpack.c.b16 %v2274, %v2273
        %v2334 = vpack.c.b16 %v2276, %v2275
        %v2335 = vpack.c.b16 %v2278, %v2277
        %v2336 = vpack.c.b16 %v2280, %v2279
        %v2337 = vpack.c.b16 %v2282, %v2281
        %v2338 = vpack.c.b16 %v2284, %v2283
        %v2339 = vpack.c.b16 %v2286, %v2285
        %v2340 = vpack.c.b16 %v2288, %v2287
        %v2341 = vpack.c.b16 %v2290, %v2289
        %v2342 = vpack.c.b16 %v2292, %v2291
        %v2343 = vpack.c.b16 %v2294, %v2293
        %v2344 = vpack.c.b16 %v2296, %v2295
        %v2345 = vpack.c.b16 %v2298, %v2297
        %v2346 = vpack.c.b16 %v2300, %v2299
        %v2347 = vpack.c.b16 %v2302, %v2301
        %v2348 = vpack.c.b16 %v2304, %v2303
        %v2349 = vpack.c.b16 %v2306, %v2305
        %v2350 = vpack.c.b16 %v2308, %v2307
        %v2351 = vpack.c.b16 %v2310, %v2309
        %v2352 = vpack.c.b16 %v2312, %v2311
        %v2353 = vpack.c.b16 %v2314, %v2313
        %v2354 = vpack.c.b16 %v2316, %v2315
        %v2355 = vpack.c.b16 %v2318, %v2317
        %v2356 = vpack.c.b16 %v2320, %v2319
        %v2357 = vpack.c.b16 %v2322, %v2321
        %v2358 = vpack.c.b16 %v2324, %v2323
        %v2359 = vpack.c.b16 %v2326, %v2325
        %v2360 = vpack.c.b16 %v2328, %v2327
        %v2363 = vunpack.c.l.b16 %v2199
        %v2364 = vunpack.c.l.b16 %v2200
        %v2365 = vpack.c.b16 %v2364, %v2363
        %vm2367 = vcmask 130048
        %v2369 = vsel %vm2367, %v2329, 0
        %v2372 = vsel %vm2367, %v2330, 0
        %v2375 = vsel %vm2367, %v2331, 0
        %v2378 = vsel %vm2367, %v2332, 0
        %v2381 = vsel %vm2367, %v2333, 0
        %v2384 = vsel %vm2367, %v2334, 0
        %v2387 = vsel %vm2367, %v2335, 0
        %v2390 = vsel %vm2367, %v2336, 0
        %v2393 = vsel %vm2367, %v2337, 0
        %v2396 = vsel %vm2367, %v2338, 0
        %v2399 = vsel %vm2367, %v2339, 0
        %v2402 = vsel %vm2367, %v2340, 0
        %v2405 = vsel %vm2367, %v2341, 0
        %v2408 = vsel %vm2367, %v2342, 0
        %v2411 = vsel %vm2367, %v2343, 0
        %v2414 = vsel %vm2367, %v2344, 0
        %v2417 = vsel %vm2367, %v2345, 0
        %v2420 = vsel %vm2367, %v2346, 0
        %v2423 = vsel %vm2367, %v2347, 0
        %v2426 = vsel %vm2367, %v2348, 0
        %v2429 = vsel %vm2367, %v2349, 0
        %v2432 = vsel %vm2367, %v2350, 0
        %v2435 = vsel %vm2367, %v2351, 0
        %v2438 = vsel %vm2367, %v2352, 0
        %v2441 = vsel %vm2367, %v2353, 0
        %v2444 = vsel %vm2367, %v2354, 0
        %v2447 = vsel %vm2367, %v2355, 0
        %v2450 = vsel %vm2367, %v2356, 0
        %v2453 = vsel %vm2367, %v2357, 0
        %v2456 = vsel %vm2367, %v2358, 0
        %v2459 = vsel %vm2367, %v2359, 0
        %v2462 = vsel %vm2367, %v2360, 0
        %2464 = vmatprep.subr.bf16.mxu0 0
        %2465 = vmatpush1.bf16.msra.mxu0 0
        %2466 = vmatprep.subr.bf16.mxu0 0
        %2467 = vmatpush1.bf16.msra.mxu0 0
        %2468 = vmatprep.subr.bf16.mxu0 0
        %2469 = vmatpush1.bf16.msra.mxu0 0
        %2470 = vmatprep.subr.bf16.mxu0 0
        %2471 = vmatpush1.bf16.msra.mxu0 0
        %2472 = vmatprep.subr.bf16.mxu0 0
        %2473 = vmatpush1.bf16.msra.mxu0 0
        %2474 = vmatprep.subr.bf16.mxu0 0
        %2475 = vmatpush1.bf16.msra.mxu0 0
        %2476 = vmatprep.subr.bf16.mxu0 0
        %2477 = vmatpush1.bf16.msra.mxu0 0
        %2478 = vmatprep.subr.bf16.mxu0 0
        %2479 = vmatpush1.bf16.msra.mxu0 %v2365
        %2480 = vmatprep.subr.bf16.mxu0 0
        %2481 = vmatpush2.bf16.msra.mxu0 0
        %2482 = vmatprep.subr.bf16.mxu0 0
        %2483 = vmatpush2.bf16.msra.mxu0 0
        %2484 = vmatprep.subr.bf16.mxu0 0
        %2485 = vmatpush2.bf16.msra.mxu0 0
        %2486 = vmatprep.subr.bf16.mxu0 0
        %2487 = vmatpush2.bf16.msra.mxu0 0
        %2488 = vmatprep.subr.bf16.mxu0 0
        %2489 = vmatpush2.bf16.msra.mxu0 0
        %2490 = vmatprep.subr.bf16.mxu0 0
        %2491 = vmatpush2.bf16.msra.mxu0 0
        %2492 = vmatprep.subr.bf16.mxu0 0
        %2493 = vmatpush2.bf16.msra.mxu0 0
        %2494 = vmatprep.subr.bf16.mxu0 0
        %2495 = vmatpush2.bf16.msra.mxu0 0
        %2496 = vmatprep.mubr.bf16.mxu0 0
        %2497 = vmatmul.mubr.bf16.gmra.mxu0 %v2369
        %v2498 = vpop.f32.mrf.mxu0
        %v2499 = vadd.f32 0.0, %v2498
        %v2500 = vpop.f32.mrf.mxu0
        %v2501 = vpop.f32.mrf.mxu0
        %v2502 = vadd.f32 0.0, %v2501
        %v2503 = vpop.f32.mrf.mxu0
        %2504 = vmatprep.mubr.bf16.mxu0 0
        %2505 = vmatmul.mubr.bf16.gmra.mxu0 %v2372
        %v2506 = vpop.f32.mrf.mxu0
        %v2507 = vadd.f32 0.0, %v2506
        %v2508 = vpop.f32.mrf.mxu0
        %v2509 = vpop.f32.mrf.mxu0
        %v2510 = vadd.f32 0.0, %v2509
        %v2511 = vpop.f32.mrf.mxu0
        %2512 = vmatprep.mubr.bf16.mxu0 0
        %2513 = vmatmul.mubr.bf16.gmra.mxu0 %v2375
        %v2514 = vpop.f32.mrf.mxu0
        %v2515 = vadd.f32 0.0, %v2514
        %v2516 = vpop.f32.mrf.mxu0
        %v2517 = vpop.f32.mrf.mxu0
        %v2518 = vadd.f32 0.0, %v2517
        %v2519 = vpop.f32.mrf.mxu0
        %2520 = vmatprep.mubr.bf16.mxu0 0
        %2521 = vmatmul.mubr.bf16.gmra.mxu0 %v2378
        %v2522 = vpop.f32.mrf.mxu0
        %v2523 = vadd.f32 0.0, %v2522
        %v2524 = vpop.f32.mrf.mxu0
        %v2525 = vpop.f32.mrf.mxu0
        %v2526 = vadd.f32 0.0, %v2525
        %v2527 = vpop.f32.mrf.mxu0
        %2528 = vmatprep.mubr.bf16.mxu0 0
        %2529 = vmatmul.mubr.bf16.gmra.mxu0 %v2381
        %v2530 = vpop.f32.mrf.mxu0
        %v2531 = vadd.f32 0.0, %v2530
        %v2532 = vpop.f32.mrf.mxu0
        %v2533 = vpop.f32.mrf.mxu0
        %v2534 = vadd.f32 0.0, %v2533
        %v2535 = vpop.f32.mrf.mxu0
        %2536 = vmatprep.mubr.bf16.mxu0 0
        %2537 = vmatmul.mubr.bf16.gmra.mxu0 %v2384
        %v2538 = vpop.f32.mrf.mxu0
        %v2539 = vadd.f32 0.0, %v2538
        %v2540 = vpop.f32.mrf.mxu0
        %v2541 = vpop.f32.mrf.mxu0
        %v2542 = vadd.f32 0.0, %v2541
        %v2543 = vpop.f32.mrf.mxu0
        %2544 = vmatprep.mubr.bf16.mxu0 0
        %2545 = vmatmul.mubr.bf16.gmra.mxu0 %v2387
        %v2546 = vpop.f32.mrf.mxu0
        %v2547 = vadd.f32 0.0, %v2546
        %v2548 = vpop.f32.mrf.mxu0
        %v2549 = vpop.f32.mrf.mxu0
        %v2550 = vadd.f32 0.0, %v2549
        %v2551 = vpop.f32.mrf.mxu0
        %2552 = vmatprep.mubr.bf16.mxu0 0
        %2553 = vmatmul.mubr.bf16.gmra.mxu0 %v2390
        %v2554 = vpop.f32.mrf.mxu0
        %v2555 = vadd.f32 0.0, %v2554
        %v2556 = vpop.f32.mrf.mxu0
        %v2557 = vpop.f32.mrf.mxu0
        %v2558 = vadd.f32 0.0, %v2557
        %v2559 = vpop.f32.mrf.mxu0
        %2560 = vmatprep.mubr.bf16.mxu0 0
        %2561 = vmatmul.mubr.bf16.gmra.mxu0 %v2393
        %v2562 = vpop.f32.mrf.mxu0
        %v2563 = vadd.f32 0.0, %v2562
        %v2564 = vpop.f32.mrf.mxu0
        %v2565 = vpop.f32.mrf.mxu0
        %v2566 = vadd.f32 0.0, %v2565
        %v2567 = vpop.f32.mrf.mxu0
        %2568 = vmatprep.mubr.bf16.mxu0 0
        %2569 = vmatmul.mubr.bf16.gmra.mxu0 %v2396
        %v2570 = vpop.f32.mrf.mxu0
        %v2571 = vadd.f32 0.0, %v2570
        %v2572 = vpop.f32.mrf.mxu0
        %v2573 = vpop.f32.mrf.mxu0
        %v2574 = vadd.f32 0.0, %v2573
        %v2575 = vpop.f32.mrf.mxu0
        %2576 = vmatprep.mubr.bf16.mxu0 0
        %2577 = vmatmul.mubr.bf16.gmra.mxu0 %v2399
        %v2578 = vpop.f32.mrf.mxu0
        %v2579 = vadd.f32 0.0, %v2578
        %v2580 = vpop.f32.mrf.mxu0
        %v2581 = vpop.f32.mrf.mxu0
        %v2582 = vadd.f32 0.0, %v2581
        %v2583 = vpop.f32.mrf.mxu0
        %2584 = vmatprep.mubr.bf16.mxu0 0
        %2585 = vmatmul.mubr.bf16.gmra.mxu0 %v2402
        %v2586 = vpop.f32.mrf.mxu0
        %v2587 = vadd.f32 0.0, %v2586
        %v2588 = vpop.f32.mrf.mxu0
        %v2589 = vpop.f32.mrf.mxu0
        %v2590 = vadd.f32 0.0, %v2589
        %v2591 = vpop.f32.mrf.mxu0
        %2592 = vmatprep.mubr.bf16.mxu0 0
        %2593 = vmatmul.mubr.bf16.gmra.mxu0 %v2405
        %v2594 = vpop.f32.mrf.mxu0
        %v2595 = vadd.f32 0.0, %v2594
        %v2596 = vpop.f32.mrf.mxu0
        %v2597 = vpop.f32.mrf.mxu0
        %v2598 = vadd.f32 0.0, %v2597
        %v2599 = vpop.f32.mrf.mxu0
        %2600 = vmatprep.mubr.bf16.mxu0 0
        %2601 = vmatmul.mubr.bf16.gmra.mxu0 %v2408
        %v2602 = vpop.f32.mrf.mxu0
        %v2603 = vadd.f32 0.0, %v2602
        %v2604 = vpop.f32.mrf.mxu0
        %v2605 = vpop.f32.mrf.mxu0
        %v2606 = vadd.f32 0.0, %v2605
        %v2607 = vpop.f32.mrf.mxu0
        %2608 = vmatprep.mubr.bf16.mxu0 0
        %2609 = vmatmul.mubr.bf16.gmra.mxu0 %v2411
        %v2610 = vpop.f32.mrf.mxu0
        %v2611 = vadd.f32 0.0, %v2610
        %v2612 = vpop.f32.mrf.mxu0
        %v2613 = vpop.f32.mrf.mxu0
        %v2614 = vadd.f32 0.0, %v2613
        %v2615 = vpop.f32.mrf.mxu0
        %2616 = vmatprep.mubr.bf16.mxu0 0
        %2617 = vmatmul.mubr.bf16.gmra.mxu0 %v2414
        %v2618 = vpop.f32.mrf.mxu0
        %v2619 = vadd.f32 0.0, %v2618
        %v2620 = vpop.f32.mrf.mxu0
        %v2621 = vpop.f32.mrf.mxu0
        %v2622 = vadd.f32 0.0, %v2621
        %v2623 = vpop.f32.mrf.mxu0
        %2624 = vmatprep.mubr.bf16.mxu0 0
        %2625 = vmatmul.mubr.bf16.gmra.mxu0 %v2417
        %v2626 = vpop.f32.mrf.mxu0
        %v2627 = vadd.f32 0.0, %v2626
        %v2628 = vpop.f32.mrf.mxu0
        %v2629 = vpop.f32.mrf.mxu0
        %v2630 = vadd.f32 0.0, %v2629
        %v2631 = vpop.f32.mrf.mxu0
        %2632 = vmatprep.mubr.bf16.mxu0 0
        %2633 = vmatmul.mubr.bf16.gmra.mxu0 %v2420
        %v2634 = vpop.f32.mrf.mxu0
        %v2635 = vadd.f32 0.0, %v2634
        %v2636 = vpop.f32.mrf.mxu0
        %v2637 = vpop.f32.mrf.mxu0
        %v2638 = vadd.f32 0.0, %v2637
        %v2639 = vpop.f32.mrf.mxu0
        %2640 = vmatprep.mubr.bf16.mxu0 0
        %2641 = vmatmul.mubr.bf16.gmra.mxu0 %v2423
        %v2642 = vpop.f32.mrf.mxu0
        %v2643 = vadd.f32 0.0, %v2642
        %v2644 = vpop.f32.mrf.mxu0
        %v2645 = vpop.f32.mrf.mxu0
        %v2646 = vadd.f32 0.0, %v2645
        %v2647 = vpop.f32.mrf.mxu0
        %2648 = vmatprep.mubr.bf16.mxu0 0
        %2649 = vmatmul.mubr.bf16.gmra.mxu0 %v2426
        %v2650 = vpop.f32.mrf.mxu0
        %v2651 = vadd.f32 0.0, %v2650
        %v2652 = vpop.f32.mrf.mxu0
        %v2653 = vpop.f32.mrf.mxu0
        %v2654 = vadd.f32 0.0, %v2653
        %v2655 = vpop.f32.mrf.mxu0
        %2656 = vmatprep.mubr.bf16.mxu0 0
        %2657 = vmatmul.mubr.bf16.gmra.mxu0 %v2429
        %v2658 = vpop.f32.mrf.mxu0
        %v2659 = vadd.f32 0.0, %v2658
        %v2660 = vpop.f32.mrf.mxu0
        %v2661 = vpop.f32.mrf.mxu0
        %v2662 = vadd.f32 0.0, %v2661
        %v2663 = vpop.f32.mrf.mxu0
        %2664 = vmatprep.mubr.bf16.mxu0 0
        %2665 = vmatmul.mubr.bf16.gmra.mxu0 %v2432
        %v2666 = vpop.f32.mrf.mxu0
        %v2667 = vadd.f32 0.0, %v2666
        %v2668 = vpop.f32.mrf.mxu0
        %v2669 = vpop.f32.mrf.mxu0
        %v2670 = vadd.f32 0.0, %v2669
        %v2671 = vpop.f32.mrf.mxu0
        %2672 = vmatprep.mubr.bf16.mxu0 0
        %2673 = vmatmul.mubr.bf16.gmra.mxu0 %v2435
        %v2674 = vpop.f32.mrf.mxu0
        %v2675 = vadd.f32 0.0, %v2674
        %v2676 = vpop.f32.mrf.mxu0
        %v2677 = vpop.f32.mrf.mxu0
        %v2678 = vadd.f32 0.0, %v2677
        %v2679 = vpop.f32.mrf.mxu0
        %2680 = vmatprep.mubr.bf16.mxu0 0
        %2681 = vmatmul.mubr.bf16.gmra.mxu0 %v2438
        %v2682 = vpop.f32.mrf.mxu0
        %v2683 = vadd.f32 0.0, %v2682
        %v2684 = vpop.f32.mrf.mxu0
        %v2685 = vpop.f32.mrf.mxu0
        %v2686 = vadd.f32 0.0, %v2685
        %v2687 = vpop.f32.mrf.mxu0
        %2688 = vmatprep.mubr.bf16.mxu0 0
        %2689 = vmatmul.mubr.bf16.gmra.mxu0 %v2441
        %v2690 = vpop.f32.mrf.mxu0
        %v2691 = vadd.f32 0.0, %v2690
        %v2692 = vpop.f32.mrf.mxu0
        %v2693 = vpop.f32.mrf.mxu0
        %v2694 = vadd.f32 0.0, %v2693
        %v2695 = vpop.f32.mrf.mxu0
        %2696 = vmatprep.mubr.bf16.mxu0 0
        %2697 = vmatmul.mubr.bf16.gmra.mxu0 %v2444
        %v2698 = vpop.f32.mrf.mxu0
        %v2699 = vadd.f32 0.0, %v2698
        %v2700 = vpop.f32.mrf.mxu0
        %v2701 = vpop.f32.mrf.mxu0
        %v2702 = vadd.f32 0.0, %v2701
        %v2703 = vpop.f32.mrf.mxu0
        %2704 = vmatprep.mubr.bf16.mxu0 0
        %2705 = vmatmul.mubr.bf16.gmra.mxu0 %v2447
        %v2706 = vpop.f32.mrf.mxu0
        %v2707 = vadd.f32 0.0, %v2706
        %v2708 = vpop.f32.mrf.mxu0
        %v2709 = vpop.f32.mrf.mxu0
        %v2710 = vadd.f32 0.0, %v2709
        %v2711 = vpop.f32.mrf.mxu0
        %2712 = vmatprep.mubr.bf16.mxu0 0
        %2713 = vmatmul.mubr.bf16.gmra.mxu0 %v2450
        %v2714 = vpop.f32.mrf.mxu0
        %v2715 = vadd.f32 0.0, %v2714
        %v2716 = vpop.f32.mrf.mxu0
        %v2717 = vpop.f32.mrf.mxu0
        %v2718 = vadd.f32 0.0, %v2717
        %v2719 = vpop.f32.mrf.mxu0
        %2720 = vmatprep.mubr.bf16.mxu0 0
        %2721 = vmatmul.mubr.bf16.gmra.mxu0 %v2453
        %v2722 = vpop.f32.mrf.mxu0
        %v2723 = vadd.f32 0.0, %v2722
        %v2724 = vpop.f32.mrf.mxu0
        %v2725 = vpop.f32.mrf.mxu0
        %v2726 = vadd.f32 0.0, %v2725
        %v2727 = vpop.f32.mrf.mxu0
        %2728 = vmatprep.mubr.bf16.mxu0 0
        %2729 = vmatmul.mubr.bf16.gmra.mxu0 %v2456
        %v2730 = vpop.f32.mrf.mxu0
        %v2731 = vadd.f32 0.0, %v2730
        %v2732 = vpop.f32.mrf.mxu0
        %v2733 = vpop.f32.mrf.mxu0
        %v2734 = vadd.f32 0.0, %v2733
        %v2735 = vpop.f32.mrf.mxu0
        %2736 = vmatprep.mubr.bf16.mxu0 0
        %2737 = vmatmul.mubr.bf16.gmra.mxu0 %v2459
        %v2738 = vpop.f32.mrf.mxu0
        %v2739 = vadd.f32 0.0, %v2738
        %v2740 = vpop.f32.mrf.mxu0
        %v2741 = vpop.f32.mrf.mxu0
        %v2742 = vadd.f32 0.0, %v2741
        %v2743 = vpop.f32.mrf.mxu0
        %2744 = vmatprep.mubr.bf16.mxu0 0
        %2745 = vmatmul.mubr.bf16.gmra.mxu0 %v2462
        %v2746 = vpop.f32.mrf.mxu0
        %v2747 = vadd.f32 0.0, %v2746
        %v2748 = vpop.f32.mrf.mxu0
        %v2749 = vpop.f32.mrf.mxu0
        %v2750 = vadd.f32 0.0, %v2749
        %v2751 = vpop.f32.mrf.mxu0
        %2752 = vdwg.mxu0
        %v2817 = vunpack.c.l.b16 %v2067
        %v2818 = vunpack.c.l.b16 %v2068
        %v2819 = vunpack.c.l.b16 %v2069
        %v2820 = vunpack.c.l.b16 %v2070
        %v2821 = vunpack.c.l.b16 %v2071
        %v2822 = vunpack.c.l.b16 %v2072
        %v2823 = vunpack.c.l.b16 %v2073
        %v2824 = vunpack.c.l.b16 %v2074
        %v2825 = vunpack.c.l.b16 %v2075
        %v2826 = vunpack.c.l.b16 %v2076
        %v2827 = vunpack.c.l.b16 %v2077
        %v2828 = vunpack.c.l.b16 %v2078
        %v2829 = vunpack.c.l.b16 %v2079
        %v2830 = vunpack.c.l.b16 %v2080
        %v2831 = vunpack.c.l.b16 %v2081
        %v2832 = vunpack.c.l.b16 %v2082
        %v2833 = vunpack.c.l.b16 %v2083
        %v2834 = vunpack.c.l.b16 %v2084
        %v2835 = vunpack.c.l.b16 %v2085
        %v2836 = vunpack.c.l.b16 %v2086
        %v2837 = vunpack.c.l.b16 %v2087
        %v2838 = vunpack.c.l.b16 %v2088
        %v2839 = vunpack.c.l.b16 %v2089
        %v2840 = vunpack.c.l.b16 %v2090
        %v2841 = vunpack.c.l.b16 %v2091
        %v2842 = vunpack.c.l.b16 %v2092
        %v2843 = vunpack.c.l.b16 %v2093
        %v2844 = vunpack.c.l.b16 %v2094
        %v2845 = vunpack.c.l.b16 %v2095
        %v2846 = vunpack.c.l.b16 %v2096
        %v2847 = vunpack.c.l.b16 %v2097
        %v2848 = vunpack.c.l.b16 %v2098
        %v2849 = vunpack.c.l.b16 %v2099
        %v2850 = vunpack.c.l.b16 %v2100
        %v2851 = vunpack.c.l.b16 %v2101
        %v2852 = vunpack.c.l.b16 %v2102
        %v2853 = vunpack.c.l.b16 %v2103
        %v2854 = vunpack.c.l.b16 %v2104
        %v2855 = vunpack.c.l.b16 %v2105
        %v2856 = vunpack.c.l.b16 %v2106
        %v2857 = vunpack.c.l.b16 %v2107
        %v2858 = vunpack.c.l.b16 %v2108
        %v2859 = vunpack.c.l.b16 %v2109
        %v2860 = vunpack.c.l.b16 %v2110
        %v2861 = vunpack.c.l.b16 %v2111
        %v2862 = vunpack.c.l.b16 %v2112
        %v2863 = vunpack.c.l.b16 %v2113
        %v2864 = vunpack.c.l.b16 %v2114
        %v2865 = vunpack.c.l.b16 %v2115
        %v2866 = vunpack.c.l.b16 %v2116
        %v2867 = vunpack.c.l.b16 %v2117
        %v2868 = vunpack.c.l.b16 %v2118
        %v2869 = vunpack.c.l.b16 %v2119
        %v2870 = vunpack.c.l.b16 %v2120
        %v2871 = vunpack.c.l.b16 %v2121
        %v2872 = vunpack.c.l.b16 %v2122
        %v2873 = vunpack.c.l.b16 %v2123
        %v2874 = vunpack.c.l.b16 %v2124
        %v2875 = vunpack.c.l.b16 %v2125
        %v2876 = vunpack.c.l.b16 %v2126
        %v2877 = vunpack.c.l.b16 %v2127
        %v2878 = vunpack.c.l.b16 %v2128
        %v2879 = vunpack.c.l.b16 %v2129
        %v2880 = vunpack.c.l.b16 %v2130
        %v2881 = vpack.c.b16 %v2818, %v2817
        %v2882 = vpack.c.b16 %v2820, %v2819
        %v2883 = vpack.c.b16 %v2822, %v2821
        %v2884 = vpack.c.b16 %v2824, %v2823
        %v2885 = vpack.c.b16 %v2826, %v2825
        %v2886 = vpack.c.b16 %v2828, %v2827
        %v2887 = vpack.c.b16 %v2830, %v2829
        %v2888 = vpack.c.b16 %v2832, %v2831
        %v2889 = vpack.c.b16 %v2834, %v2833
        %v2890 = vpack.c.b16 %v2836, %v2835
        %v2891 = vpack.c.b16 %v2838, %v2837
        %v2892 = vpack.c.b16 %v2840, %v2839
        %v2893 = vpack.c.b16 %v2842, %v2841
        %v2894 = vpack.c.b16 %v2844, %v2843
        %v2895 = vpack.c.b16 %v2846, %v2845
        %v2896 = vpack.c.b16 %v2848, %v2847
        %v2897 = vpack.c.b16 %v2850, %v2849
        %v2898 = vpack.c.b16 %v2852, %v2851
        %v2899 = vpack.c.b16 %v2854, %v2853
        %v2900 = vpack.c.b16 %v2856, %v2855
        %v2901 = vpack.c.b16 %v2858, %v2857
        %v2902 = vpack.c.b16 %v2860, %v2859
        %v2903 = vpack.c.b16 %v2862, %v2861
        %v2904 = vpack.c.b16 %v2864, %v2863
        %v2905 = vpack.c.b16 %v2866, %v2865
        %v2906 = vpack.c.b16 %v2868, %v2867
        %v2907 = vpack.c.b16 %v2870, %v2869
        %v2908 = vpack.c.b16 %v2872, %v2871
        %v2909 = vpack.c.b16 %v2874, %v2873
        %v2910 = vpack.c.b16 %v2876, %v2875
        %v2911 = vpack.c.b16 %v2878, %v2877
        %v2912 = vpack.c.b16 %v2880, %v2879
        %v2915 = vunpack.c.l.b16 %v2131
        %v2916 = vunpack.c.l.b16 %v2132
        %v2917 = vpack.c.b16 %v2916, %v2915
        %v2920 = vsel %vm2367, %v2881, 0
        %v2923 = vsel %vm2367, %v2882, 0
        %v2926 = vsel %vm2367, %v2883, 0
        %v2929 = vsel %vm2367, %v2884, 0
        %v2932 = vsel %vm2367, %v2885, 0
        %v2935 = vsel %vm2367, %v2886, 0
        %v2938 = vsel %vm2367, %v2887, 0
        %v2941 = vsel %vm2367, %v2888, 0
        %v2944 = vsel %vm2367, %v2889, 0
        %v2947 = vsel %vm2367, %v2890, 0
        %v2950 = vsel %vm2367, %v2891, 0
        %v2953 = vsel %vm2367, %v2892, 0
        %v2956 = vsel %vm2367, %v2893, 0
        %v2959 = vsel %vm2367, %v2894, 0
        %v2962 = vsel %vm2367, %v2895, 0
        %v2965 = vsel %vm2367, %v2896, 0
        %v2968 = vsel %vm2367, %v2897, 0
        %v2971 = vsel %vm2367, %v2898, 0
        %v2974 = vsel %vm2367, %v2899, 0
        %v2977 = vsel %vm2367, %v2900, 0
        %v2980 = vsel %vm2367, %v2901, 0
        %v2983 = vsel %vm2367, %v2902, 0
        %v2986 = vsel %vm2367, %v2903, 0
        %v2989 = vsel %vm2367, %v2904, 0
        %v2992 = vsel %vm2367, %v2905, 0
        %v2995 = vsel %vm2367, %v2906, 0
        %v2998 = vsel %vm2367, %v2907, 0
        %v3001 = vsel %vm2367, %v2908, 0
        %v3004 = vsel %vm2367, %v2909, 0
        %v3007 = vsel %vm2367, %v2910, 0
        %v3010 = vsel %vm2367, %v2911, 0
        %v3013 = vsel %vm2367, %v2912, 0
        %3015 = vmatprep.subr.bf16.mxu0 0
        %3016 = vmatpush1.bf16.msra.mxu0 0
        %3017 = vmatprep.subr.bf16.mxu0 0
        %3018 = vmatpush1.bf16.msra.mxu0 0
        %3019 = vmatprep.subr.bf16.mxu0 0
        %3020 = vmatpush1.bf16.msra.mxu0 0
        %3021 = vmatprep.subr.bf16.mxu0 0
        %3022 = vmatpush1.bf16.msra.mxu0 0
        %3023 = vmatprep.subr.bf16.mxu0 0
        %3024 = vmatpush1.bf16.msra.mxu0 0
        %3025 = vmatprep.subr.bf16.mxu0 0
        %3026 = vmatpush1.bf16.msra.mxu0 0
        %3027 = vmatprep.subr.bf16.mxu0 0
        %3028 = vmatpush1.bf16.msra.mxu0 0
        %3029 = vmatprep.subr.bf16.mxu0 0
        %3030 = vmatpush1.bf16.msra.mxu0 %v2917
        %3031 = vmatprep.subr.bf16.mxu0 0
        %3032 = vmatpush2.bf16.msra.mxu0 0
        %3033 = vmatprep.subr.bf16.mxu0 0
        %3034 = vmatpush2.bf16.msra.mxu0 0
        %3035 = vmatprep.subr.bf16.mxu0 0
        %3036 = vmatpush2.bf16.msra.mxu0 0
        %3037 = vmatprep.subr.bf16.mxu0 0
        %3038 = vmatpush2.bf16.msra.mxu0 0
        %3039 = vmatprep.subr.bf16.mxu0 0
        %3040 = vmatpush2.bf16.msra.mxu0 0
        %3041 = vmatprep.subr.bf16.mxu0 0
        %3042 = vmatpush2.bf16.msra.mxu0 0
        %3043 = vmatprep.subr.bf16.mxu0 0
        %3044 = vmatpush2.bf16.msra.mxu0 0
        %3045 = vmatprep.subr.bf16.mxu0 0
        %3046 = vmatpush2.bf16.msra.mxu0 0
        %3047 = vmatprep.mubr.bf16.mxu0 0
        %3048 = vmatmul.mubr.bf16.gmra.mxu0 %v2920
        %v3049 = vpop.f32.mrf.mxu0
        %v3050 = vadd.f32 %v2499, %v3049
        %v3051 = vpop.f32.mrf.mxu0
        %v3052 = vpop.f32.mrf.mxu0
        %v3053 = vadd.f32 %v2502, %v3052
        %v3054 = vpop.f32.mrf.mxu0
        %3055 = vmatprep.mubr.bf16.mxu0 0
        %3056 = vmatmul.mubr.bf16.gmra.mxu0 %v2923
        %v3057 = vpop.f32.mrf.mxu0
        %v3058 = vadd.f32 %v2507, %v3057
        %v3059 = vpop.f32.mrf.mxu0
        %v3060 = vpop.f32.mrf.mxu0
        %v3061 = vadd.f32 %v2510, %v3060
        %v3062 = vpop.f32.mrf.mxu0
        %3063 = vmatprep.mubr.bf16.mxu0 0
        %3064 = vmatmul.mubr.bf16.gmra.mxu0 %v2926
        %v3065 = vpop.f32.mrf.mxu0
        %v3066 = vadd.f32 %v2515, %v3065
        %v3067 = vpop.f32.mrf.mxu0
        %v3068 = vpop.f32.mrf.mxu0
        %v3069 = vadd.f32 %v2518, %v3068
        %v3070 = vpop.f32.mrf.mxu0
        %3071 = vmatprep.mubr.bf16.mxu0 0
        %3072 = vmatmul.mubr.bf16.gmra.mxu0 %v2929
        %v3073 = vpop.f32.mrf.mxu0
        %v3074 = vadd.f32 %v2523, %v3073
        %v3075 = vpop.f32.mrf.mxu0
        %v3076 = vpop.f32.mrf.mxu0
        %v3077 = vadd.f32 %v2526, %v3076
        %v3078 = vpop.f32.mrf.mxu0
        %3079 = vmatprep.mubr.bf16.mxu0 0
        %3080 = vmatmul.mubr.bf16.gmra.mxu0 %v2932
        %v3081 = vpop.f32.mrf.mxu0
        %v3082 = vadd.f32 %v2531, %v3081
        %v3083 = vpop.f32.mrf.mxu0
        %v3084 = vpop.f32.mrf.mxu0
        %v3085 = vadd.f32 %v2534, %v3084
        %v3086 = vpop.f32.mrf.mxu0
        %3087 = vmatprep.mubr.bf16.mxu0 0
        %3088 = vmatmul.mubr.bf16.gmra.mxu0 %v2935
        %v3089 = vpop.f32.mrf.mxu0
        %v3090 = vadd.f32 %v2539, %v3089
        %v3091 = vpop.f32.mrf.mxu0
        %v3092 = vpop.f32.mrf.mxu0
        %v3093 = vadd.f32 %v2542, %v3092
        %v3094 = vpop.f32.mrf.mxu0
        %3095 = vmatprep.mubr.bf16.mxu0 0
        %3096 = vmatmul.mubr.bf16.gmra.mxu0 %v2938
        %v3097 = vpop.f32.mrf.mxu0
        %v3098 = vadd.f32 %v2547, %v3097
        %v3099 = vpop.f32.mrf.mxu0
        %v3100 = vpop.f32.mrf.mxu0
        %v3101 = vadd.f32 %v2550, %v3100
        %v3102 = vpop.f32.mrf.mxu0
        %3103 = vmatprep.mubr.bf16.mxu0 0
        %3104 = vmatmul.mubr.bf16.gmra.mxu0 %v2941
        %v3105 = vpop.f32.mrf.mxu0
        %v3106 = vadd.f32 %v2555, %v3105
        %v3107 = vpop.f32.mrf.mxu0
        %v3108 = vpop.f32.mrf.mxu0
        %v3109 = vadd.f32 %v2558, %v3108
        %v3110 = vpop.f32.mrf.mxu0
        %3111 = vmatprep.mubr.bf16.mxu0 0
        %3112 = vmatmul.mubr.bf16.gmra.mxu0 %v2944
        %v3113 = vpop.f32.mrf.mxu0
        %v3114 = vadd.f32 %v2563, %v3113
        %v3115 = vpop.f32.mrf.mxu0
        %v3116 = vpop.f32.mrf.mxu0
        %v3117 = vadd.f32 %v2566, %v3116
        %v3118 = vpop.f32.mrf.mxu0
        %3119 = vmatprep.mubr.bf16.mxu0 0
        %3120 = vmatmul.mubr.bf16.gmra.mxu0 %v2947
        %v3121 = vpop.f32.mrf.mxu0
        %v3122 = vadd.f32 %v2571, %v3121
        %v3123 = vpop.f32.mrf.mxu0
        %v3124 = vpop.f32.mrf.mxu0
        %v3125 = vadd.f32 %v2574, %v3124
        %v3126 = vpop.f32.mrf.mxu0
        %3127 = vmatprep.mubr.bf16.mxu0 0
        %3128 = vmatmul.mubr.bf16.gmra.mxu0 %v2950
        %v3129 = vpop.f32.mrf.mxu0
        %v3130 = vadd.f32 %v2579, %v3129
        %v3131 = vpop.f32.mrf.mxu0
        %v3132 = vpop.f32.mrf.mxu0
        %v3133 = vadd.f32 %v2582, %v3132
        %v3134 = vpop.f32.mrf.mxu0
        %3135 = vmatprep.mubr.bf16.mxu0 0
        %3136 = vmatmul.mubr.bf16.gmra.mxu0 %v2953
        %v3137 = vpop.f32.mrf.mxu0
        %v3138 = vadd.f32 %v2587, %v3137
        %v3139 = vpop.f32.mrf.mxu0
        %v3140 = vpop.f32.mrf.mxu0
        %v3141 = vadd.f32 %v2590, %v3140
        %v3142 = vpop.f32.mrf.mxu0
        %3143 = vmatprep.mubr.bf16.mxu0 0
        %3144 = vmatmul.mubr.bf16.gmra.mxu0 %v2956
        %v3145 = vpop.f32.mrf.mxu0
        %v3146 = vadd.f32 %v2595, %v3145
        %v3147 = vpop.f32.mrf.mxu0
        %v3148 = vpop.f32.mrf.mxu0
        %v3149 = vadd.f32 %v2598, %v3148
        %v3150 = vpop.f32.mrf.mxu0
        %3151 = vmatprep.mubr.bf16.mxu0 0
        %3152 = vmatmul.mubr.bf16.gmra.mxu0 %v2959
        %v3153 = vpop.f32.mrf.mxu0
        %v3154 = vadd.f32 %v2603, %v3153
        %v3155 = vpop.f32.mrf.mxu0
        %v3156 = vpop.f32.mrf.mxu0
        %v3157 = vadd.f32 %v2606, %v3156
        %v3158 = vpop.f32.mrf.mxu0
        %3159 = vmatprep.mubr.bf16.mxu0 0
        %3160 = vmatmul.mubr.bf16.gmra.mxu0 %v2962
        %v3161 = vpop.f32.mrf.mxu0
        %v3162 = vadd.f32 %v2611, %v3161
        %v3163 = vpop.f32.mrf.mxu0
        %v3164 = vpop.f32.mrf.mxu0
        %v3165 = vadd.f32 %v2614, %v3164
        %v3166 = vpop.f32.mrf.mxu0
        %3167 = vmatprep.mubr.bf16.mxu0 0
        %3168 = vmatmul.mubr.bf16.gmra.mxu0 %v2965
        %v3169 = vpop.f32.mrf.mxu0
        %v3170 = vadd.f32 %v2619, %v3169
        %v3171 = vpop.f32.mrf.mxu0
        %v3172 = vpop.f32.mrf.mxu0
        %v3173 = vadd.f32 %v2622, %v3172
        %v3174 = vpop.f32.mrf.mxu0
        %3175 = vmatprep.mubr.bf16.mxu0 0
        %3176 = vmatmul.mubr.bf16.gmra.mxu0 %v2968
        %v3177 = vpop.f32.mrf.mxu0
        %v3178 = vadd.f32 %v2627, %v3177
        %v3179 = vpop.f32.mrf.mxu0
        %v3180 = vpop.f32.mrf.mxu0
        %v3181 = vadd.f32 %v2630, %v3180
        %v3182 = vpop.f32.mrf.mxu0
        %3183 = vmatprep.mubr.bf16.mxu0 0
        %3184 = vmatmul.mubr.bf16.gmra.mxu0 %v2971
        %v3185 = vpop.f32.mrf.mxu0
        %v3186 = vadd.f32 %v2635, %v3185
        %v3187 = vpop.f32.mrf.mxu0
        %v3188 = vpop.f32.mrf.mxu0
        %v3189 = vadd.f32 %v2638, %v3188
        %v3190 = vpop.f32.mrf.mxu0
        %3191 = vmatprep.mubr.bf16.mxu0 0
        %3192 = vmatmul.mubr.bf16.gmra.mxu0 %v2974
        %v3193 = vpop.f32.mrf.mxu0
        %v3194 = vadd.f32 %v2643, %v3193
        %v3195 = vpop.f32.mrf.mxu0
        %v3196 = vpop.f32.mrf.mxu0
        %v3197 = vadd.f32 %v2646, %v3196
        %v3198 = vpop.f32.mrf.mxu0
        %3199 = vmatprep.mubr.bf16.mxu0 0
        %3200 = vmatmul.mubr.bf16.gmra.mxu0 %v2977
        %v3201 = vpop.f32.mrf.mxu0
        %v3202 = vadd.f32 %v2651, %v3201
        %v3203 = vpop.f32.mrf.mxu0
        %v3204 = vpop.f32.mrf.mxu0
        %v3205 = vadd.f32 %v2654, %v3204
        %v3206 = vpop.f32.mrf.mxu0
        %3207 = vmatprep.mubr.bf16.mxu0 0
        %3208 = vmatmul.mubr.bf16.gmra.mxu0 %v2980
        %v3209 = vpop.f32.mrf.mxu0
        %v3210 = vadd.f32 %v2659, %v3209
        %v3211 = vpop.f32.mrf.mxu0
        %v3212 = vpop.f32.mrf.mxu0
        %v3213 = vadd.f32 %v2662, %v3212
        %v3214 = vpop.f32.mrf.mxu0
        %3215 = vmatprep.mubr.bf16.mxu0 0
        %3216 = vmatmul.mubr.bf16.gmra.mxu0 %v2983
        %v3217 = vpop.f32.mrf.mxu0
        %v3218 = vadd.f32 %v2667, %v3217
        %v3219 = vpop.f32.mrf.mxu0
        %v3220 = vpop.f32.mrf.mxu0
        %v3221 = vadd.f32 %v2670, %v3220
        %v3222 = vpop.f32.mrf.mxu0
        %3223 = vmatprep.mubr.bf16.mxu0 0
        %3224 = vmatmul.mubr.bf16.gmra.mxu0 %v2986
        %v3225 = vpop.f32.mrf.mxu0
        %v3226 = vadd.f32 %v2675, %v3225
        %v3227 = vpop.f32.mrf.mxu0
        %v3228 = vpop.f32.mrf.mxu0
        %v3229 = vadd.f32 %v2678, %v3228
        %v3230 = vpop.f32.mrf.mxu0
        %3231 = vmatprep.mubr.bf16.mxu0 0
        %3232 = vmatmul.mubr.bf16.gmra.mxu0 %v2989
        %v3233 = vpop.f32.mrf.mxu0
        %v3234 = vadd.f32 %v2683, %v3233
        %v3235 = vpop.f32.mrf.mxu0
        %v3236 = vpop.f32.mrf.mxu0
        %v3237 = vadd.f32 %v2686, %v3236
        %v3238 = vpop.f32.mrf.mxu0
        %3239 = vmatprep.mubr.bf16.mxu0 0
        %3240 = vmatmul.mubr.bf16.gmra.mxu0 %v2992
        %v3241 = vpop.f32.mrf.mxu0
        %v3242 = vadd.f32 %v2691, %v3241
        %v3243 = vpop.f32.mrf.mxu0
        %v3244 = vpop.f32.mrf.mxu0
        %v3245 = vadd.f32 %v2694, %v3244
        %v3246 = vpop.f32.mrf.mxu0
        %3247 = vmatprep.mubr.bf16.mxu0 0
        %3248 = vmatmul.mubr.bf16.gmra.mxu0 %v2995
        %v3249 = vpop.f32.mrf.mxu0
        %v3250 = vadd.f32 %v2699, %v3249
        %v3251 = vpop.f32.mrf.mxu0
        %v3252 = vpop.f32.mrf.mxu0
        %v3253 = vadd.f32 %v2702, %v3252
        %v3254 = vpop.f32.mrf.mxu0
        %3255 = vmatprep.mubr.bf16.mxu0 0
        %3256 = vmatmul.mubr.bf16.gmra.mxu0 %v2998
        %v3257 = vpop.f32.mrf.mxu0
        %v3258 = vadd.f32 %v2707, %v3257
        %v3259 = vpop.f32.mrf.mxu0
        %v3260 = vpop.f32.mrf.mxu0
        %v3261 = vadd.f32 %v2710, %v3260
        %v3262 = vpop.f32.mrf.mxu0
        %3263 = vmatprep.mubr.bf16.mxu0 0
        %3264 = vmatmul.mubr.bf16.gmra.mxu0 %v3001
        %v3265 = vpop.f32.mrf.mxu0
        %v3266 = vadd.f32 %v2715, %v3265
        %v3267 = vpop.f32.mrf.mxu0
        %v3268 = vpop.f32.mrf.mxu0
        %v3269 = vadd.f32 %v2718, %v3268
        %v3270 = vpop.f32.mrf.mxu0
        %3271 = vmatprep.mubr.bf16.mxu0 0
        %3272 = vmatmul.mubr.bf16.gmra.mxu0 %v3004
        %v3273 = vpop.f32.mrf.mxu0
        %v3274 = vadd.f32 %v2723, %v3273
        %v3275 = vpop.f32.mrf.mxu0
        %v3276 = vpop.f32.mrf.mxu0
        %v3277 = vadd.f32 %v2726, %v3276
        %v3278 = vpop.f32.mrf.mxu0
        %3279 = vmatprep.mubr.bf16.mxu0 0
        %3280 = vmatmul.mubr.bf16.gmra.mxu0 %v3007
        %v3281 = vpop.f32.mrf.mxu0
        %v3282 = vadd.f32 %v2731, %v3281
        %v3283 = vpop.f32.mrf.mxu0
        %v3284 = vpop.f32.mrf.mxu0
        %v3285 = vadd.f32 %v2734, %v3284
        %v3286 = vpop.f32.mrf.mxu0
        %3287 = vmatprep.mubr.bf16.mxu0 0
        %3288 = vmatmul.mubr.bf16.gmra.mxu0 %v3010
        %v3289 = vpop.f32.mrf.mxu0
        %v3290 = vadd.f32 %v2739, %v3289
        %v3291 = vpop.f32.mrf.mxu0
        %v3292 = vpop.f32.mrf.mxu0
        %v3293 = vadd.f32 %v2742, %v3292
        %v3294 = vpop.f32.mrf.mxu0
        %3295 = vmatprep.mubr.bf16.mxu0 0
        %3296 = vmatmul.mubr.bf16.gmra.mxu0 %v3013
        %v3297 = vpop.f32.mrf.mxu0
        %v3298 = vadd.f32 %v2747, %v3297
        %v3299 = vpop.f32.mrf.mxu0
        %v3300 = vpop.f32.mrf.mxu0
        %v3301 = vadd.f32 %v2750, %v3300
        %v3302 = vpop.f32.mrf.mxu0
        %3303 = vdwg.mxu0
        %s3304 = scalar_lea.vmem [#allocation2], 544
        %v3305 = vld [vmem:[%s3304] sm:$0xf]
        %v3306 = vld [vmem:[%s3304 + $0x4] sm:$0xf]
        %v3307 = vld [vmem:[%s3304 + $0x8] sm:$0xf]
        %v3308 = vld [vmem:[%s3304 + $0xc] sm:$0xf]
        %v3309 = vld [vmem:[%s3304 + $0x10] sm:$0xf]
        %v3310 = vld [vmem:[%s3304 + $0x14] sm:$0xf]
        %v3311 = vld [vmem:[%s3304 + $0x18] sm:$0xf]
        %v3312 = vld [vmem:[%s3304 + $0x1c] sm:$0xf]
        %v3313 = vld [vmem:[%s3304 + $0x20] sm:$0xf]
        %v3314 = vld [vmem:[%s3304 + $0x24] sm:$0xf]
        %v3315 = vld [vmem:[%s3304 + $0x28] sm:$0xf]
        %v3316 = vld [vmem:[%s3304 + $0x2c] sm:$0xf]
        %v3317 = vld [vmem:[%s3304 + $0x30] sm:$0xf]
        %v3318 = vld [vmem:[%s3304 + $0x34] sm:$0xf]
        %v3319 = vld [vmem:[%s3304 + $0x38] sm:$0xf]
        %v3320 = vld [vmem:[%s3304 + $0x3c] sm:$0xf]
        %v3321 = vld [vmem:[%s3304 + $0x40] sm:$0xf]
        %v3322 = vld [vmem:[%s3304 + $0x44] sm:$0xf]
        %v3323 = vld [vmem:[%s3304 + $0x48] sm:$0xf]
        %v3324 = vld [vmem:[%s3304 + $0x4c] sm:$0xf]
        %v3325 = vld [vmem:[%s3304 + $0x50] sm:$0xf]
        %v3326 = vld [vmem:[%s3304 + $0x54] sm:$0xf]
        %v3327 = vld [vmem:[%s3304 + $0x58] sm:$0xf]
        %v3328 = vld [vmem:[%s3304 + $0x5c] sm:$0xf]
        %v3329 = vld [vmem:[%s3304 + $0x60] sm:$0xf]
        %v3330 = vld [vmem:[%s3304 + $0x64] sm:$0xf]
        %v3331 = vld [vmem:[%s3304 + $0x68] sm:$0xf]
        %v3332 = vld [vmem:[%s3304 + $0x6c] sm:$0xf]
        %v3333 = vld [vmem:[%s3304 + $0x70] sm:$0xf]
        %v3334 = vld [vmem:[%s3304 + $0x74] sm:$0xf]
        %v3335 = vld [vmem:[%s3304 + $0x78] sm:$0xf]
        %v3336 = vld [vmem:[%s3304 + $0x7c] sm:$0xf]
        %v3337 = vld [vmem:[%s3304 + $0x80] sm:$0xf]
        %v3338 = vld [vmem:[%s3304 + $0x84] sm:$0xf]
        %v3339 = vld [vmem:[%s3304 + $0x88] sm:$0xf]
        %v3340 = vld [vmem:[%s3304 + $0x8c] sm:$0xf]
        %v3341 = vld [vmem:[%s3304 + $0x90] sm:$0xf]
        %v3342 = vld [vmem:[%s3304 + $0x94] sm:$0xf]
        %v3343 = vld [vmem:[%s3304 + $0x98] sm:$0xf]
        %v3344 = vld [vmem:[%s3304 + $0x9c] sm:$0xf]
        %v3345 = vld [vmem:[%s3304 + $0xa0] sm:$0xf]
        %v3346 = vld [vmem:[%s3304 + $0xa4] sm:$0xf]
        %v3347 = vld [vmem:[%s3304 + $0xa8] sm:$0xf]
        %v3348 = vld [vmem:[%s3304 + $0xac] sm:$0xf]
        %v3349 = vld [vmem:[%s3304 + $0xb0] sm:$0xf]
        %v3350 = vld [vmem:[%s3304 + $0xb4] sm:$0xf]
        %v3351 = vld [vmem:[%s3304 + $0xb8] sm:$0xf]
        %v3352 = vld [vmem:[%s3304 + $0xbc] sm:$0xf]
        %v3353 = vld [vmem:[%s3304 + $0xc0] sm:$0xf]
        %v3354 = vld [vmem:[%s3304 + $0xc4] sm:$0xf]
        %v3355 = vld [vmem:[%s3304 + $0xc8] sm:$0xf]
        %v3356 = vld [vmem:[%s3304 + $0xcc] sm:$0xf]
        %v3357 = vld [vmem:[%s3304 + $0xd0] sm:$0xf]
        %v3358 = vld [vmem:[%s3304 + $0xd4] sm:$0xf]
        %v3359 = vld [vmem:[%s3304 + $0xd8] sm:$0xf]
        %v3360 = vld [vmem:[%s3304 + $0xdc] sm:$0xf]
        %v3361 = vld [vmem:[%s3304 + $0xe0] sm:$0xf]
        %v3362 = vld [vmem:[%s3304 + $0xe4] sm:$0xf]
        %v3363 = vld [vmem:[%s3304 + $0xe8] sm:$0xf]
        %v3364 = vld [vmem:[%s3304 + $0xec] sm:$0xf]
        %v3365 = vld [vmem:[%s3304 + $0xf0] sm:$0xf]
        %v3366 = vld [vmem:[%s3304 + $0xf4] sm:$0xf]
        %v3367 = vld [vmem:[%s3304 + $0xf8] sm:$0xf]
        %v3368 = vld [vmem:[%s3304 + $0xfc] sm:$0xf]
        %s3369 = scalar_lea.vmem %s3, 16
        %v3370 = vld [vmem:[%s3369] sm:$0xf]
        %v3371 = vld [vmem:[%s3369 + $0x4] sm:$0xf]
        %v3436 = vunpack.c.l.b16 %v3305
        %v3437 = vunpack.c.l.b16 %v3306
        %v3438 = vunpack.c.l.b16 %v3307
        %v3439 = vunpack.c.l.b16 %v3308
        %v3440 = vunpack.c.l.b16 %v3309
        %v3441 = vunpack.c.l.b16 %v3310
        %v3442 = vunpack.c.l.b16 %v3311
        %v3443 = vunpack.c.l.b16 %v3312
        %v3444 = vunpack.c.l.b16 %v3313
        %v3445 = vunpack.c.l.b16 %v3314
        %v3446 = vunpack.c.l.b16 %v3315
        %v3447 = vunpack.c.l.b16 %v3316
        %v3448 = vunpack.c.l.b16 %v3317
        %v3449 = vunpack.c.l.b16 %v3318
        %v3450 = vunpack.c.l.b16 %v3319
        %v3451 = vunpack.c.l.b16 %v3320
        %v3452 = vunpack.c.l.b16 %v3321
        %v3453 = vunpack.c.l.b16 %v3322
        %v3454 = vunpack.c.l.b16 %v3323
        %v3455 = vunpack.c.l.b16 %v3324
        %v3456 = vunpack.c.l.b16 %v3325
        %v3457 = vunpack.c.l.b16 %v3326
        %v3458 = vunpack.c.l.b16 %v3327
        %v3459 = vunpack.c.l.b16 %v3328
        %v3460 = vunpack.c.l.b16 %v3329
        %v3461 = vunpack.c.l.b16 %v3330
        %v3462 = vunpack.c.l.b16 %v3331
        %v3463 = vunpack.c.l.b16 %v3332
        %v3464 = vunpack.c.l.b16 %v3333
        %v3465 = vunpack.c.l.b16 %v3334
        %v3466 = vunpack.c.l.b16 %v3335
        %v3467 = vunpack.c.l.b16 %v3336
        %v3468 = vunpack.c.l.b16 %v3337
        %v3469 = vunpack.c.l.b16 %v3338
        %v3470 = vunpack.c.l.b16 %v3339
        %v3471 = vunpack.c.l.b16 %v3340
        %v3472 = vunpack.c.l.b16 %v3341
        %v3473 = vunpack.c.l.b16 %v3342
        %v3474 = vunpack.c.l.b16 %v3343
        %v3475 = vunpack.c.l.b16 %v3344
        %v3476 = vunpack.c.l.b16 %v3345
        %v3477 = vunpack.c.l.b16 %v3346
        %v3478 = vunpack.c.l.b16 %v3347
        %v3479 = vunpack.c.l.b16 %v3348
        %v3480 = vunpack.c.l.b16 %v3349
        %v3481 = vunpack.c.l.b16 %v3350
        %v3482 = vunpack.c.l.b16 %v3351
        %v3483 = vunpack.c.l.b16 %v3352
        %v3484 = vunpack.c.l.b16 %v3353
        %v3485 = vunpack.c.l.b16 %v3354
        %v3486 = vunpack.c.l.b16 %v3355
        %v3487 = vunpack.c.l.b16 %v3356
        %v3488 = vunpack.c.l.b16 %v3357
        %v3489 = vunpack.c.l.b16 %v3358
        %v3490 = vunpack.c.l.b16 %v3359
        %v3491 = vunpack.c.l.b16 %v3360
        %v3492 = vunpack.c.l.b16 %v3361
        %v3493 = vunpack.c.l.b16 %v3362
        %v3494 = vunpack.c.l.b16 %v3363
        %v3495 = vunpack.c.l.b16 %v3364
        %v3496 = vunpack.c.l.b16 %v3365
        %v3497 = vunpack.c.l.b16 %v3366
        %v3498 = vunpack.c.l.b16 %v3367
        %v3499 = vunpack.c.l.b16 %v3368
        %v3500 = vpack.c.b16 %v3437, %v3436
        %v3501 = vpack.c.b16 %v3439, %v3438
        %v3502 = vpack.c.b16 %v3441, %v3440
        %v3503 = vpack.c.b16 %v3443, %v3442
        %v3504 = vpack.c.b16 %v3445, %v3444
        %v3505 = vpack.c.b16 %v3447, %v3446
        %v3506 = vpack.c.b16 %v3449, %v3448
        %v3507 = vpack.c.b16 %v3451, %v3450
        %v3508 = vpack.c.b16 %v3453, %v3452
        %v3509 = vpack.c.b16 %v3455, %v3454
        %v3510 = vpack.c.b16 %v3457, %v3456
        %v3511 = vpack.c.b16 %v3459, %v3458
        %v3512 = vpack.c.b16 %v3461, %v3460
        %v3513 = vpack.c.b16 %v3463, %v3462
        %v3514 = vpack.c.b16 %v3465, %v3464
        %v3515 = vpack.c.b16 %v3467, %v3466
        %v3516 = vpack.c.b16 %v3469, %v3468
        %v3517 = vpack.c.b16 %v3471, %v3470
        %v3518 = vpack.c.b16 %v3473, %v3472
        %v3519 = vpack.c.b16 %v3475, %v3474
        %v3520 = vpack.c.b16 %v3477, %v3476
        %v3521 = vpack.c.b16 %v3479, %v3478
        %v3522 = vpack.c.b16 %v3481, %v3480
        %v3523 = vpack.c.b16 %v3483, %v3482
        %v3524 = vpack.c.b16 %v3485, %v3484
        %v3525 = vpack.c.b16 %v3487, %v3486
        %v3526 = vpack.c.b16 %v3489, %v3488
        %v3527 = vpack.c.b16 %v3491, %v3490
        %v3528 = vpack.c.b16 %v3493, %v3492
        %v3529 = vpack.c.b16 %v3495, %v3494
        %v3530 = vpack.c.b16 %v3497, %v3496
        %v3531 = vpack.c.b16 %v3499, %v3498
        %v3534 = vunpack.c.l.b16 %v3370
        %v3535 = vunpack.c.l.b16 %v3371
        %v3536 = vpack.c.b16 %v3535, %v3534
        %v3539 = vsel %vm2367, %v3500, 0
        %v3542 = vsel %vm2367, %v3501, 0
        %v3545 = vsel %vm2367, %v3502, 0
        %v3548 = vsel %vm2367, %v3503, 0
        %v3551 = vsel %vm2367, %v3504, 0
        %v3554 = vsel %vm2367, %v3505, 0
        %v3557 = vsel %vm2367, %v3506, 0
        %v3560 = vsel %vm2367, %v3507, 0
        %v3563 = vsel %vm2367, %v3508, 0
        %v3566 = vsel %vm2367, %v3509, 0
        %v3569 = vsel %vm2367, %v3510, 0
        %v3572 = vsel %vm2367, %v3511, 0
        %v3575 = vsel %vm2367, %v3512, 0
        %v3578 = vsel %vm2367, %v3513, 0
        %v3581 = vsel %vm2367, %v3514, 0
        %v3584 = vsel %vm2367, %v3515, 0
        %v3587 = vsel %vm2367, %v3516, 0
        %v3590 = vsel %vm2367, %v3517, 0
        %v3593 = vsel %vm2367, %v3518, 0
        %v3596 = vsel %vm2367, %v3519, 0
        %v3599 = vsel %vm2367, %v3520, 0
        %v3602 = vsel %vm2367, %v3521, 0
        %v3605 = vsel %vm2367, %v3522, 0
        %v3608 = vsel %vm2367, %v3523, 0
        %v3611 = vsel %vm2367, %v3524, 0
        %v3614 = vsel %vm2367, %v3525, 0
        %v3617 = vsel %vm2367, %v3526, 0
        %v3620 = vsel %vm2367, %v3527, 0
        %v3623 = vsel %vm2367, %v3528, 0
        %v3626 = vsel %vm2367, %v3529, 0
        %v3629 = vsel %vm2367, %v3530, 0
        %v3632 = vsel %vm2367, %v3531, 0
        %3634 = vmatprep.subr.bf16.mxu0 0
        %3635 = vmatpush1.bf16.msra.mxu0 0
        %3636 = vmatprep.subr.bf16.mxu0 0
        %3637 = vmatpush1.bf16.msra.mxu0 0
        %3638 = vmatprep.subr.bf16.mxu0 0
        %3639 = vmatpush1.bf16.msra.mxu0 0
        %3640 = vmatprep.subr.bf16.mxu0 0
        %3641 = vmatpush1.bf16.msra.mxu0 0
        %3642 = vmatprep.subr.bf16.mxu0 0
        %3643 = vmatpush1.bf16.msra.mxu0 0
        %3644 = vmatprep.subr.bf16.mxu0 0
        %3645 = vmatpush1.bf16.msra.mxu0 0
        %3646 = vmatprep.subr.bf16.mxu0 0
        %3647 = vmatpush1.bf16.msra.mxu0 0
        %3648 = vmatprep.subr.bf16.mxu0 0
        %3649 = vmatpush1.bf16.msra.mxu0 %v3536
        %3650 = vmatprep.subr.bf16.mxu0 0
        %3651 = vmatpush2.bf16.msra.mxu0 0
        %3652 = vmatprep.subr.bf16.mxu0 0
        %3653 = vmatpush2.bf16.msra.mxu0 0
        %3654 = vmatprep.subr.bf16.mxu0 0
        %3655 = vmatpush2.bf16.msra.mxu0 0
        %3656 = vmatprep.subr.bf16.mxu0 0
        %3657 = vmatpush2.bf16.msra.mxu0 0
        %3658 = vmatprep.subr.bf16.mxu0 0
        %3659 = vmatpush2.bf16.msra.mxu0 0
        %3660 = vmatprep.subr.bf16.mxu0 0
        %3661 = vmatpush2.bf16.msra.mxu0 0
        %3662 = vmatprep.subr.bf16.mxu0 0
        %3663 = vmatpush2.bf16.msra.mxu0 0
        %3664 = vmatprep.subr.bf16.mxu0 0
        %3665 = vmatpush2.bf16.msra.mxu0 0
        %3666 = vmatprep.mubr.bf16.mxu0 0
        %3667 = vmatmul.mubr.bf16.gmra.mxu0 %v3539
        %v3668 = vpop.f32.mrf.mxu0
        %v3669 = vadd.f32 0.0, %v3668
        %v3670 = vpop.f32.mrf.mxu0
        %v3671 = vpop.f32.mrf.mxu0
        %v3672 = vadd.f32 0.0, %v3671
        %v3673 = vpop.f32.mrf.mxu0
        %3674 = vmatprep.mubr.bf16.mxu0 0
        %3675 = vmatmul.mubr.bf16.gmra.mxu0 %v3542
        %v3676 = vpop.f32.mrf.mxu0
        %v3677 = vadd.f32 0.0, %v3676
        %v3678 = vpop.f32.mrf.mxu0
        %v3679 = vpop.f32.mrf.mxu0
        %v3680 = vadd.f32 0.0, %v3679
        %v3681 = vpop.f32.mrf.mxu0
        %3682 = vmatprep.mubr.bf16.mxu0 0
        %3683 = vmatmul.mubr.bf16.gmra.mxu0 %v3545
        %v3684 = vpop.f32.mrf.mxu0
        %v3685 = vadd.f32 0.0, %v3684
        %v3686 = vpop.f32.mrf.mxu0
        %v3687 = vpop.f32.mrf.mxu0
        %v3688 = vadd.f32 0.0, %v3687
        %v3689 = vpop.f32.mrf.mxu0
        %3690 = vmatprep.mubr.bf16.mxu0 0
        %3691 = vmatmul.mubr.bf16.gmra.mxu0 %v3548
        %v3692 = vpop.f32.mrf.mxu0
        %v3693 = vadd.f32 0.0, %v3692
        %v3694 = vpop.f32.mrf.mxu0
        %v3695 = vpop.f32.mrf.mxu0
        %v3696 = vadd.f32 0.0, %v3695
        %v3697 = vpop.f32.mrf.mxu0
        %3698 = vmatprep.mubr.bf16.mxu0 0
        %3699 = vmatmul.mubr.bf16.gmra.mxu0 %v3551
        %v3700 = vpop.f32.mrf.mxu0
        %v3701 = vadd.f32 0.0, %v3700
        %v3702 = vpop.f32.mrf.mxu0
        %v3703 = vpop.f32.mrf.mxu0
        %v3704 = vadd.f32 0.0, %v3703
        %v3705 = vpop.f32.mrf.mxu0
        %3706 = vmatprep.mubr.bf16.mxu0 0
        %3707 = vmatmul.mubr.bf16.gmra.mxu0 %v3554
        %v3708 = vpop.f32.mrf.mxu0
        %v3709 = vadd.f32 0.0, %v3708
        %v3710 = vpop.f32.mrf.mxu0
        %v3711 = vpop.f32.mrf.mxu0
        %v3712 = vadd.f32 0.0, %v3711
        %v3713 = vpop.f32.mrf.mxu0
        %3714 = vmatprep.mubr.bf16.mxu0 0
        %3715 = vmatmul.mubr.bf16.gmra.mxu0 %v3557
        %v3716 = vpop.f32.mrf.mxu0
        %v3717 = vadd.f32 0.0, %v3716
        %v3718 = vpop.f32.mrf.mxu0
        %v3719 = vpop.f32.mrf.mxu0
        %v3720 = vadd.f32 0.0, %v3719
        %v3721 = vpop.f32.mrf.mxu0
        %3722 = vmatprep.mubr.bf16.mxu0 0
        %3723 = vmatmul.mubr.bf16.gmra.mxu0 %v3560
        %v3724 = vpop.f32.mrf.mxu0
        %v3725 = vadd.f32 0.0, %v3724
        %v3726 = vpop.f32.mrf.mxu0
        %v3727 = vpop.f32.mrf.mxu0
        %v3728 = vadd.f32 0.0, %v3727
        %v3729 = vpop.f32.mrf.mxu0
        %3730 = vmatprep.mubr.bf16.mxu0 0
        %3731 = vmatmul.mubr.bf16.gmra.mxu0 %v3563
        %v3732 = vpop.f32.mrf.mxu0
        %v3733 = vadd.f32 0.0, %v3732
        %v3734 = vpop.f32.mrf.mxu0
        %v3735 = vpop.f32.mrf.mxu0
        %v3736 = vadd.f32 0.0, %v3735
        %v3737 = vpop.f32.mrf.mxu0
        %3738 = vmatprep.mubr.bf16.mxu0 0
        %3739 = vmatmul.mubr.bf16.gmra.mxu0 %v3566
        %v3740 = vpop.f32.mrf.mxu0
        %v3741 = vadd.f32 0.0, %v3740
        %v3742 = vpop.f32.mrf.mxu0
        %v3743 = vpop.f32.mrf.mxu0
        %v3744 = vadd.f32 0.0, %v3743
        %v3745 = vpop.f32.mrf.mxu0
        %3746 = vmatprep.mubr.bf16.mxu0 0
        %3747 = vmatmul.mubr.bf16.gmra.mxu0 %v3569
        %v3748 = vpop.f32.mrf.mxu0
        %v3749 = vadd.f32 0.0, %v3748
        %v3750 = vpop.f32.mrf.mxu0
        %v3751 = vpop.f32.mrf.mxu0
        %v3752 = vadd.f32 0.0, %v3751
        %v3753 = vpop.f32.mrf.mxu0
        %3754 = vmatprep.mubr.bf16.mxu0 0
        %3755 = vmatmul.mubr.bf16.gmra.mxu0 %v3572
        %v3756 = vpop.f32.mrf.mxu0
        %v3757 = vadd.f32 0.0, %v3756
        %v3758 = vpop.f32.mrf.mxu0
        %v3759 = vpop.f32.mrf.mxu0
        %v3760 = vadd.f32 0.0, %v3759
        %v3761 = vpop.f32.mrf.mxu0
        %3762 = vmatprep.mubr.bf16.mxu0 0
        %3763 = vmatmul.mubr.bf16.gmra.mxu0 %v3575
        %v3764 = vpop.f32.mrf.mxu0
        %v3765 = vadd.f32 0.0, %v3764
        %v3766 = vpop.f32.mrf.mxu0
        %v3767 = vpop.f32.mrf.mxu0
        %v3768 = vadd.f32 0.0, %v3767
        %v3769 = vpop.f32.mrf.mxu0
        %3770 = vmatprep.mubr.bf16.mxu0 0
        %3771 = vmatmul.mubr.bf16.gmra.mxu0 %v3578
        %v3772 = vpop.f32.mrf.mxu0
        %v3773 = vadd.f32 0.0, %v3772
        %v3774 = vpop.f32.mrf.mxu0
        %v3775 = vpop.f32.mrf.mxu0
        %v3776 = vadd.f32 0.0, %v3775
        %v3777 = vpop.f32.mrf.mxu0
        %3778 = vmatprep.mubr.bf16.mxu0 0
        %3779 = vmatmul.mubr.bf16.gmra.mxu0 %v3581
        %v3780 = vpop.f32.mrf.mxu0
        %v3781 = vadd.f32 0.0, %v3780
        %v3782 = vpop.f32.mrf.mxu0
        %v3783 = vpop.f32.mrf.mxu0
        %v3784 = vadd.f32 0.0, %v3783
        %v3785 = vpop.f32.mrf.mxu0
        %3786 = vmatprep.mubr.bf16.mxu0 0
        %3787 = vmatmul.mubr.bf16.gmra.mxu0 %v3584
        %v3788 = vpop.f32.mrf.mxu0
        %v3789 = vadd.f32 0.0, %v3788
        %v3790 = vpop.f32.mrf.mxu0
        %v3791 = vpop.f32.mrf.mxu0
        %v3792 = vadd.f32 0.0, %v3791
        %v3793 = vpop.f32.mrf.mxu0
        %3794 = vmatprep.mubr.bf16.mxu0 0
        %3795 = vmatmul.mubr.bf16.gmra.mxu0 %v3587
        %v3796 = vpop.f32.mrf.mxu0
        %v3797 = vadd.f32 0.0, %v3796
        %v3798 = vpop.f32.mrf.mxu0
        %v3799 = vpop.f32.mrf.mxu0
        %v3800 = vadd.f32 0.0, %v3799
        %v3801 = vpop.f32.mrf.mxu0
        %3802 = vmatprep.mubr.bf16.mxu0 0
        %3803 = vmatmul.mubr.bf16.gmra.mxu0 %v3590
        %v3804 = vpop.f32.mrf.mxu0
        %v3805 = vadd.f32 0.0, %v3804
        %v3806 = vpop.f32.mrf.mxu0
        %v3807 = vpop.f32.mrf.mxu0
        %v3808 = vadd.f32 0.0, %v3807
        %v3809 = vpop.f32.mrf.mxu0
        %3810 = vmatprep.mubr.bf16.mxu0 0
        %3811 = vmatmul.mubr.bf16.gmra.mxu0 %v3593
        %v3812 = vpop.f32.mrf.mxu0
        %v3813 = vadd.f32 0.0, %v3812
        %v3814 = vpop.f32.mrf.mxu0
        %v3815 = vpop.f32.mrf.mxu0
        %v3816 = vadd.f32 0.0, %v3815
        %v3817 = vpop.f32.mrf.mxu0
        %3818 = vmatprep.mubr.bf16.mxu0 0
        %3819 = vmatmul.mubr.bf16.gmra.mxu0 %v3596
        %v3820 = vpop.f32.mrf.mxu0
        %v3821 = vadd.f32 0.0, %v3820
        %v3822 = vpop.f32.mrf.mxu0
        %v3823 = vpop.f32.mrf.mxu0
        %v3824 = vadd.f32 0.0, %v3823
        %v3825 = vpop.f32.mrf.mxu0
        %3826 = vmatprep.mubr.bf16.mxu0 0
        %3827 = vmatmul.mubr.bf16.gmra.mxu0 %v3599
        %v3828 = vpop.f32.mrf.mxu0
        %v3829 = vadd.f32 0.0, %v3828
        %v3830 = vpop.f32.mrf.mxu0
        %v3831 = vpop.f32.mrf.mxu0
        %v3832 = vadd.f32 0.0, %v3831
        %v3833 = vpop.f32.mrf.mxu0
        %3834 = vmatprep.mubr.bf16.mxu0 0
        %3835 = vmatmul.mubr.bf16.gmra.mxu0 %v3602
        %v3836 = vpop.f32.mrf.mxu0
        %v3837 = vadd.f32 0.0, %v3836
        %v3838 = vpop.f32.mrf.mxu0
        %v3839 = vpop.f32.mrf.mxu0
        %v3840 = vadd.f32 0.0, %v3839
        %v3841 = vpop.f32.mrf.mxu0
        %3842 = vmatprep.mubr.bf16.mxu0 0
        %3843 = vmatmul.mubr.bf16.gmra.mxu0 %v3605
        %v3844 = vpop.f32.mrf.mxu0
        %v3845 = vadd.f32 0.0, %v3844
        %v3846 = vpop.f32.mrf.mxu0
        %v3847 = vpop.f32.mrf.mxu0
        %v3848 = vadd.f32 0.0, %v3847
        %v3849 = vpop.f32.mrf.mxu0
        %3850 = vmatprep.mubr.bf16.mxu0 0
        %3851 = vmatmul.mubr.bf16.gmra.mxu0 %v3608
        %v3852 = vpop.f32.mrf.mxu0
        %v3853 = vadd.f32 0.0, %v3852
        %v3854 = vpop.f32.mrf.mxu0
        %v3855 = vpop.f32.mrf.mxu0
        %v3856 = vadd.f32 0.0, %v3855
        %v3857 = vpop.f32.mrf.mxu0
        %3858 = vmatprep.mubr.bf16.mxu0 0
        %3859 = vmatmul.mubr.bf16.gmra.mxu0 %v3611
        %v3860 = vpop.f32.mrf.mxu0
        %v3861 = vadd.f32 0.0, %v3860
        %v3862 = vpop.f32.mrf.mxu0
        %v3863 = vpop.f32.mrf.mxu0
        %v3864 = vadd.f32 0.0, %v3863
        %v3865 = vpop.f32.mrf.mxu0
        %3866 = vmatprep.mubr.bf16.mxu0 0
        %3867 = vmatmul.mubr.bf16.gmra.mxu0 %v3614
        %v3868 = vpop.f32.mrf.mxu0
        %v3869 = vadd.f32 0.0, %v3868
        %v3870 = vpop.f32.mrf.mxu0
        %v3871 = vpop.f32.mrf.mxu0
        %v3872 = vadd.f32 0.0, %v3871
        %v3873 = vpop.f32.mrf.mxu0
        %3874 = vmatprep.mubr.bf16.mxu0 0
        %3875 = vmatmul.mubr.bf16.gmra.mxu0 %v3617
        %v3876 = vpop.f32.mrf.mxu0
        %v3877 = vadd.f32 0.0, %v3876
        %v3878 = vpop.f32.mrf.mxu0
        %v3879 = vpop.f32.mrf.mxu0
        %v3880 = vadd.f32 0.0, %v3879
        %v3881 = vpop.f32.mrf.mxu0
        %3882 = vmatprep.mubr.bf16.mxu0 0
        %3883 = vmatmul.mubr.bf16.gmra.mxu0 %v3620
        %v3884 = vpop.f32.mrf.mxu0
        %v3885 = vadd.f32 0.0, %v3884
        %v3886 = vpop.f32.mrf.mxu0
        %v3887 = vpop.f32.mrf.mxu0
        %v3888 = vadd.f32 0.0, %v3887
        %v3889 = vpop.f32.mrf.mxu0
        %3890 = vmatprep.mubr.bf16.mxu0 0
        %3891 = vmatmul.mubr.bf16.gmra.mxu0 %v3623
        %v3892 = vpop.f32.mrf.mxu0
        %v3893 = vadd.f32 0.0, %v3892
        %v3894 = vpop.f32.mrf.mxu0
        %v3895 = vpop.f32.mrf.mxu0
        %v3896 = vadd.f32 0.0, %v3895
        %v3897 = vpop.f32.mrf.mxu0
        %3898 = vmatprep.mubr.bf16.mxu0 0
        %3899 = vmatmul.mubr.bf16.gmra.mxu0 %v3626
        %v3900 = vpop.f32.mrf.mxu0
        %v3901 = vadd.f32 0.0, %v3900
        %v3902 = vpop.f32.mrf.mxu0
        %v3903 = vpop.f32.mrf.mxu0
        %v3904 = vadd.f32 0.0, %v3903
        %v3905 = vpop.f32.mrf.mxu0
        %3906 = vmatprep.mubr.bf16.mxu0 0
        %3907 = vmatmul.mubr.bf16.gmra.mxu0 %v3629
        %v3908 = vpop.f32.mrf.mxu0
        %v3909 = vadd.f32 0.0, %v3908
        %v3910 = vpop.f32.mrf.mxu0
        %v3911 = vpop.f32.mrf.mxu0
        %v3912 = vadd.f32 0.0, %v3911
        %v3913 = vpop.f32.mrf.mxu0
        %3914 = vmatprep.mubr.bf16.mxu0 0
        %3915 = vmatmul.mubr.bf16.gmra.mxu0 %v3632
        %v3916 = vpop.f32.mrf.mxu0
        %v3917 = vadd.f32 0.0, %v3916
        %v3918 = vpop.f32.mrf.mxu0
        %v3919 = vpop.f32.mrf.mxu0
        %v3920 = vadd.f32 0.0, %v3919
        %v3921 = vpop.f32.mrf.mxu0
        %3922 = vdwg.mxu0
        %v3923 = vadd.f32 %v3050, %v3669
        %v3924 = vadd.f32 %v3053, %v3672
        %v3925 = vadd.f32 %v3058, %v3677
        %v3926 = vadd.f32 %v3061, %v3680
        %v3927 = vadd.f32 %v3066, %v3685
        %v3928 = vadd.f32 %v3069, %v3688
        %v3929 = vadd.f32 %v3074, %v3693
        %v3930 = vadd.f32 %v3077, %v3696
        %v3931 = vadd.f32 %v3082, %v3701
        %v3932 = vadd.f32 %v3085, %v3704
        %v3933 = vadd.f32 %v3090, %v3709
        %v3934 = vadd.f32 %v3093, %v3712
        %v3935 = vadd.f32 %v3098, %v3717
        %v3936 = vadd.f32 %v3101, %v3720
        %v3937 = vadd.f32 %v3106, %v3725
        %v3938 = vadd.f32 %v3109, %v3728
        %v3939 = vadd.f32 %v3114, %v3733
        %v3940 = vadd.f32 %v3117, %v3736
        %v3941 = vadd.f32 %v3122, %v3741
        %v3942 = vadd.f32 %v3125, %v3744
        %v3943 = vadd.f32 %v3130, %v3749
        %v3944 = vadd.f32 %v3133, %v3752
        %v3945 = vadd.f32 %v3138, %v3757
        %v3946 = vadd.f32 %v3141, %v3760
        %v3947 = vadd.f32 %v3146, %v3765
        %v3948 = vadd.f32 %v3149, %v3768
        %v3949 = vadd.f32 %v3154, %v3773
        %v3950 = vadd.f32 %v3157, %v3776
        %v3951 = vadd.f32 %v3162, %v3781
        %v3952 = vadd.f32 %v3165, %v3784
        %v3953 = vadd.f32 %v3170, %v3789
        %v3954 = vadd.f32 %v3173, %v3792
        %v3955 = vadd.f32 %v3178, %v3797
        %v3956 = vadd.f32 %v3181, %v3800
        %v3957 = vadd.f32 %v3186, %v3805
        %v3958 = vadd.f32 %v3189, %v3808
        %v3959 = vadd.f32 %v3194, %v3813
        %v3960 = vadd.f32 %v3197, %v3816
        %v3961 = vadd.f32 %v3202, %v3821
        %v3962 = vadd.f32 %v3205, %v3824
        %v3963 = vadd.f32 %v3210, %v3829
        %v3964 = vadd.f32 %v3213, %v3832
        %v3965 = vadd.f32 %v3218, %v3837
        %v3966 = vadd.f32 %v3221, %v3840
        %v3967 = vadd.f32 %v3226, %v3845
        %v3968 = vadd.f32 %v3229, %v3848
        %v3969 = vadd.f32 %v3234, %v3853
        %v3970 = vadd.f32 %v3237, %v3856
        %v3971 = vadd.f32 %v3242, %v3861
        %v3972 = vadd.f32 %v3245, %v3864
        %v3973 = vadd.f32 %v3250, %v3869
        %v3974 = vadd.f32 %v3253, %v3872
        %v3975 = vadd.f32 %v3258, %v3877
        %v3976 = vadd.f32 %v3261, %v3880
        %v3977 = vadd.f32 %v3266, %v3885
        %v3978 = vadd.f32 %v3269, %v3888
        %v3979 = vadd.f32 %v3274, %v3893
        %v3980 = vadd.f32 %v3277, %v3896
        %v3981 = vadd.f32 %v3282, %v3901
        %v3982 = vadd.f32 %v3285, %v3904
        %v3983 = vadd.f32 %v3290, %v3909
        %v3984 = vadd.f32 %v3293, %v3912
        %v3985 = vadd.f32 %v3298, %v3917
        %v3986 = vadd.f32 %v3301, %v3920
        %v3987 = vld [vmem:[%s1321] sm:$0xf]
        %v3988 = vld [vmem:[%s1321 + $0x4] sm:$0xf]
        %v3989 = vld [vmem:[%s1321 + $0x8] sm:$0xf]
        %v3990 = vld [vmem:[%s1321 + $0xc] sm:$0xf]
        %v3991 = vld [vmem:[%s1321 + $0x10] sm:$0xf]
        %v3992 = vld [vmem:[%s1321 + $0x14] sm:$0xf]
        %v3993 = vld [vmem:[%s1321 + $0x18] sm:$0xf]
        %v3994 = vld [vmem:[%s1321 + $0x1c] sm:$0xf]
        %v3995 = vld [vmem:[%s1321 + $0x20] sm:$0xf]
        %v3996 = vld [vmem:[%s1321 + $0x24] sm:$0xf]
        %v3997 = vld [vmem:[%s1321 + $0x28] sm:$0xf]
        %v3998 = vld [vmem:[%s1321 + $0x2c] sm:$0xf]
        %v3999 = vld [vmem:[%s1321 + $0x30] sm:$0xf]
        %v4000 = vld [vmem:[%s1321 + $0x34] sm:$0xf]
        %v4001 = vld [vmem:[%s1321 + $0x38] sm:$0xf]
        %v4002 = vld [vmem:[%s1321 + $0x3c] sm:$0xf]
        %v4003 = vld [vmem:[%s1321 + $0x40] sm:$0xf]
        %v4004 = vld [vmem:[%s1321 + $0x44] sm:$0xf]
        %v4005 = vld [vmem:[%s1321 + $0x48] sm:$0xf]
        %v4006 = vld [vmem:[%s1321 + $0x4c] sm:$0xf]
        %v4007 = vld [vmem:[%s1321 + $0x50] sm:$0xf]
        %v4008 = vld [vmem:[%s1321 + $0x54] sm:$0xf]
        %v4009 = vld [vmem:[%s1321 + $0x58] sm:$0xf]
        %v4010 = vld [vmem:[%s1321 + $0x5c] sm:$0xf]
        %v4011 = vld [vmem:[%s1321 + $0x60] sm:$0xf]
        %v4012 = vld [vmem:[%s1321 + $0x64] sm:$0xf]
        %v4013 = vld [vmem:[%s1321 + $0x68] sm:$0xf]
        %v4014 = vld [vmem:[%s1321 + $0x6c] sm:$0xf]
        %v4015 = vld [vmem:[%s1321 + $0x70] sm:$0xf]
        %v4016 = vld [vmem:[%s1321 + $0x74] sm:$0xf]
        %v4017 = vld [vmem:[%s1321 + $0x78] sm:$0xf]
        %v4018 = vld [vmem:[%s1321 + $0x7c] sm:$0xf]
        %v4019 = vld [vmem:[%s1321 + $0x80] sm:$0xf]
        %v4020 = vld [vmem:[%s1321 + $0x84] sm:$0xf]
        %v4021 = vld [vmem:[%s1321 + $0x88] sm:$0xf]
        %v4022 = vld [vmem:[%s1321 + $0x8c] sm:$0xf]
        %v4023 = vld [vmem:[%s1321 + $0x90] sm:$0xf]
        %v4024 = vld [vmem:[%s1321 + $0x94] sm:$0xf]
        %v4025 = vld [vmem:[%s1321 + $0x98] sm:$0xf]
        %v4026 = vld [vmem:[%s1321 + $0x9c] sm:$0xf]
        %v4027 = vld [vmem:[%s1321 + $0xa0] sm:$0xf]
        %v4028 = vld [vmem:[%s1321 + $0xa4] sm:$0xf]
        %v4029 = vld [vmem:[%s1321 + $0xa8] sm:$0xf]
        %v4030 = vld [vmem:[%s1321 + $0xac] sm:$0xf]
        %v4031 = vld [vmem:[%s1321 + $0xb0] sm:$0xf]
        %v4032 = vld [vmem:[%s1321 + $0xb4] sm:$0xf]
        %v4033 = vld [vmem:[%s1321 + $0xb8] sm:$0xf]
        %v4034 = vld [vmem:[%s1321 + $0xbc] sm:$0xf]
        %v4035 = vld [vmem:[%s1321 + $0xc0] sm:$0xf]
        %v4036 = vld [vmem:[%s1321 + $0xc4] sm:$0xf]
        %v4037 = vld [vmem:[%s1321 + $0xc8] sm:$0xf]
        %v4038 = vld [vmem:[%s1321 + $0xcc] sm:$0xf]
        %v4039 = vld [vmem:[%s1321 + $0xd0] sm:$0xf]
        %v4040 = vld [vmem:[%s1321 + $0xd4] sm:$0xf]
        %v4041 = vld [vmem:[%s1321 + $0xd8] sm:$0xf]
        %v4042 = vld [vmem:[%s1321 + $0xdc] sm:$0xf]
        %v4043 = vld [vmem:[%s1321 + $0xe0] sm:$0xf]
        %v4044 = vld [vmem:[%s1321 + $0xe4] sm:$0xf]
        %v4045 = vld [vmem:[%s1321 + $0xe8] sm:$0xf]
        %v4046 = vld [vmem:[%s1321 + $0xec] sm:$0xf]
        %v4047 = vld [vmem:[%s1321 + $0xf0] sm:$0xf]
        %v4048 = vld [vmem:[%s1321 + $0xf4] sm:$0xf]
        %v4049 = vld [vmem:[%s1321 + $0xf8] sm:$0xf]
        %v4050 = vld [vmem:[%s1321 + $0xfc] sm:$0xf]
        %s4051 = scalar_lea.vmem %s3, 24
        %v4052 = vld [vmem:[%s4051] sm:$0xf]
        %v4053 = vld [vmem:[%s4051 + $0x4] sm:$0xf]
        %v4118 = vunpack.c.l.b16 %v3987
        %v4119 = vunpack.c.l.b16 %v3988
        %v4120 = vunpack.c.l.b16 %v3989
        %v4121 = vunpack.c.l.b16 %v3990
        %v4122 = vunpack.c.l.b16 %v3991
        %v4123 = vunpack.c.l.b16 %v3992
        %v4124 = vunpack.c.l.b16 %v3993
        %v4125 = vunpack.c.l.b16 %v3994
        %v4126 = vunpack.c.l.b16 %v3995
        %v4127 = vunpack.c.l.b16 %v3996
        %v4128 = vunpack.c.l.b16 %v3997
        %v4129 = vunpack.c.l.b16 %v3998
        %v4130 = vunpack.c.l.b16 %v3999
        %v4131 = vunpack.c.l.b16 %v4000
        %v4132 = vunpack.c.l.b16 %v4001
        %v4133 = vunpack.c.l.b16 %v4002
        %v4134 = vunpack.c.l.b16 %v4003
        %v4135 = vunpack.c.l.b16 %v4004
        %v4136 = vunpack.c.l.b16 %v4005
        %v4137 = vunpack.c.l.b16 %v4006
        %v4138 = vunpack.c.l.b16 %v4007
        %v4139 = vunpack.c.l.b16 %v4008
        %v4140 = vunpack.c.l.b16 %v4009
        %v4141 = vunpack.c.l.b16 %v4010
        %v4142 = vunpack.c.l.b16 %v4011
        %v4143 = vunpack.c.l.b16 %v4012
        %v4144 = vunpack.c.l.b16 %v4013
        %v4145 = vunpack.c.l.b16 %v4014
        %v4146 = vunpack.c.l.b16 %v4015
        %v4147 = vunpack.c.l.b16 %v4016
        %v4148 = vunpack.c.l.b16 %v4017
        %v4149 = vunpack.c.l.b16 %v4018
        %v4150 = vunpack.c.l.b16 %v4019
        %v4151 = vunpack.c.l.b16 %v4020
        %v4152 = vunpack.c.l.b16 %v4021
        %v4153 = vunpack.c.l.b16 %v4022
        %v4154 = vunpack.c.l.b16 %v4023
        %v4155 = vunpack.c.l.b16 %v4024
        %v4156 = vunpack.c.l.b16 %v4025
        %v4157 = vunpack.c.l.b16 %v4026
        %v4158 = vunpack.c.l.b16 %v4027
        %v4159 = vunpack.c.l.b16 %v4028
        %v4160 = vunpack.c.l.b16 %v4029
        %v4161 = vunpack.c.l.b16 %v4030
        %v4162 = vunpack.c.l.b16 %v4031
        %v4163 = vunpack.c.l.b16 %v4032
        %v4164 = vunpack.c.l.b16 %v4033
        %v4165 = vunpack.c.l.b16 %v4034
        %v4166 = vunpack.c.l.b16 %v4035
        %v4167 = vunpack.c.l.b16 %v4036
        %v4168 = vunpack.c.l.b16 %v4037
        %v4169 = vunpack.c.l.b16 %v4038
        %v4170 = vunpack.c.l.b16 %v4039
        %v4171 = vunpack.c.l.b16 %v4040
        %v4172 = vunpack.c.l.b16 %v4041
        %v4173 = vunpack.c.l.b16 %v4042
        %v4174 = vunpack.c.l.b16 %v4043
        %v4175 = vunpack.c.l.b16 %v4044
        %v4176 = vunpack.c.l.b16 %v4045
        %v4177 = vunpack.c.l.b16 %v4046
        %v4178 = vunpack.c.l.b16 %v4047
        %v4179 = vunpack.c.l.b16 %v4048
        %v4180 = vunpack.c.l.b16 %v4049
        %v4181 = vunpack.c.l.b16 %v4050
        %v4182 = vpack.c.b16 %v4119, %v4118
        %v4183 = vpack.c.b16 %v4121, %v4120
        %v4184 = vpack.c.b16 %v4123, %v4122
        %v4185 = vpack.c.b16 %v4125, %v4124
        %v4186 = vpack.c.b16 %v4127, %v4126
        %v4187 = vpack.c.b16 %v4129, %v4128
        %v4188 = vpack.c.b16 %v4131, %v4130
        %v4189 = vpack.c.b16 %v4133, %v4132
        %v4190 = vpack.c.b16 %v4135, %v4134
        %v4191 = vpack.c.b16 %v4137, %v4136
        %v4192 = vpack.c.b16 %v4139, %v4138
        %v4193 = vpack.c.b16 %v4141, %v4140
        %v4194 = vpack.c.b16 %v4143, %v4142
        %v4195 = vpack.c.b16 %v4145, %v4144
        %v4196 = vpack.c.b16 %v4147, %v4146
        %v4197 = vpack.c.b16 %v4149, %v4148
        %v4198 = vpack.c.b16 %v4151, %v4150
        %v4199 = vpack.c.b16 %v4153, %v4152
        %v4200 = vpack.c.b16 %v4155, %v4154
        %v4201 = vpack.c.b16 %v4157, %v4156
        %v4202 = vpack.c.b16 %v4159, %v4158
        %v4203 = vpack.c.b16 %v4161, %v4160
        %v4204 = vpack.c.b16 %v4163, %v4162
        %v4205 = vpack.c.b16 %v4165, %v4164
        %v4206 = vpack.c.b16 %v4167, %v4166
        %v4207 = vpack.c.b16 %v4169, %v4168
        %v4208 = vpack.c.b16 %v4171, %v4170
        %v4209 = vpack.c.b16 %v4173, %v4172
        %v4210 = vpack.c.b16 %v4175, %v4174
        %v4211 = vpack.c.b16 %v4177, %v4176
        %v4212 = vpack.c.b16 %v4179, %v4178
        %v4213 = vpack.c.b16 %v4181, %v4180
        %v4216 = vunpack.c.l.b16 %v4052
        %v4217 = vunpack.c.l.b16 %v4053
        %v4218 = vpack.c.b16 %v4217, %v4216
        %v4221 = vsel %vm2367, %v4182, 0
        %v4224 = vsel %vm2367, %v4183, 0
        %v4227 = vsel %vm2367, %v4184, 0
        %v4230 = vsel %vm2367, %v4185, 0
        %v4233 = vsel %vm2367, %v4186, 0
        %v4236 = vsel %vm2367, %v4187, 0
        %v4239 = vsel %vm2367, %v4188, 0
        %v4242 = vsel %vm2367, %v4189, 0
        %v4245 = vsel %vm2367, %v4190, 0
        %v4248 = vsel %vm2367, %v4191, 0
        %v4251 = vsel %vm2367, %v4192, 0
        %v4254 = vsel %vm2367, %v4193, 0
        %v4257 = vsel %vm2367, %v4194, 0
        %v4260 = vsel %vm2367, %v4195, 0
        %v4263 = vsel %vm2367, %v4196, 0
        %v4266 = vsel %vm2367, %v4197, 0
        %v4269 = vsel %vm2367, %v4198, 0
        %v4272 = vsel %vm2367, %v4199, 0
        %v4275 = vsel %vm2367, %v4200, 0
        %v4278 = vsel %vm2367, %v4201, 0
        %v4281 = vsel %vm2367, %v4202, 0
        %v4284 = vsel %vm2367, %v4203, 0
        %v4287 = vsel %vm2367, %v4204, 0
        %v4290 = vsel %vm2367, %v4205, 0
        %v4293 = vsel %vm2367, %v4206, 0
        %v4296 = vsel %vm2367, %v4207, 0
        %v4299 = vsel %vm2367, %v4208, 0
        %v4302 = vsel %vm2367, %v4209, 0
        %v4305 = vsel %vm2367, %v4210, 0
        %v4308 = vsel %vm2367, %v4211, 0
        %v4311 = vsel %vm2367, %v4212, 0
        %v4314 = vsel %vm2367, %v4213, 0
        %4316 = vmatprep.subr.bf16.mxu0 0
        %4317 = vmatpush1.bf16.msra.mxu0 0
        %4318 = vmatprep.subr.bf16.mxu0 0
        %4319 = vmatpush1.bf16.msra.mxu0 0
        %4320 = vmatprep.subr.bf16.mxu0 0
        %4321 = vmatpush1.bf16.msra.mxu0 0
        %4322 = vmatprep.subr.bf16.mxu0 0
        %4323 = vmatpush1.bf16.msra.mxu0 0
        %4324 = vmatprep.subr.bf16.mxu0 0
        %4325 = vmatpush1.bf16.msra.mxu0 0
        %4326 = vmatprep.subr.bf16.mxu0 0
        %4327 = vmatpush1.bf16.msra.mxu0 0
        %4328 = vmatprep.subr.bf16.mxu0 0
        %4329 = vmatpush1.bf16.msra.mxu0 0
        %4330 = vmatprep.subr.bf16.mxu0 0
        %4331 = vmatpush1.bf16.msra.mxu0 %v4218
        %4332 = vmatprep.subr.bf16.mxu0 0
        %4333 = vmatpush2.bf16.msra.mxu0 0
        %4334 = vmatprep.subr.bf16.mxu0 0
        %4335 = vmatpush2.bf16.msra.mxu0 0
        %4336 = vmatprep.subr.bf16.mxu0 0
        %4337 = vmatpush2.bf16.msra.mxu0 0
        %4338 = vmatprep.subr.bf16.mxu0 0
        %4339 = vmatpush2.bf16.msra.mxu0 0
        %4340 = vmatprep.subr.bf16.mxu0 0
        %4341 = vmatpush2.bf16.msra.mxu0 0
        %4342 = vmatprep.subr.bf16.mxu0 0
        %4343 = vmatpush2.bf16.msra.mxu0 0
        %4344 = vmatprep.subr.bf16.mxu0 0
        %4345 = vmatpush2.bf16.msra.mxu0 0
        %4346 = vmatprep.subr.bf16.mxu0 0
        %4347 = vmatpush2.bf16.msra.mxu0 0
        %4348 = vmatprep.mubr.bf16.mxu0 0
        %4349 = vmatmul.mubr.bf16.gmra.mxu0 %v4221
        %v4350 = vpop.f32.mrf.mxu0
        %v4351 = vadd.f32 0.0, %v4350
        %v4352 = vpop.f32.mrf.mxu0
        %v4353 = vpop.f32.mrf.mxu0
        %v4354 = vadd.f32 0.0, %v4353
        %v4355 = vpop.f32.mrf.mxu0
        %4356 = vmatprep.mubr.bf16.mxu0 0
        %4357 = vmatmul.mubr.bf16.gmra.mxu0 %v4224
        %v4358 = vpop.f32.mrf.mxu0
        %v4359 = vadd.f32 0.0, %v4358
        %v4360 = vpop.f32.mrf.mxu0
        %v4361 = vpop.f32.mrf.mxu0
        %v4362 = vadd.f32 0.0, %v4361
        %v4363 = vpop.f32.mrf.mxu0
        %4364 = vmatprep.mubr.bf16.mxu0 0
        %4365 = vmatmul.mubr.bf16.gmra.mxu0 %v4227
        %v4366 = vpop.f32.mrf.mxu0
        %v4367 = vadd.f32 0.0, %v4366
        %v4368 = vpop.f32.mrf.mxu0
        %v4369 = vpop.f32.mrf.mxu0
        %v4370 = vadd.f32 0.0, %v4369
        %v4371 = vpop.f32.mrf.mxu0
        %4372 = vmatprep.mubr.bf16.mxu0 0
        %4373 = vmatmul.mubr.bf16.gmra.mxu0 %v4230
        %v4374 = vpop.f32.mrf.mxu0
        %v4375 = vadd.f32 0.0, %v4374
        %v4376 = vpop.f32.mrf.mxu0
        %v4377 = vpop.f32.mrf.mxu0
        %v4378 = vadd.f32 0.0, %v4377
        %v4379 = vpop.f32.mrf.mxu0
        %4380 = vmatprep.mubr.bf16.mxu0 0
        %4381 = vmatmul.mubr.bf16.gmra.mxu0 %v4233
        %v4382 = vpop.f32.mrf.mxu0
        %v4383 = vadd.f32 0.0, %v4382
        %v4384 = vpop.f32.mrf.mxu0
        %v4385 = vpop.f32.mrf.mxu0
        %v4386 = vadd.f32 0.0, %v4385
        %v4387 = vpop.f32.mrf.mxu0
        %4388 = vmatprep.mubr.bf16.mxu0 0
        %4389 = vmatmul.mubr.bf16.gmra.mxu0 %v4236
        %v4390 = vpop.f32.mrf.mxu0
        %v4391 = vadd.f32 0.0, %v4390
        %v4392 = vpop.f32.mrf.mxu0
        %v4393 = vpop.f32.mrf.mxu0
        %v4394 = vadd.f32 0.0, %v4393
        %v4395 = vpop.f32.mrf.mxu0
        %4396 = vmatprep.mubr.bf16.mxu0 0
        %4397 = vmatmul.mubr.bf16.gmra.mxu0 %v4239
        %v4398 = vpop.f32.mrf.mxu0
        %v4399 = vadd.f32 0.0, %v4398
        %v4400 = vpop.f32.mrf.mxu0
        %v4401 = vpop.f32.mrf.mxu0
        %v4402 = vadd.f32 0.0, %v4401
        %v4403 = vpop.f32.mrf.mxu0
        %4404 = vmatprep.mubr.bf16.mxu0 0
        %4405 = vmatmul.mubr.bf16.gmra.mxu0 %v4242
        %v4406 = vpop.f32.mrf.mxu0
        %v4407 = vadd.f32 0.0, %v4406
        %v4408 = vpop.f32.mrf.mxu0
        %v4409 = vpop.f32.mrf.mxu0
        %v4410 = vadd.f32 0.0, %v4409
        %v4411 = vpop.f32.mrf.mxu0
        %4412 = vmatprep.mubr.bf16.mxu0 0
        %4413 = vmatmul.mubr.bf16.gmra.mxu0 %v4245
        %v4414 = vpop.f32.mrf.mxu0
        %v4415 = vadd.f32 0.0, %v4414
        %v4416 = vpop.f32.mrf.mxu0
        %v4417 = vpop.f32.mrf.mxu0
        %v4418 = vadd.f32 0.0, %v4417
        %v4419 = vpop.f32.mrf.mxu0
        %4420 = vmatprep.mubr.bf16.mxu0 0
        %4421 = vmatmul.mubr.bf16.gmra.mxu0 %v4248
        %v4422 = vpop.f32.mrf.mxu0
        %v4423 = vadd.f32 0.0, %v4422
        %v4424 = vpop.f32.mrf.mxu0
        %v4425 = vpop.f32.mrf.mxu0
        %v4426 = vadd.f32 0.0, %v4425
        %v4427 = vpop.f32.mrf.mxu0
        %4428 = vmatprep.mubr.bf16.mxu0 0
        %4429 = vmatmul.mubr.bf16.gmra.mxu0 %v4251
        %v4430 = vpop.f32.mrf.mxu0
        %v4431 = vadd.f32 0.0, %v4430
        %v4432 = vpop.f32.mrf.mxu0
        %v4433 = vpop.f32.mrf.mxu0
        %v4434 = vadd.f32 0.0, %v4433
        %v4435 = vpop.f32.mrf.mxu0
        %4436 = vmatprep.mubr.bf16.mxu0 0
        %4437 = vmatmul.mubr.bf16.gmra.mxu0 %v4254
        %v4438 = vpop.f32.mrf.mxu0
        %v4439 = vadd.f32 0.0, %v4438
        %v4440 = vpop.f32.mrf.mxu0
        %v4441 = vpop.f32.mrf.mxu0
        %v4442 = vadd.f32 0.0, %v4441
        %v4443 = vpop.f32.mrf.mxu0
        %4444 = vmatprep.mubr.bf16.mxu0 0
        %4445 = vmatmul.mubr.bf16.gmra.mxu0 %v4257
        %v4446 = vpop.f32.mrf.mxu0
        %v4447 = vadd.f32 0.0, %v4446
        %v4448 = vpop.f32.mrf.mxu0
        %v4449 = vpop.f32.mrf.mxu0
        %v4450 = vadd.f32 0.0, %v4449
        %v4451 = vpop.f32.mrf.mxu0
        %4452 = vmatprep.mubr.bf16.mxu0 0
        %4453 = vmatmul.mubr.bf16.gmra.mxu0 %v4260
        %v4454 = vpop.f32.mrf.mxu0
        %v4455 = vadd.f32 0.0, %v4454
        %v4456 = vpop.f32.mrf.mxu0
        %v4457 = vpop.f32.mrf.mxu0
        %v4458 = vadd.f32 0.0, %v4457
        %v4459 = vpop.f32.mrf.mxu0
        %4460 = vmatprep.mubr.bf16.mxu0 0
        %4461 = vmatmul.mubr.bf16.gmra.mxu0 %v4263
        %v4462 = vpop.f32.mrf.mxu0
        %v4463 = vadd.f32 0.0, %v4462
        %v4464 = vpop.f32.mrf.mxu0
        %v4465 = vpop.f32.mrf.mxu0
        %v4466 = vadd.f32 0.0, %v4465
        %v4467 = vpop.f32.mrf.mxu0
        %4468 = vmatprep.mubr.bf16.mxu0 0
        %4469 = vmatmul.mubr.bf16.gmra.mxu0 %v4266
        %v4470 = vpop.f32.mrf.mxu0
        %v4471 = vadd.f32 0.0, %v4470
        %v4472 = vpop.f32.mrf.mxu0
        %v4473 = vpop.f32.mrf.mxu0
        %v4474 = vadd.f32 0.0, %v4473
        %v4475 = vpop.f32.mrf.mxu0
        %4476 = vmatprep.mubr.bf16.mxu0 0
        %4477 = vmatmul.mubr.bf16.gmra.mxu0 %v4269
        %v4478 = vpop.f32.mrf.mxu0
        %v4479 = vadd.f32 0.0, %v4478
        %v4480 = vpop.f32.mrf.mxu0
        %v4481 = vpop.f32.mrf.mxu0
        %v4482 = vadd.f32 0.0, %v4481
        %v4483 = vpop.f32.mrf.mxu0
        %4484 = vmatprep.mubr.bf16.mxu0 0
        %4485 = vmatmul.mubr.bf16.gmra.mxu0 %v4272
        %v4486 = vpop.f32.mrf.mxu0
        %v4487 = vadd.f32 0.0, %v4486
        %v4488 = vpop.f32.mrf.mxu0
        %v4489 = vpop.f32.mrf.mxu0
        %v4490 = vadd.f32 0.0, %v4489
        %v4491 = vpop.f32.mrf.mxu0
        %4492 = vmatprep.mubr.bf16.mxu0 0
        %4493 = vmatmul.mubr.bf16.gmra.mxu0 %v4275
        %v4494 = vpop.f32.mrf.mxu0
        %v4495 = vadd.f32 0.0, %v4494
        %v4496 = vpop.f32.mrf.mxu0
        %v4497 = vpop.f32.mrf.mxu0
        %v4498 = vadd.f32 0.0, %v4497
        %v4499 = vpop.f32.mrf.mxu0
        %4500 = vmatprep.mubr.bf16.mxu0 0
        %4501 = vmatmul.mubr.bf16.gmra.mxu0 %v4278
        %v4502 = vpop.f32.mrf.mxu0
        %v4503 = vadd.f32 0.0, %v4502
        %v4504 = vpop.f32.mrf.mxu0
        %v4505 = vpop.f32.mrf.mxu0
        %v4506 = vadd.f32 0.0, %v4505
        %v4507 = vpop.f32.mrf.mxu0
        %4508 = vmatprep.mubr.bf16.mxu0 0
        %4509 = vmatmul.mubr.bf16.gmra.mxu0 %v4281
        %v4510 = vpop.f32.mrf.mxu0
        %v4511 = vadd.f32 0.0, %v4510
        %v4512 = vpop.f32.mrf.mxu0
        %v4513 = vpop.f32.mrf.mxu0
        %v4514 = vadd.f32 0.0, %v4513
        %v4515 = vpop.f32.mrf.mxu0
        %4516 = vmatprep.mubr.bf16.mxu0 0
        %4517 = vmatmul.mubr.bf16.gmra.mxu0 %v4284
        %v4518 = vpop.f32.mrf.mxu0
        %v4519 = vadd.f32 0.0, %v4518
        %v4520 = vpop.f32.mrf.mxu0
        %v4521 = vpop.f32.mrf.mxu0
        %v4522 = vadd.f32 0.0, %v4521
        %v4523 = vpop.f32.mrf.mxu0
        %4524 = vmatprep.mubr.bf16.mxu0 0
        %4525 = vmatmul.mubr.bf16.gmra.mxu0 %v4287
        %v4526 = vpop.f32.mrf.mxu0
        %v4527 = vadd.f32 0.0, %v4526
        %v4528 = vpop.f32.mrf.mxu0
        %v4529 = vpop.f32.mrf.mxu0
        %v4530 = vadd.f32 0.0, %v4529
        %v4531 = vpop.f32.mrf.mxu0
        %4532 = vmatprep.mubr.bf16.mxu0 0
        %4533 = vmatmul.mubr.bf16.gmra.mxu0 %v4290
        %v4534 = vpop.f32.mrf.mxu0
        %v4535 = vadd.f32 0.0, %v4534
        %v4536 = vpop.f32.mrf.mxu0
        %v4537 = vpop.f32.mrf.mxu0
        %v4538 = vadd.f32 0.0, %v4537
        %v4539 = vpop.f32.mrf.mxu0
        %4540 = vmatprep.mubr.bf16.mxu0 0
        %4541 = vmatmul.mubr.bf16.gmra.mxu0 %v4293
        %v4542 = vpop.f32.mrf.mxu0
        %v4543 = vadd.f32 0.0, %v4542
        %v4544 = vpop.f32.mrf.mxu0
        %v4545 = vpop.f32.mrf.mxu0
        %v4546 = vadd.f32 0.0, %v4545
        %v4547 = vpop.f32.mrf.mxu0
        %4548 = vmatprep.mubr.bf16.mxu0 0
        %4549 = vmatmul.mubr.bf16.gmra.mxu0 %v4296
        %v4550 = vpop.f32.mrf.mxu0
        %v4551 = vadd.f32 0.0, %v4550
        %v4552 = vpop.f32.mrf.mxu0
        %v4553 = vpop.f32.mrf.mxu0
        %v4554 = vadd.f32 0.0, %v4553
        %v4555 = vpop.f32.mrf.mxu0
        %4556 = vmatprep.mubr.bf16.mxu0 0
        %4557 = vmatmul.mubr.bf16.gmra.mxu0 %v4299
        %v4558 = vpop.f32.mrf.mxu0
        %v4559 = vadd.f32 0.0, %v4558
        %v4560 = vpop.f32.mrf.mxu0
        %v4561 = vpop.f32.mrf.mxu0
        %v4562 = vadd.f32 0.0, %v4561
        %v4563 = vpop.f32.mrf.mxu0
        %4564 = vmatprep.mubr.bf16.mxu0 0
        %4565 = vmatmul.mubr.bf16.gmra.mxu0 %v4302
        %v4566 = vpop.f32.mrf.mxu0
        %v4567 = vadd.f32 0.0, %v4566
        %v4568 = vpop.f32.mrf.mxu0
        %v4569 = vpop.f32.mrf.mxu0
        %v4570 = vadd.f32 0.0, %v4569
        %v4571 = vpop.f32.mrf.mxu0
        %4572 = vmatprep.mubr.bf16.mxu0 0
        %4573 = vmatmul.mubr.bf16.gmra.mxu0 %v4305
        %v4574 = vpop.f32.mrf.mxu0
        %v4575 = vadd.f32 0.0, %v4574
        %v4576 = vpop.f32.mrf.mxu0
        %v4577 = vpop.f32.mrf.mxu0
        %v4578 = vadd.f32 0.0, %v4577
        %v4579 = vpop.f32.mrf.mxu0
        %4580 = vmatprep.mubr.bf16.mxu0 0
        %4581 = vmatmul.mubr.bf16.gmra.mxu0 %v4308
        %v4582 = vpop.f32.mrf.mxu0
        %v4583 = vadd.f32 0.0, %v4582
        %v4584 = vpop.f32.mrf.mxu0
        %v4585 = vpop.f32.mrf.mxu0
        %v4586 = vadd.f32 0.0, %v4585
        %v4587 = vpop.f32.mrf.mxu0
        %4588 = vmatprep.mubr.bf16.mxu0 0
        %4589 = vmatmul.mubr.bf16.gmra.mxu0 %v4311
        %v4590 = vpop.f32.mrf.mxu0
        %v4591 = vadd.f32 0.0, %v4590
        %v4592 = vpop.f32.mrf.mxu0
        %v4593 = vpop.f32.mrf.mxu0
        %v4594 = vadd.f32 0.0, %v4593
        %v4595 = vpop.f32.mrf.mxu0
        %4596 = vmatprep.mubr.bf16.mxu0 0
        %4597 = vmatmul.mubr.bf16.gmra.mxu0 %v4314
        %v4598 = vpop.f32.mrf.mxu0
        %v4599 = vadd.f32 0.0, %v4598
        %v4600 = vpop.f32.mrf.mxu0
        %v4601 = vpop.f32.mrf.mxu0
        %v4602 = vadd.f32 0.0, %v4601
        %v4603 = vpop.f32.mrf.mxu0
        %4604 = vdwg.mxu0
        %v4605 = vadd.f32 %v3923, %v4351
        %v4606 = vadd.f32 %v3924, %v4354
        %v4607 = vadd.f32 %v3925, %v4359
        %v4608 = vadd.f32 %v3926, %v4362
        %v4609 = vadd.f32 %v3927, %v4367
        %v4610 = vadd.f32 %v3928, %v4370
        %v4611 = vadd.f32 %v3929, %v4375
        %v4612 = vadd.f32 %v3930, %v4378
        %v4613 = vadd.f32 %v3931, %v4383
        %v4614 = vadd.f32 %v3932, %v4386
        %v4615 = vadd.f32 %v3933, %v4391
        %v4616 = vadd.f32 %v3934, %v4394
        %v4617 = vadd.f32 %v3935, %v4399
        %v4618 = vadd.f32 %v3936, %v4402
        %v4619 = vadd.f32 %v3937, %v4407
        %v4620 = vadd.f32 %v3938, %v4410
        %v4621 = vadd.f32 %v3939, %v4415
        %v4622 = vadd.f32 %v3940, %v4418
        %v4623 = vadd.f32 %v3941, %v4423
        %v4624 = vadd.f32 %v3942, %v4426
        %v4625 = vadd.f32 %v3943, %v4431
        %v4626 = vadd.f32 %v3944, %v4434
        %v4627 = vadd.f32 %v3945, %v4439
        %v4628 = vadd.f32 %v3946, %v4442
        %v4629 = vadd.f32 %v3947, %v4447
        %v4630 = vadd.f32 %v3948, %v4450
        %v4631 = vadd.f32 %v3949, %v4455
        %v4632 = vadd.f32 %v3950, %v4458
        %v4633 = vadd.f32 %v3951, %v4463
        %v4634 = vadd.f32 %v3952, %v4466
        %v4635 = vadd.f32 %v3953, %v4471
        %v4636 = vadd.f32 %v3954, %v4474
        %v4637 = vadd.f32 %v3955, %v4479
        %v4638 = vadd.f32 %v3956, %v4482
        %v4639 = vadd.f32 %v3957, %v4487
        %v4640 = vadd.f32 %v3958, %v4490
        %v4641 = vadd.f32 %v3959, %v4495
        %v4642 = vadd.f32 %v3960, %v4498
        %v4643 = vadd.f32 %v3961, %v4503
        %v4644 = vadd.f32 %v3962, %v4506
        %v4645 = vadd.f32 %v3963, %v4511
        %v4646 = vadd.f32 %v3964, %v4514
        %v4647 = vadd.f32 %v3965, %v4519
        %v4648 = vadd.f32 %v3966, %v4522
        %v4649 = vadd.f32 %v3967, %v4527
        %v4650 = vadd.f32 %v3968, %v4530
        %v4651 = vadd.f32 %v3969, %v4535
        %v4652 = vadd.f32 %v3970, %v4538
        %v4653 = vadd.f32 %v3971, %v4543
        %v4654 = vadd.f32 %v3972, %v4546
        %v4655 = vadd.f32 %v3973, %v4551
        %v4656 = vadd.f32 %v3974, %v4554
        %v4657 = vadd.f32 %v3975, %v4559
        %v4658 = vadd.f32 %v3976, %v4562
        %v4659 = vadd.f32 %v3977, %v4567
        %v4660 = vadd.f32 %v3978, %v4570
        %v4661 = vadd.f32 %v3979, %v4575
        %v4662 = vadd.f32 %v3980, %v4578
        %v4663 = vadd.f32 %v3981, %v4583
        %v4664 = vadd.f32 %v3982, %v4586
        %v4665 = vadd.f32 %v3983, %v4591
        %v4666 = vadd.f32 %v3984, %v4594
        %v4667 = vadd.f32 %v3985, %v4599
        %v4668 = vadd.f32 %v3986, %v4602
        %v4669 = vld [vmem:[%s1517] sm:$0xf]
        %v4670 = vld [vmem:[%s1517 + $0x4] sm:$0xf]
        %v4671 = vld [vmem:[%s1517 + $0x8] sm:$0xf]
        %v4672 = vld [vmem:[%s1517 + $0xc] sm:$0xf]
        %v4673 = vld [vmem:[%s1517 + $0x10] sm:$0xf]
        %v4674 = vld [vmem:[%s1517 + $0x14] sm:$0xf]
        %v4675 = vld [vmem:[%s1517 + $0x18] sm:$0xf]
        %v4676 = vld [vmem:[%s1517 + $0x1c] sm:$0xf]
        %v4677 = vld [vmem:[%s1517 + $0x20] sm:$0xf]
        %v4678 = vld [vmem:[%s1517 + $0x24] sm:$0xf]
        %v4679 = vld [vmem:[%s1517 + $0x28] sm:$0xf]
        %v4680 = vld [vmem:[%s1517 + $0x2c] sm:$0xf]
        %v4681 = vld [vmem:[%s1517 + $0x30] sm:$0xf]
        %v4682 = vld [vmem:[%s1517 + $0x34] sm:$0xf]
        %v4683 = vld [vmem:[%s1517 + $0x38] sm:$0xf]
        %v4684 = vld [vmem:[%s1517 + $0x3c] sm:$0xf]
        %v4685 = vld [vmem:[%s1517 + $0x40] sm:$0xf]
        %v4686 = vld [vmem:[%s1517 + $0x44] sm:$0xf]
        %v4687 = vld [vmem:[%s1517 + $0x48] sm:$0xf]
        %v4688 = vld [vmem:[%s1517 + $0x4c] sm:$0xf]
        %v4689 = vld [vmem:[%s1517 + $0x50] sm:$0xf]
        %v4690 = vld [vmem:[%s1517 + $0x54] sm:$0xf]
        %v4691 = vld [vmem:[%s1517 + $0x58] sm:$0xf]
        %v4692 = vld [vmem:[%s1517 + $0x5c] sm:$0xf]
        %v4693 = vld [vmem:[%s1517 + $0x60] sm:$0xf]
        %v4694 = vld [vmem:[%s1517 + $0x64] sm:$0xf]
        %v4695 = vld [vmem:[%s1517 + $0x68] sm:$0xf]
        %v4696 = vld [vmem:[%s1517 + $0x6c] sm:$0xf]
        %v4697 = vld [vmem:[%s1517 + $0x70] sm:$0xf]
        %v4698 = vld [vmem:[%s1517 + $0x74] sm:$0xf]
        %v4699 = vld [vmem:[%s1517 + $0x78] sm:$0xf]
        %v4700 = vld [vmem:[%s1517 + $0x7c] sm:$0xf]
        %v4701 = vld [vmem:[%s1517 + $0x80] sm:$0xf]
        %v4702 = vld [vmem:[%s1517 + $0x84] sm:$0xf]
        %v4703 = vld [vmem:[%s1517 + $0x88] sm:$0xf]
        %v4704 = vld [vmem:[%s1517 + $0x8c] sm:$0xf]
        %v4705 = vld [vmem:[%s1517 + $0x90] sm:$0xf]
        %v4706 = vld [vmem:[%s1517 + $0x94] sm:$0xf]
        %v4707 = vld [vmem:[%s1517 + $0x98] sm:$0xf]
        %v4708 = vld [vmem:[%s1517 + $0x9c] sm:$0xf]
        %v4709 = vld [vmem:[%s1517 + $0xa0] sm:$0xf]
        %v4710 = vld [vmem:[%s1517 + $0xa4] sm:$0xf]
        %v4711 = vld [vmem:[%s1517 + $0xa8] sm:$0xf]
        %v4712 = vld [vmem:[%s1517 + $0xac] sm:$0xf]
        %v4713 = vld [vmem:[%s1517 + $0xb0] sm:$0xf]
        %v4714 = vld [vmem:[%s1517 + $0xb4] sm:$0xf]
        %v4715 = vld [vmem:[%s1517 + $0xb8] sm:$0xf]
        %v4716 = vld [vmem:[%s1517 + $0xbc] sm:$0xf]
        %v4717 = vld [vmem:[%s1517 + $0xc0] sm:$0xf]
        %v4718 = vld [vmem:[%s1517 + $0xc4] sm:$0xf]
        %v4719 = vld [vmem:[%s1517 + $0xc8] sm:$0xf]
        %v4720 = vld [vmem:[%s1517 + $0xcc] sm:$0xf]
        %v4721 = vld [vmem:[%s1517 + $0xd0] sm:$0xf]
        %v4722 = vld [vmem:[%s1517 + $0xd4] sm:$0xf]
        %v4723 = vld [vmem:[%s1517 + $0xd8] sm:$0xf]
        %v4724 = vld [vmem:[%s1517 + $0xdc] sm:$0xf]
        %v4725 = vld [vmem:[%s1517 + $0xe0] sm:$0xf]
        %v4726 = vld [vmem:[%s1517 + $0xe4] sm:$0xf]
        %v4727 = vld [vmem:[%s1517 + $0xe8] sm:$0xf]
        %v4728 = vld [vmem:[%s1517 + $0xec] sm:$0xf]
        %v4729 = vld [vmem:[%s1517 + $0xf0] sm:$0xf]
        %v4730 = vld [vmem:[%s1517 + $0xf4] sm:$0xf]
        %v4731 = vld [vmem:[%s1517 + $0xf8] sm:$0xf]
        %v4732 = vld [vmem:[%s1517 + $0xfc] sm:$0xf]
        %s4733 = scalar_lea.vmem %s3, 32
        %v4734 = vld [vmem:[%s4733] sm:$0xf]
        %v4735 = vld [vmem:[%s4733 + $0x4] sm:$0xf]
        %v4800 = vunpack.c.l.b16 %v4669
        %v4801 = vunpack.c.l.b16 %v4670
        %v4802 = vunpack.c.l.b16 %v4671
        %v4803 = vunpack.c.l.b16 %v4672
        %v4804 = vunpack.c.l.b16 %v4673
        %v4805 = vunpack.c.l.b16 %v4674
        %v4806 = vunpack.c.l.b16 %v4675
        %v4807 = vunpack.c.l.b16 %v4676
        %v4808 = vunpack.c.l.b16 %v4677
        %v4809 = vunpack.c.l.b16 %v4678
        %v4810 = vunpack.c.l.b16 %v4679
        %v4811 = vunpack.c.l.b16 %v4680
        %v4812 = vunpack.c.l.b16 %v4681
        %v4813 = vunpack.c.l.b16 %v4682
        %v4814 = vunpack.c.l.b16 %v4683
        %v4815 = vunpack.c.l.b16 %v4684
        %v4816 = vunpack.c.l.b16 %v4685
        %v4817 = vunpack.c.l.b16 %v4686
        %v4818 = vunpack.c.l.b16 %v4687
        %v4819 = vunpack.c.l.b16 %v4688
        %v4820 = vunpack.c.l.b16 %v4689
        %v4821 = vunpack.c.l.b16 %v4690
        %v4822 = vunpack.c.l.b16 %v4691
        %v4823 = vunpack.c.l.b16 %v4692
        %v4824 = vunpack.c.l.b16 %v4693
        %v4825 = vunpack.c.l.b16 %v4694
        %v4826 = vunpack.c.l.b16 %v4695
        %v4827 = vunpack.c.l.b16 %v4696
        %v4828 = vunpack.c.l.b16 %v4697
        %v4829 = vunpack.c.l.b16 %v4698
        %v4830 = vunpack.c.l.b16 %v4699
        %v4831 = vunpack.c.l.b16 %v4700
        %v4832 = vunpack.c.l.b16 %v4701
        %v4833 = vunpack.c.l.b16 %v4702
        %v4834 = vunpack.c.l.b16 %v4703
        %v4835 = vunpack.c.l.b16 %v4704
        %v4836 = vunpack.c.l.b16 %v4705
        %v4837 = vunpack.c.l.b16 %v4706
        %v4838 = vunpack.c.l.b16 %v4707
        %v4839 = vunpack.c.l.b16 %v4708
        %v4840 = vunpack.c.l.b16 %v4709
        %v4841 = vunpack.c.l.b16 %v4710
        %v4842 = vunpack.c.l.b16 %v4711
        %v4843 = vunpack.c.l.b16 %v4712
        %v4844 = vunpack.c.l.b16 %v4713
        %v4845 = vunpack.c.l.b16 %v4714
        %v4846 = vunpack.c.l.b16 %v4715
        %v4847 = vunpack.c.l.b16 %v4716
        %v4848 = vunpack.c.l.b16 %v4717
        %v4849 = vunpack.c.l.b16 %v4718
        %v4850 = vunpack.c.l.b16 %v4719
        %v4851 = vunpack.c.l.b16 %v4720
        %v4852 = vunpack.c.l.b16 %v4721
        %v4853 = vunpack.c.l.b16 %v4722
        %v4854 = vunpack.c.l.b16 %v4723
        %v4855 = vunpack.c.l.b16 %v4724
        %v4856 = vunpack.c.l.b16 %v4725
        %v4857 = vunpack.c.l.b16 %v4726
        %v4858 = vunpack.c.l.b16 %v4727
        %v4859 = vunpack.c.l.b16 %v4728
        %v4860 = vunpack.c.l.b16 %v4729
        %v4861 = vunpack.c.l.b16 %v4730
        %v4862 = vunpack.c.l.b16 %v4731
        %v4863 = vunpack.c.l.b16 %v4732
        %v4864 = vpack.c.b16 %v4801, %v4800
        %v4865 = vpack.c.b16 %v4803, %v4802
        %v4866 = vpack.c.b16 %v4805, %v4804
        %v4867 = vpack.c.b16 %v4807, %v4806
        %v4868 = vpack.c.b16 %v4809, %v4808
        %v4869 = vpack.c.b16 %v4811, %v4810
        %v4870 = vpack.c.b16 %v4813, %v4812
        %v4871 = vpack.c.b16 %v4815, %v4814
        %v4872 = vpack.c.b16 %v4817, %v4816
        %v4873 = vpack.c.b16 %v4819, %v4818
        %v4874 = vpack.c.b16 %v4821, %v4820
        %v4875 = vpack.c.b16 %v4823, %v4822
        %v4876 = vpack.c.b16 %v4825, %v4824
        %v4877 = vpack.c.b16 %v4827, %v4826
        %v4878 = vpack.c.b16 %v4829, %v4828
        %v4879 = vpack.c.b16 %v4831, %v4830
        %v4880 = vpack.c.b16 %v4833, %v4832
        %v4881 = vpack.c.b16 %v4835, %v4834
        %v4882 = vpack.c.b16 %v4837, %v4836
        %v4883 = vpack.c.b16 %v4839, %v4838
        %v4884 = vpack.c.b16 %v4841, %v4840
        %v4885 = vpack.c.b16 %v4843, %v4842
        %v4886 = vpack.c.b16 %v4845, %v4844
        %v4887 = vpack.c.b16 %v4847, %v4846
        %v4888 = vpack.c.b16 %v4849, %v4848
        %v4889 = vpack.c.b16 %v4851, %v4850
        %v4890 = vpack.c.b16 %v4853, %v4852
        %v4891 = vpack.c.b16 %v4855, %v4854
        %v4892 = vpack.c.b16 %v4857, %v4856
        %v4893 = vpack.c.b16 %v4859, %v4858
        %v4894 = vpack.c.b16 %v4861, %v4860
        %v4895 = vpack.c.b16 %v4863, %v4862
        %v4898 = vunpack.c.l.b16 %v4734
        %v4899 = vunpack.c.l.b16 %v4735
        %v4900 = vpack.c.b16 %v4899, %v4898
        %v4903 = vsel %vm2367, %v4864, 0
        %v4906 = vsel %vm2367, %v4865, 0
        %v4909 = vsel %vm2367, %v4866, 0
        %v4912 = vsel %vm2367, %v4867, 0
        %v4915 = vsel %vm2367, %v4868, 0
        %v4918 = vsel %vm2367, %v4869, 0
        %v4921 = vsel %vm2367, %v4870, 0
        %v4924 = vsel %vm2367, %v4871, 0
        %v4927 = vsel %vm2367, %v4872, 0
        %v4930 = vsel %vm2367, %v4873, 0
        %v4933 = vsel %vm2367, %v4874, 0
        %v4936 = vsel %vm2367, %v4875, 0
        %v4939 = vsel %vm2367, %v4876, 0
        %v4942 = vsel %vm2367, %v4877, 0
        %v4945 = vsel %vm2367, %v4878, 0
        %v4948 = vsel %vm2367, %v4879, 0
        %v4951 = vsel %vm2367, %v4880, 0
        %v4954 = vsel %vm2367, %v4881, 0
        %v4957 = vsel %vm2367, %v4882, 0
        %v4960 = vsel %vm2367, %v4883, 0
        %v4963 = vsel %vm2367, %v4884, 0
        %v4966 = vsel %vm2367, %v4885, 0
        %v4969 = vsel %vm2367, %v4886, 0
        %v4972 = vsel %vm2367, %v4887, 0
        %v4975 = vsel %vm2367, %v4888, 0
        %v4978 = vsel %vm2367, %v4889, 0
        %v4981 = vsel %vm2367, %v4890, 0
        %v4984 = vsel %vm2367, %v4891, 0
        %v4987 = vsel %vm2367, %v4892, 0
        %v4990 = vsel %vm2367, %v4893, 0
        %v4993 = vsel %vm2367, %v4894, 0
        %v4996 = vsel %vm2367, %v4895, 0
        %4998 = vmatprep.subr.bf16.mxu0 0
        %4999 = vmatpush1.bf16.msra.mxu0 0
        %5000 = vmatprep.subr.bf16.mxu0 0
        %5001 = vmatpush1.bf16.msra.mxu0 0
        %5002 = vmatprep.subr.bf16.mxu0 0
        %5003 = vmatpush1.bf16.msra.mxu0 0
        %5004 = vmatprep.subr.bf16.mxu0 0
        %5005 = vmatpush1.bf16.msra.mxu0 0
        %5006 = vmatprep.subr.bf16.mxu0 0
        %5007 = vmatpush1.bf16.msra.mxu0 0
        %5008 = vmatprep.subr.bf16.mxu0 0
        %5009 = vmatpush1.bf16.msra.mxu0 0
        %5010 = vmatprep.subr.bf16.mxu0 0
        %5011 = vmatpush1.bf16.msra.mxu0 0
        %5012 = vmatprep.subr.bf16.mxu0 0
        %5013 = vmatpush1.bf16.msra.mxu0 %v4900
        %5014 = vmatprep.subr.bf16.mxu0 0
        %5015 = vmatpush2.bf16.msra.mxu0 0
        %5016 = vmatprep.subr.bf16.mxu0 0
        %5017 = vmatpush2.bf16.msra.mxu0 0
        %5018 = vmatprep.subr.bf16.mxu0 0
        %5019 = vmatpush2.bf16.msra.mxu0 0
        %5020 = vmatprep.subr.bf16.mxu0 0
        %5021 = vmatpush2.bf16.msra.mxu0 0
        %5022 = vmatprep.subr.bf16.mxu0 0
        %5023 = vmatpush2.bf16.msra.mxu0 0
        %5024 = vmatprep.subr.bf16.mxu0 0
        %5025 = vmatpush2.bf16.msra.mxu0 0
        %5026 = vmatprep.subr.bf16.mxu0 0
        %5027 = vmatpush2.bf16.msra.mxu0 0
        %5028 = vmatprep.subr.bf16.mxu0 0
        %5029 = vmatpush2.bf16.msra.mxu0 0
        %5030 = vmatprep.mubr.bf16.mxu0 0
        %5031 = vmatmul.mubr.bf16.gmra.mxu0 %v4903
        %v5032 = vpop.f32.mrf.mxu0
        %v5033 = vadd.f32 0.0, %v5032
        %v5034 = vpop.f32.mrf.mxu0
        %v5035 = vpop.f32.mrf.mxu0
        %v5036 = vadd.f32 0.0, %v5035
        %v5037 = vpop.f32.mrf.mxu0
        %5038 = vmatprep.mubr.bf16.mxu0 0
        %5039 = vmatmul.mubr.bf16.gmra.mxu0 %v4906
        %v5040 = vpop.f32.mrf.mxu0
        %v5041 = vadd.f32 0.0, %v5040
        %v5042 = vpop.f32.mrf.mxu0
        %v5043 = vpop.f32.mrf.mxu0
        %v5044 = vadd.f32 0.0, %v5043
        %v5045 = vpop.f32.mrf.mxu0
        %5046 = vmatprep.mubr.bf16.mxu0 0
        %5047 = vmatmul.mubr.bf16.gmra.mxu0 %v4909
        %v5048 = vpop.f32.mrf.mxu0
        %v5049 = vadd.f32 0.0, %v5048
        %v5050 = vpop.f32.mrf.mxu0
        %v5051 = vpop.f32.mrf.mxu0
        %v5052 = vadd.f32 0.0, %v5051
        %v5053 = vpop.f32.mrf.mxu0
        %5054 = vmatprep.mubr.bf16.mxu0 0
        %5055 = vmatmul.mubr.bf16.gmra.mxu0 %v4912
        %v5056 = vpop.f32.mrf.mxu0
        %v5057 = vadd.f32 0.0, %v5056
        %v5058 = vpop.f32.mrf.mxu0
        %v5059 = vpop.f32.mrf.mxu0
        %v5060 = vadd.f32 0.0, %v5059
        %v5061 = vpop.f32.mrf.mxu0
        %5062 = vmatprep.mubr.bf16.mxu0 0
        %5063 = vmatmul.mubr.bf16.gmra.mxu0 %v4915
        %v5064 = vpop.f32.mrf.mxu0
        %v5065 = vadd.f32 0.0, %v5064
        %v5066 = vpop.f32.mrf.mxu0
        %v5067 = vpop.f32.mrf.mxu0
        %v5068 = vadd.f32 0.0, %v5067
        %v5069 = vpop.f32.mrf.mxu0
        %5070 = vmatprep.mubr.bf16.mxu0 0
        %5071 = vmatmul.mubr.bf16.gmra.mxu0 %v4918
        %v5072 = vpop.f32.mrf.mxu0
        %v5073 = vadd.f32 0.0, %v5072
        %v5074 = vpop.f32.mrf.mxu0
        %v5075 = vpop.f32.mrf.mxu0
        %v5076 = vadd.f32 0.0, %v5075
        %v5077 = vpop.f32.mrf.mxu0
        %5078 = vmatprep.mubr.bf16.mxu0 0
        %5079 = vmatmul.mubr.bf16.gmra.mxu0 %v4921
        %v5080 = vpop.f32.mrf.mxu0
        %v5081 = vadd.f32 0.0, %v5080
        %v5082 = vpop.f32.mrf.mxu0
        %v5083 = vpop.f32.mrf.mxu0
        %v5084 = vadd.f32 0.0, %v5083
        %v5085 = vpop.f32.mrf.mxu0
        %5086 = vmatprep.mubr.bf16.mxu0 0
        %5087 = vmatmul.mubr.bf16.gmra.mxu0 %v4924
        %v5088 = vpop.f32.mrf.mxu0
        %v5089 = vadd.f32 0.0, %v5088
        %v5090 = vpop.f32.mrf.mxu0
        %v5091 = vpop.f32.mrf.mxu0
        %v5092 = vadd.f32 0.0, %v5091
        %v5093 = vpop.f32.mrf.mxu0
        %5094 = vmatprep.mubr.bf16.mxu0 0
        %5095 = vmatmul.mubr.bf16.gmra.mxu0 %v4927
        %v5096 = vpop.f32.mrf.mxu0
        %v5097 = vadd.f32 0.0, %v5096
        %v5098 = vpop.f32.mrf.mxu0
        %v5099 = vpop.f32.mrf.mxu0
        %v5100 = vadd.f32 0.0, %v5099
        %v5101 = vpop.f32.mrf.mxu0
        %5102 = vmatprep.mubr.bf16.mxu0 0
        %5103 = vmatmul.mubr.bf16.gmra.mxu0 %v4930
        %v5104 = vpop.f32.mrf.mxu0
        %v5105 = vadd.f32 0.0, %v5104
        %v5106 = vpop.f32.mrf.mxu0
        %v5107 = vpop.f32.mrf.mxu0
        %v5108 = vadd.f32 0.0, %v5107
        %v5109 = vpop.f32.mrf.mxu0
        %5110 = vmatprep.mubr.bf16.mxu0 0
        %5111 = vmatmul.mubr.bf16.gmra.mxu0 %v4933
        %v5112 = vpop.f32.mrf.mxu0
        %v5113 = vadd.f32 0.0, %v5112
        %v5114 = vpop.f32.mrf.mxu0
        %v5115 = vpop.f32.mrf.mxu0
        %v5116 = vadd.f32 0.0, %v5115
        %v5117 = vpop.f32.mrf.mxu0
        %5118 = vmatprep.mubr.bf16.mxu0 0
        %5119 = vmatmul.mubr.bf16.gmra.mxu0 %v4936
        %v5120 = vpop.f32.mrf.mxu0
        %v5121 = vadd.f32 0.0, %v5120
        %v5122 = vpop.f32.mrf.mxu0
        %v5123 = vpop.f32.mrf.mxu0
        %v5124 = vadd.f32 0.0, %v5123
        %v5125 = vpop.f32.mrf.mxu0
        %5126 = vmatprep.mubr.bf16.mxu0 0
        %5127 = vmatmul.mubr.bf16.gmra.mxu0 %v4939
        %v5128 = vpop.f32.mrf.mxu0
        %v5129 = vadd.f32 0.0, %v5128
        %v5130 = vpop.f32.mrf.mxu0
        %v5131 = vpop.f32.mrf.mxu0
        %v5132 = vadd.f32 0.0, %v5131
        %v5133 = vpop.f32.mrf.mxu0
        %5134 = vmatprep.mubr.bf16.mxu0 0
        %5135 = vmatmul.mubr.bf16.gmra.mxu0 %v4942
        %v5136 = vpop.f32.mrf.mxu0
        %v5137 = vadd.f32 0.0, %v5136
        %v5138 = vpop.f32.mrf.mxu0
        %v5139 = vpop.f32.mrf.mxu0
        %v5140 = vadd.f32 0.0, %v5139
        %v5141 = vpop.f32.mrf.mxu0
        %5142 = vmatprep.mubr.bf16.mxu0 0
        %5143 = vmatmul.mubr.bf16.gmra.mxu0 %v4945
        %v5144 = vpop.f32.mrf.mxu0
        %v5145 = vadd.f32 0.0, %v5144
        %v5146 = vpop.f32.mrf.mxu0
        %v5147 = vpop.f32.mrf.mxu0
        %v5148 = vadd.f32 0.0, %v5147
        %v5149 = vpop.f32.mrf.mxu0
        %5150 = vmatprep.mubr.bf16.mxu0 0
        %5151 = vmatmul.mubr.bf16.gmra.mxu0 %v4948
        %v5152 = vpop.f32.mrf.mxu0
        %v5153 = vadd.f32 0.0, %v5152
        %v5154 = vpop.f32.mrf.mxu0
        %v5155 = vpop.f32.mrf.mxu0
        %v5156 = vadd.f32 0.0, %v5155
        %v5157 = vpop.f32.mrf.mxu0
        %5158 = vmatprep.mubr.bf16.mxu0 0
        %5159 = vmatmul.mubr.bf16.gmra.mxu0 %v4951
        %v5160 = vpop.f32.mrf.mxu0
        %v5161 = vadd.f32 0.0, %v5160
        %v5162 = vpop.f32.mrf.mxu0
        %v5163 = vpop.f32.mrf.mxu0
        %v5164 = vadd.f32 0.0, %v5163
        %v5165 = vpop.f32.mrf.mxu0
        %5166 = vmatprep.mubr.bf16.mxu0 0
        %5167 = vmatmul.mubr.bf16.gmra.mxu0 %v4954
        %v5168 = vpop.f32.mrf.mxu0
        %v5169 = vadd.f32 0.0, %v5168
        %v5170 = vpop.f32.mrf.mxu0
        %v5171 = vpop.f32.mrf.mxu0
        %v5172 = vadd.f32 0.0, %v5171
        %v5173 = vpop.f32.mrf.mxu0
        %5174 = vmatprep.mubr.bf16.mxu0 0
        %5175 = vmatmul.mubr.bf16.gmra.mxu0 %v4957
        %v5176 = vpop.f32.mrf.mxu0
        %v5177 = vadd.f32 0.0, %v5176
        %v5178 = vpop.f32.mrf.mxu0
        %v5179 = vpop.f32.mrf.mxu0
        %v5180 = vadd.f32 0.0, %v5179
        %v5181 = vpop.f32.mrf.mxu0
        %5182 = vmatprep.mubr.bf16.mxu0 0
        %5183 = vmatmul.mubr.bf16.gmra.mxu0 %v4960
        %v5184 = vpop.f32.mrf.mxu0
        %v5185 = vadd.f32 0.0, %v5184
        %v5186 = vpop.f32.mrf.mxu0
        %v5187 = vpop.f32.mrf.mxu0
        %v5188 = vadd.f32 0.0, %v5187
        %v5189 = vpop.f32.mrf.mxu0
        %5190 = vmatprep.mubr.bf16.mxu0 0
        %5191 = vmatmul.mubr.bf16.gmra.mxu0 %v4963
        %v5192 = vpop.f32.mrf.mxu0
        %v5193 = vadd.f32 0.0, %v5192
        %v5194 = vpop.f32.mrf.mxu0
        %v5195 = vpop.f32.mrf.mxu0
        %v5196 = vadd.f32 0.0, %v5195
        %v5197 = vpop.f32.mrf.mxu0
        %5198 = vmatprep.mubr.bf16.mxu0 0
        %5199 = vmatmul.mubr.bf16.gmra.mxu0 %v4966
        %v5200 = vpop.f32.mrf.mxu0
        %v5201 = vadd.f32 0.0, %v5200
        %v5202 = vpop.f32.mrf.mxu0
        %v5203 = vpop.f32.mrf.mxu0
        %v5204 = vadd.f32 0.0, %v5203
        %v5205 = vpop.f32.mrf.mxu0
        %5206 = vmatprep.mubr.bf16.mxu0 0
        %5207 = vmatmul.mubr.bf16.gmra.mxu0 %v4969
        %v5208 = vpop.f32.mrf.mxu0
        %v5209 = vadd.f32 0.0, %v5208
        %v5210 = vpop.f32.mrf.mxu0
        %v5211 = vpop.f32.mrf.mxu0
        %v5212 = vadd.f32 0.0, %v5211
        %v5213 = vpop.f32.mrf.mxu0
        %5214 = vmatprep.mubr.bf16.mxu0 0
        %5215 = vmatmul.mubr.bf16.gmra.mxu0 %v4972
        %v5216 = vpop.f32.mrf.mxu0
        %v5217 = vadd.f32 0.0, %v5216
        %v5218 = vpop.f32.mrf.mxu0
        %v5219 = vpop.f32.mrf.mxu0
        %v5220 = vadd.f32 0.0, %v5219
        %v5221 = vpop.f32.mrf.mxu0
        %5222 = vmatprep.mubr.bf16.mxu0 0
        %5223 = vmatmul.mubr.bf16.gmra.mxu0 %v4975
        %v5224 = vpop.f32.mrf.mxu0
        %v5225 = vadd.f32 0.0, %v5224
        %v5226 = vpop.f32.mrf.mxu0
        %v5227 = vpop.f32.mrf.mxu0
        %v5228 = vadd.f32 0.0, %v5227
        %v5229 = vpop.f32.mrf.mxu0
        %5230 = vmatprep.mubr.bf16.mxu0 0
        %5231 = vmatmul.mubr.bf16.gmra.mxu0 %v4978
        %v5232 = vpop.f32.mrf.mxu0
        %v5233 = vadd.f32 0.0, %v5232
        %v5234 = vpop.f32.mrf.mxu0
        %v5235 = vpop.f32.mrf.mxu0
        %v5236 = vadd.f32 0.0, %v5235
        %v5237 = vpop.f32.mrf.mxu0
        %5238 = vmatprep.mubr.bf16.mxu0 0
        %5239 = vmatmul.mubr.bf16.gmra.mxu0 %v4981
        %v5240 = vpop.f32.mrf.mxu0
        %v5241 = vadd.f32 0.0, %v5240
        %v5242 = vpop.f32.mrf.mxu0
        %v5243 = vpop.f32.mrf.mxu0
        %v5244 = vadd.f32 0.0, %v5243
        %v5245 = vpop.f32.mrf.mxu0
        %5246 = vmatprep.mubr.bf16.mxu0 0
        %5247 = vmatmul.mubr.bf16.gmra.mxu0 %v4984
        %v5248 = vpop.f32.mrf.mxu0
        %v5249 = vadd.f32 0.0, %v5248
        %v5250 = vpop.f32.mrf.mxu0
        %v5251 = vpop.f32.mrf.mxu0
        %v5252 = vadd.f32 0.0, %v5251
        %v5253 = vpop.f32.mrf.mxu0
        %5254 = vmatprep.mubr.bf16.mxu0 0
        %5255 = vmatmul.mubr.bf16.gmra.mxu0 %v4987
        %v5256 = vpop.f32.mrf.mxu0
        %v5257 = vadd.f32 0.0, %v5256
        %v5258 = vpop.f32.mrf.mxu0
        %v5259 = vpop.f32.mrf.mxu0
        %v5260 = vadd.f32 0.0, %v5259
        %v5261 = vpop.f32.mrf.mxu0
        %5262 = vmatprep.mubr.bf16.mxu0 0
        %5263 = vmatmul.mubr.bf16.gmra.mxu0 %v4990
        %v5264 = vpop.f32.mrf.mxu0
        %v5265 = vadd.f32 0.0, %v5264
        %v5266 = vpop.f32.mrf.mxu0
        %v5267 = vpop.f32.mrf.mxu0
        %v5268 = vadd.f32 0.0, %v5267
        %v5269 = vpop.f32.mrf.mxu0
        %5270 = vmatprep.mubr.bf16.mxu0 0
        %5271 = vmatmul.mubr.bf16.gmra.mxu0 %v4993
        %v5272 = vpop.f32.mrf.mxu0
        %v5273 = vadd.f32 0.0, %v5272
        %v5274 = vpop.f32.mrf.mxu0
        %v5275 = vpop.f32.mrf.mxu0
        %v5276 = vadd.f32 0.0, %v5275
        %v5277 = vpop.f32.mrf.mxu0
        %5278 = vmatprep.mubr.bf16.mxu0 0
        %5279 = vmatmul.mubr.bf16.gmra.mxu0 %v4996
        %v5280 = vpop.f32.mrf.mxu0
        %v5281 = vadd.f32 0.0, %v5280
        %v5282 = vpop.f32.mrf.mxu0
        %v5283 = vpop.f32.mrf.mxu0
        %v5284 = vadd.f32 0.0, %v5283
        %v5285 = vpop.f32.mrf.mxu0
        %5286 = vdwg.mxu0
        %v5287 = vadd.f32 %v4605, %v5033
        %v5288 = vadd.f32 %v4606, %v5036
        %v5289 = vadd.f32 %v4607, %v5041
        %v5290 = vadd.f32 %v4608, %v5044
        %v5291 = vadd.f32 %v4609, %v5049
        %v5292 = vadd.f32 %v4610, %v5052
        %v5293 = vadd.f32 %v4611, %v5057
        %v5294 = vadd.f32 %v4612, %v5060
        %v5295 = vadd.f32 %v4613, %v5065
        %v5296 = vadd.f32 %v4614, %v5068
        %v5297 = vadd.f32 %v4615, %v5073
        %v5298 = vadd.f32 %v4616, %v5076
        %v5299 = vadd.f32 %v4617, %v5081
        %v5300 = vadd.f32 %v4618, %v5084
        %v5301 = vadd.f32 %v4619, %v5089
        %v5302 = vadd.f32 %v4620, %v5092
        %v5303 = vadd.f32 %v4621, %v5097
        %v5304 = vadd.f32 %v4622, %v5100
        %v5305 = vadd.f32 %v4623, %v5105
        %v5306 = vadd.f32 %v4624, %v5108
        %v5307 = vadd.f32 %v4625, %v5113
        %v5308 = vadd.f32 %v4626, %v5116
        %v5309 = vadd.f32 %v4627, %v5121
        %v5310 = vadd.f32 %v4628, %v5124
        %v5311 = vadd.f32 %v4629, %v5129
        %v5312 = vadd.f32 %v4630, %v5132
        %v5313 = vadd.f32 %v4631, %v5137
        %v5314 = vadd.f32 %v4632, %v5140
        %v5315 = vadd.f32 %v4633, %v5145
        %v5316 = vadd.f32 %v4634, %v5148
        %v5317 = vadd.f32 %v4635, %v5153
        %v5318 = vadd.f32 %v4636, %v5156
        %v5319 = vadd.f32 %v4637, %v5161
        %v5320 = vadd.f32 %v4638, %v5164
        %v5321 = vadd.f32 %v4639, %v5169
        %v5322 = vadd.f32 %v4640, %v5172
        %v5323 = vadd.f32 %v4641, %v5177
        %v5324 = vadd.f32 %v4642, %v5180
        %v5325 = vadd.f32 %v4643, %v5185
        %v5326 = vadd.f32 %v4644, %v5188
        %v5327 = vadd.f32 %v4645, %v5193
        %v5328 = vadd.f32 %v4646, %v5196
        %v5329 = vadd.f32 %v4647, %v5201
        %v5330 = vadd.f32 %v4648, %v5204
        %v5331 = vadd.f32 %v4649, %v5209
        %v5332 = vadd.f32 %v4650, %v5212
        %v5333 = vadd.f32 %v4651, %v5217
        %v5334 = vadd.f32 %v4652, %v5220
        %v5335 = vadd.f32 %v4653, %v5225
        %v5336 = vadd.f32 %v4654, %v5228
        %v5337 = vadd.f32 %v4655, %v5233
        %v5338 = vadd.f32 %v4656, %v5236
        %v5339 = vadd.f32 %v4657, %v5241
        %v5340 = vadd.f32 %v4658, %v5244
        %v5341 = vadd.f32 %v4659, %v5249
        %v5342 = vadd.f32 %v4660, %v5252
        %v5343 = vadd.f32 %v4661, %v5257
        %v5344 = vadd.f32 %v4662, %v5260
        %v5345 = vadd.f32 %v4663, %v5265
        %v5346 = vadd.f32 %v4664, %v5268
        %v5347 = vadd.f32 %v4665, %v5273
        %v5348 = vadd.f32 %v4666, %v5276
        %v5349 = vadd.f32 %v4667, %v5281
        %v5350 = vadd.f32 %v4668, %v5284
        %v5351 = vld [vmem:[%s1937] sm:$0xf]
        %v5352 = vld [vmem:[%s1937 + $0x4] sm:$0xf]
        %v5353 = vld [vmem:[%s1937 + $0x8] sm:$0xf]
        %v5354 = vld [vmem:[%s1937 + $0xc] sm:$0xf]
        %v5355 = vld [vmem:[%s1937 + $0x10] sm:$0xf]
        %v5356 = vld [vmem:[%s1937 + $0x14] sm:$0xf]
        %v5357 = vld [vmem:[%s1937 + $0x18] sm:$0xf]
        %v5358 = vld [vmem:[%s1937 + $0x1c] sm:$0xf]
        %v5359 = vld [vmem:[%s1937 + $0x20] sm:$0xf]
        %v5360 = vld [vmem:[%s1937 + $0x24] sm:$0xf]
        %v5361 = vld [vmem:[%s1937 + $0x28] sm:$0xf]
        %v5362 = vld [vmem:[%s1937 + $0x2c] sm:$0xf]
        %v5363 = vld [vmem:[%s1937 + $0x30] sm:$0xf]
        %v5364 = vld [vmem:[%s1937 + $0x34] sm:$0xf]
        %v5365 = vld [vmem:[%s1937 + $0x38] sm:$0xf]
        %v5366 = vld [vmem:[%s1937 + $0x3c] sm:$0xf]
        %v5367 = vld [vmem:[%s1937 + $0x40] sm:$0xf]
        %v5368 = vld [vmem:[%s1937 + $0x44] sm:$0xf]
        %v5369 = vld [vmem:[%s1937 + $0x48] sm:$0xf]
        %v5370 = vld [vmem:[%s1937 + $0x4c] sm:$0xf]
        %v5371 = vld [vmem:[%s1937 + $0x50] sm:$0xf]
        %v5372 = vld [vmem:[%s1937 + $0x54] sm:$0xf]
        %v5373 = vld [vmem:[%s1937 + $0x58] sm:$0xf]
        %v5374 = vld [vmem:[%s1937 + $0x5c] sm:$0xf]
        %v5375 = vld [vmem:[%s1937 + $0x60] sm:$0xf]
        %v5376 = vld [vmem:[%s1937 + $0x64] sm:$0xf]
        %v5377 = vld [vmem:[%s1937 + $0x68] sm:$0xf]
        %v5378 = vld [vmem:[%s1937 + $0x6c] sm:$0xf]
        %v5379 = vld [vmem:[%s1937 + $0x70] sm:$0xf]
        %v5380 = vld [vmem:[%s1937 + $0x74] sm:$0xf]
        %v5381 = vld [vmem:[%s1937 + $0x78] sm:$0xf]
        %v5382 = vld [vmem:[%s1937 + $0x7c] sm:$0xf]
        %v5383 = vld [vmem:[%s1937 + $0x80] sm:$0xf]
        %v5384 = vld [vmem:[%s1937 + $0x84] sm:$0xf]
        %v5385 = vld [vmem:[%s1937 + $0x88] sm:$0xf]
        %v5386 = vld [vmem:[%s1937 + $0x8c] sm:$0xf]
        %v5387 = vld [vmem:[%s1937 + $0x90] sm:$0xf]
        %v5388 = vld [vmem:[%s1937 + $0x94] sm:$0xf]
        %v5389 = vld [vmem:[%s1937 + $0x98] sm:$0xf]
        %v5390 = vld [vmem:[%s1937 + $0x9c] sm:$0xf]
        %v5391 = vld [vmem:[%s1937 + $0xa0] sm:$0xf]
        %v5392 = vld [vmem:[%s1937 + $0xa4] sm:$0xf]
        %v5393 = vld [vmem:[%s1937 + $0xa8] sm:$0xf]
        %v5394 = vld [vmem:[%s1937 + $0xac] sm:$0xf]
        %v5395 = vld [vmem:[%s1937 + $0xb0] sm:$0xf]
        %v5396 = vld [vmem:[%s1937 + $0xb4] sm:$0xf]
        %v5397 = vld [vmem:[%s1937 + $0xb8] sm:$0xf]
        %v5398 = vld [vmem:[%s1937 + $0xbc] sm:$0xf]
        %v5399 = vld [vmem:[%s1937 + $0xc0] sm:$0xf]
        %v5400 = vld [vmem:[%s1937 + $0xc4] sm:$0xf]
        %v5401 = vld [vmem:[%s1937 + $0xc8] sm:$0xf]
        %v5402 = vld [vmem:[%s1937 + $0xcc] sm:$0xf]
        %v5403 = vld [vmem:[%s1937 + $0xd0] sm:$0xf]
        %v5404 = vld [vmem:[%s1937 + $0xd4] sm:$0xf]
        %v5405 = vld [vmem:[%s1937 + $0xd8] sm:$0xf]
        %v5406 = vld [vmem:[%s1937 + $0xdc] sm:$0xf]
        %v5407 = vld [vmem:[%s1937 + $0xe0] sm:$0xf]
        %v5408 = vld [vmem:[%s1937 + $0xe4] sm:$0xf]
        %v5409 = vld [vmem:[%s1937 + $0xe8] sm:$0xf]
        %v5410 = vld [vmem:[%s1937 + $0xec] sm:$0xf]
        %v5411 = vld [vmem:[%s1937 + $0xf0] sm:$0xf]
        %v5412 = vld [vmem:[%s1937 + $0xf4] sm:$0xf]
        %v5413 = vld [vmem:[%s1937 + $0xf8] sm:$0xf]
        %v5414 = vld [vmem:[%s1937 + $0xfc] sm:$0xf]
        %s5415 = scalar_lea.vmem %s3, 40
        %v5416 = vld [vmem:[%s5415] sm:$0xf]
        %v5417 = vld [vmem:[%s5415 + $0x4] sm:$0xf]
        %v5482 = vunpack.c.l.b16 %v5351
        %v5483 = vunpack.c.l.b16 %v5352
        %v5484 = vunpack.c.l.b16 %v5353
        %v5485 = vunpack.c.l.b16 %v5354
        %v5486 = vunpack.c.l.b16 %v5355
        %v5487 = vunpack.c.l.b16 %v5356
        %v5488 = vunpack.c.l.b16 %v5357
        %v5489 = vunpack.c.l.b16 %v5358
        %v5490 = vunpack.c.l.b16 %v5359
        %v5491 = vunpack.c.l.b16 %v5360
        %v5492 = vunpack.c.l.b16 %v5361
        %v5493 = vunpack.c.l.b16 %v5362
        %v5494 = vunpack.c.l.b16 %v5363
        %v5495 = vunpack.c.l.b16 %v5364
        %v5496 = vunpack.c.l.b16 %v5365
        %v5497 = vunpack.c.l.b16 %v5366
        %v5498 = vunpack.c.l.b16 %v5367
        %v5499 = vunpack.c.l.b16 %v5368
        %v5500 = vunpack.c.l.b16 %v5369
        %v5501 = vunpack.c.l.b16 %v5370
        %v5502 = vunpack.c.l.b16 %v5371
        %v5503 = vunpack.c.l.b16 %v5372
        %v5504 = vunpack.c.l.b16 %v5373
        %v5505 = vunpack.c.l.b16 %v5374
        %v5506 = vunpack.c.l.b16 %v5375
        %v5507 = vunpack.c.l.b16 %v5376
        %v5508 = vunpack.c.l.b16 %v5377
        %v5509 = vunpack.c.l.b16 %v5378
        %v5510 = vunpack.c.l.b16 %v5379
        %v5511 = vunpack.c.l.b16 %v5380
        %v5512 = vunpack.c.l.b16 %v5381
        %v5513 = vunpack.c.l.b16 %v5382
        %v5514 = vunpack.c.l.b16 %v5383
        %v5515 = vunpack.c.l.b16 %v5384
        %v5516 = vunpack.c.l.b16 %v5385
        %v5517 = vunpack.c.l.b16 %v5386
        %v5518 = vunpack.c.l.b16 %v5387
        %v5519 = vunpack.c.l.b16 %v5388
        %v5520 = vunpack.c.l.b16 %v5389
        %v5521 = vunpack.c.l.b16 %v5390
        %v5522 = vunpack.c.l.b16 %v5391
        %v5523 = vunpack.c.l.b16 %v5392
        %v5524 = vunpack.c.l.b16 %v5393
        %v5525 = vunpack.c.l.b16 %v5394
        %v5526 = vunpack.c.l.b16 %v5395
        %v5527 = vunpack.c.l.b16 %v5396
        %v5528 = vunpack.c.l.b16 %v5397
        %v5529 = vunpack.c.l.b16 %v5398
        %v5530 = vunpack.c.l.b16 %v5399
        %v5531 = vunpack.c.l.b16 %v5400
        %v5532 = vunpack.c.l.b16 %v5401
        %v5533 = vunpack.c.l.b16 %v5402
        %v5534 = vunpack.c.l.b16 %v5403
        %v5535 = vunpack.c.l.b16 %v5404
        %v5536 = vunpack.c.l.b16 %v5405
        %v5537 = vunpack.c.l.b16 %v5406
        %v5538 = vunpack.c.l.b16 %v5407
        %v5539 = vunpack.c.l.b16 %v5408
        %v5540 = vunpack.c.l.b16 %v5409
        %v5541 = vunpack.c.l.b16 %v5410
        %v5542 = vunpack.c.l.b16 %v5411
        %v5543 = vunpack.c.l.b16 %v5412
        %v5544 = vunpack.c.l.b16 %v5413
        %v5545 = vunpack.c.l.b16 %v5414
        %v5546 = vpack.c.b16 %v5483, %v5482
        %v5547 = vpack.c.b16 %v5485, %v5484
        %v5548 = vpack.c.b16 %v5487, %v5486
        %v5549 = vpack.c.b16 %v5489, %v5488
        %v5550 = vpack.c.b16 %v5491, %v5490
        %v5551 = vpack.c.b16 %v5493, %v5492
        %v5552 = vpack.c.b16 %v5495, %v5494
        %v5553 = vpack.c.b16 %v5497, %v5496
        %v5554 = vpack.c.b16 %v5499, %v5498
        %v5555 = vpack.c.b16 %v5501, %v5500
        %v5556 = vpack.c.b16 %v5503, %v5502
        %v5557 = vpack.c.b16 %v5505, %v5504
        %v5558 = vpack.c.b16 %v5507, %v5506
        %v5559 = vpack.c.b16 %v5509, %v5508
        %v5560 = vpack.c.b16 %v5511, %v5510
        %v5561 = vpack.c.b16 %v5513, %v5512
        %v5562 = vpack.c.b16 %v5515, %v5514
        %v5563 = vpack.c.b16 %v5517, %v5516
        %v5564 = vpack.c.b16 %v5519, %v5518
        %v5565 = vpack.c.b16 %v5521, %v5520
        %v5566 = vpack.c.b16 %v5523, %v5522
        %v5567 = vpack.c.b16 %v5525, %v5524
        %v5568 = vpack.c.b16 %v5527, %v5526
        %v5569 = vpack.c.b16 %v5529, %v5528
        %v5570 = vpack.c.b16 %v5531, %v5530
        %v5571 = vpack.c.b16 %v5533, %v5532
        %v5572 = vpack.c.b16 %v5535, %v5534
        %v5573 = vpack.c.b16 %v5537, %v5536
        %v5574 = vpack.c.b16 %v5539, %v5538
        %v5575 = vpack.c.b16 %v5541, %v5540
        %v5576 = vpack.c.b16 %v5543, %v5542
        %v5577 = vpack.c.b16 %v5545, %v5544
        %v5580 = vunpack.c.l.b16 %v5416
        %v5581 = vunpack.c.l.b16 %v5417
        %v5582 = vpack.c.b16 %v5581, %v5580
        %v5585 = vsel %vm2367, %v5546, 0
        %v5588 = vsel %vm2367, %v5547, 0
        %v5591 = vsel %vm2367, %v5548, 0
        %v5594 = vsel %vm2367, %v5549, 0
        %v5597 = vsel %vm2367, %v5550, 0
        %v5600 = vsel %vm2367, %v5551, 0
        %v5603 = vsel %vm2367, %v5552, 0
        %v5606 = vsel %vm2367, %v5553, 0
        %v5609 = vsel %vm2367, %v5554, 0
        %v5612 = vsel %vm2367, %v5555, 0
        %v5615 = vsel %vm2367, %v5556, 0
        %v5618 = vsel %vm2367, %v5557, 0
        %v5621 = vsel %vm2367, %v5558, 0
        %v5624 = vsel %vm2367, %v5559, 0
        %v5627 = vsel %vm2367, %v5560, 0
        %v5630 = vsel %vm2367, %v5561, 0
        %v5633 = vsel %vm2367, %v5562, 0
        %v5636 = vsel %vm2367, %v5563, 0
        %v5639 = vsel %vm2367, %v5564, 0
        %v5642 = vsel %vm2367, %v5565, 0
        %v5645 = vsel %vm2367, %v5566, 0
        %v5648 = vsel %vm2367, %v5567, 0
        %v5651 = vsel %vm2367, %v5568, 0
        %v5654 = vsel %vm2367, %v5569, 0
        %v5657 = vsel %vm2367, %v5570, 0
        %v5660 = vsel %vm2367, %v5571, 0
        %v5663 = vsel %vm2367, %v5572, 0
        %v5666 = vsel %vm2367, %v5573, 0
        %v5669 = vsel %vm2367, %v5574, 0
        %v5672 = vsel %vm2367, %v5575, 0
        %v5675 = vsel %vm2367, %v5576, 0
        %v5678 = vsel %vm2367, %v5577, 0
        %5680 = vmatprep.subr.bf16.mxu0 0
        %5681 = vmatpush1.bf16.msra.mxu0 0
        %5682 = vmatprep.subr.bf16.mxu0 0
        %5683 = vmatpush1.bf16.msra.mxu0 0
        %5684 = vmatprep.subr.bf16.mxu0 0
        %5685 = vmatpush1.bf16.msra.mxu0 0
        %5686 = vmatprep.subr.bf16.mxu0 0
        %5687 = vmatpush1.bf16.msra.mxu0 0
        %5688 = vmatprep.subr.bf16.mxu0 0
        %5689 = vmatpush1.bf16.msra.mxu0 0
        %5690 = vmatprep.subr.bf16.mxu0 0
        %5691 = vmatpush1.bf16.msra.mxu0 0
        %5692 = vmatprep.subr.bf16.mxu0 0
        %5693 = vmatpush1.bf16.msra.mxu0 0
        %5694 = vmatprep.subr.bf16.mxu0 0
        %5695 = vmatpush1.bf16.msra.mxu0 %v5582
        %5696 = vmatprep.subr.bf16.mxu0 0
        %5697 = vmatpush2.bf16.msra.mxu0 0
        %5698 = vmatprep.subr.bf16.mxu0 0
        %5699 = vmatpush2.bf16.msra.mxu0 0
        %5700 = vmatprep.subr.bf16.mxu0 0
        %5701 = vmatpush2.bf16.msra.mxu0 0
        %5702 = vmatprep.subr.bf16.mxu0 0
        %5703 = vmatpush2.bf16.msra.mxu0 0
        %5704 = vmatprep.subr.bf16.mxu0 0
        %5705 = vmatpush2.bf16.msra.mxu0 0
        %5706 = vmatprep.subr.bf16.mxu0 0
        %5707 = vmatpush2.bf16.msra.mxu0 0
        %5708 = vmatprep.subr.bf16.mxu0 0
        %5709 = vmatpush2.bf16.msra.mxu0 0
        %5710 = vmatprep.subr.bf16.mxu0 0
        %5711 = vmatpush2.bf16.msra.mxu0 0
        %5712 = vmatprep.mubr.bf16.mxu0 0
        %5713 = vmatmul.mubr.bf16.gmra.mxu0 %v5585
        %v5714 = vpop.f32.mrf.mxu0
        %v5715 = vadd.f32 0.0, %v5714
        %v5716 = vpop.f32.mrf.mxu0
        %v5717 = vpop.f32.mrf.mxu0
        %v5718 = vadd.f32 0.0, %v5717
        %v5719 = vpop.f32.mrf.mxu0
        %5720 = vmatprep.mubr.bf16.mxu0 0
        %5721 = vmatmul.mubr.bf16.gmra.mxu0 %v5588
        %v5722 = vpop.f32.mrf.mxu0
        %v5723 = vadd.f32 0.0, %v5722
        %v5724 = vpop.f32.mrf.mxu0
        %v5725 = vpop.f32.mrf.mxu0
        %v5726 = vadd.f32 0.0, %v5725
        %v5727 = vpop.f32.mrf.mxu0
        %5728 = vmatprep.mubr.bf16.mxu0 0
        %5729 = vmatmul.mubr.bf16.gmra.mxu0 %v5591
        %v5730 = vpop.f32.mrf.mxu0
        %v5731 = vadd.f32 0.0, %v5730
        %v5732 = vpop.f32.mrf.mxu0
        %v5733 = vpop.f32.mrf.mxu0
        %v5734 = vadd.f32 0.0, %v5733
        %v5735 = vpop.f32.mrf.mxu0
        %5736 = vmatprep.mubr.bf16.mxu0 0
        %5737 = vmatmul.mubr.bf16.gmra.mxu0 %v5594
        %v5738 = vpop.f32.mrf.mxu0
        %v5739 = vadd.f32 0.0, %v5738
        %v5740 = vpop.f32.mrf.mxu0
        %v5741 = vpop.f32.mrf.mxu0
        %v5742 = vadd.f32 0.0, %v5741
        %v5743 = vpop.f32.mrf.mxu0
        %5744 = vmatprep.mubr.bf16.mxu0 0
        %5745 = vmatmul.mubr.bf16.gmra.mxu0 %v5597
        %v5746 = vpop.f32.mrf.mxu0
        %v5747 = vadd.f32 0.0, %v5746
        %v5748 = vpop.f32.mrf.mxu0
        %v5749 = vpop.f32.mrf.mxu0
        %v5750 = vadd.f32 0.0, %v5749
        %v5751 = vpop.f32.mrf.mxu0
        %5752 = vmatprep.mubr.bf16.mxu0 0
        %5753 = vmatmul.mubr.bf16.gmra.mxu0 %v5600
        %v5754 = vpop.f32.mrf.mxu0
        %v5755 = vadd.f32 0.0, %v5754
        %v5756 = vpop.f32.mrf.mxu0
        %v5757 = vpop.f32.mrf.mxu0
        %v5758 = vadd.f32 0.0, %v5757
        %v5759 = vpop.f32.mrf.mxu0
        %5760 = vmatprep.mubr.bf16.mxu0 0
        %5761 = vmatmul.mubr.bf16.gmra.mxu0 %v5603
        %v5762 = vpop.f32.mrf.mxu0
        %v5763 = vadd.f32 0.0, %v5762
        %v5764 = vpop.f32.mrf.mxu0
        %v5765 = vpop.f32.mrf.mxu0
        %v5766 = vadd.f32 0.0, %v5765
        %v5767 = vpop.f32.mrf.mxu0
        %5768 = vmatprep.mubr.bf16.mxu0 0
        %5769 = vmatmul.mubr.bf16.gmra.mxu0 %v5606
        %v5770 = vpop.f32.mrf.mxu0
        %v5771 = vadd.f32 0.0, %v5770
        %v5772 = vpop.f32.mrf.mxu0
        %v5773 = vpop.f32.mrf.mxu0
        %v5774 = vadd.f32 0.0, %v5773
        %v5775 = vpop.f32.mrf.mxu0
        %5776 = vmatprep.mubr.bf16.mxu0 0
        %5777 = vmatmul.mubr.bf16.gmra.mxu0 %v5609
        %v5778 = vpop.f32.mrf.mxu0
        %v5779 = vadd.f32 0.0, %v5778
        %v5780 = vpop.f32.mrf.mxu0
        %v5781 = vpop.f32.mrf.mxu0
        %v5782 = vadd.f32 0.0, %v5781
        %v5783 = vpop.f32.mrf.mxu0
        %5784 = vmatprep.mubr.bf16.mxu0 0
        %5785 = vmatmul.mubr.bf16.gmra.mxu0 %v5612
        %v5786 = vpop.f32.mrf.mxu0
        %v5787 = vadd.f32 0.0, %v5786
        %v5788 = vpop.f32.mrf.mxu0
        %v5789 = vpop.f32.mrf.mxu0
        %v5790 = vadd.f32 0.0, %v5789
        %v5791 = vpop.f32.mrf.mxu0
        %5792 = vmatprep.mubr.bf16.mxu0 0
        %5793 = vmatmul.mubr.bf16.gmra.mxu0 %v5615
        %v5794 = vpop.f32.mrf.mxu0
        %v5795 = vadd.f32 0.0, %v5794
        %v5796 = vpop.f32.mrf.mxu0
        %v5797 = vpop.f32.mrf.mxu0
        %v5798 = vadd.f32 0.0, %v5797
        %v5799 = vpop.f32.mrf.mxu0
        %5800 = vmatprep.mubr.bf16.mxu0 0
        %5801 = vmatmul.mubr.bf16.gmra.mxu0 %v5618
        %v5802 = vpop.f32.mrf.mxu0
        %v5803 = vadd.f32 0.0, %v5802
        %v5804 = vpop.f32.mrf.mxu0
        %v5805 = vpop.f32.mrf.mxu0
        %v5806 = vadd.f32 0.0, %v5805
        %v5807 = vpop.f32.mrf.mxu0
        %5808 = vmatprep.mubr.bf16.mxu0 0
        %5809 = vmatmul.mubr.bf16.gmra.mxu0 %v5621
        %v5810 = vpop.f32.mrf.mxu0
        %v5811 = vadd.f32 0.0, %v5810
        %v5812 = vpop.f32.mrf.mxu0
        %v5813 = vpop.f32.mrf.mxu0
        %v5814 = vadd.f32 0.0, %v5813
        %v5815 = vpop.f32.mrf.mxu0
        %5816 = vmatprep.mubr.bf16.mxu0 0
        %5817 = vmatmul.mubr.bf16.gmra.mxu0 %v5624
        %v5818 = vpop.f32.mrf.mxu0
        %v5819 = vadd.f32 0.0, %v5818
        %v5820 = vpop.f32.mrf.mxu0
        %v5821 = vpop.f32.mrf.mxu0
        %v5822 = vadd.f32 0.0, %v5821
        %v5823 = vpop.f32.mrf.mxu0
        %5824 = vmatprep.mubr.bf16.mxu0 0
        %5825 = vmatmul.mubr.bf16.gmra.mxu0 %v5627
        %v5826 = vpop.f32.mrf.mxu0
        %v5827 = vadd.f32 0.0, %v5826
        %v5828 = vpop.f32.mrf.mxu0
        %v5829 = vpop.f32.mrf.mxu0
        %v5830 = vadd.f32 0.0, %v5829
        %v5831 = vpop.f32.mrf.mxu0
        %5832 = vmatprep.mubr.bf16.mxu0 0
        %5833 = vmatmul.mubr.bf16.gmra.mxu0 %v5630
        %v5834 = vpop.f32.mrf.mxu0
        %v5835 = vadd.f32 0.0, %v5834
        %v5836 = vpop.f32.mrf.mxu0
        %v5837 = vpop.f32.mrf.mxu0
        %v5838 = vadd.f32 0.0, %v5837
        %v5839 = vpop.f32.mrf.mxu0
        %5840 = vmatprep.mubr.bf16.mxu0 0
        %5841 = vmatmul.mubr.bf16.gmra.mxu0 %v5633
        %v5842 = vpop.f32.mrf.mxu0
        %v5843 = vadd.f32 0.0, %v5842
        %v5844 = vpop.f32.mrf.mxu0
        %v5845 = vpop.f32.mrf.mxu0
        %v5846 = vadd.f32 0.0, %v5845
        %v5847 = vpop.f32.mrf.mxu0
        %5848 = vmatprep.mubr.bf16.mxu0 0
        %5849 = vmatmul.mubr.bf16.gmra.mxu0 %v5636
        %v5850 = vpop.f32.mrf.mxu0
        %v5851 = vadd.f32 0.0, %v5850
        %v5852 = vpop.f32.mrf.mxu0
        %v5853 = vpop.f32.mrf.mxu0
        %v5854 = vadd.f32 0.0, %v5853
        %v5855 = vpop.f32.mrf.mxu0
        %5856 = vmatprep.mubr.bf16.mxu0 0
        %5857 = vmatmul.mubr.bf16.gmra.mxu0 %v5639
        %v5858 = vpop.f32.mrf.mxu0
        %v5859 = vadd.f32 0.0, %v5858
        %v5860 = vpop.f32.mrf.mxu0
        %v5861 = vpop.f32.mrf.mxu0
        %v5862 = vadd.f32 0.0, %v5861
        %v5863 = vpop.f32.mrf.mxu0
        %5864 = vmatprep.mubr.bf16.mxu0 0
        %5865 = vmatmul.mubr.bf16.gmra.mxu0 %v5642
        %v5866 = vpop.f32.mrf.mxu0
        %v5867 = vadd.f32 0.0, %v5866
        %v5868 = vpop.f32.mrf.mxu0
        %v5869 = vpop.f32.mrf.mxu0
        %v5870 = vadd.f32 0.0, %v5869
        %v5871 = vpop.f32.mrf.mxu0
        %5872 = vmatprep.mubr.bf16.mxu0 0
        %5873 = vmatmul.mubr.bf16.gmra.mxu0 %v5645
        %v5874 = vpop.f32.mrf.mxu0
        %v5875 = vadd.f32 0.0, %v5874
        %v5876 = vpop.f32.mrf.mxu0
        %v5877 = vpop.f32.mrf.mxu0
        %v5878 = vadd.f32 0.0, %v5877
        %v5879 = vpop.f32.mrf.mxu0
        %5880 = vmatprep.mubr.bf16.mxu0 0
        %5881 = vmatmul.mubr.bf16.gmra.mxu0 %v5648
        %v5882 = vpop.f32.mrf.mxu0
        %v5883 = vadd.f32 0.0, %v5882
        %v5884 = vpop.f32.mrf.mxu0
        %v5885 = vpop.f32.mrf.mxu0
        %v5886 = vadd.f32 0.0, %v5885
        %v5887 = vpop.f32.mrf.mxu0
        %5888 = vmatprep.mubr.bf16.mxu0 0
        %5889 = vmatmul.mubr.bf16.gmra.mxu0 %v5651
        %v5890 = vpop.f32.mrf.mxu0
        %v5891 = vadd.f32 0.0, %v5890
        %v5892 = vpop.f32.mrf.mxu0
        %v5893 = vpop.f32.mrf.mxu0
        %v5894 = vadd.f32 0.0, %v5893
        %v5895 = vpop.f32.mrf.mxu0
        %5896 = vmatprep.mubr.bf16.mxu0 0
        %5897 = vmatmul.mubr.bf16.gmra.mxu0 %v5654
        %v5898 = vpop.f32.mrf.mxu0
        %v5899 = vadd.f32 0.0, %v5898
        %v5900 = vpop.f32.mrf.mxu0
        %v5901 = vpop.f32.mrf.mxu0
        %v5902 = vadd.f32 0.0, %v5901
        %v5903 = vpop.f32.mrf.mxu0
        %5904 = vmatprep.mubr.bf16.mxu0 0
        %5905 = vmatmul.mubr.bf16.gmra.mxu0 %v5657
        %v5906 = vpop.f32.mrf.mxu0
        %v5907 = vadd.f32 0.0, %v5906
        %v5908 = vpop.f32.mrf.mxu0
        %v5909 = vpop.f32.mrf.mxu0
        %v5910 = vadd.f32 0.0, %v5909
        %v5911 = vpop.f32.mrf.mxu0
        %5912 = vmatprep.mubr.bf16.mxu0 0
        %5913 = vmatmul.mubr.bf16.gmra.mxu0 %v5660
        %v5914 = vpop.f32.mrf.mxu0
        %v5915 = vadd.f32 0.0, %v5914
        %v5916 = vpop.f32.mrf.mxu0
        %v5917 = vpop.f32.mrf.mxu0
        %v5918 = vadd.f32 0.0, %v5917
        %v5919 = vpop.f32.mrf.mxu0
        %5920 = vmatprep.mubr.bf16.mxu0 0
        %5921 = vmatmul.mubr.bf16.gmra.mxu0 %v5663
        %v5922 = vpop.f32.mrf.mxu0
        %v5923 = vadd.f32 0.0, %v5922
        %v5924 = vpop.f32.mrf.mxu0
        %v5925 = vpop.f32.mrf.mxu0
        %v5926 = vadd.f32 0.0, %v5925
        %v5927 = vpop.f32.mrf.mxu0
        %5928 = vmatprep.mubr.bf16.mxu0 0
        %5929 = vmatmul.mubr.bf16.gmra.mxu0 %v5666
        %v5930 = vpop.f32.mrf.mxu0
        %v5931 = vadd.f32 0.0, %v5930
        %v5932 = vpop.f32.mrf.mxu0
        %v5933 = vpop.f32.mrf.mxu0
        %v5934 = vadd.f32 0.0, %v5933
        %v5935 = vpop.f32.mrf.mxu0
        %5936 = vmatprep.mubr.bf16.mxu0 0
        %5937 = vmatmul.mubr.bf16.gmra.mxu0 %v5669
        %v5938 = vpop.f32.mrf.mxu0
        %v5939 = vadd.f32 0.0, %v5938
        %v5940 = vpop.f32.mrf.mxu0
        %v5941 = vpop.f32.mrf.mxu0
        %v5942 = vadd.f32 0.0, %v5941
        %v5943 = vpop.f32.mrf.mxu0
        %5944 = vmatprep.mubr.bf16.mxu0 0
        %5945 = vmatmul.mubr.bf16.gmra.mxu0 %v5672
        %v5946 = vpop.f32.mrf.mxu0
        %v5947 = vadd.f32 0.0, %v5946
        %v5948 = vpop.f32.mrf.mxu0
        %v5949 = vpop.f32.mrf.mxu0
        %v5950 = vadd.f32 0.0, %v5949
        %v5951 = vpop.f32.mrf.mxu0
        %5952 = vmatprep.mubr.bf16.mxu0 0
        %5953 = vmatmul.mubr.bf16.gmra.mxu0 %v5675
        %v5954 = vpop.f32.mrf.mxu0
        %v5955 = vadd.f32 0.0, %v5954
        %v5956 = vpop.f32.mrf.mxu0
        %v5957 = vpop.f32.mrf.mxu0
        %v5958 = vadd.f32 0.0, %v5957
        %v5959 = vpop.f32.mrf.mxu0
        %5960 = vmatprep.mubr.bf16.mxu0 0
        %5961 = vmatmul.mubr.bf16.gmra.mxu0 %v5678
        %v5962 = vpop.f32.mrf.mxu0
        %v5963 = vadd.f32 0.0, %v5962
        %v5964 = vpop.f32.mrf.mxu0
        %v5965 = vpop.f32.mrf.mxu0
        %v5966 = vadd.f32 0.0, %v5965
        %v5967 = vpop.f32.mrf.mxu0
        %5968 = vdwg.mxu0
        %v5969 = vadd.f32 %v5287, %v5715
        %v5970 = vadd.f32 %v5288, %v5718
        %v5971 = vadd.f32 %v5289, %v5723
        %v5972 = vadd.f32 %v5290, %v5726
        %v5973 = vadd.f32 %v5291, %v5731
        %v5974 = vadd.f32 %v5292, %v5734
        %v5975 = vadd.f32 %v5293, %v5739
        %v5976 = vadd.f32 %v5294, %v5742
        %v5977 = vadd.f32 %v5295, %v5747
        %v5978 = vadd.f32 %v5296, %v5750
        %v5979 = vadd.f32 %v5297, %v5755
        %v5980 = vadd.f32 %v5298, %v5758
        %v5981 = vadd.f32 %v5299, %v5763
        %v5982 = vadd.f32 %v5300, %v5766
        %v5983 = vadd.f32 %v5301, %v5771
        %v5984 = vadd.f32 %v5302, %v5774
        %v5985 = vadd.f32 %v5303, %v5779
        %v5986 = vadd.f32 %v5304, %v5782
        %v5987 = vadd.f32 %v5305, %v5787
        %v5988 = vadd.f32 %v5306, %v5790
        %v5989 = vadd.f32 %v5307, %v5795
        %v5990 = vadd.f32 %v5308, %v5798
        %v5991 = vadd.f32 %v5309, %v5803
        %v5992 = vadd.f32 %v5310, %v5806
        %v5993 = vadd.f32 %v5311, %v5811
        %v5994 = vadd.f32 %v5312, %v5814
        %v5995 = vadd.f32 %v5313, %v5819
        %v5996 = vadd.f32 %v5314, %v5822
        %v5997 = vadd.f32 %v5315, %v5827
        %v5998 = vadd.f32 %v5316, %v5830
        %v5999 = vadd.f32 %v5317, %v5835
        %v6000 = vadd.f32 %v5318, %v5838
        %v6001 = vadd.f32 %v5319, %v5843
        %v6002 = vadd.f32 %v5320, %v5846
        %v6003 = vadd.f32 %v5321, %v5851
        %v6004 = vadd.f32 %v5322, %v5854
        %v6005 = vadd.f32 %v5323, %v5859
        %v6006 = vadd.f32 %v5324, %v5862
        %v6007 = vadd.f32 %v5325, %v5867
        %v6008 = vadd.f32 %v5326, %v5870
        %v6009 = vadd.f32 %v5327, %v5875
        %v6010 = vadd.f32 %v5328, %v5878
        %v6011 = vadd.f32 %v5329, %v5883
        %v6012 = vadd.f32 %v5330, %v5886
        %v6013 = vadd.f32 %v5331, %v5891
        %v6014 = vadd.f32 %v5332, %v5894
        %v6015 = vadd.f32 %v5333, %v5899
        %v6016 = vadd.f32 %v5334, %v5902
        %v6017 = vadd.f32 %v5335, %v5907
        %v6018 = vadd.f32 %v5336, %v5910
        %v6019 = vadd.f32 %v5337, %v5915
        %v6020 = vadd.f32 %v5338, %v5918
        %v6021 = vadd.f32 %v5339, %v5923
        %v6022 = vadd.f32 %v5340, %v5926
        %v6023 = vadd.f32 %v5341, %v5931
        %v6024 = vadd.f32 %v5342, %v5934
        %v6025 = vadd.f32 %v5343, %v5939
        %v6026 = vadd.f32 %v5344, %v5942
        %v6027 = vadd.f32 %v5345, %v5947
        %v6028 = vadd.f32 %v5346, %v5950
        %v6029 = vadd.f32 %v5347, %v5955
        %v6030 = vadd.f32 %v5348, %v5958
        %v6031 = vadd.f32 %v5349, %v5963
        %v6032 = vadd.f32 %v5350, %v5966
        %s6033 = scalar_lea.vmem [#allocation2], 16
        %v6034 = vld [vmem:[%s6033] sm:$0xf]
        %v6035 = vld [vmem:[%s6033 + $0x4] sm:$0xf]
        %v6036 = vld [vmem:[%s6033 + $0x8] sm:$0xf]
        %v6037 = vld [vmem:[%s6033 + $0xc] sm:$0xf]
        %v6038 = vld [vmem:[%s6033 + $0x10] sm:$0xf]
        %v6039 = vld [vmem:[%s6033 + $0x14] sm:$0xf]
        %v6040 = vld [vmem:[%s6033 + $0x18] sm:$0xf]
        %v6041 = vld [vmem:[%s6033 + $0x1c] sm:$0xf]
        %v6042 = vld [vmem:[%s6033 + $0x20] sm:$0xf]
        %v6043 = vld [vmem:[%s6033 + $0x24] sm:$0xf]
        %v6044 = vld [vmem:[%s6033 + $0x28] sm:$0xf]
        %v6045 = vld [vmem:[%s6033 + $0x2c] sm:$0xf]
        %v6046 = vld [vmem:[%s6033 + $0x30] sm:$0xf]
        %v6047 = vld [vmem:[%s6033 + $0x34] sm:$0xf]
        %v6048 = vld [vmem:[%s6033 + $0x38] sm:$0xf]
        %v6049 = vld [vmem:[%s6033 + $0x3c] sm:$0xf]
        %v6050 = vld [vmem:[%s6033 + $0x40] sm:$0xf]
        %v6051 = vld [vmem:[%s6033 + $0x44] sm:$0xf]
        %v6052 = vld [vmem:[%s6033 + $0x48] sm:$0xf]
        %v6053 = vld [vmem:[%s6033 + $0x4c] sm:$0xf]
        %v6054 = vld [vmem:[%s6033 + $0x50] sm:$0xf]
        %v6055 = vld [vmem:[%s6033 + $0x54] sm:$0xf]
        %v6056 = vld [vmem:[%s6033 + $0x58] sm:$0xf]
        %v6057 = vld [vmem:[%s6033 + $0x5c] sm:$0xf]
        %v6058 = vld [vmem:[%s6033 + $0x60] sm:$0xf]
        %v6059 = vld [vmem:[%s6033 + $0x64] sm:$0xf]
        %v6060 = vld [vmem:[%s6033 + $0x68] sm:$0xf]
        %v6061 = vld [vmem:[%s6033 + $0x6c] sm:$0xf]
        %v6062 = vld [vmem:[%s6033 + $0x70] sm:$0xf]
        %v6063 = vld [vmem:[%s6033 + $0x74] sm:$0xf]
        %v6064 = vld [vmem:[%s6033 + $0x78] sm:$0xf]
        %v6065 = vld [vmem:[%s6033 + $0x7c] sm:$0xf]
        %v6066 = vld [vmem:[%s6033 + $0x80] sm:$0xf]
        %v6067 = vld [vmem:[%s6033 + $0x84] sm:$0xf]
        %v6068 = vld [vmem:[%s6033 + $0x88] sm:$0xf]
        %v6069 = vld [vmem:[%s6033 + $0x8c] sm:$0xf]
        %v6070 = vld [vmem:[%s6033 + $0x90] sm:$0xf]
        %v6071 = vld [vmem:[%s6033 + $0x94] sm:$0xf]
        %v6072 = vld [vmem:[%s6033 + $0x98] sm:$0xf]
        %v6073 = vld [vmem:[%s6033 + $0x9c] sm:$0xf]
        %v6074 = vld [vmem:[%s6033 + $0xa0] sm:$0xf]
        %v6075 = vld [vmem:[%s6033 + $0xa4] sm:$0xf]
        %v6076 = vld [vmem:[%s6033 + $0xa8] sm:$0xf]
        %v6077 = vld [vmem:[%s6033 + $0xac] sm:$0xf]
        %v6078 = vld [vmem:[%s6033 + $0xb0] sm:$0xf]
        %v6079 = vld [vmem:[%s6033 + $0xb4] sm:$0xf]
        %v6080 = vld [vmem:[%s6033 + $0xb8] sm:$0xf]
        %v6081 = vld [vmem:[%s6033 + $0xbc] sm:$0xf]
        %v6082 = vld [vmem:[%s6033 + $0xc0] sm:$0xf]
        %v6083 = vld [vmem:[%s6033 + $0xc4] sm:$0xf]
        %v6084 = vld [vmem:[%s6033 + $0xc8] sm:$0xf]
        %v6085 = vld [vmem:[%s6033 + $0xcc] sm:$0xf]
        %v6086 = vld [vmem:[%s6033 + $0xd0] sm:$0xf]
        %v6087 = vld [vmem:[%s6033 + $0xd4] sm:$0xf]
        %v6088 = vld [vmem:[%s6033 + $0xd8] sm:$0xf]
        %v6089 = vld [vmem:[%s6033 + $0xdc] sm:$0xf]
        %v6090 = vld [vmem:[%s6033 + $0xe0] sm:$0xf]
        %v6091 = vld [vmem:[%s6033 + $0xe4] sm:$0xf]
        %v6092 = vld [vmem:[%s6033 + $0xe8] sm:$0xf]
        %v6093 = vld [vmem:[%s6033 + $0xec] sm:$0xf]
        %v6094 = vld [vmem:[%s6033 + $0xf0] sm:$0xf]
        %v6095 = vld [vmem:[%s6033 + $0xf4] sm:$0xf]
        %v6096 = vld [vmem:[%s6033 + $0xf8] sm:$0xf]
        %v6097 = vld [vmem:[%s6033 + $0xfc] sm:$0xf]
        %s6098 = scalar_lea.vmem %s3, 48
        %v6099 = vld [vmem:[%s6098] sm:$0xf]
        %v6100 = vld [vmem:[%s6098 + $0x4] sm:$0xf]
        %v6165 = vunpack.c.l.b16 %v6034
        %v6166 = vunpack.c.l.b16 %v6035
        %v6167 = vunpack.c.l.b16 %v6036
        %v6168 = vunpack.c.l.b16 %v6037
        %v6169 = vunpack.c.l.b16 %v6038
        %v6170 = vunpack.c.l.b16 %v6039
        %v6171 = vunpack.c.l.b16 %v6040
        %v6172 = vunpack.c.l.b16 %v6041
        %v6173 = vunpack.c.l.b16 %v6042
        %v6174 = vunpack.c.l.b16 %v6043
        %v6175 = vunpack.c.l.b16 %v6044
        %v6176 = vunpack.c.l.b16 %v6045
        %v6177 = vunpack.c.l.b16 %v6046
        %v6178 = vunpack.c.l.b16 %v6047
        %v6179 = vunpack.c.l.b16 %v6048
        %v6180 = vunpack.c.l.b16 %v6049
        %v6181 = vunpack.c.l.b16 %v6050
        %v6182 = vunpack.c.l.b16 %v6051
        %v6183 = vunpack.c.l.b16 %v6052
        %v6184 = vunpack.c.l.b16 %v6053
        %v6185 = vunpack.c.l.b16 %v6054
        %v6186 = vunpack.c.l.b16 %v6055
        %v6187 = vunpack.c.l.b16 %v6056
        %v6188 = vunpack.c.l.b16 %v6057
        %v6189 = vunpack.c.l.b16 %v6058
        %v6190 = vunpack.c.l.b16 %v6059
        %v6191 = vunpack.c.l.b16 %v6060
        %v6192 = vunpack.c.l.b16 %v6061
        %v6193 = vunpack.c.l.b16 %v6062
        %v6194 = vunpack.c.l.b16 %v6063
        %v6195 = vunpack.c.l.b16 %v6064
        %v6196 = vunpack.c.l.b16 %v6065
        %v6197 = vunpack.c.l.b16 %v6066
        %v6198 = vunpack.c.l.b16 %v6067
        %v6199 = vunpack.c.l.b16 %v6068
        %v6200 = vunpack.c.l.b16 %v6069
        %v6201 = vunpack.c.l.b16 %v6070
        %v6202 = vunpack.c.l.b16 %v6071
        %v6203 = vunpack.c.l.b16 %v6072
        %v6204 = vunpack.c.l.b16 %v6073
        %v6205 = vunpack.c.l.b16 %v6074
        %v6206 = vunpack.c.l.b16 %v6075
        %v6207 = vunpack.c.l.b16 %v6076
        %v6208 = vunpack.c.l.b16 %v6077
        %v6209 = vunpack.c.l.b16 %v6078
        %v6210 = vunpack.c.l.b16 %v6079
        %v6211 = vunpack.c.l.b16 %v6080
        %v6212 = vunpack.c.l.b16 %v6081
        %v6213 = vunpack.c.l.b16 %v6082
        %v6214 = vunpack.c.l.b16 %v6083
        %v6215 = vunpack.c.l.b16 %v6084
        %v6216 = vunpack.c.l.b16 %v6085
        %v6217 = vunpack.c.l.b16 %v6086
        %v6218 = vunpack.c.l.b16 %v6087
        %v6219 = vunpack.c.l.b16 %v6088
        %v6220 = vunpack.c.l.b16 %v6089
        %v6221 = vunpack.c.l.b16 %v6090
        %v6222 = vunpack.c.l.b16 %v6091
        %v6223 = vunpack.c.l.b16 %v6092
        %v6224 = vunpack.c.l.b16 %v6093
        %v6225 = vunpack.c.l.b16 %v6094
        %v6226 = vunpack.c.l.b16 %v6095
        %v6227 = vunpack.c.l.b16 %v6096
        %v6228 = vunpack.c.l.b16 %v6097
        %v6229 = vpack.c.b16 %v6166, %v6165
        %v6230 = vpack.c.b16 %v6168, %v6167
        %v6231 = vpack.c.b16 %v6170, %v6169
        %v6232 = vpack.c.b16 %v6172, %v6171
        %v6233 = vpack.c.b16 %v6174, %v6173
        %v6234 = vpack.c.b16 %v6176, %v6175
        %v6235 = vpack.c.b16 %v6178, %v6177
        %v6236 = vpack.c.b16 %v6180, %v6179
        %v6237 = vpack.c.b16 %v6182, %v6181
        %v6238 = vpack.c.b16 %v6184, %v6183
        %v6239 = vpack.c.b16 %v6186, %v6185
        %v6240 = vpack.c.b16 %v6188, %v6187
        %v6241 = vpack.c.b16 %v6190, %v6189
        %v6242 = vpack.c.b16 %v6192, %v6191
        %v6243 = vpack.c.b16 %v6194, %v6193
        %v6244 = vpack.c.b16 %v6196, %v6195
        %v6245 = vpack.c.b16 %v6198, %v6197
        %v6246 = vpack.c.b16 %v6200, %v6199
        %v6247 = vpack.c.b16 %v6202, %v6201
        %v6248 = vpack.c.b16 %v6204, %v6203
        %v6249 = vpack.c.b16 %v6206, %v6205
        %v6250 = vpack.c.b16 %v6208, %v6207
        %v6251 = vpack.c.b16 %v6210, %v6209
        %v6252 = vpack.c.b16 %v6212, %v6211
        %v6253 = vpack.c.b16 %v6214, %v6213
        %v6254 = vpack.c.b16 %v6216, %v6215
        %v6255 = vpack.c.b16 %v6218, %v6217
        %v6256 = vpack.c.b16 %v6220, %v6219
        %v6257 = vpack.c.b16 %v6222, %v6221
        %v6258 = vpack.c.b16 %v6224, %v6223
        %v6259 = vpack.c.b16 %v6226, %v6225
        %v6260 = vpack.c.b16 %v6228, %v6227
        %v6263 = vunpack.c.l.b16 %v6099
        %v6264 = vunpack.c.l.b16 %v6100
        %v6265 = vpack.c.b16 %v6264, %v6263
        %v6268 = vsel %vm2367, %v6229, 0
        %v6271 = vsel %vm2367, %v6230, 0
        %v6274 = vsel %vm2367, %v6231, 0
        %v6277 = vsel %vm2367, %v6232, 0
        %v6280 = vsel %vm2367, %v6233, 0
        %v6283 = vsel %vm2367, %v6234, 0
        %v6286 = vsel %vm2367, %v6235, 0
        %v6289 = vsel %vm2367, %v6236, 0
        %v6292 = vsel %vm2367, %v6237, 0
        %v6295 = vsel %vm2367, %v6238, 0
        %v6298 = vsel %vm2367, %v6239, 0
        %v6301 = vsel %vm2367, %v6240, 0
        %v6304 = vsel %vm2367, %v6241, 0
        %v6307 = vsel %vm2367, %v6242, 0
        %v6310 = vsel %vm2367, %v6243, 0
        %v6313 = vsel %vm2367, %v6244, 0
        %v6316 = vsel %vm2367, %v6245, 0
        %v6319 = vsel %vm2367, %v6246, 0
        %v6322 = vsel %vm2367, %v6247, 0
        %v6325 = vsel %vm2367, %v6248, 0
        %v6328 = vsel %vm2367, %v6249, 0
        %v6331 = vsel %vm2367, %v6250, 0
        %v6334 = vsel %vm2367, %v6251, 0
        %v6337 = vsel %vm2367, %v6252, 0
        %v6340 = vsel %vm2367, %v6253, 0
        %v6343 = vsel %vm2367, %v6254, 0
        %v6346 = vsel %vm2367, %v6255, 0
        %v6349 = vsel %vm2367, %v6256, 0
        %v6352 = vsel %vm2367, %v6257, 0
        %v6355 = vsel %vm2367, %v6258, 0
        %v6358 = vsel %vm2367, %v6259, 0
        %v6361 = vsel %vm2367, %v6260, 0
        %6363 = vmatprep.subr.bf16.mxu0 0
        %6364 = vmatpush1.bf16.msra.mxu0 0
        %6365 = vmatprep.subr.bf16.mxu0 0
        %6366 = vmatpush1.bf16.msra.mxu0 0
        %6367 = vmatprep.subr.bf16.mxu0 0
        %6368 = vmatpush1.bf16.msra.mxu0 0
        %6369 = vmatprep.subr.bf16.mxu0 0
        %6370 = vmatpush1.bf16.msra.mxu0 0
        %6371 = vmatprep.subr.bf16.mxu0 0
        %6372 = vmatpush1.bf16.msra.mxu0 0
        %6373 = vmatprep.subr.bf16.mxu0 0
        %6374 = vmatpush1.bf16.msra.mxu0 0
        %6375 = vmatprep.subr.bf16.mxu0 0
        %6376 = vmatpush1.bf16.msra.mxu0 0
        %6377 = vmatprep.subr.bf16.mxu0 0
        %6378 = vmatpush1.bf16.msra.mxu0 %v6265
        %6379 = vmatprep.subr.bf16.mxu0 0
        %6380 = vmatpush2.bf16.msra.mxu0 0
        %6381 = vmatprep.subr.bf16.mxu0 0
        %6382 = vmatpush2.bf16.msra.mxu0 0
        %6383 = vmatprep.subr.bf16.mxu0 0
        %6384 = vmatpush2.bf16.msra.mxu0 0
        %6385 = vmatprep.subr.bf16.mxu0 0
        %6386 = vmatpush2.bf16.msra.mxu0 0
        %6387 = vmatprep.subr.bf16.mxu0 0
        %6388 = vmatpush2.bf16.msra.mxu0 0
        %6389 = vmatprep.subr.bf16.mxu0 0
        %6390 = vmatpush2.bf16.msra.mxu0 0
        %6391 = vmatprep.subr.bf16.mxu0 0
        %6392 = vmatpush2.bf16.msra.mxu0 0
        %6393 = vmatprep.subr.bf16.mxu0 0
        %6394 = vmatpush2.bf16.msra.mxu0 0
        %6395 = vmatprep.mubr.bf16.mxu0 0
        %6396 = vmatmul.mubr.bf16.gmra.mxu0 %v6268
        %v6397 = vpop.f32.mrf.mxu0
        %v6398 = vadd.f32 0.0, %v6397
        %v6399 = vpop.f32.mrf.mxu0
        %v6400 = vpop.f32.mrf.mxu0
        %v6401 = vadd.f32 0.0, %v6400
        %v6402 = vpop.f32.mrf.mxu0
        %6403 = vmatprep.mubr.bf16.mxu0 0
        %6404 = vmatmul.mubr.bf16.gmra.mxu0 %v6271
        %v6405 = vpop.f32.mrf.mxu0
        %v6406 = vadd.f32 0.0, %v6405
        %v6407 = vpop.f32.mrf.mxu0
        %v6408 = vpop.f32.mrf.mxu0
        %v6409 = vadd.f32 0.0, %v6408
        %v6410 = vpop.f32.mrf.mxu0
        %6411 = vmatprep.mubr.bf16.mxu0 0
        %6412 = vmatmul.mubr.bf16.gmra.mxu0 %v6274
        %v6413 = vpop.f32.mrf.mxu0
        %v6414 = vadd.f32 0.0, %v6413
        %v6415 = vpop.f32.mrf.mxu0
        %v6416 = vpop.f32.mrf.mxu0
        %v6417 = vadd.f32 0.0, %v6416
        %v6418 = vpop.f32.mrf.mxu0
        %6419 = vmatprep.mubr.bf16.mxu0 0
        %6420 = vmatmul.mubr.bf16.gmra.mxu0 %v6277
        %v6421 = vpop.f32.mrf.mxu0
        %v6422 = vadd.f32 0.0, %v6421
        %v6423 = vpop.f32.mrf.mxu0
        %v6424 = vpop.f32.mrf.mxu0
        %v6425 = vadd.f32 0.0, %v6424
        %v6426 = vpop.f32.mrf.mxu0
        %6427 = vmatprep.mubr.bf16.mxu0 0
        %6428 = vmatmul.mubr.bf16.gmra.mxu0 %v6280
        %v6429 = vpop.f32.mrf.mxu0
        %v6430 = vadd.f32 0.0, %v6429
        %v6431 = vpop.f32.mrf.mxu0
        %v6432 = vpop.f32.mrf.mxu0
        %v6433 = vadd.f32 0.0, %v6432
        %v6434 = vpop.f32.mrf.mxu0
        %6435 = vmatprep.mubr.bf16.mxu0 0
        %6436 = vmatmul.mubr.bf16.gmra.mxu0 %v6283
        %v6437 = vpop.f32.mrf.mxu0
        %v6438 = vadd.f32 0.0, %v6437
        %v6439 = vpop.f32.mrf.mxu0
        %v6440 = vpop.f32.mrf.mxu0
        %v6441 = vadd.f32 0.0, %v6440
        %v6442 = vpop.f32.mrf.mxu0
        %6443 = vmatprep.mubr.bf16.mxu0 0
        %6444 = vmatmul.mubr.bf16.gmra.mxu0 %v6286
        %v6445 = vpop.f32.mrf.mxu0
        %v6446 = vadd.f32 0.0, %v6445
        %v6447 = vpop.f32.mrf.mxu0
        %v6448 = vpop.f32.mrf.mxu0
        %v6449 = vadd.f32 0.0, %v6448
        %v6450 = vpop.f32.mrf.mxu0
        %6451 = vmatprep.mubr.bf16.mxu0 0
        %6452 = vmatmul.mubr.bf16.gmra.mxu0 %v6289
        %v6453 = vpop.f32.mrf.mxu0
        %v6454 = vadd.f32 0.0, %v6453
        %v6455 = vpop.f32.mrf.mxu0
        %v6456 = vpop.f32.mrf.mxu0
        %v6457 = vadd.f32 0.0, %v6456
        %v6458 = vpop.f32.mrf.mxu0
        %6459 = vmatprep.mubr.bf16.mxu0 0
        %6460 = vmatmul.mubr.bf16.gmra.mxu0 %v6292
        %v6461 = vpop.f32.mrf.mxu0
        %v6462 = vadd.f32 0.0, %v6461
        %v6463 = vpop.f32.mrf.mxu0
        %v6464 = vpop.f32.mrf.mxu0
        %v6465 = vadd.f32 0.0, %v6464
        %v6466 = vpop.f32.mrf.mxu0
        %6467 = vmatprep.mubr.bf16.mxu0 0
        %6468 = vmatmul.mubr.bf16.gmra.mxu0 %v6295
        %v6469 = vpop.f32.mrf.mxu0
        %v6470 = vadd.f32 0.0, %v6469
        %v6471 = vpop.f32.mrf.mxu0
        %v6472 = vpop.f32.mrf.mxu0
        %v6473 = vadd.f32 0.0, %v6472
        %v6474 = vpop.f32.mrf.mxu0
        %6475 = vmatprep.mubr.bf16.mxu0 0
        %6476 = vmatmul.mubr.bf16.gmra.mxu0 %v6298
        %v6477 = vpop.f32.mrf.mxu0
        %v6478 = vadd.f32 0.0, %v6477
        %v6479 = vpop.f32.mrf.mxu0
        %v6480 = vpop.f32.mrf.mxu0
        %v6481 = vadd.f32 0.0, %v6480
        %v6482 = vpop.f32.mrf.mxu0
        %6483 = vmatprep.mubr.bf16.mxu0 0
        %6484 = vmatmul.mubr.bf16.gmra.mxu0 %v6301
        %v6485 = vpop.f32.mrf.mxu0
        %v6486 = vadd.f32 0.0, %v6485
        %v6487 = vpop.f32.mrf.mxu0
        %v6488 = vpop.f32.mrf.mxu0
        %v6489 = vadd.f32 0.0, %v6488
        %v6490 = vpop.f32.mrf.mxu0
        %6491 = vmatprep.mubr.bf16.mxu0 0
        %6492 = vmatmul.mubr.bf16.gmra.mxu0 %v6304
        %v6493 = vpop.f32.mrf.mxu0
        %v6494 = vadd.f32 0.0, %v6493
        %v6495 = vpop.f32.mrf.mxu0
        %v6496 = vpop.f32.mrf.mxu0
        %v6497 = vadd.f32 0.0, %v6496
        %v6498 = vpop.f32.mrf.mxu0
        %6499 = vmatprep.mubr.bf16.mxu0 0
        %6500 = vmatmul.mubr.bf16.gmra.mxu0 %v6307
        %v6501 = vpop.f32.mrf.mxu0
        %v6502 = vadd.f32 0.0, %v6501
        %v6503 = vpop.f32.mrf.mxu0
        %v6504 = vpop.f32.mrf.mxu0
        %v6505 = vadd.f32 0.0, %v6504
        %v6506 = vpop.f32.mrf.mxu0
        %6507 = vmatprep.mubr.bf16.mxu0 0
        %6508 = vmatmul.mubr.bf16.gmra.mxu0 %v6310
        %v6509 = vpop.f32.mrf.mxu0
        %v6510 = vadd.f32 0.0, %v6509
        %v6511 = vpop.f32.mrf.mxu0
        %v6512 = vpop.f32.mrf.mxu0
        %v6513 = vadd.f32 0.0, %v6512
        %v6514 = vpop.f32.mrf.mxu0
        %6515 = vmatprep.mubr.bf16.mxu0 0
        %6516 = vmatmul.mubr.bf16.gmra.mxu0 %v6313
        %v6517 = vpop.f32.mrf.mxu0
        %v6518 = vadd.f32 0.0, %v6517
        %v6519 = vpop.f32.mrf.mxu0
        %v6520 = vpop.f32.mrf.mxu0
        %v6521 = vadd.f32 0.0, %v6520
        %v6522 = vpop.f32.mrf.mxu0
        %6523 = vmatprep.mubr.bf16.mxu0 0
        %6524 = vmatmul.mubr.bf16.gmra.mxu0 %v6316
        %v6525 = vpop.f32.mrf.mxu0
        %v6526 = vadd.f32 0.0, %v6525
        %v6527 = vpop.f32.mrf.mxu0
        %v6528 = vpop.f32.mrf.mxu0
        %v6529 = vadd.f32 0.0, %v6528
        %v6530 = vpop.f32.mrf.mxu0
        %6531 = vmatprep.mubr.bf16.mxu0 0
        %6532 = vmatmul.mubr.bf16.gmra.mxu0 %v6319
        %v6533 = vpop.f32.mrf.mxu0
        %v6534 = vadd.f32 0.0, %v6533
        %v6535 = vpop.f32.mrf.mxu0
        %v6536 = vpop.f32.mrf.mxu0
        %v6537 = vadd.f32 0.0, %v6536
        %v6538 = vpop.f32.mrf.mxu0
        %6539 = vmatprep.mubr.bf16.mxu0 0
        %6540 = vmatmul.mubr.bf16.gmra.mxu0 %v6322
        %v6541 = vpop.f32.mrf.mxu0
        %v6542 = vadd.f32 0.0, %v6541
        %v6543 = vpop.f32.mrf.mxu0
        %v6544 = vpop.f32.mrf.mxu0
        %v6545 = vadd.f32 0.0, %v6544
        %v6546 = vpop.f32.mrf.mxu0
        %6547 = vmatprep.mubr.bf16.mxu0 0
        %6548 = vmatmul.mubr.bf16.gmra.mxu0 %v6325
        %v6549 = vpop.f32.mrf.mxu0
        %v6550 = vadd.f32 0.0, %v6549
        %v6551 = vpop.f32.mrf.mxu0
        %v6552 = vpop.f32.mrf.mxu0
        %v6553 = vadd.f32 0.0, %v6552
        %v6554 = vpop.f32.mrf.mxu0
        %6555 = vmatprep.mubr.bf16.mxu0 0
        %6556 = vmatmul.mubr.bf16.gmra.mxu0 %v6328
        %v6557 = vpop.f32.mrf.mxu0
        %v6558 = vadd.f32 0.0, %v6557
        %v6559 = vpop.f32.mrf.mxu0
        %v6560 = vpop.f32.mrf.mxu0
        %v6561 = vadd.f32 0.0, %v6560
        %v6562 = vpop.f32.mrf.mxu0
        %6563 = vmatprep.mubr.bf16.mxu0 0
        %6564 = vmatmul.mubr.bf16.gmra.mxu0 %v6331
        %v6565 = vpop.f32.mrf.mxu0
        %v6566 = vadd.f32 0.0, %v6565
        %v6567 = vpop.f32.mrf.mxu0
        %v6568 = vpop.f32.mrf.mxu0
        %v6569 = vadd.f32 0.0, %v6568
        %v6570 = vpop.f32.mrf.mxu0
        %6571 = vmatprep.mubr.bf16.mxu0 0
        %6572 = vmatmul.mubr.bf16.gmra.mxu0 %v6334
        %v6573 = vpop.f32.mrf.mxu0
        %v6574 = vadd.f32 0.0, %v6573
        %v6575 = vpop.f32.mrf.mxu0
        %v6576 = vpop.f32.mrf.mxu0
        %v6577 = vadd.f32 0.0, %v6576
        %v6578 = vpop.f32.mrf.mxu0
        %6579 = vmatprep.mubr.bf16.mxu0 0
        %6580 = vmatmul.mubr.bf16.gmra.mxu0 %v6337
        %v6581 = vpop.f32.mrf.mxu0
        %v6582 = vadd.f32 0.0, %v6581
        %v6583 = vpop.f32.mrf.mxu0
        %v6584 = vpop.f32.mrf.mxu0
        %v6585 = vadd.f32 0.0, %v6584
        %v6586 = vpop.f32.mrf.mxu0
        %6587 = vmatprep.mubr.bf16.mxu0 0
        %6588 = vmatmul.mubr.bf16.gmra.mxu0 %v6340
        %v6589 = vpop.f32.mrf.mxu0
        %v6590 = vadd.f32 0.0, %v6589
        %v6591 = vpop.f32.mrf.mxu0
        %v6592 = vpop.f32.mrf.mxu0
        %v6593 = vadd.f32 0.0, %v6592
        %v6594 = vpop.f32.mrf.mxu0
        %6595 = vmatprep.mubr.bf16.mxu0 0
        %6596 = vmatmul.mubr.bf16.gmra.mxu0 %v6343
        %v6597 = vpop.f32.mrf.mxu0
        %v6598 = vadd.f32 0.0, %v6597
        %v6599 = vpop.f32.mrf.mxu0
        %v6600 = vpop.f32.mrf.mxu0
        %v6601 = vadd.f32 0.0, %v6600
        %v6602 = vpop.f32.mrf.mxu0
        %6603 = vmatprep.mubr.bf16.mxu0 0
        %6604 = vmatmul.mubr.bf16.gmra.mxu0 %v6346
        %v6605 = vpop.f32.mrf.mxu0
        %v6606 = vadd.f32 0.0, %v6605
        %v6607 = vpop.f32.mrf.mxu0
        %v6608 = vpop.f32.mrf.mxu0
        %v6609 = vadd.f32 0.0, %v6608
        %v6610 = vpop.f32.mrf.mxu0
        %6611 = vmatprep.mubr.bf16.mxu0 0
        %6612 = vmatmul.mubr.bf16.gmra.mxu0 %v6349
        %v6613 = vpop.f32.mrf.mxu0
        %v6614 = vadd.f32 0.0, %v6613
        %v6615 = vpop.f32.mrf.mxu0
        %v6616 = vpop.f32.mrf.mxu0
        %v6617 = vadd.f32 0.0, %v6616
        %v6618 = vpop.f32.mrf.mxu0
        %6619 = vmatprep.mubr.bf16.mxu0 0
        %6620 = vmatmul.mubr.bf16.gmra.mxu0 %v6352
        %v6621 = vpop.f32.mrf.mxu0
        %v6622 = vadd.f32 0.0, %v6621
        %v6623 = vpop.f32.mrf.mxu0
        %v6624 = vpop.f32.mrf.mxu0
        %v6625 = vadd.f32 0.0, %v6624
        %v6626 = vpop.f32.mrf.mxu0
        %6627 = vmatprep.mubr.bf16.mxu0 0
        %6628 = vmatmul.mubr.bf16.gmra.mxu0 %v6355
        %v6629 = vpop.f32.mrf.mxu0
        %v6630 = vadd.f32 0.0, %v6629
        %v6631 = vpop.f32.mrf.mxu0
        %v6632 = vpop.f32.mrf.mxu0
        %v6633 = vadd.f32 0.0, %v6632
        %v6634 = vpop.f32.mrf.mxu0
        %6635 = vmatprep.mubr.bf16.mxu0 0
        %6636 = vmatmul.mubr.bf16.gmra.mxu0 %v6358
        %v6637 = vpop.f32.mrf.mxu0
        %v6638 = vadd.f32 0.0, %v6637
        %v6639 = vpop.f32.mrf.mxu0
        %v6640 = vpop.f32.mrf.mxu0
        %v6641 = vadd.f32 0.0, %v6640
        %v6642 = vpop.f32.mrf.mxu0
        %6643 = vmatprep.mubr.bf16.mxu0 0
        %6644 = vmatmul.mubr.bf16.gmra.mxu0 %v6361
        %v6645 = vpop.f32.mrf.mxu0
        %v6646 = vadd.f32 0.0, %v6645
        %v6647 = vpop.f32.mrf.mxu0
        %v6648 = vpop.f32.mrf.mxu0
        %v6649 = vadd.f32 0.0, %v6648
        %v6650 = vpop.f32.mrf.mxu0
        %6651 = vdwg.mxu0
        %v6652 = vadd.f32 %v5969, %v6398
        %v6653 = vadd.f32 %v5970, %v6401
        %v6654 = vadd.f32 %v5971, %v6406
        %v6655 = vadd.f32 %v5972, %v6409
        %v6656 = vadd.f32 %v5973, %v6414
        %v6657 = vadd.f32 %v5974, %v6417
        %v6658 = vadd.f32 %v5975, %v6422
        %v6659 = vadd.f32 %v5976, %v6425
        %v6660 = vadd.f32 %v5977, %v6430
        %v6661 = vadd.f32 %v5978, %v6433
        %v6662 = vadd.f32 %v5979, %v6438
        %v6663 = vadd.f32 %v5980, %v6441
        %v6664 = vadd.f32 %v5981, %v6446
        %v6665 = vadd.f32 %v5982, %v6449
        %v6666 = vadd.f32 %v5983, %v6454
        %v6667 = vadd.f32 %v5984, %v6457
        %v6668 = vadd.f32 %v5985, %v6462
        %v6669 = vadd.f32 %v5986, %v6465
        %v6670 = vadd.f32 %v5987, %v6470
        %v6671 = vadd.f32 %v5988, %v6473
        %v6672 = vadd.f32 %v5989, %v6478
        %v6673 = vadd.f32 %v5990, %v6481
        %v6674 = vadd.f32 %v5991, %v6486
        %v6675 = vadd.f32 %v5992, %v6489
        %v6676 = vadd.f32 %v5993, %v6494
        %v6677 = vadd.f32 %v5994, %v6497
        %v6678 = vadd.f32 %v5995, %v6502
        %v6679 = vadd.f32 %v5996, %v6505
        %v6680 = vadd.f32 %v5997, %v6510
        %v6681 = vadd.f32 %v5998, %v6513
        %v6682 = vadd.f32 %v5999, %v6518
        %v6683 = vadd.f32 %v6000, %v6521
        %v6684 = vadd.f32 %v6001, %v6526
        %v6685 = vadd.f32 %v6002, %v6529
        %v6686 = vadd.f32 %v6003, %v6534
        %v6687 = vadd.f32 %v6004, %v6537
        %v6688 = vadd.f32 %v6005, %v6542
        %v6689 = vadd.f32 %v6006, %v6545
        %v6690 = vadd.f32 %v6007, %v6550
        %v6691 = vadd.f32 %v6008, %v6553
        %v6692 = vadd.f32 %v6009, %v6558
        %v6693 = vadd.f32 %v6010, %v6561
        %v6694 = vadd.f32 %v6011, %v6566
        %v6695 = vadd.f32 %v6012, %v6569
        %v6696 = vadd.f32 %v6013, %v6574
        %v6697 = vadd.f32 %v6014, %v6577
        %v6698 = vadd.f32 %v6015, %v6582
        %v6699 = vadd.f32 %v6016, %v6585
        %v6700 = vadd.f32 %v6017, %v6590
        %v6701 = vadd.f32 %v6018, %v6593
        %v6702 = vadd.f32 %v6019, %v6598
        %v6703 = vadd.f32 %v6020, %v6601
        %v6704 = vadd.f32 %v6021, %v6606
        %v6705 = vadd.f32 %v6022, %v6609
        %v6706 = vadd.f32 %v6023, %v6614
        %v6707 = vadd.f32 %v6024, %v6617
        %v6708 = vadd.f32 %v6025, %v6622
        %v6709 = vadd.f32 %v6026, %v6625
        %v6710 = vadd.f32 %v6027, %v6630
        %v6711 = vadd.f32 %v6028, %v6633
        %v6712 = vadd.f32 %v6029, %v6638
        %v6713 = vadd.f32 %v6030, %v6641
        %v6714 = vadd.f32 %v6031, %v6646
        %v6715 = vadd.f32 %v6032, %v6649
        %s6716 = scalar_lea.vmem [#allocation2], 288
        %v6717 = vld [vmem:[%s6716] sm:$0xf]
        %v6718 = vld [vmem:[%s6716 + $0x4] sm:$0xf]
        %v6719 = vld [vmem:[%s6716 + $0x8] sm:$0xf]
        %v6720 = vld [vmem:[%s6716 + $0xc] sm:$0xf]
        %v6721 = vld [vmem:[%s6716 + $0x10] sm:$0xf]
        %v6722 = vld [vmem:[%s6716 + $0x14] sm:$0xf]
        %v6723 = vld [vmem:[%s6716 + $0x18] sm:$0xf]
        %v6724 = vld [vmem:[%s6716 + $0x1c] sm:$0xf]
        %v6725 = vld [vmem:[%s6716 + $0x20] sm:$0xf]
        %v6726 = vld [vmem:[%s6716 + $0x24] sm:$0xf]
        %v6727 = vld [vmem:[%s6716 + $0x28] sm:$0xf]
        %v6728 = vld [vmem:[%s6716 + $0x2c] sm:$0xf]
        %v6729 = vld [vmem:[%s6716 + $0x30] sm:$0xf]
        %v6730 = vld [vmem:[%s6716 + $0x34] sm:$0xf]
        %v6731 = vld [vmem:[%s6716 + $0x38] sm:$0xf]
        %v6732 = vld [vmem:[%s6716 + $0x3c] sm:$0xf]
        %v6733 = vld [vmem:[%s6716 + $0x40] sm:$0xf]
        %v6734 = vld [vmem:[%s6716 + $0x44] sm:$0xf]
        %v6735 = vld [vmem:[%s6716 + $0x48] sm:$0xf]
        %v6736 = vld [vmem:[%s6716 + $0x4c] sm:$0xf]
        %v6737 = vld [vmem:[%s6716 + $0x50] sm:$0xf]
        %v6738 = vld [vmem:[%s6716 + $0x54] sm:$0xf]
        %v6739 = vld [vmem:[%s6716 + $0x58] sm:$0xf]
        %v6740 = vld [vmem:[%s6716 + $0x5c] sm:$0xf]
        %v6741 = vld [vmem:[%s6716 + $0x60] sm:$0xf]
        %v6742 = vld [vmem:[%s6716 + $0x64] sm:$0xf]
        %v6743 = vld [vmem:[%s6716 + $0x68] sm:$0xf]
        %v6744 = vld [vmem:[%s6716 + $0x6c] sm:$0xf]
        %v6745 = vld [vmem:[%s6716 + $0x70] sm:$0xf]
        %v6746 = vld [vmem:[%s6716 + $0x74] sm:$0xf]
        %v6747 = vld [vmem:[%s6716 + $0x78] sm:$0xf]
        %v6748 = vld [vmem:[%s6716 + $0x7c] sm:$0xf]
        %v6749 = vld [vmem:[%s6716 + $0x80] sm:$0xf]
        %v6750 = vld [vmem:[%s6716 + $0x84] sm:$0xf]
        %v6751 = vld [vmem:[%s6716 + $0x88] sm:$0xf]
        %v6752 = vld [vmem:[%s6716 + $0x8c] sm:$0xf]
        %v6753 = vld [vmem:[%s6716 + $0x90] sm:$0xf]
        %v6754 = vld [vmem:[%s6716 + $0x94] sm:$0xf]
        %v6755 = vld [vmem:[%s6716 + $0x98] sm:$0xf]
        %v6756 = vld [vmem:[%s6716 + $0x9c] sm:$0xf]
        %v6757 = vld [vmem:[%s6716 + $0xa0] sm:$0xf]
        %v6758 = vld [vmem:[%s6716 + $0xa4] sm:$0xf]
        %v6759 = vld [vmem:[%s6716 + $0xa8] sm:$0xf]
        %v6760 = vld [vmem:[%s6716 + $0xac] sm:$0xf]
        %v6761 = vld [vmem:[%s6716 + $0xb0] sm:$0xf]
        %v6762 = vld [vmem:[%s6716 + $0xb4] sm:$0xf]
        %v6763 = vld [vmem:[%s6716 + $0xb8] sm:$0xf]
        %v6764 = vld [vmem:[%s6716 + $0xbc] sm:$0xf]
        %v6765 = vld [vmem:[%s6716 + $0xc0] sm:$0xf]
        %v6766 = vld [vmem:[%s6716 + $0xc4] sm:$0xf]
        %v6767 = vld [vmem:[%s6716 + $0xc8] sm:$0xf]
        %v6768 = vld [vmem:[%s6716 + $0xcc] sm:$0xf]
        %v6769 = vld [vmem:[%s6716 + $0xd0] sm:$0xf]
        %v6770 = vld [vmem:[%s6716 + $0xd4] sm:$0xf]
        %v6771 = vld [vmem:[%s6716 + $0xd8] sm:$0xf]
        %v6772 = vld [vmem:[%s6716 + $0xdc] sm:$0xf]
        %v6773 = vld [vmem:[%s6716 + $0xe0] sm:$0xf]
        %v6774 = vld [vmem:[%s6716 + $0xe4] sm:$0xf]
        %v6775 = vld [vmem:[%s6716 + $0xe8] sm:$0xf]
        %v6776 = vld [vmem:[%s6716 + $0xec] sm:$0xf]
        %v6777 = vld [vmem:[%s6716 + $0xf0] sm:$0xf]
        %v6778 = vld [vmem:[%s6716 + $0xf4] sm:$0xf]
        %v6779 = vld [vmem:[%s6716 + $0xf8] sm:$0xf]
        %v6780 = vld [vmem:[%s6716 + $0xfc] sm:$0xf]
        %s6781 = scalar_lea.vmem %s3, 56
        %v6782 = vld [vmem:[%s6781] sm:$0xf]
        %v6783 = vld [vmem:[%s6781 + $0x4] sm:$0xf]
        %v6848 = vunpack.c.l.b16 %v6717
        %v6849 = vunpack.c.l.b16 %v6718
        %v6850 = vunpack.c.l.b16 %v6719
        %v6851 = vunpack.c.l.b16 %v6720
        %v6852 = vunpack.c.l.b16 %v6721
        %v6853 = vunpack.c.l.b16 %v6722
        %v6854 = vunpack.c.l.b16 %v6723
        %v6855 = vunpack.c.l.b16 %v6724
        %v6856 = vunpack.c.l.b16 %v6725
        %v6857 = vunpack.c.l.b16 %v6726
        %v6858 = vunpack.c.l.b16 %v6727
        %v6859 = vunpack.c.l.b16 %v6728
        %v6860 = vunpack.c.l.b16 %v6729
        %v6861 = vunpack.c.l.b16 %v6730
        %v6862 = vunpack.c.l.b16 %v6731
        %v6863 = vunpack.c.l.b16 %v6732
        %v6864 = vunpack.c.l.b16 %v6733
        %v6865 = vunpack.c.l.b16 %v6734
        %v6866 = vunpack.c.l.b16 %v6735
        %v6867 = vunpack.c.l.b16 %v6736
        %v6868 = vunpack.c.l.b16 %v6737
        %v6869 = vunpack.c.l.b16 %v6738
        %v6870 = vunpack.c.l.b16 %v6739
        %v6871 = vunpack.c.l.b16 %v6740
        %v6872 = vunpack.c.l.b16 %v6741
        %v6873 = vunpack.c.l.b16 %v6742
        %v6874 = vunpack.c.l.b16 %v6743
        %v6875 = vunpack.c.l.b16 %v6744
        %v6876 = vunpack.c.l.b16 %v6745
        %v6877 = vunpack.c.l.b16 %v6746
        %v6878 = vunpack.c.l.b16 %v6747
        %v6879 = vunpack.c.l.b16 %v6748
        %v6880 = vunpack.c.l.b16 %v6749
        %v6881 = vunpack.c.l.b16 %v6750
        %v6882 = vunpack.c.l.b16 %v6751
        %v6883 = vunpack.c.l.b16 %v6752
        %v6884 = vunpack.c.l.b16 %v6753
        %v6885 = vunpack.c.l.b16 %v6754
        %v6886 = vunpack.c.l.b16 %v6755
        %v6887 = vunpack.c.l.b16 %v6756
        %v6888 = vunpack.c.l.b16 %v6757
        %v6889 = vunpack.c.l.b16 %v6758
        %v6890 = vunpack.c.l.b16 %v6759
        %v6891 = vunpack.c.l.b16 %v6760
        %v6892 = vunpack.c.l.b16 %v6761
        %v6893 = vunpack.c.l.b16 %v6762
        %v6894 = vunpack.c.l.b16 %v6763
        %v6895 = vunpack.c.l.b16 %v6764
        %v6896 = vunpack.c.l.b16 %v6765
        %v6897 = vunpack.c.l.b16 %v6766
        %v6898 = vunpack.c.l.b16 %v6767
        %v6899 = vunpack.c.l.b16 %v6768
        %v6900 = vunpack.c.l.b16 %v6769
        %v6901 = vunpack.c.l.b16 %v6770
        %v6902 = vunpack.c.l.b16 %v6771
        %v6903 = vunpack.c.l.b16 %v6772
        %v6904 = vunpack.c.l.b16 %v6773
        %v6905 = vunpack.c.l.b16 %v6774
        %v6906 = vunpack.c.l.b16 %v6775
        %v6907 = vunpack.c.l.b16 %v6776
        %v6908 = vunpack.c.l.b16 %v6777
        %v6909 = vunpack.c.l.b16 %v6778
        %v6910 = vunpack.c.l.b16 %v6779
        %v6911 = vunpack.c.l.b16 %v6780
        %v6912 = vpack.c.b16 %v6849, %v6848
        %v6913 = vpack.c.b16 %v6851, %v6850
        %v6914 = vpack.c.b16 %v6853, %v6852
        %v6915 = vpack.c.b16 %v6855, %v6854
        %v6916 = vpack.c.b16 %v6857, %v6856
        %v6917 = vpack.c.b16 %v6859, %v6858
        %v6918 = vpack.c.b16 %v6861, %v6860
        %v6919 = vpack.c.b16 %v6863, %v6862
        %v6920 = vpack.c.b16 %v6865, %v6864
        %v6921 = vpack.c.b16 %v6867, %v6866
        %v6922 = vpack.c.b16 %v6869, %v6868
        %v6923 = vpack.c.b16 %v6871, %v6870
        %v6924 = vpack.c.b16 %v6873, %v6872
        %v6925 = vpack.c.b16 %v6875, %v6874
        %v6926 = vpack.c.b16 %v6877, %v6876
        %v6927 = vpack.c.b16 %v6879, %v6878
        %v6928 = vpack.c.b16 %v6881, %v6880
        %v6929 = vpack.c.b16 %v6883, %v6882
        %v6930 = vpack.c.b16 %v6885, %v6884
        %v6931 = vpack.c.b16 %v6887, %v6886
        %v6932 = vpack.c.b16 %v6889, %v6888
        %v6933 = vpack.c.b16 %v6891, %v6890
        %v6934 = vpack.c.b16 %v6893, %v6892
        %v6935 = vpack.c.b16 %v6895, %v6894
        %v6936 = vpack.c.b16 %v6897, %v6896
        %v6937 = vpack.c.b16 %v6899, %v6898
        %v6938 = vpack.c.b16 %v6901, %v6900
        %v6939 = vpack.c.b16 %v6903, %v6902
        %v6940 = vpack.c.b16 %v6905, %v6904
        %v6941 = vpack.c.b16 %v6907, %v6906
        %v6942 = vpack.c.b16 %v6909, %v6908
        %v6943 = vpack.c.b16 %v6911, %v6910
        %v6946 = vunpack.c.l.b16 %v6782
        %v6947 = vunpack.c.l.b16 %v6783
        %v6948 = vpack.c.b16 %v6947, %v6946
        %v6951 = vsel %vm2367, %v6912, 0
        %v6954 = vsel %vm2367, %v6913, 0
        %v6957 = vsel %vm2367, %v6914, 0
        %v6960 = vsel %vm2367, %v6915, 0
        %v6963 = vsel %vm2367, %v6916, 0
        %v6966 = vsel %vm2367, %v6917, 0
        %v6969 = vsel %vm2367, %v6918, 0
        %v6972 = vsel %vm2367, %v6919, 0
        %v6975 = vsel %vm2367, %v6920, 0
        %v6978 = vsel %vm2367, %v6921, 0
        %v6981 = vsel %vm2367, %v6922, 0
        %v6984 = vsel %vm2367, %v6923, 0
        %v6987 = vsel %vm2367, %v6924, 0
        %v6990 = vsel %vm2367, %v6925, 0
        %v6993 = vsel %vm2367, %v6926, 0
        %v6996 = vsel %vm2367, %v6927, 0
        %v6999 = vsel %vm2367, %v6928, 0
        %v7002 = vsel %vm2367, %v6929, 0
        %v7005 = vsel %vm2367, %v6930, 0
        %v7008 = vsel %vm2367, %v6931, 0
        %v7011 = vsel %vm2367, %v6932, 0
        %v7014 = vsel %vm2367, %v6933, 0
        %v7017 = vsel %vm2367, %v6934, 0
        %v7020 = vsel %vm2367, %v6935, 0
        %v7023 = vsel %vm2367, %v6936, 0
        %v7026 = vsel %vm2367, %v6937, 0
        %v7029 = vsel %vm2367, %v6938, 0
        %v7032 = vsel %vm2367, %v6939, 0
        %v7035 = vsel %vm2367, %v6940, 0
        %v7038 = vsel %vm2367, %v6941, 0
        %v7041 = vsel %vm2367, %v6942, 0
        %v7044 = vsel %vm2367, %v6943, 0
        %7046 = vmatprep.subr.bf16.mxu0 0
        %7047 = vmatpush1.bf16.msra.mxu0 0
        %7048 = vmatprep.subr.bf16.mxu0 0
        %7049 = vmatpush1.bf16.msra.mxu0 0
        %7050 = vmatprep.subr.bf16.mxu0 0
        %7051 = vmatpush1.bf16.msra.mxu0 0
        %7052 = vmatprep.subr.bf16.mxu0 0
        %7053 = vmatpush1.bf16.msra.mxu0 0
        %7054 = vmatprep.subr.bf16.mxu0 0
        %7055 = vmatpush1.bf16.msra.mxu0 0
        %7056 = vmatprep.subr.bf16.mxu0 0
        %7057 = vmatpush1.bf16.msra.mxu0 0
        %7058 = vmatprep.subr.bf16.mxu0 0
        %7059 = vmatpush1.bf16.msra.mxu0 0
        %7060 = vmatprep.subr.bf16.mxu0 0
        %7061 = vmatpush1.bf16.msra.mxu0 %v6948
        %7062 = vmatprep.subr.bf16.mxu0 0
        %7063 = vmatpush2.bf16.msra.mxu0 0
        %7064 = vmatprep.subr.bf16.mxu0 0
        %7065 = vmatpush2.bf16.msra.mxu0 0
        %7066 = vmatprep.subr.bf16.mxu0 0
        %7067 = vmatpush2.bf16.msra.mxu0 0
        %7068 = vmatprep.subr.bf16.mxu0 0
        %7069 = vmatpush2.bf16.msra.mxu0 0
        %7070 = vmatprep.subr.bf16.mxu0 0
        %7071 = vmatpush2.bf16.msra.mxu0 0
        %7072 = vmatprep.subr.bf16.mxu0 0
        %7073 = vmatpush2.bf16.msra.mxu0 0
        %7074 = vmatprep.subr.bf16.mxu0 0
        %7075 = vmatpush2.bf16.msra.mxu0 0
        %7076 = vmatprep.subr.bf16.mxu0 0
        %7077 = vmatpush2.bf16.msra.mxu0 0
        %7078 = vmatprep.mubr.bf16.mxu0 0
        %7079 = vmatmul.mubr.bf16.gmra.mxu0 %v6951
        %v7080 = vpop.f32.mrf.mxu0
        %v7081 = vadd.f32 0.0, %v7080
        %v7082 = vpop.f32.mrf.mxu0
        %v7083 = vpop.f32.mrf.mxu0
        %v7084 = vadd.f32 0.0, %v7083
        %v7085 = vpop.f32.mrf.mxu0
        %7086 = vmatprep.mubr.bf16.mxu0 0
        %7087 = vmatmul.mubr.bf16.gmra.mxu0 %v6954
        %v7088 = vpop.f32.mrf.mxu0
        %v7089 = vadd.f32 0.0, %v7088
        %v7090 = vpop.f32.mrf.mxu0
        %v7091 = vpop.f32.mrf.mxu0
        %v7092 = vadd.f32 0.0, %v7091
        %v7093 = vpop.f32.mrf.mxu0
        %7094 = vmatprep.mubr.bf16.mxu0 0
        %7095 = vmatmul.mubr.bf16.gmra.mxu0 %v6957
        %v7096 = vpop.f32.mrf.mxu0
        %v7097 = vadd.f32 0.0, %v7096
        %v7098 = vpop.f32.mrf.mxu0
        %v7099 = vpop.f32.mrf.mxu0
        %v7100 = vadd.f32 0.0, %v7099
        %v7101 = vpop.f32.mrf.mxu0
        %7102 = vmatprep.mubr.bf16.mxu0 0
        %7103 = vmatmul.mubr.bf16.gmra.mxu0 %v6960
        %v7104 = vpop.f32.mrf.mxu0
        %v7105 = vadd.f32 0.0, %v7104
        %v7106 = vpop.f32.mrf.mxu0
        %v7107 = vpop.f32.mrf.mxu0
        %v7108 = vadd.f32 0.0, %v7107
        %v7109 = vpop.f32.mrf.mxu0
        %7110 = vmatprep.mubr.bf16.mxu0 0
        %7111 = vmatmul.mubr.bf16.gmra.mxu0 %v6963
        %v7112 = vpop.f32.mrf.mxu0
        %v7113 = vadd.f32 0.0, %v7112
        %v7114 = vpop.f32.mrf.mxu0
        %v7115 = vpop.f32.mrf.mxu0
        %v7116 = vadd.f32 0.0, %v7115
        %v7117 = vpop.f32.mrf.mxu0
        %7118 = vmatprep.mubr.bf16.mxu0 0
        %7119 = vmatmul.mubr.bf16.gmra.mxu0 %v6966
        %v7120 = vpop.f32.mrf.mxu0
        %v7121 = vadd.f32 0.0, %v7120
        %v7122 = vpop.f32.mrf.mxu0
        %v7123 = vpop.f32.mrf.mxu0
        %v7124 = vadd.f32 0.0, %v7123
        %v7125 = vpop.f32.mrf.mxu0
        %7126 = vmatprep.mubr.bf16.mxu0 0
        %7127 = vmatmul.mubr.bf16.gmra.mxu0 %v6969
        %v7128 = vpop.f32.mrf.mxu0
        %v7129 = vadd.f32 0.0, %v7128
        %v7130 = vpop.f32.mrf.mxu0
        %v7131 = vpop.f32.mrf.mxu0
        %v7132 = vadd.f32 0.0, %v7131
        %v7133 = vpop.f32.mrf.mxu0
        %7134 = vmatprep.mubr.bf16.mxu0 0
        %7135 = vmatmul.mubr.bf16.gmra.mxu0 %v6972
        %v7136 = vpop.f32.mrf.mxu0
        %v7137 = vadd.f32 0.0, %v7136
        %v7138 = vpop.f32.mrf.mxu0
        %v7139 = vpop.f32.mrf.mxu0
        %v7140 = vadd.f32 0.0, %v7139
        %v7141 = vpop.f32.mrf.mxu0
        %7142 = vmatprep.mubr.bf16.mxu0 0
        %7143 = vmatmul.mubr.bf16.gmra.mxu0 %v6975
        %v7144 = vpop.f32.mrf.mxu0
        %v7145 = vadd.f32 0.0, %v7144
        %v7146 = vpop.f32.mrf.mxu0
        %v7147 = vpop.f32.mrf.mxu0
        %v7148 = vadd.f32 0.0, %v7147
        %v7149 = vpop.f32.mrf.mxu0
        %7150 = vmatprep.mubr.bf16.mxu0 0
        %7151 = vmatmul.mubr.bf16.gmra.mxu0 %v6978
        %v7152 = vpop.f32.mrf.mxu0
        %v7153 = vadd.f32 0.0, %v7152
        %v7154 = vpop.f32.mrf.mxu0
        %v7155 = vpop.f32.mrf.mxu0
        %v7156 = vadd.f32 0.0, %v7155
        %v7157 = vpop.f32.mrf.mxu0
        %7158 = vmatprep.mubr.bf16.mxu0 0
        %7159 = vmatmul.mubr.bf16.gmra.mxu0 %v6981
        %v7160 = vpop.f32.mrf.mxu0
        %v7161 = vadd.f32 0.0, %v7160
        %v7162 = vpop.f32.mrf.mxu0
        %v7163 = vpop.f32.mrf.mxu0
        %v7164 = vadd.f32 0.0, %v7163
        %v7165 = vpop.f32.mrf.mxu0
        %7166 = vmatprep.mubr.bf16.mxu0 0
        %7167 = vmatmul.mubr.bf16.gmra.mxu0 %v6984
        %v7168 = vpop.f32.mrf.mxu0
        %v7169 = vadd.f32 0.0, %v7168
        %v7170 = vpop.f32.mrf.mxu0
        %v7171 = vpop.f32.mrf.mxu0
        %v7172 = vadd.f32 0.0, %v7171
        %v7173 = vpop.f32.mrf.mxu0
        %7174 = vmatprep.mubr.bf16.mxu0 0
        %7175 = vmatmul.mubr.bf16.gmra.mxu0 %v6987
        %v7176 = vpop.f32.mrf.mxu0
        %v7177 = vadd.f32 0.0, %v7176
        %v7178 = vpop.f32.mrf.mxu0
        %v7179 = vpop.f32.mrf.mxu0
        %v7180 = vadd.f32 0.0, %v7179
        %v7181 = vpop.f32.mrf.mxu0
        %7182 = vmatprep.mubr.bf16.mxu0 0
        %7183 = vmatmul.mubr.bf16.gmra.mxu0 %v6990
        %v7184 = vpop.f32.mrf.mxu0
        %v7185 = vadd.f32 0.0, %v7184
        %v7186 = vpop.f32.mrf.mxu0
        %v7187 = vpop.f32.mrf.mxu0
        %v7188 = vadd.f32 0.0, %v7187
        %v7189 = vpop.f32.mrf.mxu0
        %7190 = vmatprep.mubr.bf16.mxu0 0
        %7191 = vmatmul.mubr.bf16.gmra.mxu0 %v6993
        %v7192 = vpop.f32.mrf.mxu0
        %v7193 = vadd.f32 0.0, %v7192
        %v7194 = vpop.f32.mrf.mxu0
        %v7195 = vpop.f32.mrf.mxu0
        %v7196 = vadd.f32 0.0, %v7195
        %v7197 = vpop.f32.mrf.mxu0
        %7198 = vmatprep.mubr.bf16.mxu0 0
        %7199 = vmatmul.mubr.bf16.gmra.mxu0 %v6996
        %v7200 = vpop.f32.mrf.mxu0
        %v7201 = vadd.f32 0.0, %v7200
        %v7202 = vpop.f32.mrf.mxu0
        %v7203 = vpop.f32.mrf.mxu0
        %v7204 = vadd.f32 0.0, %v7203
        %v7205 = vpop.f32.mrf.mxu0
        %7206 = vmatprep.mubr.bf16.mxu0 0
        %7207 = vmatmul.mubr.bf16.gmra.mxu0 %v6999
        %v7208 = vpop.f32.mrf.mxu0
        %v7209 = vadd.f32 0.0, %v7208
        %v7210 = vpop.f32.mrf.mxu0
        %v7211 = vpop.f32.mrf.mxu0
        %v7212 = vadd.f32 0.0, %v7211
        %v7213 = vpop.f32.mrf.mxu0
        %7214 = vmatprep.mubr.bf16.mxu0 0
        %7215 = vmatmul.mubr.bf16.gmra.mxu0 %v7002
        %v7216 = vpop.f32.mrf.mxu0
        %v7217 = vadd.f32 0.0, %v7216
        %v7218 = vpop.f32.mrf.mxu0
        %v7219 = vpop.f32.mrf.mxu0
        %v7220 = vadd.f32 0.0, %v7219
        %v7221 = vpop.f32.mrf.mxu0
        %7222 = vmatprep.mubr.bf16.mxu0 0
        %7223 = vmatmul.mubr.bf16.gmra.mxu0 %v7005
        %v7224 = vpop.f32.mrf.mxu0
        %v7225 = vadd.f32 0.0, %v7224
        %v7226 = vpop.f32.mrf.mxu0
        %v7227 = vpop.f32.mrf.mxu0
        %v7228 = vadd.f32 0.0, %v7227
        %v7229 = vpop.f32.mrf.mxu0
        %7230 = vmatprep.mubr.bf16.mxu0 0
        %7231 = vmatmul.mubr.bf16.gmra.mxu0 %v7008
        %v7232 = vpop.f32.mrf.mxu0
        %v7233 = vadd.f32 0.0, %v7232
        %v7234 = vpop.f32.mrf.mxu0
        %v7235 = vpop.f32.mrf.mxu0
        %v7236 = vadd.f32 0.0, %v7235
        %v7237 = vpop.f32.mrf.mxu0
        %7238 = vmatprep.mubr.bf16.mxu0 0
        %7239 = vmatmul.mubr.bf16.gmra.mxu0 %v7011
        %v7240 = vpop.f32.mrf.mxu0
        %v7241 = vadd.f32 0.0, %v7240
        %v7242 = vpop.f32.mrf.mxu0
        %v7243 = vpop.f32.mrf.mxu0
        %v7244 = vadd.f32 0.0, %v7243
        %v7245 = vpop.f32.mrf.mxu0
        %7246 = vmatprep.mubr.bf16.mxu0 0
        %7247 = vmatmul.mubr.bf16.gmra.mxu0 %v7014
        %v7248 = vpop.f32.mrf.mxu0
        %v7249 = vadd.f32 0.0, %v7248
        %v7250 = vpop.f32.mrf.mxu0
        %v7251 = vpop.f32.mrf.mxu0
        %v7252 = vadd.f32 0.0, %v7251
        %v7253 = vpop.f32.mrf.mxu0
        %7254 = vmatprep.mubr.bf16.mxu0 0
        %7255 = vmatmul.mubr.bf16.gmra.mxu0 %v7017
        %v7256 = vpop.f32.mrf.mxu0
        %v7257 = vadd.f32 0.0, %v7256
        %v7258 = vpop.f32.mrf.mxu0
        %v7259 = vpop.f32.mrf.mxu0
        %v7260 = vadd.f32 0.0, %v7259
        %v7261 = vpop.f32.mrf.mxu0
        %7262 = vmatprep.mubr.bf16.mxu0 0
        %7263 = vmatmul.mubr.bf16.gmra.mxu0 %v7020
        %v7264 = vpop.f32.mrf.mxu0
        %v7265 = vadd.f32 0.0, %v7264
        %v7266 = vpop.f32.mrf.mxu0
        %v7267 = vpop.f32.mrf.mxu0
        %v7268 = vadd.f32 0.0, %v7267
        %v7269 = vpop.f32.mrf.mxu0
        %7270 = vmatprep.mubr.bf16.mxu0 0
        %7271 = vmatmul.mubr.bf16.gmra.mxu0 %v7023
        %v7272 = vpop.f32.mrf.mxu0
        %v7273 = vadd.f32 0.0, %v7272
        %v7274 = vpop.f32.mrf.mxu0
        %v7275 = vpop.f32.mrf.mxu0
        %v7276 = vadd.f32 0.0, %v7275
        %v7277 = vpop.f32.mrf.mxu0
        %7278 = vmatprep.mubr.bf16.mxu0 0
        %7279 = vmatmul.mubr.bf16.gmra.mxu0 %v7026
        %v7280 = vpop.f32.mrf.mxu0
        %v7281 = vadd.f32 0.0, %v7280
        %v7282 = vpop.f32.mrf.mxu0
        %v7283 = vpop.f32.mrf.mxu0
        %v7284 = vadd.f32 0.0, %v7283
        %v7285 = vpop.f32.mrf.mxu0
        %7286 = vmatprep.mubr.bf16.mxu0 0
        %7287 = vmatmul.mubr.bf16.gmra.mxu0 %v7029
        %v7288 = vpop.f32.mrf.mxu0
        %v7289 = vadd.f32 0.0, %v7288
        %v7290 = vpop.f32.mrf.mxu0
        %v7291 = vpop.f32.mrf.mxu0
        %v7292 = vadd.f32 0.0, %v7291
        %v7293 = vpop.f32.mrf.mxu0
        %7294 = vmatprep.mubr.bf16.mxu0 0
        %7295 = vmatmul.mubr.bf16.gmra.mxu0 %v7032
        %v7296 = vpop.f32.mrf.mxu0
        %v7297 = vadd.f32 0.0, %v7296
        %v7298 = vpop.f32.mrf.mxu0
        %v7299 = vpop.f32.mrf.mxu0
        %v7300 = vadd.f32 0.0, %v7299
        %v7301 = vpop.f32.mrf.mxu0
        %7302 = vmatprep.mubr.bf16.mxu0 0
        %7303 = vmatmul.mubr.bf16.gmra.mxu0 %v7035
        %v7304 = vpop.f32.mrf.mxu0
        %v7305 = vadd.f32 0.0, %v7304
        %v7306 = vpop.f32.mrf.mxu0
        %v7307 = vpop.f32.mrf.mxu0
        %v7308 = vadd.f32 0.0, %v7307
        %v7309 = vpop.f32.mrf.mxu0
        %7310 = vmatprep.mubr.bf16.mxu0 0
        %7311 = vmatmul.mubr.bf16.gmra.mxu0 %v7038
        %v7312 = vpop.f32.mrf.mxu0
        %v7313 = vadd.f32 0.0, %v7312
        %v7314 = vpop.f32.mrf.mxu0
        %v7315 = vpop.f32.mrf.mxu0
        %v7316 = vadd.f32 0.0, %v7315
        %v7317 = vpop.f32.mrf.mxu0
        %7318 = vmatprep.mubr.bf16.mxu0 0
        %7319 = vmatmul.mubr.bf16.gmra.mxu0 %v7041
        %v7320 = vpop.f32.mrf.mxu0
        %v7321 = vadd.f32 0.0, %v7320
        %v7322 = vpop.f32.mrf.mxu0
        %v7323 = vpop.f32.mrf.mxu0
        %v7324 = vadd.f32 0.0, %v7323
        %v7325 = vpop.f32.mrf.mxu0
        %7326 = vmatprep.mubr.bf16.mxu0 0
        %7327 = vmatmul.mubr.bf16.gmra.mxu0 %v7044
        %v7328 = vpop.f32.mrf.mxu0
        %v7329 = vadd.f32 0.0, %v7328
        %v7330 = vpop.f32.mrf.mxu0
        %v7331 = vpop.f32.mrf.mxu0
        %v7332 = vadd.f32 0.0, %v7331
        %v7333 = vpop.f32.mrf.mxu0
        %7334 = vdwg.mxu0
        %v7335 = vadd.f32 %v6652, %v7081
        %v7336 = vadd.f32 %v6653, %v7084
        %v7337 = vadd.f32 %v6654, %v7089
        %v7338 = vadd.f32 %v6655, %v7092
        %v7339 = vadd.f32 %v6656, %v7097
        %v7340 = vadd.f32 %v6657, %v7100
        %v7341 = vadd.f32 %v6658, %v7105
        %v7342 = vadd.f32 %v6659, %v7108
        %v7343 = vadd.f32 %v6660, %v7113
        %v7344 = vadd.f32 %v6661, %v7116
        %v7345 = vadd.f32 %v6662, %v7121
        %v7346 = vadd.f32 %v6663, %v7124
        %v7347 = vadd.f32 %v6664, %v7129
        %v7348 = vadd.f32 %v6665, %v7132
        %v7349 = vadd.f32 %v6666, %v7137
        %v7350 = vadd.f32 %v6667, %v7140
        %v7351 = vadd.f32 %v6668, %v7145
        %v7352 = vadd.f32 %v6669, %v7148
        %v7353 = vadd.f32 %v6670, %v7153
        %v7354 = vadd.f32 %v6671, %v7156
        %v7355 = vadd.f32 %v6672, %v7161
        %v7356 = vadd.f32 %v6673, %v7164
        %v7357 = vadd.f32 %v6674, %v7169
        %v7358 = vadd.f32 %v6675, %v7172
        %v7359 = vadd.f32 %v6676, %v7177
        %v7360 = vadd.f32 %v6677, %v7180
        %v7361 = vadd.f32 %v6678, %v7185
        %v7362 = vadd.f32 %v6679, %v7188
        %v7363 = vadd.f32 %v6680, %v7193
        %v7364 = vadd.f32 %v6681, %v7196
        %v7365 = vadd.f32 %v6682, %v7201
        %v7366 = vadd.f32 %v6683, %v7204
        %v7367 = vadd.f32 %v6684, %v7209
        %v7368 = vadd.f32 %v6685, %v7212
        %v7369 = vadd.f32 %v6686, %v7217
        %v7370 = vadd.f32 %v6687, %v7220
        %v7371 = vadd.f32 %v6688, %v7225
        %v7372 = vadd.f32 %v6689, %v7228
        %v7373 = vadd.f32 %v6690, %v7233
        %v7374 = vadd.f32 %v6691, %v7236
        %v7375 = vadd.f32 %v6692, %v7241
        %v7376 = vadd.f32 %v6693, %v7244
        %v7377 = vadd.f32 %v6694, %v7249
        %v7378 = vadd.f32 %v6695, %v7252
        %v7379 = vadd.f32 %v6696, %v7257
        %v7380 = vadd.f32 %v6697, %v7260
        %v7381 = vadd.f32 %v6698, %v7265
        %v7382 = vadd.f32 %v6699, %v7268
        %v7383 = vadd.f32 %v6700, %v7273
        %v7384 = vadd.f32 %v6701, %v7276
        %v7385 = vadd.f32 %v6702, %v7281
        %v7386 = vadd.f32 %v6703, %v7284
        %v7387 = vadd.f32 %v6704, %v7289
        %v7388 = vadd.f32 %v6705, %v7292
        %v7389 = vadd.f32 %v6706, %v7297
        %v7390 = vadd.f32 %v6707, %v7300
        %v7391 = vadd.f32 %v6708, %v7305
        %v7392 = vadd.f32 %v6709, %v7308
        %v7393 = vadd.f32 %v6710, %v7313
        %v7394 = vadd.f32 %v6711, %v7316
        %v7395 = vadd.f32 %v6712, %v7321
        %v7396 = vadd.f32 %v6713, %v7324
        %v7397 = vadd.f32 %v6714, %v7329
        %v7398 = vadd.f32 %v6715, %v7332
        %s7399 = scalar_lea.vmem [#allocation2], 560
        %v7400 = vld [vmem:[%s7399] sm:$0xf]
        %v7401 = vld [vmem:[%s7399 + $0x4] sm:$0xf]
        %v7402 = vld [vmem:[%s7399 + $0x8] sm:$0xf]
        %v7403 = vld [vmem:[%s7399 + $0xc] sm:$0xf]
        %v7404 = vld [vmem:[%s7399 + $0x10] sm:$0xf]
        %v7405 = vld [vmem:[%s7399 + $0x14] sm:$0xf]
        %v7406 = vld [vmem:[%s7399 + $0x18] sm:$0xf]
        %v7407 = vld [vmem:[%s7399 + $0x1c] sm:$0xf]
        %v7408 = vld [vmem:[%s7399 + $0x20] sm:$0xf]
        %v7409 = vld [vmem:[%s7399 + $0x24] sm:$0xf]
        %v7410 = vld [vmem:[%s7399 + $0x28] sm:$0xf]
        %v7411 = vld [vmem:[%s7399 + $0x2c] sm:$0xf]
        %v7412 = vld [vmem:[%s7399 + $0x30] sm:$0xf]
        %v7413 = vld [vmem:[%s7399 + $0x34] sm:$0xf]
        %v7414 = vld [vmem:[%s7399 + $0x38] sm:$0xf]
        %v7415 = vld [vmem:[%s7399 + $0x3c] sm:$0xf]
        %v7416 = vld [vmem:[%s7399 + $0x40] sm:$0xf]
        %v7417 = vld [vmem:[%s7399 + $0x44] sm:$0xf]
        %v7418 = vld [vmem:[%s7399 + $0x48] sm:$0xf]
        %v7419 = vld [vmem:[%s7399 + $0x4c] sm:$0xf]
        %v7420 = vld [vmem:[%s7399 + $0x50] sm:$0xf]
        %v7421 = vld [vmem:[%s7399 + $0x54] sm:$0xf]
        %v7422 = vld [vmem:[%s7399 + $0x58] sm:$0xf]
        %v7423 = vld [vmem:[%s7399 + $0x5c] sm:$0xf]
        %v7424 = vld [vmem:[%s7399 + $0x60] sm:$0xf]
        %v7425 = vld [vmem:[%s7399 + $0x64] sm:$0xf]
        %v7426 = vld [vmem:[%s7399 + $0x68] sm:$0xf]
        %v7427 = vld [vmem:[%s7399 + $0x6c] sm:$0xf]
        %v7428 = vld [vmem:[%s7399 + $0x70] sm:$0xf]
        %v7429 = vld [vmem:[%s7399 + $0x74] sm:$0xf]
        %v7430 = vld [vmem:[%s7399 + $0x78] sm:$0xf]
        %v7431 = vld [vmem:[%s7399 + $0x7c] sm:$0xf]
        %v7432 = vld [vmem:[%s7399 + $0x80] sm:$0xf]
        %v7433 = vld [vmem:[%s7399 + $0x84] sm:$0xf]
        %v7434 = vld [vmem:[%s7399 + $0x88] sm:$0xf]
        %v7435 = vld [vmem:[%s7399 + $0x8c] sm:$0xf]
        %v7436 = vld [vmem:[%s7399 + $0x90] sm:$0xf]
        %v7437 = vld [vmem:[%s7399 + $0x94] sm:$0xf]
        %v7438 = vld [vmem:[%s7399 + $0x98] sm:$0xf]
        %v7439 = vld [vmem:[%s7399 + $0x9c] sm:$0xf]
        %v7440 = vld [vmem:[%s7399 + $0xa0] sm:$0xf]
        %v7441 = vld [vmem:[%s7399 + $0xa4] sm:$0xf]
        %v7442 = vld [vmem:[%s7399 + $0xa8] sm:$0xf]
        %v7443 = vld [vmem:[%s7399 + $0xac] sm:$0xf]
        %v7444 = vld [vmem:[%s7399 + $0xb0] sm:$0xf]
        %v7445 = vld [vmem:[%s7399 + $0xb4] sm:$0xf]
        %v7446 = vld [vmem:[%s7399 + $0xb8] sm:$0xf]
        %v7447 = vld [vmem:[%s7399 + $0xbc] sm:$0xf]
        %v7448 = vld [vmem:[%s7399 + $0xc0] sm:$0xf]
        %v7449 = vld [vmem:[%s7399 + $0xc4] sm:$0xf]
        %v7450 = vld [vmem:[%s7399 + $0xc8] sm:$0xf]
        %v7451 = vld [vmem:[%s7399 + $0xcc] sm:$0xf]
        %v7452 = vld [vmem:[%s7399 + $0xd0] sm:$0xf]
        %v7453 = vld [vmem:[%s7399 + $0xd4] sm:$0xf]
        %v7454 = vld [vmem:[%s7399 + $0xd8] sm:$0xf]
        %v7455 = vld [vmem:[%s7399 + $0xdc] sm:$0xf]
        %v7456 = vld [vmem:[%s7399 + $0xe0] sm:$0xf]
        %v7457 = vld [vmem:[%s7399 + $0xe4] sm:$0xf]
        %v7458 = vld [vmem:[%s7399 + $0xe8] sm:$0xf]
        %v7459 = vld [vmem:[%s7399 + $0xec] sm:$0xf]
        %v7460 = vld [vmem:[%s7399 + $0xf0] sm:$0xf]
        %v7461 = vld [vmem:[%s7399 + $0xf4] sm:$0xf]
        %v7462 = vld [vmem:[%s7399 + $0xf8] sm:$0xf]
        %v7463 = vld [vmem:[%s7399 + $0xfc] sm:$0xf]
        %s7464 = scalar_lea.vmem %s3, 64
        %v7465 = vld [vmem:[%s7464] sm:$0xf]
        %v7466 = vld [vmem:[%s7464 + $0x4] sm:$0xf]
        %v7531 = vunpack.c.l.b16 %v7400
        %v7532 = vunpack.c.l.b16 %v7401
        %v7533 = vunpack.c.l.b16 %v7402
        %v7534 = vunpack.c.l.b16 %v7403
        %v7535 = vunpack.c.l.b16 %v7404
        %v7536 = vunpack.c.l.b16 %v7405
        %v7537 = vunpack.c.l.b16 %v7406
        %v7538 = vunpack.c.l.b16 %v7407
        %v7539 = vunpack.c.l.b16 %v7408
        %v7540 = vunpack.c.l.b16 %v7409
        %v7541 = vunpack.c.l.b16 %v7410
        %v7542 = vunpack.c.l.b16 %v7411
        %v7543 = vunpack.c.l.b16 %v7412
        %v7544 = vunpack.c.l.b16 %v7413
        %v7545 = vunpack.c.l.b16 %v7414
        %v7546 = vunpack.c.l.b16 %v7415
        %v7547 = vunpack.c.l.b16 %v7416
        %v7548 = vunpack.c.l.b16 %v7417
        %v7549 = vunpack.c.l.b16 %v7418
        %v7550 = vunpack.c.l.b16 %v7419
        %v7551 = vunpack.c.l.b16 %v7420
        %v7552 = vunpack.c.l.b16 %v7421
        %v7553 = vunpack.c.l.b16 %v7422
        %v7554 = vunpack.c.l.b16 %v7423
        %v7555 = vunpack.c.l.b16 %v7424
        %v7556 = vunpack.c.l.b16 %v7425
        %v7557 = vunpack.c.l.b16 %v7426
        %v7558 = vunpack.c.l.b16 %v7427
        %v7559 = vunpack.c.l.b16 %v7428
        %v7560 = vunpack.c.l.b16 %v7429
        %v7561 = vunpack.c.l.b16 %v7430
        %v7562 = vunpack.c.l.b16 %v7431
        %v7563 = vunpack.c.l.b16 %v7432
        %v7564 = vunpack.c.l.b16 %v7433
        %v7565 = vunpack.c.l.b16 %v7434
        %v7566 = vunpack.c.l.b16 %v7435
        %v7567 = vunpack.c.l.b16 %v7436
        %v7568 = vunpack.c.l.b16 %v7437
        %v7569 = vunpack.c.l.b16 %v7438
        %v7570 = vunpack.c.l.b16 %v7439
        %v7571 = vunpack.c.l.b16 %v7440
        %v7572 = vunpack.c.l.b16 %v7441
        %v7573 = vunpack.c.l.b16 %v7442
        %v7574 = vunpack.c.l.b16 %v7443
        %v7575 = vunpack.c.l.b16 %v7444
        %v7576 = vunpack.c.l.b16 %v7445
        %v7577 = vunpack.c.l.b16 %v7446
        %v7578 = vunpack.c.l.b16 %v7447
        %v7579 = vunpack.c.l.b16 %v7448
        %v7580 = vunpack.c.l.b16 %v7449
        %v7581 = vunpack.c.l.b16 %v7450
        %v7582 = vunpack.c.l.b16 %v7451
        %v7583 = vunpack.c.l.b16 %v7452
        %v7584 = vunpack.c.l.b16 %v7453
        %v7585 = vunpack.c.l.b16 %v7454
        %v7586 = vunpack.c.l.b16 %v7455
        %v7587 = vunpack.c.l.b16 %v7456
        %v7588 = vunpack.c.l.b16 %v7457
        %v7589 = vunpack.c.l.b16 %v7458
        %v7590 = vunpack.c.l.b16 %v7459
        %v7591 = vunpack.c.l.b16 %v7460
        %v7592 = vunpack.c.l.b16 %v7461
        %v7593 = vunpack.c.l.b16 %v7462
        %v7594 = vunpack.c.l.b16 %v7463
        %v7595 = vpack.c.b16 %v7532, %v7531
        %v7596 = vpack.c.b16 %v7534, %v7533
        %v7597 = vpack.c.b16 %v7536, %v7535
        %v7598 = vpack.c.b16 %v7538, %v7537
        %v7599 = vpack.c.b16 %v7540, %v7539
        %v7600 = vpack.c.b16 %v7542, %v7541
        %v7601 = vpack.c.b16 %v7544, %v7543
        %v7602 = vpack.c.b16 %v7546, %v7545
        %v7603 = vpack.c.b16 %v7548, %v7547
        %v7604 = vpack.c.b16 %v7550, %v7549
        %v7605 = vpack.c.b16 %v7552, %v7551
        %v7606 = vpack.c.b16 %v7554, %v7553
        %v7607 = vpack.c.b16 %v7556, %v7555
        %v7608 = vpack.c.b16 %v7558, %v7557
        %v7609 = vpack.c.b16 %v7560, %v7559
        %v7610 = vpack.c.b16 %v7562, %v7561
        %v7611 = vpack.c.b16 %v7564, %v7563
        %v7612 = vpack.c.b16 %v7566, %v7565
        %v7613 = vpack.c.b16 %v7568, %v7567
        %v7614 = vpack.c.b16 %v7570, %v7569
        %v7615 = vpack.c.b16 %v7572, %v7571
        %v7616 = vpack.c.b16 %v7574, %v7573
        %v7617 = vpack.c.b16 %v7576, %v7575
        %v7618 = vpack.c.b16 %v7578, %v7577
        %v7619 = vpack.c.b16 %v7580, %v7579
        %v7620 = vpack.c.b16 %v7582, %v7581
        %v7621 = vpack.c.b16 %v7584, %v7583
        %v7622 = vpack.c.b16 %v7586, %v7585
        %v7623 = vpack.c.b16 %v7588, %v7587
        %v7624 = vpack.c.b16 %v7590, %v7589
        %v7625 = vpack.c.b16 %v7592, %v7591
        %v7626 = vpack.c.b16 %v7594, %v7593
        %v7629 = vunpack.c.l.b16 %v7465
        %v7630 = vunpack.c.l.b16 %v7466
        %v7631 = vpack.c.b16 %v7630, %v7629
        %v7634 = vsel %vm2367, %v7595, 0
        %v7637 = vsel %vm2367, %v7596, 0
        %v7640 = vsel %vm2367, %v7597, 0
        %v7643 = vsel %vm2367, %v7598, 0
        %v7646 = vsel %vm2367, %v7599, 0
        %v7649 = vsel %vm2367, %v7600, 0
        %v7652 = vsel %vm2367, %v7601, 0
        %v7655 = vsel %vm2367, %v7602, 0
        %v7658 = vsel %vm2367, %v7603, 0
        %v7661 = vsel %vm2367, %v7604, 0
        %v7664 = vsel %vm2367, %v7605, 0
        %v7667 = vsel %vm2367, %v7606, 0
        %v7670 = vsel %vm2367, %v7607, 0
        %v7673 = vsel %vm2367, %v7608, 0
        %v7676 = vsel %vm2367, %v7609, 0
        %v7679 = vsel %vm2367, %v7610, 0
        %v7682 = vsel %vm2367, %v7611, 0
        %v7685 = vsel %vm2367, %v7612, 0
        %v7688 = vsel %vm2367, %v7613, 0
        %v7691 = vsel %vm2367, %v7614, 0
        %v7694 = vsel %vm2367, %v7615, 0
        %v7697 = vsel %vm2367, %v7616, 0
        %v7700 = vsel %vm2367, %v7617, 0
        %v7703 = vsel %vm2367, %v7618, 0
        %v7706 = vsel %vm2367, %v7619, 0
        %v7709 = vsel %vm2367, %v7620, 0
        %v7712 = vsel %vm2367, %v7621, 0
        %v7715 = vsel %vm2367, %v7622, 0
        %v7718 = vsel %vm2367, %v7623, 0
        %v7721 = vsel %vm2367, %v7624, 0
        %v7724 = vsel %vm2367, %v7625, 0
        %v7727 = vsel %vm2367, %v7626, 0
        %7729 = vmatprep.subr.bf16.mxu0 0
        %7730 = vmatpush1.bf16.msra.mxu0 0
        %7731 = vmatprep.subr.bf16.mxu0 0
        %7732 = vmatpush1.bf16.msra.mxu0 0
        %7733 = vmatprep.subr.bf16.mxu0 0
        %7734 = vmatpush1.bf16.msra.mxu0 0
        %7735 = vmatprep.subr.bf16.mxu0 0
        %7736 = vmatpush1.bf16.msra.mxu0 0
        %7737 = vmatprep.subr.bf16.mxu0 0
        %7738 = vmatpush1.bf16.msra.mxu0 0
        %7739 = vmatprep.subr.bf16.mxu0 0
        %7740 = vmatpush1.bf16.msra.mxu0 0
        %7741 = vmatprep.subr.bf16.mxu0 0
        %7742 = vmatpush1.bf16.msra.mxu0 0
        %7743 = vmatprep.subr.bf16.mxu0 0
        %7744 = vmatpush1.bf16.msra.mxu0 %v7631
        %7745 = vmatprep.subr.bf16.mxu0 0
        %7746 = vmatpush2.bf16.msra.mxu0 0
        %7747 = vmatprep.subr.bf16.mxu0 0
        %7748 = vmatpush2.bf16.msra.mxu0 0
        %7749 = vmatprep.subr.bf16.mxu0 0
        %7750 = vmatpush2.bf16.msra.mxu0 0
        %7751 = vmatprep.subr.bf16.mxu0 0
        %7752 = vmatpush2.bf16.msra.mxu0 0
        %7753 = vmatprep.subr.bf16.mxu0 0
        %7754 = vmatpush2.bf16.msra.mxu0 0
        %7755 = vmatprep.subr.bf16.mxu0 0
        %7756 = vmatpush2.bf16.msra.mxu0 0
        %7757 = vmatprep.subr.bf16.mxu0 0
        %7758 = vmatpush2.bf16.msra.mxu0 0
        %7759 = vmatprep.subr.bf16.mxu0 0
        %7760 = vmatpush2.bf16.msra.mxu0 0
        %7761 = vmatprep.mubr.bf16.mxu0 0
        %7762 = vmatmul.mubr.bf16.gmra.mxu0 %v7634
        %v7763 = vpop.f32.mrf.mxu0
        %v7764 = vadd.f32 0.0, %v7763
        %v7765 = vpop.f32.mrf.mxu0
        %v7766 = vpop.f32.mrf.mxu0
        %v7767 = vadd.f32 0.0, %v7766
        %v7768 = vpop.f32.mrf.mxu0
        %7769 = vmatprep.mubr.bf16.mxu0 0
        %7770 = vmatmul.mubr.bf16.gmra.mxu0 %v7637
        %v7771 = vpop.f32.mrf.mxu0
        %v7772 = vadd.f32 0.0, %v7771
        %v7773 = vpop.f32.mrf.mxu0
        %v7774 = vpop.f32.mrf.mxu0
        %v7775 = vadd.f32 0.0, %v7774
        %v7776 = vpop.f32.mrf.mxu0
        %7777 = vmatprep.mubr.bf16.mxu0 0
        %7778 = vmatmul.mubr.bf16.gmra.mxu0 %v7640
        %v7779 = vpop.f32.mrf.mxu0
        %v7780 = vadd.f32 0.0, %v7779
        %v7781 = vpop.f32.mrf.mxu0
        %v7782 = vpop.f32.mrf.mxu0
        %v7783 = vadd.f32 0.0, %v7782
        %v7784 = vpop.f32.mrf.mxu0
        %7785 = vmatprep.mubr.bf16.mxu0 0
        %7786 = vmatmul.mubr.bf16.gmra.mxu0 %v7643
        %v7787 = vpop.f32.mrf.mxu0
        %v7788 = vadd.f32 0.0, %v7787
        %v7789 = vpop.f32.mrf.mxu0
        %v7790 = vpop.f32.mrf.mxu0
        %v7791 = vadd.f32 0.0, %v7790
        %v7792 = vpop.f32.mrf.mxu0
        %7793 = vmatprep.mubr.bf16.mxu0 0
        %7794 = vmatmul.mubr.bf16.gmra.mxu0 %v7646
        %v7795 = vpop.f32.mrf.mxu0
        %v7796 = vadd.f32 0.0, %v7795
        %v7797 = vpop.f32.mrf.mxu0
        %v7798 = vpop.f32.mrf.mxu0
        %v7799 = vadd.f32 0.0, %v7798
        %v7800 = vpop.f32.mrf.mxu0
        %7801 = vmatprep.mubr.bf16.mxu0 0
        %7802 = vmatmul.mubr.bf16.gmra.mxu0 %v7649
        %v7803 = vpop.f32.mrf.mxu0
        %v7804 = vadd.f32 0.0, %v7803
        %v7805 = vpop.f32.mrf.mxu0
        %v7806 = vpop.f32.mrf.mxu0
        %v7807 = vadd.f32 0.0, %v7806
        %v7808 = vpop.f32.mrf.mxu0
        %7809 = vmatprep.mubr.bf16.mxu0 0
        %7810 = vmatmul.mubr.bf16.gmra.mxu0 %v7652
        %v7811 = vpop.f32.mrf.mxu0
        %v7812 = vadd.f32 0.0, %v7811
        %v7813 = vpop.f32.mrf.mxu0
        %v7814 = vpop.f32.mrf.mxu0
        %v7815 = vadd.f32 0.0, %v7814
        %v7816 = vpop.f32.mrf.mxu0
        %7817 = vmatprep.mubr.bf16.mxu0 0
        %7818 = vmatmul.mubr.bf16.gmra.mxu0 %v7655
        %v7819 = vpop.f32.mrf.mxu0
        %v7820 = vadd.f32 0.0, %v7819
        %v7821 = vpop.f32.mrf.mxu0
        %v7822 = vpop.f32.mrf.mxu0
        %v7823 = vadd.f32 0.0, %v7822
        %v7824 = vpop.f32.mrf.mxu0
        %7825 = vmatprep.mubr.bf16.mxu0 0
        %7826 = vmatmul.mubr.bf16.gmra.mxu0 %v7658
        %v7827 = vpop.f32.mrf.mxu0
        %v7828 = vadd.f32 0.0, %v7827
        %v7829 = vpop.f32.mrf.mxu0
        %v7830 = vpop.f32.mrf.mxu0
        %v7831 = vadd.f32 0.0, %v7830
        %v7832 = vpop.f32.mrf.mxu0
        %7833 = vmatprep.mubr.bf16.mxu0 0
        %7834 = vmatmul.mubr.bf16.gmra.mxu0 %v7661
        %v7835 = vpop.f32.mrf.mxu0
        %v7836 = vadd.f32 0.0, %v7835
        %v7837 = vpop.f32.mrf.mxu0
        %v7838 = vpop.f32.mrf.mxu0
        %v7839 = vadd.f32 0.0, %v7838
        %v7840 = vpop.f32.mrf.mxu0
        %7841 = vmatprep.mubr.bf16.mxu0 0
        %7842 = vmatmul.mubr.bf16.gmra.mxu0 %v7664
        %v7843 = vpop.f32.mrf.mxu0
        %v7844 = vadd.f32 0.0, %v7843
        %v7845 = vpop.f32.mrf.mxu0
        %v7846 = vpop.f32.mrf.mxu0
        %v7847 = vadd.f32 0.0, %v7846
        %v7848 = vpop.f32.mrf.mxu0
        %7849 = vmatprep.mubr.bf16.mxu0 0
        %7850 = vmatmul.mubr.bf16.gmra.mxu0 %v7667
        %v7851 = vpop.f32.mrf.mxu0
        %v7852 = vadd.f32 0.0, %v7851
        %v7853 = vpop.f32.mrf.mxu0
        %v7854 = vpop.f32.mrf.mxu0
        %v7855 = vadd.f32 0.0, %v7854
        %v7856 = vpop.f32.mrf.mxu0
        %7857 = vmatprep.mubr.bf16.mxu0 0
        %7858 = vmatmul.mubr.bf16.gmra.mxu0 %v7670
        %v7859 = vpop.f32.mrf.mxu0
        %v7860 = vadd.f32 0.0, %v7859
        %v7861 = vpop.f32.mrf.mxu0
        %v7862 = vpop.f32.mrf.mxu0
        %v7863 = vadd.f32 0.0, %v7862
        %v7864 = vpop.f32.mrf.mxu0
        %7865 = vmatprep.mubr.bf16.mxu0 0
        %7866 = vmatmul.mubr.bf16.gmra.mxu0 %v7673
        %v7867 = vpop.f32.mrf.mxu0
        %v7868 = vadd.f32 0.0, %v7867
        %v7869 = vpop.f32.mrf.mxu0
        %v7870 = vpop.f32.mrf.mxu0
        %v7871 = vadd.f32 0.0, %v7870
        %v7872 = vpop.f32.mrf.mxu0
        %7873 = vmatprep.mubr.bf16.mxu0 0
        %7874 = vmatmul.mubr.bf16.gmra.mxu0 %v7676
        %v7875 = vpop.f32.mrf.mxu0
        %v7876 = vadd.f32 0.0, %v7875
        %v7877 = vpop.f32.mrf.mxu0
        %v7878 = vpop.f32.mrf.mxu0
        %v7879 = vadd.f32 0.0, %v7878
        %v7880 = vpop.f32.mrf.mxu0
        %7881 = vmatprep.mubr.bf16.mxu0 0
        %7882 = vmatmul.mubr.bf16.gmra.mxu0 %v7679
        %v7883 = vpop.f32.mrf.mxu0
        %v7884 = vadd.f32 0.0, %v7883
        %v7885 = vpop.f32.mrf.mxu0
        %v7886 = vpop.f32.mrf.mxu0
        %v7887 = vadd.f32 0.0, %v7886
        %v7888 = vpop.f32.mrf.mxu0
        %7889 = vmatprep.mubr.bf16.mxu0 0
        %7890 = vmatmul.mubr.bf16.gmra.mxu0 %v7682
        %v7891 = vpop.f32.mrf.mxu0
        %v7892 = vadd.f32 0.0, %v7891
        %v7893 = vpop.f32.mrf.mxu0
        %v7894 = vpop.f32.mrf.mxu0
        %v7895 = vadd.f32 0.0, %v7894
        %v7896 = vpop.f32.mrf.mxu0
        %7897 = vmatprep.mubr.bf16.mxu0 0
        %7898 = vmatmul.mubr.bf16.gmra.mxu0 %v7685
        %v7899 = vpop.f32.mrf.mxu0
        %v7900 = vadd.f32 0.0, %v7899
        %v7901 = vpop.f32.mrf.mxu0
        %v7902 = vpop.f32.mrf.mxu0
        %v7903 = vadd.f32 0.0, %v7902
        %v7904 = vpop.f32.mrf.mxu0
        %7905 = vmatprep.mubr.bf16.mxu0 0
        %7906 = vmatmul.mubr.bf16.gmra.mxu0 %v7688
        %v7907 = vpop.f32.mrf.mxu0
        %v7908 = vadd.f32 0.0, %v7907
        %v7909 = vpop.f32.mrf.mxu0
        %v7910 = vpop.f32.mrf.mxu0
        %v7911 = vadd.f32 0.0, %v7910
        %v7912 = vpop.f32.mrf.mxu0
        %7913 = vmatprep.mubr.bf16.mxu0 0
        %7914 = vmatmul.mubr.bf16.gmra.mxu0 %v7691
        %v7915 = vpop.f32.mrf.mxu0
        %v7916 = vadd.f32 0.0, %v7915
        %v7917 = vpop.f32.mrf.mxu0
        %v7918 = vpop.f32.mrf.mxu0
        %v7919 = vadd.f32 0.0, %v7918
        %v7920 = vpop.f32.mrf.mxu0
        %7921 = vmatprep.mubr.bf16.mxu0 0
        %7922 = vmatmul.mubr.bf16.gmra.mxu0 %v7694
        %v7923 = vpop.f32.mrf.mxu0
        %v7924 = vadd.f32 0.0, %v7923
        %v7925 = vpop.f32.mrf.mxu0
        %v7926 = vpop.f32.mrf.mxu0
        %v7927 = vadd.f32 0.0, %v7926
        %v7928 = vpop.f32.mrf.mxu0
        %7929 = vmatprep.mubr.bf16.mxu0 0
        %7930 = vmatmul.mubr.bf16.gmra.mxu0 %v7697
        %v7931 = vpop.f32.mrf.mxu0
        %v7932 = vadd.f32 0.0, %v7931
        %v7933 = vpop.f32.mrf.mxu0
        %v7934 = vpop.f32.mrf.mxu0
        %v7935 = vadd.f32 0.0, %v7934
        %v7936 = vpop.f32.mrf.mxu0
        %7937 = vmatprep.mubr.bf16.mxu0 0
        %7938 = vmatmul.mubr.bf16.gmra.mxu0 %v7700
        %v7939 = vpop.f32.mrf.mxu0
        %v7940 = vadd.f32 0.0, %v7939
        %v7941 = vpop.f32.mrf.mxu0
        %v7942 = vpop.f32.mrf.mxu0
        %v7943 = vadd.f32 0.0, %v7942
        %v7944 = vpop.f32.mrf.mxu0
        %7945 = vmatprep.mubr.bf16.mxu0 0
        %7946 = vmatmul.mubr.bf16.gmra.mxu0 %v7703
        %v7947 = vpop.f32.mrf.mxu0
        %v7948 = vadd.f32 0.0, %v7947
        %v7949 = vpop.f32.mrf.mxu0
        %v7950 = vpop.f32.mrf.mxu0
        %v7951 = vadd.f32 0.0, %v7950
        %v7952 = vpop.f32.mrf.mxu0
        %7953 = vmatprep.mubr.bf16.mxu0 0
        %7954 = vmatmul.mubr.bf16.gmra.mxu0 %v7706
        %v7955 = vpop.f32.mrf.mxu0
        %v7956 = vadd.f32 0.0, %v7955
        %v7957 = vpop.f32.mrf.mxu0
        %v7958 = vpop.f32.mrf.mxu0
        %v7959 = vadd.f32 0.0, %v7958
        %v7960 = vpop.f32.mrf.mxu0
        %7961 = vmatprep.mubr.bf16.mxu0 0
        %7962 = vmatmul.mubr.bf16.gmra.mxu0 %v7709
        %v7963 = vpop.f32.mrf.mxu0
        %v7964 = vadd.f32 0.0, %v7963
        %v7965 = vpop.f32.mrf.mxu0
        %v7966 = vpop.f32.mrf.mxu0
        %v7967 = vadd.f32 0.0, %v7966
        %v7968 = vpop.f32.mrf.mxu0
        %7969 = vmatprep.mubr.bf16.mxu0 0
        %7970 = vmatmul.mubr.bf16.gmra.mxu0 %v7712
        %v7971 = vpop.f32.mrf.mxu0
        %v7972 = vadd.f32 0.0, %v7971
        %v7973 = vpop.f32.mrf.mxu0
        %v7974 = vpop.f32.mrf.mxu0
        %v7975 = vadd.f32 0.0, %v7974
        %v7976 = vpop.f32.mrf.mxu0
        %7977 = vmatprep.mubr.bf16.mxu0 0
        %7978 = vmatmul.mubr.bf16.gmra.mxu0 %v7715
        %v7979 = vpop.f32.mrf.mxu0
        %v7980 = vadd.f32 0.0, %v7979
        %v7981 = vpop.f32.mrf.mxu0
        %v7982 = vpop.f32.mrf.mxu0
        %v7983 = vadd.f32 0.0, %v7982
        %v7984 = vpop.f32.mrf.mxu0
        %7985 = vmatprep.mubr.bf16.mxu0 0
        %7986 = vmatmul.mubr.bf16.gmra.mxu0 %v7718
        %v7987 = vpop.f32.mrf.mxu0
        %v7988 = vadd.f32 0.0, %v7987
        %v7989 = vpop.f32.mrf.mxu0
        %v7990 = vpop.f32.mrf.mxu0
        %v7991 = vadd.f32 0.0, %v7990
        %v7992 = vpop.f32.mrf.mxu0
        %7993 = vmatprep.mubr.bf16.mxu0 0
        %7994 = vmatmul.mubr.bf16.gmra.mxu0 %v7721
        %v7995 = vpop.f32.mrf.mxu0
        %v7996 = vadd.f32 0.0, %v7995
        %v7997 = vpop.f32.mrf.mxu0
        %v7998 = vpop.f32.mrf.mxu0
        %v7999 = vadd.f32 0.0, %v7998
        %v8000 = vpop.f32.mrf.mxu0
        %8001 = vmatprep.mubr.bf16.mxu0 0
        %8002 = vmatmul.mubr.bf16.gmra.mxu0 %v7724
        %v8003 = vpop.f32.mrf.mxu0
        %v8004 = vadd.f32 0.0, %v8003
        %v8005 = vpop.f32.mrf.mxu0
        %v8006 = vpop.f32.mrf.mxu0
        %v8007 = vadd.f32 0.0, %v8006
        %v8008 = vpop.f32.mrf.mxu0
        %8009 = vmatprep.mubr.bf16.mxu0 0
        %8010 = vmatmul.mubr.bf16.gmra.mxu0 %v7727
        %v8011 = vpop.f32.mrf.mxu0
        %v8012 = vadd.f32 0.0, %v8011
        %v8013 = vpop.f32.mrf.mxu0
        %v8014 = vpop.f32.mrf.mxu0
        %v8015 = vadd.f32 0.0, %v8014
        %v8016 = vpop.f32.mrf.mxu0
        %8017 = vdwg.mxu0
        %v8018 = vadd.f32 %v7335, %v7764
        %v8019 = vadd.f32 %v7336, %v7767
        %v8020 = vadd.f32 %v7337, %v7772
        %v8021 = vadd.f32 %v7338, %v7775
        %v8022 = vadd.f32 %v7339, %v7780
        %v8023 = vadd.f32 %v7340, %v7783
        %v8024 = vadd.f32 %v7341, %v7788
        %v8025 = vadd.f32 %v7342, %v7791
        %v8026 = vadd.f32 %v7343, %v7796
        %v8027 = vadd.f32 %v7344, %v7799
        %v8028 = vadd.f32 %v7345, %v7804
        %v8029 = vadd.f32 %v7346, %v7807
        %v8030 = vadd.f32 %v7347, %v7812
        %v8031 = vadd.f32 %v7348, %v7815
        %v8032 = vadd.f32 %v7349, %v7820
        %v8033 = vadd.f32 %v7350, %v7823
        %v8034 = vadd.f32 %v7351, %v7828
        %v8035 = vadd.f32 %v7352, %v7831
        %v8036 = vadd.f32 %v7353, %v7836
        %v8037 = vadd.f32 %v7354, %v7839
        %v8038 = vadd.f32 %v7355, %v7844
        %v8039 = vadd.f32 %v7356, %v7847
        %v8040 = vadd.f32 %v7357, %v7852
        %v8041 = vadd.f32 %v7358, %v7855
        %v8042 = vadd.f32 %v7359, %v7860
        %v8043 = vadd.f32 %v7360, %v7863
        %v8044 = vadd.f32 %v7361, %v7868
        %v8045 = vadd.f32 %v7362, %v7871
        %v8046 = vadd.f32 %v7363, %v7876
        %v8047 = vadd.f32 %v7364, %v7879
        %v8048 = vadd.f32 %v7365, %v7884
        %v8049 = vadd.f32 %v7366, %v7887
        %v8050 = vadd.f32 %v7367, %v7892
        %v8051 = vadd.f32 %v7368, %v7895
        %v8052 = vadd.f32 %v7369, %v7900
        %v8053 = vadd.f32 %v7370, %v7903
        %v8054 = vadd.f32 %v7371, %v7908
        %v8055 = vadd.f32 %v7372, %v7911
        %v8056 = vadd.f32 %v7373, %v7916
        %v8057 = vadd.f32 %v7374, %v7919
        %v8058 = vadd.f32 %v7375, %v7924
        %v8059 = vadd.f32 %v7376, %v7927
        %v8060 = vadd.f32 %v7377, %v7932
        %v8061 = vadd.f32 %v7378, %v7935
        %v8062 = vadd.f32 %v7379, %v7940
        %v8063 = vadd.f32 %v7380, %v7943
        %v8064 = vadd.f32 %v7381, %v7948
        %v8065 = vadd.f32 %v7382, %v7951
        %v8066 = vadd.f32 %v7383, %v7956
        %v8067 = vadd.f32 %v7384, %v7959
        %v8068 = vadd.f32 %v7385, %v7964
        %v8069 = vadd.f32 %v7386, %v7967
        %v8070 = vadd.f32 %v7387, %v7972
        %v8071 = vadd.f32 %v7388, %v7975
        %v8072 = vadd.f32 %v7389, %v7980
        %v8073 = vadd.f32 %v7390, %v7983
        %v8074 = vadd.f32 %v7391, %v7988
        %v8075 = vadd.f32 %v7392, %v7991
        %v8076 = vadd.f32 %v7393, %v7996
        %v8077 = vadd.f32 %v7394, %v7999
        %v8078 = vadd.f32 %v7395, %v8004
        %v8079 = vadd.f32 %v7396, %v8007
        %v8080 = vadd.f32 %v7397, %v8012
        %v8081 = vadd.f32 %v7398, %v8015
        %v8082 = vld [vmem:[%s215] sm:$0xff]
        %v8083 = vld [vmem:[%s215 + $0x8] sm:$0xff]
        %v8084 = vld [vmem:[%s215 + $0x10] sm:$0xff]
        %v8085 = vld [vmem:[%s215 + $0x18] sm:$0xff]
        %v8086 = vld [vmem:[%s215 + $0x20] sm:$0xff]
        %v8087 = vld [vmem:[%s215 + $0x28] sm:$0xff]
        %v8088 = vld [vmem:[%s215 + $0x30] sm:$0xff]
        %v8089 = vld [vmem:[%s215 + $0x38] sm:$0xff]
        %v8090 = vld [vmem:[%s215 + $0x40] sm:$0xff]
        %v8091 = vld [vmem:[%s215 + $0x48] sm:$0xff]
        %v8092 = vld [vmem:[%s215 + $0x50] sm:$0xff]
        %v8093 = vld [vmem:[%s215 + $0x58] sm:$0xff]
        %v8094 = vld [vmem:[%s215 + $0x60] sm:$0xff]
        %v8095 = vld [vmem:[%s215 + $0x68] sm:$0xff]
        %v8096 = vld [vmem:[%s215 + $0x70] sm:$0xff]
        %v8097 = vld [vmem:[%s215 + $0x78] sm:$0xff]
        %v8098 = vld [vmem:[%s215 + $0x80] sm:$0xff]
        %v8099 = vld [vmem:[%s215 + $0x88] sm:$0xff]
        %v8100 = vld [vmem:[%s215 + $0x90] sm:$0xff]
        %v8101 = vld [vmem:[%s215 + $0x98] sm:$0xff]
        %v8102 = vld [vmem:[%s215 + $0xa0] sm:$0xff]
        %v8103 = vld [vmem:[%s215 + $0xa8] sm:$0xff]
        %v8104 = vld [vmem:[%s215 + $0xb0] sm:$0xff]
        %v8105 = vld [vmem:[%s215 + $0xb8] sm:$0xff]
        %v8106 = vld [vmem:[%s215 + $0xc0] sm:$0xff]
        %v8107 = vld [vmem:[%s215 + $0xc8] sm:$0xff]
        %v8108 = vld [vmem:[%s215 + $0xd0] sm:$0xff]
        %v8109 = vld [vmem:[%s215 + $0xd8] sm:$0xff]
        %v8110 = vld [vmem:[%s215 + $0xe0] sm:$0xff]
        %v8111 = vld [vmem:[%s215 + $0xe8] sm:$0xff]
        %v8112 = vld [vmem:[%s215 + $0xf0] sm:$0xff]
        %v8113 = vld [vmem:[%s215 + $0xf8] sm:$0xff]
        %v8114 = vld [vmem:[%s215 + $0x100] sm:$0xff]
        %v8115 = vld [vmem:[%s215 + $0x108] sm:$0xff]
        %v8116 = vld [vmem:[%s215 + $0x110] sm:$0xff]
        %v8117 = vld [vmem:[%s215 + $0x118] sm:$0xff]
        %v8118 = vld [vmem:[%s215 + $0x120] sm:$0xff]
        %v8119 = vld [vmem:[%s215 + $0x128] sm:$0xff]
        %v8120 = vld [vmem:[%s215 + $0x130] sm:$0xff]
        %v8121 = vld [vmem:[%s215 + $0x138] sm:$0xff]
        %v8122 = vld [vmem:[%s215 + $0x140] sm:$0xff]
        %v8123 = vld [vmem:[%s215 + $0x148] sm:$0xff]
        %v8124 = vld [vmem:[%s215 + $0x150] sm:$0xff]
        %v8125 = vld [vmem:[%s215 + $0x158] sm:$0xff]
        %v8126 = vld [vmem:[%s215 + $0x160] sm:$0xff]
        %v8127 = vld [vmem:[%s215 + $0x168] sm:$0xff]
        %v8128 = vld [vmem:[%s215 + $0x170] sm:$0xff]
        %v8129 = vld [vmem:[%s215 + $0x178] sm:$0xff]
        %v8130 = vld [vmem:[%s215 + $0x180] sm:$0xff]
        %v8131 = vld [vmem:[%s215 + $0x188] sm:$0xff]
        %v8132 = vld [vmem:[%s215 + $0x190] sm:$0xff]
        %v8133 = vld [vmem:[%s215 + $0x198] sm:$0xff]
        %v8134 = vld [vmem:[%s215 + $0x1a0] sm:$0xff]
        %v8135 = vld [vmem:[%s215 + $0x1a8] sm:$0xff]
        %v8136 = vld [vmem:[%s215 + $0x1b0] sm:$0xff]
        %v8137 = vld [vmem:[%s215 + $0x1b8] sm:$0xff]
        %v8138 = vld [vmem:[%s215 + $0x1c0] sm:$0xff]
        %v8139 = vld [vmem:[%s215 + $0x1c8] sm:$0xff]
        %v8140 = vld [vmem:[%s215 + $0x1d0] sm:$0xff]
        %v8141 = vld [vmem:[%s215 + $0x1d8] sm:$0xff]
        %v8142 = vld [vmem:[%s215 + $0x1e0] sm:$0xff]
        %v8143 = vld [vmem:[%s215 + $0x1e8] sm:$0xff]
        %v8144 = vld [vmem:[%s215 + $0x1f0] sm:$0xff]
        %v8145 = vld [vmem:[%s215 + $0x1f8] sm:$0xff]
        %v8146 = vpack.c.bf16 %v8083, %v8082
        %v8147 = vpack.c.bf16 %v8085, %v8084
        %v8148 = vpack.c.bf16 %v8087, %v8086
        %v8149 = vpack.c.bf16 %v8089, %v8088
        %v8150 = vpack.c.bf16 %v8091, %v8090
        %v8151 = vpack.c.bf16 %v8093, %v8092
        %v8152 = vpack.c.bf16 %v8095, %v8094
        %v8153 = vpack.c.bf16 %v8097, %v8096
        %v8154 = vpack.c.bf16 %v8099, %v8098
        %v8155 = vpack.c.bf16 %v8101, %v8100
        %v8156 = vpack.c.bf16 %v8103, %v8102
        %v8157 = vpack.c.bf16 %v8105, %v8104
        %v8158 = vpack.c.bf16 %v8107, %v8106
        %v8159 = vpack.c.bf16 %v8109, %v8108
        %v8160 = vpack.c.bf16 %v8111, %v8110
        %v8161 = vpack.c.bf16 %v8113, %v8112
        %v8162 = vpack.c.bf16 %v8115, %v8114
        %v8163 = vpack.c.bf16 %v8117, %v8116
        %v8164 = vpack.c.bf16 %v8119, %v8118
        %v8165 = vpack.c.bf16 %v8121, %v8120
        %v8166 = vpack.c.bf16 %v8123, %v8122
        %v8167 = vpack.c.bf16 %v8125, %v8124
        %v8168 = vpack.c.bf16 %v8127, %v8126
        %v8169 = vpack.c.bf16 %v8129, %v8128
        %v8170 = vpack.c.bf16 %v8131, %v8130
        %v8171 = vpack.c.bf16 %v8133, %v8132
        %v8172 = vpack.c.bf16 %v8135, %v8134
        %v8173 = vpack.c.bf16 %v8137, %v8136
        %v8174 = vpack.c.bf16 %v8139, %v8138
        %v8175 = vpack.c.bf16 %v8141, %v8140
        %v8176 = vpack.c.bf16 %v8143, %v8142
        %v8177 = vpack.c.bf16 %v8145, %v8144
        %v8178 = vld [vmem:[%s2] sm:$0xf]
        %v8179 = vld [vmem:[%s2 + $0x4] sm:$0xf]
        %v8182 = vunpack.c.l.b16 %v8178
        %v8183 = vunpack.c.l.b16 %v8179
        %v8184 = vpack.c.b16 %v8183, %v8182
        %v8187 = vsel %vm2367, %v8146, 0
        %v8190 = vsel %vm2367, %v8147, 0
        %v8193 = vsel %vm2367, %v8148, 0
        %v8196 = vsel %vm2367, %v8149, 0
        %v8199 = vsel %vm2367, %v8150, 0
        %v8202 = vsel %vm2367, %v8151, 0
        %v8205 = vsel %vm2367, %v8152, 0
        %v8208 = vsel %vm2367, %v8153, 0
        %v8211 = vsel %vm2367, %v8154, 0
        %v8214 = vsel %vm2367, %v8155, 0
        %v8217 = vsel %vm2367, %v8156, 0
        %v8220 = vsel %vm2367, %v8157, 0
        %v8223 = vsel %vm2367, %v8158, 0
        %v8226 = vsel %vm2367, %v8159, 0
        %v8229 = vsel %vm2367, %v8160, 0
        %v8232 = vsel %vm2367, %v8161, 0
        %v8235 = vsel %vm2367, %v8162, 0
        %v8238 = vsel %vm2367, %v8163, 0
        %v8241 = vsel %vm2367, %v8164, 0
        %v8244 = vsel %vm2367, %v8165, 0
        %v8247 = vsel %vm2367, %v8166, 0
        %v8250 = vsel %vm2367, %v8167, 0
        %v8253 = vsel %vm2367, %v8168, 0
        %v8256 = vsel %vm2367, %v8169, 0
        %v8259 = vsel %vm2367, %v8170, 0
        %v8262 = vsel %vm2367, %v8171, 0
        %v8265 = vsel %vm2367, %v8172, 0
        %v8268 = vsel %vm2367, %v8173, 0
        %v8271 = vsel %vm2367, %v8174, 0
        %v8274 = vsel %vm2367, %v8175, 0
        %v8277 = vsel %vm2367, %v8176, 0
        %v8280 = vsel %vm2367, %v8177, 0
        %8282 = vmatprep.subr.bf16.mxu0 0
        %8283 = vmatpush1.bf16.msra.mxu0 0
        %8284 = vmatprep.subr.bf16.mxu0 0
        %8285 = vmatpush1.bf16.msra.mxu0 0
        %8286 = vmatprep.subr.bf16.mxu0 0
        %8287 = vmatpush1.bf16.msra.mxu0 0
        %8288 = vmatprep.subr.bf16.mxu0 0
        %8289 = vmatpush1.bf16.msra.mxu0 0
        %8290 = vmatprep.subr.bf16.mxu0 0
        %8291 = vmatpush1.bf16.msra.mxu0 0
        %8292 = vmatprep.subr.bf16.mxu0 0
        %8293 = vmatpush1.bf16.msra.mxu0 0
        %8294 = vmatprep.subr.bf16.mxu0 0
        %8295 = vmatpush1.bf16.msra.mxu0 0
        %8296 = vmatprep.subr.bf16.mxu0 0
        %8297 = vmatpush1.bf16.msra.mxu0 %v8184
        %8298 = vmatprep.subr.bf16.mxu0 0
        %8299 = vmatpush2.bf16.msra.mxu0 0
        %8300 = vmatprep.subr.bf16.mxu0 0
        %8301 = vmatpush2.bf16.msra.mxu0 0
        %8302 = vmatprep.subr.bf16.mxu0 0
        %8303 = vmatpush2.bf16.msra.mxu0 0
        %8304 = vmatprep.subr.bf16.mxu0 0
        %8305 = vmatpush2.bf16.msra.mxu0 0
        %8306 = vmatprep.subr.bf16.mxu0 0
        %8307 = vmatpush2.bf16.msra.mxu0 0
        %8308 = vmatprep.subr.bf16.mxu0 0
        %8309 = vmatpush2.bf16.msra.mxu0 0
        %8310 = vmatprep.subr.bf16.mxu0 0
        %8311 = vmatpush2.bf16.msra.mxu0 0
        %8312 = vmatprep.subr.bf16.mxu0 0
        %8313 = vmatpush2.bf16.msra.mxu0 0
        %8314 = vmatprep.mubr.bf16.mxu0 0
        %8315 = vmatmul.mubr.bf16.gmra.mxu0 %v8187
        %v8316 = vpop.f32.mrf.mxu0
        %v8317 = vadd.f32 0.0, %v8316
        %v8318 = vpop.f32.mrf.mxu0
        %v8319 = vpop.f32.mrf.mxu0
        %v8320 = vadd.f32 0.0, %v8319
        %v8321 = vpop.f32.mrf.mxu0
        %8322 = vmatprep.mubr.bf16.mxu0 0
        %8323 = vmatmul.mubr.bf16.gmra.mxu0 %v8190
        %v8324 = vpop.f32.mrf.mxu0
        %v8325 = vadd.f32 0.0, %v8324
        %v8326 = vpop.f32.mrf.mxu0
        %v8327 = vpop.f32.mrf.mxu0
        %v8328 = vadd.f32 0.0, %v8327
        %v8329 = vpop.f32.mrf.mxu0
        %8330 = vmatprep.mubr.bf16.mxu0 0
        %8331 = vmatmul.mubr.bf16.gmra.mxu0 %v8193
        %v8332 = vpop.f32.mrf.mxu0
        %v8333 = vadd.f32 0.0, %v8332
        %v8334 = vpop.f32.mrf.mxu0
        %v8335 = vpop.f32.mrf.mxu0
        %v8336 = vadd.f32 0.0, %v8335
        %v8337 = vpop.f32.mrf.mxu0
        %8338 = vmatprep.mubr.bf16.mxu0 0
        %8339 = vmatmul.mubr.bf16.gmra.mxu0 %v8196
        %v8340 = vpop.f32.mrf.mxu0
        %v8341 = vadd.f32 0.0, %v8340
        %v8342 = vpop.f32.mrf.mxu0
        %v8343 = vpop.f32.mrf.mxu0
        %v8344 = vadd.f32 0.0, %v8343
        %v8345 = vpop.f32.mrf.mxu0
        %8346 = vmatprep.mubr.bf16.mxu0 0
        %8347 = vmatmul.mubr.bf16.gmra.mxu0 %v8199
        %v8348 = vpop.f32.mrf.mxu0
        %v8349 = vadd.f32 0.0, %v8348
        %v8350 = vpop.f32.mrf.mxu0
        %v8351 = vpop.f32.mrf.mxu0
        %v8352 = vadd.f32 0.0, %v8351
        %v8353 = vpop.f32.mrf.mxu0
        %8354 = vmatprep.mubr.bf16.mxu0 0
        %8355 = vmatmul.mubr.bf16.gmra.mxu0 %v8202
        %v8356 = vpop.f32.mrf.mxu0
        %v8357 = vadd.f32 0.0, %v8356
        %v8358 = vpop.f32.mrf.mxu0
        %v8359 = vpop.f32.mrf.mxu0
        %v8360 = vadd.f32 0.0, %v8359
        %v8361 = vpop.f32.mrf.mxu0
        %8362 = vmatprep.mubr.bf16.mxu0 0
        %8363 = vmatmul.mubr.bf16.gmra.mxu0 %v8205
        %v8364 = vpop.f32.mrf.mxu0
        %v8365 = vadd.f32 0.0, %v8364
        %v8366 = vpop.f32.mrf.mxu0
        %v8367 = vpop.f32.mrf.mxu0
        %v8368 = vadd.f32 0.0, %v8367
        %v8369 = vpop.f32.mrf.mxu0
        %8370 = vmatprep.mubr.bf16.mxu0 0
        %8371 = vmatmul.mubr.bf16.gmra.mxu0 %v8208
        %v8372 = vpop.f32.mrf.mxu0
        %v8373 = vadd.f32 0.0, %v8372
        %v8374 = vpop.f32.mrf.mxu0
        %v8375 = vpop.f32.mrf.mxu0
        %v8376 = vadd.f32 0.0, %v8375
        %v8377 = vpop.f32.mrf.mxu0
        %8378 = vmatprep.mubr.bf16.mxu0 0
        %8379 = vmatmul.mubr.bf16.gmra.mxu0 %v8211
        %v8380 = vpop.f32.mrf.mxu0
        %v8381 = vadd.f32 0.0, %v8380
        %v8382 = vpop.f32.mrf.mxu0
        %v8383 = vpop.f32.mrf.mxu0
        %v8384 = vadd.f32 0.0, %v8383
        %v8385 = vpop.f32.mrf.mxu0
        %8386 = vmatprep.mubr.bf16.mxu0 0
        %8387 = vmatmul.mubr.bf16.gmra.mxu0 %v8214
        %v8388 = vpop.f32.mrf.mxu0
        %v8389 = vadd.f32 0.0, %v8388
        %v8390 = vpop.f32.mrf.mxu0
        %v8391 = vpop.f32.mrf.mxu0
        %v8392 = vadd.f32 0.0, %v8391
        %v8393 = vpop.f32.mrf.mxu0
        %8394 = vmatprep.mubr.bf16.mxu0 0
        %8395 = vmatmul.mubr.bf16.gmra.mxu0 %v8217
        %v8396 = vpop.f32.mrf.mxu0
        %v8397 = vadd.f32 0.0, %v8396
        %v8398 = vpop.f32.mrf.mxu0
        %v8399 = vpop.f32.mrf.mxu0
        %v8400 = vadd.f32 0.0, %v8399
        %v8401 = vpop.f32.mrf.mxu0
        %8402 = vmatprep.mubr.bf16.mxu0 0
        %8403 = vmatmul.mubr.bf16.gmra.mxu0 %v8220
        %v8404 = vpop.f32.mrf.mxu0
        %v8405 = vadd.f32 0.0, %v8404
        %v8406 = vpop.f32.mrf.mxu0
        %v8407 = vpop.f32.mrf.mxu0
        %v8408 = vadd.f32 0.0, %v8407
        %v8409 = vpop.f32.mrf.mxu0
        %8410 = vmatprep.mubr.bf16.mxu0 0
        %8411 = vmatmul.mubr.bf16.gmra.mxu0 %v8223
        %v8412 = vpop.f32.mrf.mxu0
        %v8413 = vadd.f32 0.0, %v8412
        %v8414 = vpop.f32.mrf.mxu0
        %v8415 = vpop.f32.mrf.mxu0
        %v8416 = vadd.f32 0.0, %v8415
        %v8417 = vpop.f32.mrf.mxu0
        %8418 = vmatprep.mubr.bf16.mxu0 0
        %8419 = vmatmul.mubr.bf16.gmra.mxu0 %v8226
        %v8420 = vpop.f32.mrf.mxu0
        %v8421 = vadd.f32 0.0, %v8420
        %v8422 = vpop.f32.mrf.mxu0
        %v8423 = vpop.f32.mrf.mxu0
        %v8424 = vadd.f32 0.0, %v8423
        %v8425 = vpop.f32.mrf.mxu0
        %8426 = vmatprep.mubr.bf16.mxu0 0
        %8427 = vmatmul.mubr.bf16.gmra.mxu0 %v8229
        %v8428 = vpop.f32.mrf.mxu0
        %v8429 = vadd.f32 0.0, %v8428
        %v8430 = vpop.f32.mrf.mxu0
        %v8431 = vpop.f32.mrf.mxu0
        %v8432 = vadd.f32 0.0, %v8431
        %v8433 = vpop.f32.mrf.mxu0
        %8434 = vmatprep.mubr.bf16.mxu0 0
        %8435 = vmatmul.mubr.bf16.gmra.mxu0 %v8232
        %v8436 = vpop.f32.mrf.mxu0
        %v8437 = vadd.f32 0.0, %v8436
        %v8438 = vpop.f32.mrf.mxu0
        %v8439 = vpop.f32.mrf.mxu0
        %v8440 = vadd.f32 0.0, %v8439
        %v8441 = vpop.f32.mrf.mxu0
        %8442 = vmatprep.mubr.bf16.mxu0 0
        %8443 = vmatmul.mubr.bf16.gmra.mxu0 %v8235
        %v8444 = vpop.f32.mrf.mxu0
        %v8445 = vadd.f32 0.0, %v8444
        %v8446 = vpop.f32.mrf.mxu0
        %v8447 = vpop.f32.mrf.mxu0
        %v8448 = vadd.f32 0.0, %v8447
        %v8449 = vpop.f32.mrf.mxu0
        %8450 = vmatprep.mubr.bf16.mxu0 0
        %8451 = vmatmul.mubr.bf16.gmra.mxu0 %v8238
        %v8452 = vpop.f32.mrf.mxu0
        %v8453 = vadd.f32 0.0, %v8452
        %v8454 = vpop.f32.mrf.mxu0
        %v8455 = vpop.f32.mrf.mxu0
        %v8456 = vadd.f32 0.0, %v8455
        %v8457 = vpop.f32.mrf.mxu0
        %8458 = vmatprep.mubr.bf16.mxu0 0
        %8459 = vmatmul.mubr.bf16.gmra.mxu0 %v8241
        %v8460 = vpop.f32.mrf.mxu0
        %v8461 = vadd.f32 0.0, %v8460
        %v8462 = vpop.f32.mrf.mxu0
        %v8463 = vpop.f32.mrf.mxu0
        %v8464 = vadd.f32 0.0, %v8463
        %v8465 = vpop.f32.mrf.mxu0
        %8466 = vmatprep.mubr.bf16.mxu0 0
        %8467 = vmatmul.mubr.bf16.gmra.mxu0 %v8244
        %v8468 = vpop.f32.mrf.mxu0
        %v8469 = vadd.f32 0.0, %v8468
        %v8470 = vpop.f32.mrf.mxu0
        %v8471 = vpop.f32.mrf.mxu0
        %v8472 = vadd.f32 0.0, %v8471
        %v8473 = vpop.f32.mrf.mxu0
        %8474 = vmatprep.mubr.bf16.mxu0 0
        %8475 = vmatmul.mubr.bf16.gmra.mxu0 %v8247
        %v8476 = vpop.f32.mrf.mxu0
        %v8477 = vadd.f32 0.0, %v8476
        %v8478 = vpop.f32.mrf.mxu0
        %v8479 = vpop.f32.mrf.mxu0
        %v8480 = vadd.f32 0.0, %v8479
        %v8481 = vpop.f32.mrf.mxu0
        %8482 = vmatprep.mubr.bf16.mxu0 0
        %8483 = vmatmul.mubr.bf16.gmra.mxu0 %v8250
        %v8484 = vpop.f32.mrf.mxu0
        %v8485 = vadd.f32 0.0, %v8484
        %v8486 = vpop.f32.mrf.mxu0
        %v8487 = vpop.f32.mrf.mxu0
        %v8488 = vadd.f32 0.0, %v8487
        %v8489 = vpop.f32.mrf.mxu0
        %8490 = vmatprep.mubr.bf16.mxu0 0
        %8491 = vmatmul.mubr.bf16.gmra.mxu0 %v8253
        %v8492 = vpop.f32.mrf.mxu0
        %v8493 = vadd.f32 0.0, %v8492
        %v8494 = vpop.f32.mrf.mxu0
        %v8495 = vpop.f32.mrf.mxu0
        %v8496 = vadd.f32 0.0, %v8495
        %v8497 = vpop.f32.mrf.mxu0
        %8498 = vmatprep.mubr.bf16.mxu0 0
        %8499 = vmatmul.mubr.bf16.gmra.mxu0 %v8256
        %v8500 = vpop.f32.mrf.mxu0
        %v8501 = vadd.f32 0.0, %v8500
        %v8502 = vpop.f32.mrf.mxu0
        %v8503 = vpop.f32.mrf.mxu0
        %v8504 = vadd.f32 0.0, %v8503
        %v8505 = vpop.f32.mrf.mxu0
        %8506 = vmatprep.mubr.bf16.mxu0 0
        %8507 = vmatmul.mubr.bf16.gmra.mxu0 %v8259
        %v8508 = vpop.f32.mrf.mxu0
        %v8509 = vadd.f32 0.0, %v8508
        %v8510 = vpop.f32.mrf.mxu0
        %v8511 = vpop.f32.mrf.mxu0
        %v8512 = vadd.f32 0.0, %v8511
        %v8513 = vpop.f32.mrf.mxu0
        %8514 = vmatprep.mubr.bf16.mxu0 0
        %8515 = vmatmul.mubr.bf16.gmra.mxu0 %v8262
        %v8516 = vpop.f32.mrf.mxu0
        %v8517 = vadd.f32 0.0, %v8516
        %v8518 = vpop.f32.mrf.mxu0
        %v8519 = vpop.f32.mrf.mxu0
        %v8520 = vadd.f32 0.0, %v8519
        %v8521 = vpop.f32.mrf.mxu0
        %8522 = vmatprep.mubr.bf16.mxu0 0
        %8523 = vmatmul.mubr.bf16.gmra.mxu0 %v8265
        %v8524 = vpop.f32.mrf.mxu0
        %v8525 = vadd.f32 0.0, %v8524
        %v8526 = vpop.f32.mrf.mxu0
        %v8527 = vpop.f32.mrf.mxu0
        %v8528 = vadd.f32 0.0, %v8527
        %v8529 = vpop.f32.mrf.mxu0
        %8530 = vmatprep.mubr.bf16.mxu0 0
        %8531 = vmatmul.mubr.bf16.gmra.mxu0 %v8268
        %v8532 = vpop.f32.mrf.mxu0
        %v8533 = vadd.f32 0.0, %v8532
        %v8534 = vpop.f32.mrf.mxu0
        %v8535 = vpop.f32.mrf.mxu0
        %v8536 = vadd.f32 0.0, %v8535
        %v8537 = vpop.f32.mrf.mxu0
        %8538 = vmatprep.mubr.bf16.mxu0 0
        %8539 = vmatmul.mubr.bf16.gmra.mxu0 %v8271
        %v8540 = vpop.f32.mrf.mxu0
        %v8541 = vadd.f32 0.0, %v8540
        %v8542 = vpop.f32.mrf.mxu0
        %v8543 = vpop.f32.mrf.mxu0
        %v8544 = vadd.f32 0.0, %v8543
        %v8545 = vpop.f32.mrf.mxu0
        %8546 = vmatprep.mubr.bf16.mxu0 0
        %8547 = vmatmul.mubr.bf16.gmra.mxu0 %v8274
        %v8548 = vpop.f32.mrf.mxu0
        %v8549 = vadd.f32 0.0, %v8548
        %v8550 = vpop.f32.mrf.mxu0
        %v8551 = vpop.f32.mrf.mxu0
        %v8552 = vadd.f32 0.0, %v8551
        %v8553 = vpop.f32.mrf.mxu0
        %8554 = vmatprep.mubr.bf16.mxu0 0
        %8555 = vmatmul.mubr.bf16.gmra.mxu0 %v8277
        %v8556 = vpop.f32.mrf.mxu0
        %v8557 = vadd.f32 0.0, %v8556
        %v8558 = vpop.f32.mrf.mxu0
        %v8559 = vpop.f32.mrf.mxu0
        %v8560 = vadd.f32 0.0, %v8559
        %v8561 = vpop.f32.mrf.mxu0
        %8562 = vmatprep.mubr.bf16.mxu0 0
        %8563 = vmatmul.mubr.bf16.gmra.mxu0 %v8280
        %v8564 = vpop.f32.mrf.mxu0
        %v8565 = vadd.f32 0.0, %v8564
        %v8566 = vpop.f32.mrf.mxu0
        %v8567 = vpop.f32.mrf.mxu0
        %v8568 = vadd.f32 0.0, %v8567
        %v8569 = vpop.f32.mrf.mxu0
        %8570 = vdwg.mxu0
        %v8571 = vmul.f32 %v8018, %v8317
        %v8572 = vmul.f32 %v8019, %v8320
        %v8573 = vmul.f32 %v8020, %v8325
        %v8574 = vmul.f32 %v8021, %v8328
        %v8575 = vmul.f32 %v8022, %v8333
        %v8576 = vmul.f32 %v8023, %v8336
        %v8577 = vmul.f32 %v8024, %v8341
        %v8578 = vmul.f32 %v8025, %v8344
        %v8579 = vmul.f32 %v8026, %v8349
        %v8580 = vmul.f32 %v8027, %v8352
        %v8581 = vmul.f32 %v8028, %v8357
        %v8582 = vmul.f32 %v8029, %v8360
        %v8583 = vmul.f32 %v8030, %v8365
        %v8584 = vmul.f32 %v8031, %v8368
        %v8585 = vmul.f32 %v8032, %v8373
        %v8586 = vmul.f32 %v8033, %v8376
        %v8587 = vmul.f32 %v8034, %v8381
        %v8588 = vmul.f32 %v8035, %v8384
        %v8589 = vmul.f32 %v8036, %v8389
        %v8590 = vmul.f32 %v8037, %v8392
        %v8591 = vmul.f32 %v8038, %v8397
        %v8592 = vmul.f32 %v8039, %v8400
        %v8593 = vmul.f32 %v8040, %v8405
        %v8594 = vmul.f32 %v8041, %v8408
        %v8595 = vmul.f32 %v8042, %v8413
        %v8596 = vmul.f32 %v8043, %v8416
        %v8597 = vmul.f32 %v8044, %v8421
        %v8598 = vmul.f32 %v8045, %v8424
        %v8599 = vmul.f32 %v8046, %v8429
        %v8600 = vmul.f32 %v8047, %v8432
        %v8601 = vmul.f32 %v8048, %v8437
        %v8602 = vmul.f32 %v8049, %v8440
        %v8603 = vmul.f32 %v8050, %v8445
        %v8604 = vmul.f32 %v8051, %v8448
        %v8605 = vmul.f32 %v8052, %v8453
        %v8606 = vmul.f32 %v8053, %v8456
        %v8607 = vmul.f32 %v8054, %v8461
        %v8608 = vmul.f32 %v8055, %v8464
        %v8609 = vmul.f32 %v8056, %v8469
        %v8610 = vmul.f32 %v8057, %v8472
        %v8611 = vmul.f32 %v8058, %v8477
        %v8612 = vmul.f32 %v8059, %v8480
        %v8613 = vmul.f32 %v8060, %v8485
        %v8614 = vmul.f32 %v8061, %v8488
        %v8615 = vmul.f32 %v8062, %v8493
        %v8616 = vmul.f32 %v8063, %v8496
        %v8617 = vmul.f32 %v8064, %v8501
        %v8618 = vmul.f32 %v8065, %v8504
        %v8619 = vmul.f32 %v8066, %v8509
        %v8620 = vmul.f32 %v8067, %v8512
        %v8621 = vmul.f32 %v8068, %v8517
        %v8622 = vmul.f32 %v8069, %v8520
        %v8623 = vmul.f32 %v8070, %v8525
        %v8624 = vmul.f32 %v8071, %v8528
        %v8625 = vmul.f32 %v8072, %v8533
        %v8626 = vmul.f32 %v8073, %v8536
        %v8627 = vmul.f32 %v8074, %v8541
        %v8628 = vmul.f32 %v8075, %v8544
        %v8629 = vmul.f32 %v8076, %v8549
        %v8630 = vmul.f32 %v8077, %v8552
        %v8631 = vmul.f32 %v8078, %v8557
        %v8632 = vmul.f32 %v8079, %v8560
        %v8633 = vmul.f32 %v8080, %v8565
        %v8634 = vmul.f32 %v8081, %v8568
        %8635 = vst [vmem:[%s205] sm:$0xff] %v8571
        %8636 = vst [vmem:[%s205 + $0x8] sm:$0xff] %v8572
        %8637 = vst [vmem:[%s205 + $0x10] sm:$0xff] %v8573
        %8638 = vst [vmem:[%s205 + $0x18] sm:$0xff] %v8574
        %8639 = vst [vmem:[%s205 + $0x20] sm:$0xff] %v8575
        %8640 = vst [vmem:[%s205 + $0x28] sm:$0xff] %v8576
        %8641 = vst [vmem:[%s205 + $0x30] sm:$0xff] %v8577
        %8642 = vst [vmem:[%s205 + $0x38] sm:$0xff] %v8578
        %8643 = vst [vmem:[%s205 + $0x40] sm:$0xff] %v8579
        %8644 = vst [vmem:[%s205 + $0x48] sm:$0xff] %v8580
        %8645 = vst [vmem:[%s205 + $0x50] sm:$0xff] %v8581
        %8646 = vst [vmem:[%s205 + $0x58] sm:$0xff] %v8582
        %8647 = vst [vmem:[%s205 + $0x60] sm:$0xff] %v8583
        %8648 = vst [vmem:[%s205 + $0x68] sm:$0xff] %v8584
        %8649 = vst [vmem:[%s205 + $0x70] sm:$0xff] %v8585
        %8650 = vst [vmem:[%s205 + $0x78] sm:$0xff] %v8586
        %8651 = vst [vmem:[%s205 + $0x80] sm:$0xff] %v8587
        %8652 = vst [vmem:[%s205 + $0x88] sm:$0xff] %v8588
        %8653 = vst [vmem:[%s205 + $0x90] sm:$0xff] %v8589
        %8654 = vst [vmem:[%s205 + $0x98] sm:$0xff] %v8590
        %8655 = vst [vmem:[%s205 + $0xa0] sm:$0xff] %v8591
        %8656 = vst [vmem:[%s205 + $0xa8] sm:$0xff] %v8592
        %8657 = vst [vmem:[%s205 + $0xb0] sm:$0xff] %v8593
        %8658 = vst [vmem:[%s205 + $0xb8] sm:$0xff] %v8594
        %8659 = vst [vmem:[%s205 + $0xc0] sm:$0xff] %v8595
        %8660 = vst [vmem:[%s205 + $0xc8] sm:$0xff] %v8596
        %8661 = vst [vmem:[%s205 + $0xd0] sm:$0xff] %v8597
        %8662 = vst [vmem:[%s205 + $0xd8] sm:$0xff] %v8598
        %8663 = vst [vmem:[%s205 + $0xe0] sm:$0xff] %v8599
        %8664 = vst [vmem:[%s205 + $0xe8] sm:$0xff] %v8600
        %8665 = vst [vmem:[%s205 + $0xf0] sm:$0xff] %v8601
        %8666 = vst [vmem:[%s205 + $0xf8] sm:$0xff] %v8602
        %8667 = vst [vmem:[%s205 + $0x100] sm:$0xff] %v8603
        %8668 = vst [vmem:[%s205 + $0x108] sm:$0xff] %v8604
        %8669 = vst [vmem:[%s205 + $0x110] sm:$0xff] %v8605
        %8670 = vst [vmem:[%s205 + $0x118] sm:$0xff] %v8606
        %8671 = vst [vmem:[%s205 + $0x120] sm:$0xff] %v8607
        %8672 = vst [vmem:[%s205 + $0x128] sm:$0xff] %v8608
        %8673 = vst [vmem:[%s205 + $0x130] sm:$0xff] %v8609
        %8674 = vst [vmem:[%s205 + $0x138] sm:$0xff] %v8610
        %8675 = vst [vmem:[%s205 + $0x140] sm:$0xff] %v8611
        %8676 = vst [vmem:[%s205 + $0x148] sm:$0xff] %v8612
        %8677 = vst [vmem:[%s205 + $0x150] sm:$0xff] %v8613
        %8678 = vst [vmem:[%s205 + $0x158] sm:$0xff] %v8614
        %8679 = vst [vmem:[%s205 + $0x160] sm:$0xff] %v8615
        %8680 = vst [vmem:[%s205 + $0x168] sm:$0xff] %v8616
        %8681 = vst [vmem:[%s205 + $0x170] sm:$0xff] %v8617
        %8682 = vst [vmem:[%s205 + $0x178] sm:$0xff] %v8618
        %8683 = vst [vmem:[%s205 + $0x180] sm:$0xff] %v8619
        %8684 = vst [vmem:[%s205 + $0x188] sm:$0xff] %v8620
        %8685 = vst [vmem:[%s205 + $0x190] sm:$0xff] %v8621
        %8686 = vst [vmem:[%s205 + $0x198] sm:$0xff] %v8622
        %8687 = vst [vmem:[%s205 + $0x1a0] sm:$0xff] %v8623
        %8688 = vst [vmem:[%s205 + $0x1a8] sm:$0xff] %v8624
        %8689 = vst [vmem:[%s205 + $0x1b0] sm:$0xff] %v8625
        %8690 = vst [vmem:[%s205 + $0x1b8] sm:$0xff] %v8626
        %8691 = vst [vmem:[%s205 + $0x1c0] sm:$0xff] %v8627
        %8692 = vst [vmem:[%s205 + $0x1c8] sm:$0xff] %v8628
        %8693 = vst [vmem:[%s205 + $0x1d0] sm:$0xff] %v8629
        %8694 = vst [vmem:[%s205 + $0x1d8] sm:$0xff] %v8630
        %8695 = vst [vmem:[%s205 + $0x1e0] sm:$0xff] %v8631
        %8696 = vst [vmem:[%s205 + $0x1e8] sm:$0xff] %v8632
        %8697 = vst [vmem:[%s205 + $0x1f0] sm:$0xff] %v8633
        %8698 = vst [vmem:[%s205 + $0x1f8] sm:$0xff] %v8634
        %s8699 = sand.u32 %s120, 1
        %s8700 = scalar_lea.sflag [#allocation4], %s8699
        %s8701 = sand.u32 %s120, 1
        %s8702 = smul.addr %s8701, 512
        %s8703 = scalar_lea.vmem [#allocation3], %s8702
        // Predicated region
        $region37: #{tpu_custom_call.1} parent=35 // pred_check
          %p8704 = pneg %p130
        $region38: #{tpu_custom_call.1} parent=35 // pred_check_branch
          %8706 = sbr.rel (%p8704) target = $region40
        $region39: #{tpu_custom_call.1} parent=35 // pred_region
          %s8708 = ssub.s32 8192, 8192
          %8709 = vsyncadd %s8700, %s8708
          %s8710 = smul.addr %s18, 64
          %s8711 = smul.addr %s8710, 128
          %s8712 = scalar_lea.hbm %s4, %s8711
          %s8713 = sshll.u32 %s8703, 4
          %s8714 = int_to_ptr.vmem [resolvable:$true] %s8713
          %8719 = dma.vmem_to_hbm [thread:$0]  %s8714, 8192, %s8712, %s8700, 128, 128, 8
        $region40: #{tpu_custom_call.1} parent=35 // pred_fallthru
          _
      $region36: #{tpu_custom_call.1} parent=5 // pred_fallthru
        _
      %p8720 = scmp.le.s32.totalorder 2, %s13
      // Predicated region
      $region41: #{tpu_custom_call.1} parent=5 // pred_check
        %p8721 = pneg %p8720
      $region42: #{tpu_custom_call.1} parent=5 // pred_check_branch
        %8723 = sbr.rel (%p8721) target = $region44
      $region43: #{tpu_custom_call.1} parent=5 // pred_region
        %s8724 = ssub.s32 %s13, 2
        // Predicated region
        $region45: #{tpu_custom_call.1} parent=43 // pred_check
          %p8725 = pneg %p136
        $region46: #{tpu_custom_call.1} parent=43 // pred_check_branch
          %8727 = sbr.rel (%p8725) target = $region48
        $region47: #{tpu_custom_call.1} parent=43 // pred_region
          %s8728 = sand.u32 %s121, 1
          %s8729 = scalar_lea.sflag [#allocation4], %s8728
          %s8730 = sand.u32 %s121, 1
          %s8731 = smul.addr %s8730, 512
          %s8732 = scalar_lea.vmem [#allocation3], %s8731
          %8733 = dma.done %s8729, 8192
        $region48: #{tpu_custom_call.1} parent=43 // pred_fallthru
          _
      $region44: #{tpu_custom_call.1} parent=5 // pred_fallthru
        _
    $region6: #{tpu_custom_call.1} parent=1 // loop_footer
      %s17 = sadd.s32 1, %s13
    $region7: #{tpu_custom_call.1} parent=1 // loop_footer_branch
      %12 = sbr.rel target = $region3
    $region8: #{tpu_custom_call.1} parent=1 // loop_exit
      _
    %8734 = vsyncpa [#allocation4], 1
    %s8735 = scalar_lea.sflag [#allocation4], 1
    %8736 = vsyncpa %s8735, 1

</llo_original>
